<compile_context>
chip_gen: v5e
topology: v5e:2x2
jax: 0.10.0
libtpu: 0.0.40
codegen_flags: <defaults>
</compile_context>

<pallas_src>
import functools

import jax
import jax.numpy as jnp
from jax import lax
from jax.experimental import pallas as pl
from jax.experimental.pallas import tpu as pltpu

DIMS = [2048, 1024, 512, 256, 128, 32, 16]
OUT_DIM = 2
OUT_PAD = 128             # lane-dense fc7 output block; sliced to 2 in wrapper
BN_EPS = 1e-5
N_HIDDEN = len(DIMS) - 1  # 6 Linear(+Dropout+BN)+GELU blocks


def _gelu_exact(z):
    # nn.GELU() default = exact erf-based GELU
    return 0.5 * z * (1.0 + lax.erf(z * jnp.float32(0.7071067811865476)))


def geo_mlp_kernel(x_ref, *refs):
    """refs = 6 * (W'_bf16, b'_f32) + (W7_pad_f32, b7_pad_f32) + (o_ref,)."""
    o_ref = refs[-1]
    params = refs[:-1]
    h = x_ref[...]                                       # (TM, 2048) f32
    for i in range(N_HIDDEN):
        w = params[2 * i][...]                           # (in, out) bf16
        b = params[2 * i + 1][...]                       # (1, out)  f32
        # fc{i+1} + dropout{i+1}(eval = identity) + batch_norm{i+1}(eval, folded)
        z = jnp.dot(h.astype(w.dtype), w,
                    preferred_element_type=jnp.float32) + b
        h = _gelu_exact(z)                               # gelu{i+1}
    w7, b7 = params[-2][...], params[-1][...]            # (16,128)/(1,128) f32
    # fc7 (output padded to 128 lanes for dense stores)
    o_ref[...] = jnp.dot(h, w7, preferred_element_type=jnp.float32) + b7


def init_params(key):
    """Deterministic synthetic parameters with BN(eval) + bias pre-folded.

    Returns the kernel-ready list:
      [W1' (bf16), b1' (f32)] * 6  +  [W7_pad (f32), b7_pad (f32)]
    """
    params = []
    for i in range(N_HIDDEN):
        in_d, out_d = DIMS[i], DIMS[i + 1]
        key, kw, kb, kg, kbeta, km, kv = jax.random.split(key, 7)
        bound = 1.0 / float(in_d) ** 0.5
        w = jax.random.uniform(kw, (in_d, out_d), jnp.float32, -bound, bound)
        b = jax.random.uniform(kb, (1, out_d), jnp.float32, -bound, bound)
        gamma = jax.random.uniform(kg, (1, out_d), jnp.float32, 0.9, 1.1)
        beta = jax.random.uniform(kbeta, (1, out_d), jnp.float32, -0.1, 0.1)
        rmean = jax.random.uniform(km, (1, out_d), jnp.float32, -0.1, 0.1)
        rvar = jax.random.uniform(kv, (1, out_d), jnp.float32, 0.1, 0.4)
        # Fold BatchNorm1d(eval) and the Linear bias (all in f32):
        #   bn(z) = (z - rmean)/sqrt(rvar+eps)*gamma + beta = z*scale + shift
        #   bn(x@W + b) = x @ (W*scale) + (b*scale + shift)
        scale = gamma / jnp.sqrt(rvar + BN_EPS)
        shift = beta - rmean * scale
        w_folded = (w * scale).astype(jnp.bfloat16)      # bf16: halves HBM bytes
        b_folded = b * scale + shift                     # stays f32
        params += [w_folded, b_folded]
    key, kw, kb = jax.random.split(key, 3)
    bound = 1.0 / float(DIMS[-1]) ** 0.5
    w7 = jax.random.uniform(kw, (DIMS[-1], OUT_DIM), jnp.float32, -bound, bound)
    b7 = jax.random.uniform(kb, (1, OUT_DIM), jnp.float32, -bound, bound)
    # Pad fc7 to 128 output lanes so the kernel's store is lane-dense.
    w7p = jnp.zeros((DIMS[-1], OUT_PAD), jnp.float32).at[:, :OUT_DIM].set(w7)
    b7p = jnp.zeros((1, OUT_PAD), jnp.float32).at[:, :OUT_DIM].set(b7)
    params += [w7p, b7p]
    return params


def _round_up(n, m):
    return (n + m - 1) // m * m


@functools.partial(jax.jit, static_argnames=("block_m",))
def geo_predictor(x, params, *, block_m=256):
    batch = x.shape[0]
    # Batch tile: multiple of 8 sublanes (f32), capped at block_m rows.
    tm = min(block_m, _round_up(batch, 8))
    padded = _round_up(batch, tm)
    if padded != batch:
        x = jnp.pad(x, ((0, padded - batch), (0, 0)))
    grid = (padded // tm,)

    x_spec = pl.BlockSpec((tm, DIMS[0]), lambda i: (i, 0))
    # Weights/biases: full-array blocks with a constant index_map -> they stay
    # VMEM-resident across batch tiles (no re-DMA per grid step).
    param_specs = [pl.BlockSpec(p.shape, lambda i: (0, 0)) for p in params]
    out_spec = pl.BlockSpec((tm, OUT_PAD), lambda i: (i, 0))

    out = pl.pallas_call(
        geo_mlp_kernel,
        out_shape=jax.ShapeDtypeStruct((padded, OUT_PAD), jnp.float32),
        grid_spec=pltpu.PrefetchScalarGridSpec(
            num_scalar_prefetch=0,
            grid=grid,
            in_specs=[x_spec] + param_specs,
            out_specs=out_spec,
        ),
        compiler_params=pltpu.CompilerParams(
            dimension_semantics=("parallel",),     # both v7x TensorCores
            vmem_limit_bytes=48 << 20,             # < v7x 64 MiB physical VMEM
        ),
    )(x, *params)
    return out[:batch, :OUT_DIM]


def geo_predictor_ref(x, params):
    """Pure-JAX reference with identical inference math & precision choices
    (bf16 hidden weights / matmul inputs, f32 accumulation, erf GELU)."""
    h = x
    for i in range(N_HIDDEN):
        w, b = params[2 * i], params[2 * i + 1]
        z = jnp.dot(h.astype(w.dtype), w, preferred_element_type=jnp.float32) + b
        h = _gelu_exact(z)
    w7, b7 = params[-2], params[-1]
    out = jnp.dot(h, w7, preferred_element_type=jnp.float32) + b7
    return out[:, :OUT_DIM]


if __name__ == "__main__":
    key = jax.random.PRNGKey(0)
    key, kx = jax.random.split(key)
    batch = 8  # input feature dim (2048) is fixed by the module
    x = jax.random.normal(kx, (batch, DIMS[0]), jnp.float32)
    params = init_params(key)

    out = jax.block_until_ready(geo_predictor(x, params))
    ref = geo_predictor_ref(x, params)

    assert out.shape == (batch, OUT_DIM)
    assert jnp.allclose(out, ref, rtol=1e-2, atol=1e-2), float(
        jnp.max(jnp.abs(out - ref)))
    print("KERNEL_OK")
</pallas_src>

<mosaic_0001>
module attributes {stable_mosaic.version = 11 : i64} {
  func.func @geo_mlp_kernel(%arg0: i32, %arg1: memref<8x2048xf32, #tpu.memory_space<vmem>>, %arg2: memref<2048x1024xbf16, #tpu.memory_space<vmem>>, %arg3: memref<1x1024xf32, #tpu.memory_space<vmem>>, %arg4: memref<1024x512xbf16, #tpu.memory_space<vmem>>, %arg5: memref<1x512xf32, #tpu.memory_space<vmem>>, %arg6: memref<512x256xbf16, #tpu.memory_space<vmem>>, %arg7: memref<1x256xf32, #tpu.memory_space<vmem>>, %arg8: memref<256x128xbf16, #tpu.memory_space<vmem>>, %arg9: memref<1x128xf32, #tpu.memory_space<vmem>>, %arg10: memref<128x32xbf16, #tpu.memory_space<vmem>>, %arg11: memref<1x32xf32, #tpu.memory_space<vmem>>, %arg12: memref<32x16xbf16, #tpu.memory_space<vmem>>, %arg13: memref<1x16xf32, #tpu.memory_space<vmem>>, %arg14: memref<16x128xf32, #tpu.memory_space<vmem>>, %arg15: memref<1x128xf32, #tpu.memory_space<vmem>>, %arg16: memref<8x128xf32, #tpu.memory_space<vmem>>) attributes {dimension_semantics = [#tpu.dimension_semantics<parallel>], iteration_bounds = array<i64: 1>, scalar_prefetch = 0 : i64, scratch_operands = 0 : i64, tpu.core_type = #tpu.core_type<tc>, window_params = [{transform_indices = @transform_0, window_bounds = array<i64: 8, 2048>}, {pipeline_mode = #tpu.pipeline_mode<synchronous>, transform_indices = @transform_1, window_bounds = array<i64: 2048, 1024>}, {pipeline_mode = #tpu.pipeline_mode<synchronous>, transform_indices = @transform_2, window_bounds = array<i64: 1, 1024>}, {pipeline_mode = #tpu.pipeline_mode<synchronous>, transform_indices = @transform_3, window_bounds = array<i64: 1024, 512>}, {pipeline_mode = #tpu.pipeline_mode<synchronous>, transform_indices = @transform_4, window_bounds = array<i64: 1, 512>}, {pipeline_mode = #tpu.pipeline_mode<synchronous>, transform_indices = @transform_5, window_bounds = array<i64: 512, 256>}, {pipeline_mode = #tpu.pipeline_mode<synchronous>, transform_indices = @transform_6, window_bounds = array<i64: 1, 256>}, {pipeline_mode = #tpu.pipeline_mode<synchronous>, transform_indices = @transform_7, window_bounds = array<i64: 256, 128>}, {pipeline_mode = #tpu.pipeline_mode<synchronous>, transform_indices = @transform_8, window_bounds = array<i64: 1, 128>}, {pipeline_mode = #tpu.pipeline_mode<synchronous>, transform_indices = @transform_9, window_bounds = array<i64: 128, 32>}, {pipeline_mode = #tpu.pipeline_mode<synchronous>, transform_indices = @transform_10, window_bounds = array<i64: 1, 32>}, {pipeline_mode = #tpu.pipeline_mode<synchronous>, transform_indices = @transform_11, window_bounds = array<i64: 32, 16>}, {pipeline_mode = #tpu.pipeline_mode<synchronous>, transform_indices = @transform_12, window_bounds = array<i64: 1, 16>}, {pipeline_mode = #tpu.pipeline_mode<synchronous>, transform_indices = @transform_13, window_bounds = array<i64: 16, 128>}, {pipeline_mode = #tpu.pipeline_mode<synchronous>, transform_indices = @transform_14, window_bounds = array<i64: 1, 128>}, {transform_indices = @transform_15, window_bounds = array<i64: 8, 128>}]} {
    %c0 = arith.constant 0 : index
    %c0_0 = arith.constant 0 : index
    %0 = vector.load %arg1[%c0, %c0_0] : memref<8x2048xf32, #tpu.memory_space<vmem>>, vector<8x2048xf32>
    %c0_1 = arith.constant 0 : index
    %c0_2 = arith.constant 0 : index
    %1 = vector.load %arg2[%c0_1, %c0_2] : memref<2048x1024xbf16, #tpu.memory_space<vmem>>, vector<2048x1024xbf16>
    %c0_3 = arith.constant 0 : index
    %c0_4 = arith.constant 0 : index
    %2 = vector.load %arg3[%c0_3, %c0_4] : memref<1x1024xf32, #tpu.memory_space<vmem>>, vector<1x1024xf32>
    %3 = arith.truncf %0 : vector<8x2048xf32> to vector<8x2048xbf16>
    %cst = arith.constant dense<0.000000e+00> : vector<8x1024xf32>
    %4 = tpu.matmul %3, %1, %cst {dimension_numbers = #tpu.dot_dimension_numbers<[1], [0], [0], [1], [0, 0, 1, 1], [], []>} : vector<8x2048xbf16>, vector<2048x1024xbf16>, vector<8x1024xf32> -> vector<8x1024xf32>
    %5 = vector.broadcast %2 : vector<1x1024xf32> to vector<8x1024xf32>
    %6 = arith.addf %4, %5 : vector<8x1024xf32>
    %cst_5 = arith.constant 5.000000e-01 : f32
    %7 = vector.broadcast %cst_5 : f32 to vector<8x1024xf32>
    %8 = arith.mulf %7, %6 : vector<8x1024xf32>
    %cst_6 = arith.constant 0.707106769 : f32
    %9 = vector.broadcast %cst_6 : f32 to vector<8x1024xf32>
    %10 = arith.mulf %6, %9 : vector<8x1024xf32>
    %11 = math.erf %10 : vector<8x1024xf32>
    %cst_7 = arith.constant 1.000000e+00 : f32
    %12 = vector.broadcast %cst_7 : f32 to vector<8x1024xf32>
    %13 = arith.addf %12, %11 : vector<8x1024xf32>
    %14 = arith.mulf %8, %13 : vector<8x1024xf32>
    %c0_8 = arith.constant 0 : index
    %c0_9 = arith.constant 0 : index
    %15 = vector.load %arg4[%c0_8, %c0_9] : memref<1024x512xbf16, #tpu.memory_space<vmem>>, vector<1024x512xbf16>
    %c0_10 = arith.constant 0 : index
    %c0_11 = arith.constant 0 : index
    %16 = vector.load %arg5[%c0_10, %c0_11] : memref<1x512xf32, #tpu.memory_space<vmem>>, vector<1x512xf32>
    %17 = arith.truncf %14 : vector<8x1024xf32> to vector<8x1024xbf16>
    %cst_12 = arith.constant dense<0.000000e+00> : vector<8x512xf32>
    %18 = tpu.matmul %17, %15, %cst_12 {dimension_numbers = #tpu.dot_dimension_numbers<[1], [0], [0], [1], [0, 0, 1, 1], [], []>} : vector<8x1024xbf16>, vector<1024x512xbf16>, vector<8x512xf32> -> vector<8x512xf32>
    %19 = vector.broadcast %16 : vector<1x512xf32> to vector<8x512xf32>
    %20 = arith.addf %18, %19 : vector<8x512xf32>
    %cst_13 = arith.constant 5.000000e-01 : f32
    %21 = vector.broadcast %cst_13 : f32 to vector<8x512xf32>
    %22 = arith.mulf %21, %20 : vector<8x512xf32>
    %cst_14 = arith.constant 0.707106769 : f32
    %23 = vector.broadcast %cst_14 : f32 to vector<8x512xf32>
    %24 = arith.mulf %20, %23 : vector<8x512xf32>
    %25 = math.erf %24 : vector<8x512xf32>
    %cst_15 = arith.constant 1.000000e+00 : f32
    %26 = vector.broadcast %cst_15 : f32 to vector<8x512xf32>
    %27 = arith.addf %26, %25 : vector<8x512xf32>
    %28 = arith.mulf %22, %27 : vector<8x512xf32>
    %c0_16 = arith.constant 0 : index
    %c0_17 = arith.constant 0 : index
    %29 = vector.load %arg6[%c0_16, %c0_17] : memref<512x256xbf16, #tpu.memory_space<vmem>>, vector<512x256xbf16>
    %c0_18 = arith.constant 0 : index
    %c0_19 = arith.constant 0 : index
    %30 = vector.load %arg7[%c0_18, %c0_19] : memref<1x256xf32, #tpu.memory_space<vmem>>, vector<1x256xf32>
    %31 = arith.truncf %28 : vector<8x512xf32> to vector<8x512xbf16>
    %cst_20 = arith.constant dense<0.000000e+00> : vector<8x256xf32>
    %32 = tpu.matmul %31, %29, %cst_20 {dimension_numbers = #tpu.dot_dimension_numbers<[1], [0], [0], [1], [0, 0, 1, 1], [], []>} : vector<8x512xbf16>, vector<512x256xbf16>, vector<8x256xf32> -> vector<8x256xf32>
    %33 = vector.broadcast %30 : vector<1x256xf32> to vector<8x256xf32>
    %34 = arith.addf %32, %33 : vector<8x256xf32>
    %cst_21 = arith.constant 5.000000e-01 : f32
    %35 = vector.broadcast %cst_21 : f32 to vector<8x256xf32>
    %36 = arith.mulf %35, %34 : vector<8x256xf32>
    %cst_22 = arith.constant 0.707106769 : f32
    %37 = vector.broadcast %cst_22 : f32 to vector<8x256xf32>
    %38 = arith.mulf %34, %37 : vector<8x256xf32>
    %39 = math.erf %38 : vector<8x256xf32>
    %cst_23 = arith.constant 1.000000e+00 : f32
    %40 = vector.broadcast %cst_23 : f32 to vector<8x256xf32>
    %41 = arith.addf %40, %39 : vector<8x256xf32>
    %42 = arith.mulf %36, %41 : vector<8x256xf32>
    %c0_24 = arith.constant 0 : index
    %c0_25 = arith.constant 0 : index
    %43 = vector.load %arg8[%c0_24, %c0_25] : memref<256x128xbf16, #tpu.memory_space<vmem>>, vector<256x128xbf16>
    %c0_26 = arith.constant 0 : index
    %c0_27 = arith.constant 0 : index
    %44 = vector.load %arg9[%c0_26, %c0_27] : memref<1x128xf32, #tpu.memory_space<vmem>>, vector<1x128xf32>
    %45 = arith.truncf %42 : vector<8x256xf32> to vector<8x256xbf16>
    %cst_28 = arith.constant dense<0.000000e+00> : vector<8x128xf32>
    %46 = tpu.matmul %45, %43, %cst_28 {dimension_numbers = #tpu.dot_dimension_numbers<[1], [0], [0], [1], [0, 0, 1, 1], [], []>} : vector<8x256xbf16>, vector<256x128xbf16>, vector<8x128xf32> -> vector<8x128xf32>
    %47 = vector.broadcast %44 : vector<1x128xf32> to vector<8x128xf32>
    %48 = arith.addf %46, %47 : vector<8x128xf32>
    %cst_29 = arith.constant 5.000000e-01 : f32
    %49 = vector.broadcast %cst_29 : f32 to vector<8x128xf32>
    %50 = arith.mulf %49, %48 : vector<8x128xf32>
    %cst_30 = arith.constant 0.707106769 : f32
    %51 = vector.broadcast %cst_30 : f32 to vector<8x128xf32>
    %52 = arith.mulf %48, %51 : vector<8x128xf32>
    %53 = math.erf %52 : vector<8x128xf32>
    %cst_31 = arith.constant 1.000000e+00 : f32
    %54 = vector.broadcast %cst_31 : f32 to vector<8x128xf32>
    %55 = arith.addf %54, %53 : vector<8x128xf32>
    %56 = arith.mulf %50, %55 : vector<8x128xf32>
    %c0_32 = arith.constant 0 : index
    %c0_33 = arith.constant 0 : index
    %57 = vector.load %arg10[%c0_32, %c0_33] : memref<128x32xbf16, #tpu.memory_space<vmem>>, vector<128x32xbf16>
    %c0_34 = arith.constant 0 : index
    %c0_35 = arith.constant 0 : index
    %58 = vector.load %arg11[%c0_34, %c0_35] : memref<1x32xf32, #tpu.memory_space<vmem>>, vector<1x32xf32>
    %59 = arith.truncf %56 : vector<8x128xf32> to vector<8x128xbf16>
    %cst_36 = arith.constant dense<0.000000e+00> : vector<8x32xf32>
    %60 = tpu.matmul %59, %57, %cst_36 {dimension_numbers = #tpu.dot_dimension_numbers<[1], [0], [0], [1], [0, 0, 1, 1], [], []>} : vector<8x128xbf16>, vector<128x32xbf16>, vector<8x32xf32> -> vector<8x32xf32>
    %61 = vector.broadcast %58 : vector<1x32xf32> to vector<8x32xf32>
    %62 = arith.addf %60, %61 : vector<8x32xf32>
    %cst_37 = arith.constant 5.000000e-01 : f32
    %63 = vector.broadcast %cst_37 : f32 to vector<8x32xf32>
    %64 = arith.mulf %63, %62 : vector<8x32xf32>
    %cst_38 = arith.constant 0.707106769 : f32
    %65 = vector.broadcast %cst_38 : f32 to vector<8x32xf32>
    %66 = arith.mulf %62, %65 : vector<8x32xf32>
    %67 = math.erf %66 : vector<8x32xf32>
    %cst_39 = arith.constant 1.000000e+00 : f32
    %68 = vector.broadcast %cst_39 : f32 to vector<8x32xf32>
    %69 = arith.addf %68, %67 : vector<8x32xf32>
    %70 = arith.mulf %64, %69 : vector<8x32xf32>
    %c0_40 = arith.constant 0 : index
    %c0_41 = arith.constant 0 : index
    %71 = vector.load %arg12[%c0_40, %c0_41] : memref<32x16xbf16, #tpu.memory_space<vmem>>, vector<32x16xbf16>
    %c0_42 = arith.constant 0 : index
    %c0_43 = arith.constant 0 : index
    %72 = vector.load %arg13[%c0_42, %c0_43] : memref<1x16xf32, #tpu.memory_space<vmem>>, vector<1x16xf32>
    %73 = arith.truncf %70 : vector<8x32xf32> to vector<8x32xbf16>
    %cst_44 = arith.constant dense<0.000000e+00> : vector<8x16xf32>
    %74 = tpu.matmul %73, %71, %cst_44 {dimension_numbers = #tpu.dot_dimension_numbers<[1], [0], [0], [1], [0, 0, 1, 1], [], []>} : vector<8x32xbf16>, vector<32x16xbf16>, vector<8x16xf32> -> vector<8x16xf32>
    %75 = vector.broadcast %72 : vector<1x16xf32> to vector<8x16xf32>
    %76 = arith.addf %74, %75 : vector<8x16xf32>
    %cst_45 = arith.constant 5.000000e-01 : f32
    %77 = vector.broadcast %cst_45 : f32 to vector<8x16xf32>
    %78 = arith.mulf %77, %76 : vector<8x16xf32>
    %cst_46 = arith.constant 0.707106769 : f32
    %79 = vector.broadcast %cst_46 : f32 to vector<8x16xf32>
    %80 = arith.mulf %76, %79 : vector<8x16xf32>
    %81 = math.erf %80 : vector<8x16xf32>
    %cst_47 = arith.constant 1.000000e+00 : f32
    %82 = vector.broadcast %cst_47 : f32 to vector<8x16xf32>
    %83 = arith.addf %82, %81 : vector<8x16xf32>
    %84 = arith.mulf %78, %83 : vector<8x16xf32>
    %c0_48 = arith.constant 0 : index
    %c0_49 = arith.constant 0 : index
    %85 = vector.load %arg14[%c0_48, %c0_49] : memref<16x128xf32, #tpu.memory_space<vmem>>, vector<16x128xf32>
    %c0_50 = arith.constant 0 : index
    %c0_51 = arith.constant 0 : index
    %86 = vector.load %arg15[%c0_50, %c0_51] : memref<1x128xf32, #tpu.memory_space<vmem>>, vector<1x128xf32>
    %cst_52 = arith.constant dense<0.000000e+00> : vector<8x128xf32>
    %87 = tpu.matmul %84, %85, %cst_52 {dimension_numbers = #tpu.dot_dimension_numbers<[1], [0], [0], [1], [0, 0, 1, 1], [], []>} : vector<8x16xf32>, vector<16x128xf32>, vector<8x128xf32> -> vector<8x128xf32>
    %88 = vector.broadcast %86 : vector<1x128xf32> to vector<8x128xf32>
    %89 = arith.addf %87, %88 : vector<8x128xf32>
    %c0_53 = arith.constant 0 : index
    %c0_54 = arith.constant 0 : index
    %90 = vector.load %arg16[%c0_53, %c0_54] : memref<8x128xf32, #tpu.memory_space<vmem>>, vector<8x128xf32>
    tpu.vector_store %arg16[%c0_53, %c0_54], %89 {strides = array<i32>} : memref<8x128xf32, #tpu.memory_space<vmem>>, vector<8x128xf32>,
    return
  }
  func.func @transform_0(%arg0: i32) -> (i32, i32) {
    %c0_i32 = arith.constant 0 : i32
    %c0_i32_0 = arith.constant 0 : i32
    return %arg0, %c0_i32 : i32, i32
  }
  func.func @transform_1(%arg0: i32) -> (i32, i32) {
    %c0_i32 = arith.constant 0 : i32
    %c0_i32_0 = arith.constant 0 : i32
    %c0_i32_1 = arith.constant 0 : i32
    return %c0_i32, %c0_i32_0 : i32, i32
  }
  func.func @transform_2(%arg0: i32) -> (i32, i32) {
    %c0_i32 = arith.constant 0 : i32
    %c0_i32_0 = arith.constant 0 : i32
    %c0_i32_1 = arith.constant 0 : i32
    return %c0_i32, %c0_i32_0 : i32, i32
  }
  func.func @transform_3(%arg0: i32) -> (i32, i32) {
    %c0_i32 = arith.constant 0 : i32
    %c0_i32_0 = arith.constant 0 : i32
    %c0_i32_1 = arith.constant 0 : i32
    return %c0_i32, %c0_i32_0 : i32, i32
  }
  func.func @transform_4(%arg0: i32) -> (i32, i32) {
    %c0_i32 = arith.constant 0 : i32
    %c0_i32_0 = arith.constant 0 : i32
    %c0_i32_1 = arith.constant 0 : i32
    return %c0_i32, %c0_i32_0 : i32, i32
  }
  func.func @transform_5(%arg0: i32) -> (i32, i32) {
    %c0_i32 = arith.constant 0 : i32
    %c0_i32_0 = arith.constant 0 : i32
    %c0_i32_1 = arith.constant 0 : i32
    return %c0_i32, %c0_i32_0 : i32, i32
  }
  func.func @transform_6(%arg0: i32) -> (i32, i32) {
    %c0_i32 = arith.constant 0 : i32
    %c0_i32_0 = arith.constant 0 : i32
    %c0_i32_1 = arith.constant 0 : i32
    return %c0_i32, %c0_i32_0 : i32, i32
  }
  func.func @transform_7(%arg0: i32) -> (i32, i32) {
    %c0_i32 = arith.constant 0 : i32
    %c0_i32_0 = arith.constant 0 : i32
    %c0_i32_1 = arith.constant 0 : i32
    return %c0_i32, %c0_i32_0 : i32, i32
  }
  func.func @transform_8(%arg0: i32) -> (i32, i32) {
    %c0_i32 = arith.constant 0 : i32
    %c0_i32_0 = arith.constant 0 : i32
    %c0_i32_1 = arith.constant 0 : i32
    return %c0_i32, %c0_i32_0 : i32, i32
  }
  func.func @transform_9(%arg0: i32) -> (i32, i32) {
    %c0_i32 = arith.constant 0 : i32
    %c0_i32_0 = arith.constant 0 : i32
    %c0_i32_1 = arith.constant 0 : i32
    return %c0_i32, %c0_i32_0 : i32, i32
  }
  func.func @transform_10(%arg0: i32) -> (i32, i32) {
    %c0_i32 = arith.constant 0 : i32
    %c0_i32_0 = arith.constant 0 : i32
    %c0_i32_1 = arith.constant 0 : i32
    return %c0_i32, %c0_i32_0 : i32, i32
  }
  func.func @transform_11(%arg0: i32) -> (i32, i32) {
    %c0_i32 = arith.constant 0 : i32
    %c0_i32_0 = arith.constant 0 : i32
    %c0_i32_1 = arith.constant 0 : i32
    return %c0_i32, %c0_i32_0 : i32, i32
  }
  func.func @transform_12(%arg0: i32) -> (i32, i32) {
    %c0_i32 = arith.constant 0 : i32
    %c0_i32_0 = arith.constant 0 : i32
    %c0_i32_1 = arith.constant 0 : i32
    return %c0_i32, %c0_i32_0 : i32, i32
  }
  func.func @transform_13(%arg0: i32) -> (i32, i32) {
    %c0_i32 = arith.constant 0 : i32
    %c0_i32_0 = arith.constant 0 : i32
    %c0_i32_1 = arith.constant 0 : i32
    return %c0_i32, %c0_i32_0 : i32, i32
  }
  func.func @transform_14(%arg0: i32) -> (i32, i32) {
    %c0_i32 = arith.constant 0 : i32
    %c0_i32_0 = arith.constant 0 : i32
    %c0_i32_1 = arith.constant 0 : i32
    return %c0_i32, %c0_i32_0 : i32, i32
  }
  func.func @transform_15(%arg0: i32) -> (i32, i32) {
    %c0_i32 = arith.constant 0 : i32
    %c0_i32_0 = arith.constant 0 : i32
    return %arg0, %c0_i32 : i32, i32
  }
}

</mosaic_0001>

<llo_original>
// kernel: geo_predictor.1
$region0: #{geo_predictor.1}
  #allocation0 [shape = 'u32[]', space=smem, size = 0x4, offset = 0x4, fixed_abs, tag = 'smem constant byte address 0x4 - core index']
  #allocation1 [shape = 'u32[72,128]{1,0:T(1,128)}', space=vmem, size = 0x9000, scoped, tag = 'internal scratch']
  %s0 = inlined_call_operand.hbm [shape: f32[8,2048], index: 0, kind: input, shape index: {}]
  %s1 = inlined_call_operand.hbm [shape: bf16[2048,1024], index: 1, kind: input, shape index: {}]
  %s2 = inlined_call_operand.hbm [shape: f32[1,1024], index: 2, kind: input, shape index: {}]
  %s3 = inlined_call_operand.hbm [shape: bf16[1024,512], index: 3, kind: input, shape index: {}]
  %s4 = inlined_call_operand.hbm [shape: f32[1,512], index: 4, kind: input, shape index: {}]
  %s5 = inlined_call_operand.hbm [shape: bf16[512,256], index: 5, kind: input, shape index: {}]
  %s6 = inlined_call_operand.hbm [shape: f32[1,256], index: 6, kind: input, shape index: {}]
  %s7 = inlined_call_operand.hbm [shape: bf16[256,128], index: 7, kind: input, shape index: {}]
  %s8 = inlined_call_operand.hbm [shape: f32[1,128], index: 8, kind: input, shape index: {}]
  %s9 = inlined_call_operand.vmem [shape: bf16[128,32], index: 9, kind: input, shape index: {}]
  %s10 = inlined_call_operand.hbm [shape: f32[1,32], index: 10, kind: input, shape index: {}]
  %s11 = inlined_call_operand.vmem [shape: bf16[32,16], index: 11, kind: input, shape index: {}]
  %s12 = inlined_call_operand.hbm [shape: f32[1,16], index: 12, kind: input, shape index: {}]
  %s13 = inlined_call_operand.hbm [shape: f32[16,128], index: 13, kind: input, shape index: {}]
  %s14 = inlined_call_operand.hbm [shape: f32[1,128], index: 14, kind: input, shape index: {}]
  %s15 = inlined_call_operand.vmem [shape: f32[8,128], index: 15, kind: output, shape index: {}]
  %s16 = sld [smem:[#allocation0]]
  $region122: #{geo_predictor.1} parent=0
    _
  %s18 = ssub.s32 1, %s16
  %s19 = scalar_select 0, %s18, %s16
  $region1: #{geo_predictor.1} parent=0
    #allocation2 [shape = 'u8[65536]{0}', space=vmem, size = 0x10000, scoped, tag = 'input window, operand 0, single buffered']
    #allocation3 [shape = 's32[1]{0}', space=sflag, size = 0x4, scoped, tag = 'scoped memory for geo_predictor.1']
    #allocation4 [shape = 'u8[4194304]{0}', space=vmem, size = 0x400000, scoped, tag = 'input window, operand 1, single buffered']
    #allocation5 [shape = 's32[1]{0}', space=sflag, size = 0x4, scoped, tag = 'scoped memory for geo_predictor.1']
    #allocation6 [shape = 'u8[4096]{0}', space=vmem, size = 0x1000, scoped, tag = 'input window, operand 2, single buffered']
    #allocation7 [shape = 'u8[1048576]{0}', space=vmem, size = 0x100000, scoped, tag = 'input window, operand 3, single buffered']
    #allocation8 [shape = 's32[1]{0}', space=sflag, size = 0x4, scoped, tag = 'scoped memory for geo_predictor.1']
    #allocation9 [shape = 'u8[2048]{0}', space=vmem, size = 0x800, scoped, tag = 'input window, operand 4, single buffered']
    #allocation10 [shape = 'u8[262144]{0}', space=vmem, size = 0x40000, scoped, tag = 'input window, operand 5, single buffered']
    #allocation11 [shape = 's32[1]{0}', space=sflag, size = 0x4, scoped, tag = 'scoped memory for geo_predictor.1']
    #allocation12 [shape = 'u8[1024]{0}', space=vmem, size = 0x400, scoped, tag = 'input window, operand 6, single buffered']
    #allocation13 [shape = 'u8[65536]{0}', space=vmem, size = 0x10000, scoped, tag = 'input window, operand 7, single buffered']
    #allocation14 [shape = 's32[1]{0}', space=sflag, size = 0x4, scoped, tag = 'scoped memory for geo_predictor.1']
    #allocation15 [shape = 'u8[512]{0}', space=vmem, size = 0x400, scoped, tag = 'input window, operand 8, single buffered']
    #allocation16 [shape = 'u8[512]{0}', space=vmem, size = 0x400, scoped, tag = 'input window, operand 10, single buffered']
    #allocation17 [shape = 's32[1]{0}', space=sflag, size = 0x4, scoped, tag = 'scoped memory for geo_predictor.1']
    #allocation18 [shape = 'u8[512]{0}', space=vmem, size = 0x400, scoped, tag = 'input window, operand 12, single buffered']
    #allocation19 [shape = 'u8[8192]{0}', space=vmem, size = 0x2000, scoped, tag = 'input window, operand 13, single buffered']
    #allocation20 [shape = 's32[1]{0}', space=sflag, size = 0x4, scoped, tag = 'scoped memory for geo_predictor.1']
    #allocation21 [shape = 'u8[512]{0}', space=vmem, size = 0x400, scoped, tag = 'input window, operand 14, single buffered']
    %20 = vsyncpa [#allocation3], 0
    %21 = vsyncpa [#allocation5], 0
    %22 = vsyncpa [#allocation8], 0
    %23 = vsyncpa [#allocation11], 0
    %24 = vsyncpa [#allocation14], 0
    %25 = vsyncpa [#allocation17], 0
    %26 = vsyncpa [#allocation20], 0
    // Predicated region
    $region2: #{geo_predictor.1} parent=1 // pred_check
      _
    $region3: #{geo_predictor.1} parent=1 // pred_check_branch
      %28 = sbr.rel (0) target = $region5
    $region4: #{geo_predictor.1} parent=1 // pred_region
      %30 = vsyncadd [#allocation3], 0
      %s32 = sshll.u32 %s0, 4
      %s33 = int_to_ptr.hbm [resolvable:$true] %s32
      %s34 = sshll.u32 [#allocation2], 4
      %s35 = int_to_ptr.vmem [resolvable:$true] %s34
      %37 = dma.hbm_to_vmem [thread:$0]  %s33, 2048, %s35, [#allocation3]
    $region5: #{geo_predictor.1} parent=1 // pred_fallthru
      _
    // Predicated region
    $region6: #{geo_predictor.1} parent=1 // pred_check
      _
    $region7: #{geo_predictor.1} parent=1 // pred_check_branch
      %39 = sbr.rel (0) target = $region9
    $region8: #{geo_predictor.1} parent=1 // pred_region
      %41 = vsyncadd [#allocation5], 0
      %s42 = sshll.u32 %s1, 4
      %s43 = int_to_ptr.hbm [resolvable:$true] %s42
      %s44 = sshll.u32 [#allocation4], 4
      %s45 = int_to_ptr.vmem [resolvable:$true] %s44
      %50 = dma.hbm_to_vmem [thread:$0]  %s43, 131072, %s45, [#allocation5], 512, 512, 32
    $region9: #{geo_predictor.1} parent=1 // pred_fallthru
      _
    // Predicated region
    $region10: #{geo_predictor.1} parent=1 // pred_check
      _
    $region11: #{geo_predictor.1} parent=1 // pred_check_branch
      %52 = sbr.rel (0) target = $region13
    $region12: #{geo_predictor.1} parent=1 // pred_region
      %54 = vsyncadd [#allocation5], 0
      %s56 = sshll.u32 %s2, 4
      %s57 = int_to_ptr.hbm [resolvable:$true] %s56
      %s58 = sshll.u32 [#allocation6], 4
      %s59 = int_to_ptr.vmem [resolvable:$true] %s58
      %61 = dma.hbm_to_vmem [thread:$0]  %s57, 128, %s59, [#allocation5]
    $region13: #{geo_predictor.1} parent=1 // pred_fallthru
      _
    // Predicated region
    $region14: #{geo_predictor.1} parent=1 // pred_check
      _
    $region15: #{geo_predictor.1} parent=1 // pred_check_branch
      %63 = sbr.rel (0) target = $region17
    $region16: #{geo_predictor.1} parent=1 // pred_region
      %65 = vsyncadd [#allocation8], 0
      %s66 = sshll.u32 %s3, 4
      %s67 = int_to_ptr.hbm [resolvable:$true] %s66
      %s68 = sshll.u32 [#allocation7], 4
      %s69 = int_to_ptr.vmem [resolvable:$true] %s68
      %74 = dma.hbm_to_vmem [thread:$0]  %s67, 32768, %s69, [#allocation8], 256, 256, 16
    $region17: #{geo_predictor.1} parent=1 // pred_fallthru
      _
    // Predicated region
    $region18: #{geo_predictor.1} parent=1 // pred_check
      _
    $region19: #{geo_predictor.1} parent=1 // pred_check_branch
      %76 = sbr.rel (0) target = $region21
    $region20: #{geo_predictor.1} parent=1 // pred_region
      %78 = vsyncadd [#allocation8], 0
      %s80 = sshll.u32 %s4, 4
      %s81 = int_to_ptr.hbm [resolvable:$true] %s80
      %s82 = sshll.u32 [#allocation9], 4
      %s83 = int_to_ptr.vmem [resolvable:$true] %s82
      %85 = dma.hbm_to_vmem [thread:$0]  %s81, 64, %s83, [#allocation8]
    $region21: #{geo_predictor.1} parent=1 // pred_fallthru
      _
    // Predicated region
    $region22: #{geo_predictor.1} parent=1 // pred_check
      _
    $region23: #{geo_predictor.1} parent=1 // pred_check_branch
      %87 = sbr.rel (0) target = $region25
    $region24: #{geo_predictor.1} parent=1 // pred_region
      %89 = vsyncadd [#allocation11], 0
      %s90 = sshll.u32 %s5, 4
      %s91 = int_to_ptr.hbm [resolvable:$true] %s90
      %s92 = sshll.u32 [#allocation10], 4
      %s93 = int_to_ptr.vmem [resolvable:$true] %s92
      %98 = dma.hbm_to_vmem [thread:$0]  %s91, 8192, %s93, [#allocation11], 128, 128, 8
    $region25: #{geo_predictor.1} parent=1 // pred_fallthru
      _
    // Predicated region
    $region26: #{geo_predictor.1} parent=1 // pred_check
      _
    $region27: #{geo_predictor.1} parent=1 // pred_check_branch
      %100 = sbr.rel (0) target = $region29
    $region28: #{geo_predictor.1} parent=1 // pred_region
      %102 = vsyncadd [#allocation11], 0
      %s104 = sshll.u32 %s6, 4
      %s105 = int_to_ptr.hbm [resolvable:$true] %s104
      %s106 = sshll.u32 [#allocation12], 4
      %s107 = int_to_ptr.vmem [resolvable:$true] %s106
      %109 = dma.hbm_to_vmem [thread:$0]  %s105, 32, %s107, [#allocation11]
    $region29: #{geo_predictor.1} parent=1 // pred_fallthru
      _
    // Predicated region
    $region30: #{geo_predictor.1} parent=1 // pred_check
      _
    $region31: #{geo_predictor.1} parent=1 // pred_check_branch
      %111 = sbr.rel (0) target = $region33
    $region32: #{geo_predictor.1} parent=1 // pred_region
      %113 = vsyncadd [#allocation14], 0
      %s114 = sshll.u32 %s7, 4
      %s115 = int_to_ptr.hbm [resolvable:$true] %s114
      %s116 = sshll.u32 [#allocation13], 4
      %s117 = int_to_ptr.vmem [resolvable:$true] %s116
      %122 = dma.hbm_to_vmem [thread:$0]  %s115, 2048, %s117, [#allocation14], 64, 64, 4
    $region33: #{geo_predictor.1} parent=1 // pred_fallthru
      _
    // Predicated region
    $region34: #{geo_predictor.1} parent=1 // pred_check
      _
    $region35: #{geo_predictor.1} parent=1 // pred_check_branch
      %124 = sbr.rel (0) target = $region37
    $region36: #{geo_predictor.1} parent=1 // pred_region
      %126 = vsyncadd [#allocation14], 0
      %s128 = sshll.u32 %s8, 4
      %s129 = int_to_ptr.hbm [resolvable:$true] %s128
      %s130 = sshll.u32 [#allocation15], 4
      %s131 = int_to_ptr.vmem [resolvable:$true] %s130
      %133 = dma.hbm_to_vmem [thread:$0]  %s129, 16, %s131, [#allocation14]
    $region37: #{geo_predictor.1} parent=1 // pred_fallthru
      _
    // Predicated region
    $region38: #{geo_predictor.1} parent=1 // pred_check
      _
    $region39: #{geo_predictor.1} parent=1 // pred_check_branch
      %135 = sbr.rel (0) target = $region41
    $region40: #{geo_predictor.1} parent=1 // pred_region
      _
    $region41: #{geo_predictor.1} parent=1 // pred_fallthru
      _
    // Predicated region
    $region42: #{geo_predictor.1} parent=1 // pred_check
      _
    $region43: #{geo_predictor.1} parent=1 // pred_check_branch
      %137 = sbr.rel (0) target = $region45
    $region44: #{geo_predictor.1} parent=1 // pred_region
      %139 = vsyncadd [#allocation17], 0
      %s141 = sshll.u32 %s10, 4
      %s142 = int_to_ptr.hbm [resolvable:$true] %s141
      %s143 = sshll.u32 [#allocation16], 4
      %s144 = int_to_ptr.vmem [resolvable:$true] %s143
      %146 = dma.hbm_to_vmem [thread:$0]  %s142, 16, %s144, [#allocation17]
    $region45: #{geo_predictor.1} parent=1 // pred_fallthru
      _
    // Predicated region
    $region46: #{geo_predictor.1} parent=1 // pred_check
      _
    $region47: #{geo_predictor.1} parent=1 // pred_check_branch
      %148 = sbr.rel (0) target = $region49
    $region48: #{geo_predictor.1} parent=1 // pred_region
      _
    $region49: #{geo_predictor.1} parent=1 // pred_fallthru
      _
    // Predicated region
    $region50: #{geo_predictor.1} parent=1 // pred_check
      _
    $region51: #{geo_predictor.1} parent=1 // pred_check_branch
      %150 = sbr.rel (0) target = $region53
    $region52: #{geo_predictor.1} parent=1 // pred_region
      %152 = vsyncadd [#allocation17], 0
      %s154 = sshll.u32 %s12, 4
      %s155 = int_to_ptr.hbm [resolvable:$true] %s154
      %s156 = sshll.u32 [#allocation18], 4
      %s157 = int_to_ptr.vmem [resolvable:$true] %s156
      %159 = dma.hbm_to_vmem [thread:$0]  %s155, 16, %s157, [#allocation17]
    $region53: #{geo_predictor.1} parent=1 // pred_fallthru
      _
    // Predicated region
    $region54: #{geo_predictor.1} parent=1 // pred_check
      _
    $region55: #{geo_predictor.1} parent=1 // pred_check_branch
      %161 = sbr.rel (0) target = $region57
    $region56: #{geo_predictor.1} parent=1 // pred_region
      %163 = vsyncadd [#allocation20], 0
      %s164 = sshll.u32 %s13, 4
      %s165 = int_to_ptr.hbm [resolvable:$true] %s164
      %s166 = sshll.u32 [#allocation19], 4
      %s167 = int_to_ptr.vmem [resolvable:$true] %s166
      %172 = dma.hbm_to_vmem [thread:$0]  %s165, 256, %s167, [#allocation20], 128, 128, 8
    $region57: #{geo_predictor.1} parent=1 // pred_fallthru
      _
    // Predicated region
    $region58: #{geo_predictor.1} parent=1 // pred_check
      _
    $region59: #{geo_predictor.1} parent=1 // pred_check_branch
      %174 = sbr.rel (0) target = $region61
    $region60: #{geo_predictor.1} parent=1 // pred_region
      %176 = vsyncadd [#allocation20], 0
      %s178 = sshll.u32 %s14, 4
      %s179 = int_to_ptr.hbm [resolvable:$true] %s178
      %s180 = sshll.u32 [#allocation21], 4
      %s181 = int_to_ptr.vmem [resolvable:$true] %s180
      %183 = dma.hbm_to_vmem [thread:$0]  %s179, 16, %s181, [#allocation20]
    $region61: #{geo_predictor.1} parent=1 // pred_fallthru
      _
    // Predicated region
    $region62: #{geo_predictor.1} parent=1 // pred_check
      _
    $region63: #{geo_predictor.1} parent=1 // pred_check_branch
      %185 = sbr.rel (0) target = $region65
    $region64: #{geo_predictor.1} parent=1 // pred_region
      %187 = dma.done [#allocation3], 2048
    $region65: #{geo_predictor.1} parent=1 // pred_fallthru
      _
    // Predicated region
    $region66: #{geo_predictor.1} parent=1 // pred_check
      _
    $region67: #{geo_predictor.1} parent=1 // pred_check_branch
      %189 = sbr.rel (0) target = $region69
    $region68: #{geo_predictor.1} parent=1 // pred_region
      %191 = dma.done [#allocation5], 131072
    $region69: #{geo_predictor.1} parent=1 // pred_fallthru
      _
    // Predicated region
    $region70: #{geo_predictor.1} parent=1 // pred_check
      _
    $region71: #{geo_predictor.1} parent=1 // pred_check_branch
      %193 = sbr.rel (0) target = $region73
    $region72: #{geo_predictor.1} parent=1 // pred_region
      %195 = dma.done [#allocation5], 128
    $region73: #{geo_predictor.1} parent=1 // pred_fallthru
      _
    // Predicated region
    $region74: #{geo_predictor.1} parent=1 // pred_check
      _
    $region75: #{geo_predictor.1} parent=1 // pred_check_branch
      %197 = sbr.rel (0) target = $region77
    $region76: #{geo_predictor.1} parent=1 // pred_region
      %199 = dma.done [#allocation8], 32768
    $region77: #{geo_predictor.1} parent=1 // pred_fallthru
      _
    // Predicated region
    $region78: #{geo_predictor.1} parent=1 // pred_check
      _
    $region79: #{geo_predictor.1} parent=1 // pred_check_branch
      %201 = sbr.rel (0) target = $region81
    $region80: #{geo_predictor.1} parent=1 // pred_region
      %203 = dma.done [#allocation8], 64
    $region81: #{geo_predictor.1} parent=1 // pred_fallthru
      _
    // Predicated region
    $region82: #{geo_predictor.1} parent=1 // pred_check
      _
    $region83: #{geo_predictor.1} parent=1 // pred_check_branch
      %205 = sbr.rel (0) target = $region85
    $region84: #{geo_predictor.1} parent=1 // pred_region
      %207 = dma.done [#allocation11], 8192
    $region85: #{geo_predictor.1} parent=1 // pred_fallthru
      _
    // Predicated region
    $region86: #{geo_predictor.1} parent=1 // pred_check
      _
    $region87: #{geo_predictor.1} parent=1 // pred_check_branch
      %209 = sbr.rel (0) target = $region89
    $region88: #{geo_predictor.1} parent=1 // pred_region
      %211 = dma.done [#allocation11], 32
    $region89: #{geo_predictor.1} parent=1 // pred_fallthru
      _
    // Predicated region
    $region90: #{geo_predictor.1} parent=1 // pred_check
      _
    $region91: #{geo_predictor.1} parent=1 // pred_check_branch
      %213 = sbr.rel (0) target = $region93
    $region92: #{geo_predictor.1} parent=1 // pred_region
      %215 = dma.done [#allocation14], 2048
    $region93: #{geo_predictor.1} parent=1 // pred_fallthru
      _
    // Predicated region
    $region94: #{geo_predictor.1} parent=1 // pred_check
      _
    $region95: #{geo_predictor.1} parent=1 // pred_check_branch
      %217 = sbr.rel (0) target = $region97
    $region96: #{geo_predictor.1} parent=1 // pred_region
      %219 = dma.done [#allocation14], 16
    $region97: #{geo_predictor.1} parent=1 // pred_fallthru
      _
    // Predicated region
    $region98: #{geo_predictor.1} parent=1 // pred_check
      _
    $region99: #{geo_predictor.1} parent=1 // pred_check_branch
      %221 = sbr.rel (0) target = $region101
    $region100: #{geo_predictor.1} parent=1 // pred_region
      %223 = dma.done [#allocation17], 16
    $region101: #{geo_predictor.1} parent=1 // pred_fallthru
      _
    // Predicated region
    $region102: #{geo_predictor.1} parent=1 // pred_check
      _
    $region103: #{geo_predictor.1} parent=1 // pred_check_branch
      %225 = sbr.rel (0) target = $region105
    $region104: #{geo_predictor.1} parent=1 // pred_region
      %227 = dma.done [#allocation17], 16
    $region105: #{geo_predictor.1} parent=1 // pred_fallthru
      _
    // Predicated region
    $region106: #{geo_predictor.1} parent=1 // pred_check
      _
    $region107: #{geo_predictor.1} parent=1 // pred_check_branch
      %229 = sbr.rel (0) target = $region109
    $region108: #{geo_predictor.1} parent=1 // pred_region
      %231 = dma.done [#allocation20], 256
    $region109: #{geo_predictor.1} parent=1 // pred_fallthru
      _
    // Predicated region
    $region110: #{geo_predictor.1} parent=1 // pred_check
      _
    $region111: #{geo_predictor.1} parent=1 // pred_check_branch
      %233 = sbr.rel (0) target = $region113
    $region112: #{geo_predictor.1} parent=1 // pred_region
      %235 = dma.done [#allocation20], 16
    $region113: #{geo_predictor.1} parent=1 // pred_fallthru
      _
    %v237 = vld [vmem:[#allocation2] sm:$0xff]
    %v238 = vld [vmem:[#allocation2 + $0x8] sm:$0xff]
    %v239 = vld [vmem:[#allocation2 + $0x10] sm:$0xff]
    %v240 = vld [vmem:[#allocation2 + $0x18] sm:$0xff]
    %v241 = vld [vmem:[#allocation2 + $0x20] sm:$0xff]
    %v242 = vld [vmem:[#allocation2 + $0x28] sm:$0xff]
    %v243 = vld [vmem:[#allocation2 + $0x30] sm:$0xff]
    %v244 = vld [vmem:[#allocation2 + $0x38] sm:$0xff]
    %v245 = vld [vmem:[#allocation2 + $0x40] sm:$0xff]
    %v246 = vld [vmem:[#allocation2 + $0x48] sm:$0xff]
    %v247 = vld [vmem:[#allocation2 + $0x50] sm:$0xff]
    %v248 = vld [vmem:[#allocation2 + $0x58] sm:$0xff]
    %v249 = vld [vmem:[#allocation2 + $0x60] sm:$0xff]
    %v250 = vld [vmem:[#allocation2 + $0x68] sm:$0xff]
    %v251 = vld [vmem:[#allocation2 + $0x70] sm:$0xff]
    %v252 = vld [vmem:[#allocation2 + $0x78] sm:$0xff]
    %v253 = vld [vmem:[#allocation4] sm:$0xff]
    %v254 = vld [vmem:[#allocation4 + $0x8] sm:$0xff]
    %v255 = vld [vmem:[#allocation4 + $0x10] sm:$0xff]
    %v256 = vld [vmem:[#allocation4 + $0x18] sm:$0xff]
    %v257 = vld [vmem:[#allocation4 + $0x20] sm:$0xff]
    %v258 = vld [vmem:[#allocation4 + $0x28] sm:$0xff]
    %v259 = vld [vmem:[#allocation4 + $0x30] sm:$0xff]
    %v260 = vld [vmem:[#allocation4 + $0x38] sm:$0xff]
    %v261 = vld [vmem:[#allocation4 + $0x40] sm:$0xff]
    %v262 = vld [vmem:[#allocation4 + $0x48] sm:$0xff]
    %v263 = vld [vmem:[#allocation4 + $0x50] sm:$0xff]
    %v264 = vld [vmem:[#allocation4 + $0x58] sm:$0xff]
    %v265 = vld [vmem:[#allocation4 + $0x60] sm:$0xff]
    %v266 = vld [vmem:[#allocation4 + $0x68] sm:$0xff]
    %v267 = vld [vmem:[#allocation4 + $0x70] sm:$0xff]
    %v268 = vld [vmem:[#allocation4 + $0x78] sm:$0xff]
    %v269 = vld [vmem:[#allocation4 + $0x80] sm:$0xff]
    %v270 = vld [vmem:[#allocation4 + $0x88] sm:$0xff]
    %v271 = vld [vmem:[#allocation4 + $0x90] sm:$0xff]
    %v272 = vld [vmem:[#allocation4 + $0x98] sm:$0xff]
    %v273 = vld [vmem:[#allocation4 + $0xa0] sm:$0xff]
    %v274 = vld [vmem:[#allocation4 + $0xa8] sm:$0xff]
    %v275 = vld [vmem:[#allocation4 + $0xb0] sm:$0xff]
    %v276 = vld [vmem:[#allocation4 + $0xb8] sm:$0xff]
    %v277 = vld [vmem:[#allocation4 + $0xc0] sm:$0xff]
    %v278 = vld [vmem:[#allocation4 + $0xc8] sm:$0xff]
    %v279 = vld [vmem:[#allocation4 + $0xd0] sm:$0xff]
    %v280 = vld [vmem:[#allocation4 + $0xd8] sm:$0xff]
    %v281 = vld [vmem:[#allocation4 + $0xe0] sm:$0xff]
    %v282 = vld [vmem:[#allocation4 + $0xe8] sm:$0xff]
    %v283 = vld [vmem:[#allocation4 + $0xf0] sm:$0xff]
    %v284 = vld [vmem:[#allocation4 + $0xf8] sm:$0xff]
    %v285 = vld [vmem:[#allocation4 + $0x100] sm:$0xff]
    %v286 = vld [vmem:[#allocation4 + $0x108] sm:$0xff]
    %v287 = vld [vmem:[#allocation4 + $0x110] sm:$0xff]
    %v288 = vld [vmem:[#allocation4 + $0x118] sm:$0xff]
    %v289 = vld [vmem:[#allocation4 + $0x120] sm:$0xff]
    %v290 = vld [vmem:[#allocation4 + $0x128] sm:$0xff]
    %v291 = vld [vmem:[#allocation4 + $0x130] sm:$0xff]
    %v292 = vld [vmem:[#allocation4 + $0x138] sm:$0xff]
    %v293 = vld [vmem:[#allocation4 + $0x140] sm:$0xff]
    %v294 = vld [vmem:[#allocation4 + $0x148] sm:$0xff]
    %v295 = vld [vmem:[#allocation4 + $0x150] sm:$0xff]
    %v296 = vld [vmem:[#allocation4 + $0x158] sm:$0xff]
    %v297 = vld [vmem:[#allocation4 + $0x160] sm:$0xff]
    %v298 = vld [vmem:[#allocation4 + $0x168] sm:$0xff]
    %v299 = vld [vmem:[#allocation4 + $0x170] sm:$0xff]
    %v300 = vld [vmem:[#allocation4 + $0x178] sm:$0xff]
    %v301 = vld [vmem:[#allocation4 + $0x180] sm:$0xff]
    %v302 = vld [vmem:[#allocation4 + $0x188] sm:$0xff]
    %v303 = vld [vmem:[#allocation4 + $0x190] sm:$0xff]
    %v304 = vld [vmem:[#allocation4 + $0x198] sm:$0xff]
    %v305 = vld [vmem:[#allocation4 + $0x1a0] sm:$0xff]
    %v306 = vld [vmem:[#allocation4 + $0x1a8] sm:$0xff]
    %v307 = vld [vmem:[#allocation4 + $0x1b0] sm:$0xff]
    %v308 = vld [vmem:[#allocation4 + $0x1b8] sm:$0xff]
    %v309 = vld [vmem:[#allocation4 + $0x1c0] sm:$0xff]
    %v310 = vld [vmem:[#allocation4 + $0x1c8] sm:$0xff]
    %v311 = vld [vmem:[#allocation4 + $0x1d0] sm:$0xff]
    %v312 = vld [vmem:[#allocation4 + $0x1d8] sm:$0xff]
    %v313 = vld [vmem:[#allocation4 + $0x1e0] sm:$0xff]
    %v314 = vld [vmem:[#allocation4 + $0x1e8] sm:$0xff]
    %v315 = vld [vmem:[#allocation4 + $0x1f0] sm:$0xff]
    %v316 = vld [vmem:[#allocation4 + $0x1f8] sm:$0xff]
    %v317 = vld [vmem:[#allocation4 + $0x200] sm:$0xff]
    %v318 = vld [vmem:[#allocation4 + $0x208] sm:$0xff]
    %v319 = vld [vmem:[#allocation4 + $0x210] sm:$0xff]
    %v320 = vld [vmem:[#allocation4 + $0x218] sm:$0xff]
    %v321 = vld [vmem:[#allocation4 + $0x220] sm:$0xff]
    %v322 = vld [vmem:[#allocation4 + $0x228] sm:$0xff]
    %v323 = vld [vmem:[#allocation4 + $0x230] sm:$0xff]
    %v324 = vld [vmem:[#allocation4 + $0x238] sm:$0xff]
    %v325 = vld [vmem:[#allocation4 + $0x240] sm:$0xff]
    %v326 = vld [vmem:[#allocation4 + $0x248] sm:$0xff]
    %v327 = vld [vmem:[#allocation4 + $0x250] sm:$0xff]
    %v328 = vld [vmem:[#allocation4 + $0x258] sm:$0xff]
    %v329 = vld [vmem:[#allocation4 + $0x260] sm:$0xff]
    %v330 = vld [vmem:[#allocation4 + $0x268] sm:$0xff]
    %v331 = vld [vmem:[#allocation4 + $0x270] sm:$0xff]
    %v332 = vld [vmem:[#allocation4 + $0x278] sm:$0xff]
    %v333 = vld [vmem:[#allocation4 + $0x280] sm:$0xff]
    %v334 = vld [vmem:[#allocation4 + $0x288] sm:$0xff]
    %v335 = vld [vmem:[#allocation4 + $0x290] sm:$0xff]
    %v336 = vld [vmem:[#allocation4 + $0x298] sm:$0xff]
    %v337 = vld [vmem:[#allocation4 + $0x2a0] sm:$0xff]
    %v338 = vld [vmem:[#allocation4 + $0x2a8] sm:$0xff]
    %v339 = vld [vmem:[#allocation4 + $0x2b0] sm:$0xff]
    %v340 = vld [vmem:[#allocation4 + $0x2b8] sm:$0xff]
    %v341 = vld [vmem:[#allocation4 + $0x2c0] sm:$0xff]
    %v342 = vld [vmem:[#allocation4 + $0x2c8] sm:$0xff]
    %v343 = vld [vmem:[#allocation4 + $0x2d0] sm:$0xff]
    %v344 = vld [vmem:[#allocation4 + $0x2d8] sm:$0xff]
    %v345 = vld [vmem:[#allocation4 + $0x2e0] sm:$0xff]
    %v346 = vld [vmem:[#allocation4 + $0x2e8] sm:$0xff]
    %v347 = vld [vmem:[#allocation4 + $0x2f0] sm:$0xff]
    %v348 = vld [vmem:[#allocation4 + $0x2f8] sm:$0xff]
    %v349 = vld [vmem:[#allocation4 + $0x300] sm:$0xff]
    %v350 = vld [vmem:[#allocation4 + $0x308] sm:$0xff]
    %v351 = vld [vmem:[#allocation4 + $0x310] sm:$0xff]
    %v352 = vld [vmem:[#allocation4 + $0x318] sm:$0xff]
    %v353 = vld [vmem:[#allocation4 + $0x320] sm:$0xff]
    %v354 = vld [vmem:[#allocation4 + $0x328] sm:$0xff]
    %v355 = vld [vmem:[#allocation4 + $0x330] sm:$0xff]
    %v356 = vld [vmem:[#allocation4 + $0x338] sm:$0xff]
    %v357 = vld [vmem:[#allocation4 + $0x340] sm:$0xff]
    %v358 = vld [vmem:[#allocation4 + $0x348] sm:$0xff]
    %v359 = vld [vmem:[#allocation4 + $0x350] sm:$0xff]
    %v360 = vld [vmem:[#allocation4 + $0x358] sm:$0xff]
    %v361 = vld [vmem:[#allocation4 + $0x360] sm:$0xff]
    %v362 = vld [vmem:[#allocation4 + $0x368] sm:$0xff]
    %v363 = vld [vmem:[#allocation4 + $0x370] sm:$0xff]
    %v364 = vld [vmem:[#allocation4 + $0x378] sm:$0xff]
    %v365 = vld [vmem:[#allocation4 + $0x380] sm:$0xff]
    %v366 = vld [vmem:[#allocation4 + $0x388] sm:$0xff]
    %v367 = vld [vmem:[#allocation4 + $0x390] sm:$0xff]
    %v368 = vld [vmem:[#allocation4 + $0x398] sm:$0xff]
    %v369 = vld [vmem:[#allocation4 + $0x3a0] sm:$0xff]
    %v370 = vld [vmem:[#allocation4 + $0x3a8] sm:$0xff]
    %v371 = vld [vmem:[#allocation4 + $0x3b0] sm:$0xff]
    %v372 = vld [vmem:[#allocation4 + $0x3b8] sm:$0xff]
    %v373 = vld [vmem:[#allocation4 + $0x3c0] sm:$0xff]
    %v374 = vld [vmem:[#allocation4 + $0x3c8] sm:$0xff]
    %v375 = vld [vmem:[#allocation4 + $0x3d0] sm:$0xff]
    %v376 = vld [vmem:[#allocation4 + $0x3d8] sm:$0xff]
    %v377 = vld [vmem:[#allocation4 + $0x3e0] sm:$0xff]
    %v378 = vld [vmem:[#allocation4 + $0x3e8] sm:$0xff]
    %v379 = vld [vmem:[#allocation4 + $0x3f0] sm:$0xff]
    %v380 = vld [vmem:[#allocation4 + $0x3f8] sm:$0xff]
    %v381 = vld [vmem:[#allocation4 + $0x400] sm:$0xff]
    %v382 = vld [vmem:[#allocation4 + $0x408] sm:$0xff]
    %v383 = vld [vmem:[#allocation4 + $0x410] sm:$0xff]
    %v384 = vld [vmem:[#allocation4 + $0x418] sm:$0xff]
    %v385 = vld [vmem:[#allocation4 + $0x420] sm:$0xff]
    %v386 = vld [vmem:[#allocation4 + $0x428] sm:$0xff]
    %v387 = vld [vmem:[#allocation4 + $0x430] sm:$0xff]
    %v388 = vld [vmem:[#allocation4 + $0x438] sm:$0xff]
    %v389 = vld [vmem:[#allocation4 + $0x440] sm:$0xff]
    %v390 = vld [vmem:[#allocation4 + $0x448] sm:$0xff]
    %v391 = vld [vmem:[#allocation4 + $0x450] sm:$0xff]
    %v392 = vld [vmem:[#allocation4 + $0x458] sm:$0xff]
    %v393 = vld [vmem:[#allocation4 + $0x460] sm:$0xff]
    %v394 = vld [vmem:[#allocation4 + $0x468] sm:$0xff]
    %v395 = vld [vmem:[#allocation4 + $0x470] sm:$0xff]
    %v396 = vld [vmem:[#allocation4 + $0x478] sm:$0xff]
    %v397 = vld [vmem:[#allocation4 + $0x480] sm:$0xff]
    %v398 = vld [vmem:[#allocation4 + $0x488] sm:$0xff]
    %v399 = vld [vmem:[#allocation4 + $0x490] sm:$0xff]
    %v400 = vld [vmem:[#allocation4 + $0x498] sm:$0xff]
    %v401 = vld [vmem:[#allocation4 + $0x4a0] sm:$0xff]
    %v402 = vld [vmem:[#allocation4 + $0x4a8] sm:$0xff]
    %v403 = vld [vmem:[#allocation4 + $0x4b0] sm:$0xff]
    %v404 = vld [vmem:[#allocation4 + $0x4b8] sm:$0xff]
    %v405 = vld [vmem:[#allocation4 + $0x4c0] sm:$0xff]
    %v406 = vld [vmem:[#allocation4 + $0x4c8] sm:$0xff]
    %v407 = vld [vmem:[#allocation4 + $0x4d0] sm:$0xff]
    %v408 = vld [vmem:[#allocation4 + $0x4d8] sm:$0xff]
    %v409 = vld [vmem:[#allocation4 + $0x4e0] sm:$0xff]
    %v410 = vld [vmem:[#allocation4 + $0x4e8] sm:$0xff]
    %v411 = vld [vmem:[#allocation4 + $0x4f0] sm:$0xff]
    %v412 = vld [vmem:[#allocation4 + $0x4f8] sm:$0xff]
    %v413 = vld [vmem:[#allocation4 + $0x500] sm:$0xff]
    %v414 = vld [vmem:[#allocation4 + $0x508] sm:$0xff]
    %v415 = vld [vmem:[#allocation4 + $0x510] sm:$0xff]
    %v416 = vld [vmem:[#allocation4 + $0x518] sm:$0xff]
    %v417 = vld [vmem:[#allocation4 + $0x520] sm:$0xff]
    %v418 = vld [vmem:[#allocation4 + $0x528] sm:$0xff]
    %v419 = vld [vmem:[#allocation4 + $0x530] sm:$0xff]
    %v420 = vld [vmem:[#allocation4 + $0x538] sm:$0xff]
    %v421 = vld [vmem:[#allocation4 + $0x540] sm:$0xff]
    %v422 = vld [vmem:[#allocation4 + $0x548] sm:$0xff]
    %v423 = vld [vmem:[#allocation4 + $0x550] sm:$0xff]
    %v424 = vld [vmem:[#allocation4 + $0x558] sm:$0xff]
    %v425 = vld [vmem:[#allocation4 + $0x560] sm:$0xff]
    %v426 = vld [vmem:[#allocation4 + $0x568] sm:$0xff]
    %v427 = vld [vmem:[#allocation4 + $0x570] sm:$0xff]
    %v428 = vld [vmem:[#allocation4 + $0x578] sm:$0xff]
    %v429 = vld [vmem:[#allocation4 + $0x580] sm:$0xff]
    %v430 = vld [vmem:[#allocation4 + $0x588] sm:$0xff]
    %v431 = vld [vmem:[#allocation4 + $0x590] sm:$0xff]
    %v432 = vld [vmem:[#allocation4 + $0x598] sm:$0xff]
    %v433 = vld [vmem:[#allocation4 + $0x5a0] sm:$0xff]
    %v434 = vld [vmem:[#allocation4 + $0x5a8] sm:$0xff]
    %v435 = vld [vmem:[#allocation4 + $0x5b0] sm:$0xff]
    %v436 = vld [vmem:[#allocation4 + $0x5b8] sm:$0xff]
    %v437 = vld [vmem:[#allocation4 + $0x5c0] sm:$0xff]
    %v438 = vld [vmem:[#allocation4 + $0x5c8] sm:$0xff]
    %v439 = vld [vmem:[#allocation4 + $0x5d0] sm:$0xff]
    %v440 = vld [vmem:[#allocation4 + $0x5d8] sm:$0xff]
    %v441 = vld [vmem:[#allocation4 + $0x5e0] sm:$0xff]
    %v442 = vld [vmem:[#allocation4 + $0x5e8] sm:$0xff]
    %v443 = vld [vmem:[#allocation4 + $0x5f0] sm:$0xff]
    %v444 = vld [vmem:[#allocation4 + $0x5f8] sm:$0xff]
    %v445 = vld [vmem:[#allocation4 + $0x600] sm:$0xff]
    %v446 = vld [vmem:[#allocation4 + $0x608] sm:$0xff]
    %v447 = vld [vmem:[#allocation4 + $0x610] sm:$0xff]
    %v448 = vld [vmem:[#allocation4 + $0x618] sm:$0xff]
    %v449 = vld [vmem:[#allocation4 + $0x620] sm:$0xff]
    %v450 = vld [vmem:[#allocation4 + $0x628] sm:$0xff]
    %v451 = vld [vmem:[#allocation4 + $0x630] sm:$0xff]
    %v452 = vld [vmem:[#allocation4 + $0x638] sm:$0xff]
    %v453 = vld [vmem:[#allocation4 + $0x640] sm:$0xff]
    %v454 = vld [vmem:[#allocation4 + $0x648] sm:$0xff]
    %v455 = vld [vmem:[#allocation4 + $0x650] sm:$0xff]
    %v456 = vld [vmem:[#allocation4 + $0x658] sm:$0xff]
    %v457 = vld [vmem:[#allocation4 + $0x660] sm:$0xff]
    %v458 = vld [vmem:[#allocation4 + $0x668] sm:$0xff]
    %v459 = vld [vmem:[#allocation4 + $0x670] sm:$0xff]
    %v460 = vld [vmem:[#allocation4 + $0x678] sm:$0xff]
    %v461 = vld [vmem:[#allocation4 + $0x680] sm:$0xff]
    %v462 = vld [vmem:[#allocation4 + $0x688] sm:$0xff]
    %v463 = vld [vmem:[#allocation4 + $0x690] sm:$0xff]
    %v464 = vld [vmem:[#allocation4 + $0x698] sm:$0xff]
    %v465 = vld [vmem:[#allocation4 + $0x6a0] sm:$0xff]
    %v466 = vld [vmem:[#allocation4 + $0x6a8] sm:$0xff]
    %v467 = vld [vmem:[#allocation4 + $0x6b0] sm:$0xff]
    %v468 = vld [vmem:[#allocation4 + $0x6b8] sm:$0xff]
    %v469 = vld [vmem:[#allocation4 + $0x6c0] sm:$0xff]
    %v470 = vld [vmem:[#allocation4 + $0x6c8] sm:$0xff]
    %v471 = vld [vmem:[#allocation4 + $0x6d0] sm:$0xff]
    %v472 = vld [vmem:[#allocation4 + $0x6d8] sm:$0xff]
    %v473 = vld [vmem:[#allocation4 + $0x6e0] sm:$0xff]
    %v474 = vld [vmem:[#allocation4 + $0x6e8] sm:$0xff]
    %v475 = vld [vmem:[#allocation4 + $0x6f0] sm:$0xff]
    %v476 = vld [vmem:[#allocation4 + $0x6f8] sm:$0xff]
    %v477 = vld [vmem:[#allocation4 + $0x700] sm:$0xff]
    %v478 = vld [vmem:[#allocation4 + $0x708] sm:$0xff]
    %v479 = vld [vmem:[#allocation4 + $0x710] sm:$0xff]
    %v480 = vld [vmem:[#allocation4 + $0x718] sm:$0xff]
    %v481 = vld [vmem:[#allocation4 + $0x720] sm:$0xff]
    %v482 = vld [vmem:[#allocation4 + $0x728] sm:$0xff]
    %v483 = vld [vmem:[#allocation4 + $0x730] sm:$0xff]
    %v484 = vld [vmem:[#allocation4 + $0x738] sm:$0xff]
    %v485 = vld [vmem:[#allocation4 + $0x740] sm:$0xff]
    %v486 = vld [vmem:[#allocation4 + $0x748] sm:$0xff]
    %v487 = vld [vmem:[#allocation4 + $0x750] sm:$0xff]
    %v488 = vld [vmem:[#allocation4 + $0x758] sm:$0xff]
    %v489 = vld [vmem:[#allocation4 + $0x760] sm:$0xff]
    %v490 = vld [vmem:[#allocation4 + $0x768] sm:$0xff]
    %v491 = vld [vmem:[#allocation4 + $0x770] sm:$0xff]
    %v492 = vld [vmem:[#allocation4 + $0x778] sm:$0xff]
    %v493 = vld [vmem:[#allocation4 + $0x780] sm:$0xff]
    %v494 = vld [vmem:[#allocation4 + $0x788] sm:$0xff]
    %v495 = vld [vmem:[#allocation4 + $0x790] sm:$0xff]
    %v496 = vld [vmem:[#allocation4 + $0x798] sm:$0xff]
    %v497 = vld [vmem:[#allocation4 + $0x7a0] sm:$0xff]
    %v498 = vld [vmem:[#allocation4 + $0x7a8] sm:$0xff]
    %v499 = vld [vmem:[#allocation4 + $0x7b0] sm:$0xff]
    %v500 = vld [vmem:[#allocation4 + $0x7b8] sm:$0xff]
    %v501 = vld [vmem:[#allocation4 + $0x7c0] sm:$0xff]
    %v502 = vld [vmem:[#allocation4 + $0x7c8] sm:$0xff]
    %v503 = vld [vmem:[#allocation4 + $0x7d0] sm:$0xff]
    %v504 = vld [vmem:[#allocation4 + $0x7d8] sm:$0xff]
    %v505 = vld [vmem:[#allocation4 + $0x7e0] sm:$0xff]
    %v506 = vld [vmem:[#allocation4 + $0x7e8] sm:$0xff]
    %v507 = vld [vmem:[#allocation4 + $0x7f0] sm:$0xff]
    %v508 = vld [vmem:[#allocation4 + $0x7f8] sm:$0xff]
    %v509 = vld [vmem:[#allocation4 + $0x800] sm:$0xff]
    %v510 = vld [vmem:[#allocation4 + $0x808] sm:$0xff]
    %v511 = vld [vmem:[#allocation4 + $0x810] sm:$0xff]
    %v512 = vld [vmem:[#allocation4 + $0x818] sm:$0xff]
    %v513 = vld [vmem:[#allocation4 + $0x820] sm:$0xff]
    %v514 = vld [vmem:[#allocation4 + $0x828] sm:$0xff]
    %v515 = vld [vmem:[#allocation4 + $0x830] sm:$0xff]
    %v516 = vld [vmem:[#allocation4 + $0x838] sm:$0xff]
    %v517 = vld [vmem:[#allocation4 + $0x840] sm:$0xff]
    %v518 = vld [vmem:[#allocation4 + $0x848] sm:$0xff]
    %v519 = vld [vmem:[#allocation4 + $0x850] sm:$0xff]
    %v520 = vld [vmem:[#allocation4 + $0x858] sm:$0xff]
    %v521 = vld [vmem:[#allocation4 + $0x860] sm:$0xff]
    %v522 = vld [vmem:[#allocation4 + $0x868] sm:$0xff]
    %v523 = vld [vmem:[#allocation4 + $0x870] sm:$0xff]
    %v524 = vld [vmem:[#allocation4 + $0x878] sm:$0xff]
    %v525 = vld [vmem:[#allocation4 + $0x880] sm:$0xff]
    %v526 = vld [vmem:[#allocation4 + $0x888] sm:$0xff]
    %v527 = vld [vmem:[#allocation4 + $0x890] sm:$0xff]
    %v528 = vld [vmem:[#allocation4 + $0x898] sm:$0xff]
    %v529 = vld [vmem:[#allocation4 + $0x8a0] sm:$0xff]
    %v530 = vld [vmem:[#allocation4 + $0x8a8] sm:$0xff]
    %v531 = vld [vmem:[#allocation4 + $0x8b0] sm:$0xff]
    %v532 = vld [vmem:[#allocation4 + $0x8b8] sm:$0xff]
    %v533 = vld [vmem:[#allocation4 + $0x8c0] sm:$0xff]
    %v534 = vld [vmem:[#allocation4 + $0x8c8] sm:$0xff]
    %v535 = vld [vmem:[#allocation4 + $0x8d0] sm:$0xff]
    %v536 = vld [vmem:[#allocation4 + $0x8d8] sm:$0xff]
    %v537 = vld [vmem:[#allocation4 + $0x8e0] sm:$0xff]
    %v538 = vld [vmem:[#allocation4 + $0x8e8] sm:$0xff]
    %v539 = vld [vmem:[#allocation4 + $0x8f0] sm:$0xff]
    %v540 = vld [vmem:[#allocation4 + $0x8f8] sm:$0xff]
    %v541 = vld [vmem:[#allocation4 + $0x900] sm:$0xff]
    %v542 = vld [vmem:[#allocation4 + $0x908] sm:$0xff]
    %v543 = vld [vmem:[#allocation4 + $0x910] sm:$0xff]
    %v544 = vld [vmem:[#allocation4 + $0x918] sm:$0xff]
    %v545 = vld [vmem:[#allocation4 + $0x920] sm:$0xff]
    %v546 = vld [vmem:[#allocation4 + $0x928] sm:$0xff]
    %v547 = vld [vmem:[#allocation4 + $0x930] sm:$0xff]
    %v548 = vld [vmem:[#allocation4 + $0x938] sm:$0xff]
    %v549 = vld [vmem:[#allocation4 + $0x940] sm:$0xff]
    %v550 = vld [vmem:[#allocation4 + $0x948] sm:$0xff]
    %v551 = vld [vmem:[#allocation4 + $0x950] sm:$0xff]
    %v552 = vld [vmem:[#allocation4 + $0x958] sm:$0xff]
    %v553 = vld [vmem:[#allocation4 + $0x960] sm:$0xff]
    %v554 = vld [vmem:[#allocation4 + $0x968] sm:$0xff]
    %v555 = vld [vmem:[#allocation4 + $0x970] sm:$0xff]
    %v556 = vld [vmem:[#allocation4 + $0x978] sm:$0xff]
    %v557 = vld [vmem:[#allocation4 + $0x980] sm:$0xff]
    %v558 = vld [vmem:[#allocation4 + $0x988] sm:$0xff]
    %v559 = vld [vmem:[#allocation4 + $0x990] sm:$0xff]
    %v560 = vld [vmem:[#allocation4 + $0x998] sm:$0xff]
    %v561 = vld [vmem:[#allocation4 + $0x9a0] sm:$0xff]
    %v562 = vld [vmem:[#allocation4 + $0x9a8] sm:$0xff]
    %v563 = vld [vmem:[#allocation4 + $0x9b0] sm:$0xff]
    %v564 = vld [vmem:[#allocation4 + $0x9b8] sm:$0xff]
    %v565 = vld [vmem:[#allocation4 + $0x9c0] sm:$0xff]
    %v566 = vld [vmem:[#allocation4 + $0x9c8] sm:$0xff]
    %v567 = vld [vmem:[#allocation4 + $0x9d0] sm:$0xff]
    %v568 = vld [vmem:[#allocation4 + $0x9d8] sm:$0xff]
    %v569 = vld [vmem:[#allocation4 + $0x9e0] sm:$0xff]
    %v570 = vld [vmem:[#allocation4 + $0x9e8] sm:$0xff]
    %v571 = vld [vmem:[#allocation4 + $0x9f0] sm:$0xff]
    %v572 = vld [vmem:[#allocation4 + $0x9f8] sm:$0xff]
    %v573 = vld [vmem:[#allocation4 + $0xa00] sm:$0xff]
    %v574 = vld [vmem:[#allocation4 + $0xa08] sm:$0xff]
    %v575 = vld [vmem:[#allocation4 + $0xa10] sm:$0xff]
    %v576 = vld [vmem:[#allocation4 + $0xa18] sm:$0xff]
    %v577 = vld [vmem:[#allocation4 + $0xa20] sm:$0xff]
    %v578 = vld [vmem:[#allocation4 + $0xa28] sm:$0xff]
    %v579 = vld [vmem:[#allocation4 + $0xa30] sm:$0xff]
    %v580 = vld [vmem:[#allocation4 + $0xa38] sm:$0xff]
    %v581 = vld [vmem:[#allocation4 + $0xa40] sm:$0xff]
    %v582 = vld [vmem:[#allocation4 + $0xa48] sm:$0xff]
    %v583 = vld [vmem:[#allocation4 + $0xa50] sm:$0xff]
    %v584 = vld [vmem:[#allocation4 + $0xa58] sm:$0xff]
    %v585 = vld [vmem:[#allocation4 + $0xa60] sm:$0xff]
    %v586 = vld [vmem:[#allocation4 + $0xa68] sm:$0xff]
    %v587 = vld [vmem:[#allocation4 + $0xa70] sm:$0xff]
    %v588 = vld [vmem:[#allocation4 + $0xa78] sm:$0xff]
    %v589 = vld [vmem:[#allocation4 + $0xa80] sm:$0xff]
    %v590 = vld [vmem:[#allocation4 + $0xa88] sm:$0xff]
    %v591 = vld [vmem:[#allocation4 + $0xa90] sm:$0xff]
    %v592 = vld [vmem:[#allocation4 + $0xa98] sm:$0xff]
    %v593 = vld [vmem:[#allocation4 + $0xaa0] sm:$0xff]
    %v594 = vld [vmem:[#allocation4 + $0xaa8] sm:$0xff]
    %v595 = vld [vmem:[#allocation4 + $0xab0] sm:$0xff]
    %v596 = vld [vmem:[#allocation4 + $0xab8] sm:$0xff]
    %v597 = vld [vmem:[#allocation4 + $0xac0] sm:$0xff]
    %v598 = vld [vmem:[#allocation4 + $0xac8] sm:$0xff]
    %v599 = vld [vmem:[#allocation4 + $0xad0] sm:$0xff]
    %v600 = vld [vmem:[#allocation4 + $0xad8] sm:$0xff]
    %v601 = vld [vmem:[#allocation4 + $0xae0] sm:$0xff]
    %v602 = vld [vmem:[#allocation4 + $0xae8] sm:$0xff]
    %v603 = vld [vmem:[#allocation4 + $0xaf0] sm:$0xff]
    %v604 = vld [vmem:[#allocation4 + $0xaf8] sm:$0xff]
    %v605 = vld [vmem:[#allocation4 + $0xb00] sm:$0xff]
    %v606 = vld [vmem:[#allocation4 + $0xb08] sm:$0xff]
    %v607 = vld [vmem:[#allocation4 + $0xb10] sm:$0xff]
    %v608 = vld [vmem:[#allocation4 + $0xb18] sm:$0xff]
    %v609 = vld [vmem:[#allocation4 + $0xb20] sm:$0xff]
    %v610 = vld [vmem:[#allocation4 + $0xb28] sm:$0xff]
    %v611 = vld [vmem:[#allocation4 + $0xb30] sm:$0xff]
    %v612 = vld [vmem:[#allocation4 + $0xb38] sm:$0xff]
    %v613 = vld [vmem:[#allocation4 + $0xb40] sm:$0xff]
    %v614 = vld [vmem:[#allocation4 + $0xb48] sm:$0xff]
    %v615 = vld [vmem:[#allocation4 + $0xb50] sm:$0xff]
    %v616 = vld [vmem:[#allocation4 + $0xb58] sm:$0xff]
    %v617 = vld [vmem:[#allocation4 + $0xb60] sm:$0xff]
    %v618 = vld [vmem:[#allocation4 + $0xb68] sm:$0xff]
    %v619 = vld [vmem:[#allocation4 + $0xb70] sm:$0xff]
    %v620 = vld [vmem:[#allocation4 + $0xb78] sm:$0xff]
    %v621 = vld [vmem:[#allocation4 + $0xb80] sm:$0xff]
    %v622 = vld [vmem:[#allocation4 + $0xb88] sm:$0xff]
    %v623 = vld [vmem:[#allocation4 + $0xb90] sm:$0xff]
    %v624 = vld [vmem:[#allocation4 + $0xb98] sm:$0xff]
    %v625 = vld [vmem:[#allocation4 + $0xba0] sm:$0xff]
    %v626 = vld [vmem:[#allocation4 + $0xba8] sm:$0xff]
    %v627 = vld [vmem:[#allocation4 + $0xbb0] sm:$0xff]
    %v628 = vld [vmem:[#allocation4 + $0xbb8] sm:$0xff]
    %v629 = vld [vmem:[#allocation4 + $0xbc0] sm:$0xff]
    %v630 = vld [vmem:[#allocation4 + $0xbc8] sm:$0xff]
    %v631 = vld [vmem:[#allocation4 + $0xbd0] sm:$0xff]
    %v632 = vld [vmem:[#allocation4 + $0xbd8] sm:$0xff]
    %v633 = vld [vmem:[#allocation4 + $0xbe0] sm:$0xff]
    %v634 = vld [vmem:[#allocation4 + $0xbe8] sm:$0xff]
    %v635 = vld [vmem:[#allocation4 + $0xbf0] sm:$0xff]
    %v636 = vld [vmem:[#allocation4 + $0xbf8] sm:$0xff]
    %v637 = vld [vmem:[#allocation4 + $0xc00] sm:$0xff]
    %v638 = vld [vmem:[#allocation4 + $0xc08] sm:$0xff]
    %v639 = vld [vmem:[#allocation4 + $0xc10] sm:$0xff]
    %v640 = vld [vmem:[#allocation4 + $0xc18] sm:$0xff]
    %v641 = vld [vmem:[#allocation4 + $0xc20] sm:$0xff]
    %v642 = vld [vmem:[#allocation4 + $0xc28] sm:$0xff]
    %v643 = vld [vmem:[#allocation4 + $0xc30] sm:$0xff]
    %v644 = vld [vmem:[#allocation4 + $0xc38] sm:$0xff]
    %v645 = vld [vmem:[#allocation4 + $0xc40] sm:$0xff]
    %v646 = vld [vmem:[#allocation4 + $0xc48] sm:$0xff]
    %v647 = vld [vmem:[#allocation4 + $0xc50] sm:$0xff]
    %v648 = vld [vmem:[#allocation4 + $0xc58] sm:$0xff]
    %v649 = vld [vmem:[#allocation4 + $0xc60] sm:$0xff]
    %v650 = vld [vmem:[#allocation4 + $0xc68] sm:$0xff]
    %v651 = vld [vmem:[#allocation4 + $0xc70] sm:$0xff]
    %v652 = vld [vmem:[#allocation4 + $0xc78] sm:$0xff]
    %v653 = vld [vmem:[#allocation4 + $0xc80] sm:$0xff]
    %v654 = vld [vmem:[#allocation4 + $0xc88] sm:$0xff]
    %v655 = vld [vmem:[#allocation4 + $0xc90] sm:$0xff]
    %v656 = vld [vmem:[#allocation4 + $0xc98] sm:$0xff]
    %v657 = vld [vmem:[#allocation4 + $0xca0] sm:$0xff]
    %v658 = vld [vmem:[#allocation4 + $0xca8] sm:$0xff]
    %v659 = vld [vmem:[#allocation4 + $0xcb0] sm:$0xff]
    %v660 = vld [vmem:[#allocation4 + $0xcb8] sm:$0xff]
    %v661 = vld [vmem:[#allocation4 + $0xcc0] sm:$0xff]
    %v662 = vld [vmem:[#allocation4 + $0xcc8] sm:$0xff]
    %v663 = vld [vmem:[#allocation4 + $0xcd0] sm:$0xff]
    %v664 = vld [vmem:[#allocation4 + $0xcd8] sm:$0xff]
    %v665 = vld [vmem:[#allocation4 + $0xce0] sm:$0xff]
    %v666 = vld [vmem:[#allocation4 + $0xce8] sm:$0xff]
    %v667 = vld [vmem:[#allocation4 + $0xcf0] sm:$0xff]
    %v668 = vld [vmem:[#allocation4 + $0xcf8] sm:$0xff]
    %v669 = vld [vmem:[#allocation4 + $0xd00] sm:$0xff]
    %v670 = vld [vmem:[#allocation4 + $0xd08] sm:$0xff]
    %v671 = vld [vmem:[#allocation4 + $0xd10] sm:$0xff]
    %v672 = vld [vmem:[#allocation4 + $0xd18] sm:$0xff]
    %v673 = vld [vmem:[#allocation4 + $0xd20] sm:$0xff]
    %v674 = vld [vmem:[#allocation4 + $0xd28] sm:$0xff]
    %v675 = vld [vmem:[#allocation4 + $0xd30] sm:$0xff]
    %v676 = vld [vmem:[#allocation4 + $0xd38] sm:$0xff]
    %v677 = vld [vmem:[#allocation4 + $0xd40] sm:$0xff]
    %v678 = vld [vmem:[#allocation4 + $0xd48] sm:$0xff]
    %v679 = vld [vmem:[#allocation4 + $0xd50] sm:$0xff]
    %v680 = vld [vmem:[#allocation4 + $0xd58] sm:$0xff]
    %v681 = vld [vmem:[#allocation4 + $0xd60] sm:$0xff]
    %v682 = vld [vmem:[#allocation4 + $0xd68] sm:$0xff]
    %v683 = vld [vmem:[#allocation4 + $0xd70] sm:$0xff]
    %v684 = vld [vmem:[#allocation4 + $0xd78] sm:$0xff]
    %v685 = vld [vmem:[#allocation4 + $0xd80] sm:$0xff]
    %v686 = vld [vmem:[#allocation4 + $0xd88] sm:$0xff]
    %v687 = vld [vmem:[#allocation4 + $0xd90] sm:$0xff]
    %v688 = vld [vmem:[#allocation4 + $0xd98] sm:$0xff]
    %v689 = vld [vmem:[#allocation4 + $0xda0] sm:$0xff]
    %v690 = vld [vmem:[#allocation4 + $0xda8] sm:$0xff]
    %v691 = vld [vmem:[#allocation4 + $0xdb0] sm:$0xff]
    %v692 = vld [vmem:[#allocation4 + $0xdb8] sm:$0xff]
    %v693 = vld [vmem:[#allocation4 + $0xdc0] sm:$0xff]
    %v694 = vld [vmem:[#allocation4 + $0xdc8] sm:$0xff]
    %v695 = vld [vmem:[#allocation4 + $0xdd0] sm:$0xff]
    %v696 = vld [vmem:[#allocation4 + $0xdd8] sm:$0xff]
    %v697 = vld [vmem:[#allocation4 + $0xde0] sm:$0xff]
    %v698 = vld [vmem:[#allocation4 + $0xde8] sm:$0xff]
    %v699 = vld [vmem:[#allocation4 + $0xdf0] sm:$0xff]
    %v700 = vld [vmem:[#allocation4 + $0xdf8] sm:$0xff]
    %v701 = vld [vmem:[#allocation4 + $0xe00] sm:$0xff]
    %v702 = vld [vmem:[#allocation4 + $0xe08] sm:$0xff]
    %v703 = vld [vmem:[#allocation4 + $0xe10] sm:$0xff]
    %v704 = vld [vmem:[#allocation4 + $0xe18] sm:$0xff]
    %v705 = vld [vmem:[#allocation4 + $0xe20] sm:$0xff]
    %v706 = vld [vmem:[#allocation4 + $0xe28] sm:$0xff]
    %v707 = vld [vmem:[#allocation4 + $0xe30] sm:$0xff]
    %v708 = vld [vmem:[#allocation4 + $0xe38] sm:$0xff]
    %v709 = vld [vmem:[#allocation4 + $0xe40] sm:$0xff]
    %v710 = vld [vmem:[#allocation4 + $0xe48] sm:$0xff]
    %v711 = vld [vmem:[#allocation4 + $0xe50] sm:$0xff]
    %v712 = vld [vmem:[#allocation4 + $0xe58] sm:$0xff]
    %v713 = vld [vmem:[#allocation4 + $0xe60] sm:$0xff]
    %v714 = vld [vmem:[#allocation4 + $0xe68] sm:$0xff]
    %v715 = vld [vmem:[#allocation4 + $0xe70] sm:$0xff]
    %v716 = vld [vmem:[#allocation4 + $0xe78] sm:$0xff]
    %v717 = vld [vmem:[#allocation4 + $0xe80] sm:$0xff]
    %v718 = vld [vmem:[#allocation4 + $0xe88] sm:$0xff]
    %v719 = vld [vmem:[#allocation4 + $0xe90] sm:$0xff]
    %v720 = vld [vmem:[#allocation4 + $0xe98] sm:$0xff]
    %v721 = vld [vmem:[#allocation4 + $0xea0] sm:$0xff]
    %v722 = vld [vmem:[#allocation4 + $0xea8] sm:$0xff]
    %v723 = vld [vmem:[#allocation4 + $0xeb0] sm:$0xff]
    %v724 = vld [vmem:[#allocation4 + $0xeb8] sm:$0xff]
    %v725 = vld [vmem:[#allocation4 + $0xec0] sm:$0xff]
    %v726 = vld [vmem:[#allocation4 + $0xec8] sm:$0xff]
    %v727 = vld [vmem:[#allocation4 + $0xed0] sm:$0xff]
    %v728 = vld [vmem:[#allocation4 + $0xed8] sm:$0xff]
    %v729 = vld [vmem:[#allocation4 + $0xee0] sm:$0xff]
    %v730 = vld [vmem:[#allocation4 + $0xee8] sm:$0xff]
    %v731 = vld [vmem:[#allocation4 + $0xef0] sm:$0xff]
    %v732 = vld [vmem:[#allocation4 + $0xef8] sm:$0xff]
    %v733 = vld [vmem:[#allocation4 + $0xf00] sm:$0xff]
    %v734 = vld [vmem:[#allocation4 + $0xf08] sm:$0xff]
    %v735 = vld [vmem:[#allocation4 + $0xf10] sm:$0xff]
    %v736 = vld [vmem:[#allocation4 + $0xf18] sm:$0xff]
    %v737 = vld [vmem:[#allocation4 + $0xf20] sm:$0xff]
    %v738 = vld [vmem:[#allocation4 + $0xf28] sm:$0xff]
    %v739 = vld [vmem:[#allocation4 + $0xf30] sm:$0xff]
    %v740 = vld [vmem:[#allocation4 + $0xf38] sm:$0xff]
    %v741 = vld [vmem:[#allocation4 + $0xf40] sm:$0xff]
    %v742 = vld [vmem:[#allocation4 + $0xf48] sm:$0xff]
    %v743 = vld [vmem:[#allocation4 + $0xf50] sm:$0xff]
    %v744 = vld [vmem:[#allocation4 + $0xf58] sm:$0xff]
    %v745 = vld [vmem:[#allocation4 + $0xf60] sm:$0xff]
    %v746 = vld [vmem:[#allocation4 + $0xf68] sm:$0xff]
    %v747 = vld [vmem:[#allocation4 + $0xf70] sm:$0xff]
    %v748 = vld [vmem:[#allocation4 + $0xf78] sm:$0xff]
    %v749 = vld [vmem:[#allocation4 + $0xf80] sm:$0xff]
    %v750 = vld [vmem:[#allocation4 + $0xf88] sm:$0xff]
    %v751 = vld [vmem:[#allocation4 + $0xf90] sm:$0xff]
    %v752 = vld [vmem:[#allocation4 + $0xf98] sm:$0xff]
    %v753 = vld [vmem:[#allocation4 + $0xfa0] sm:$0xff]
    %v754 = vld [vmem:[#allocation4 + $0xfa8] sm:$0xff]
    %v755 = vld [vmem:[#allocation4 + $0xfb0] sm:$0xff]
    %v756 = vld [vmem:[#allocation4 + $0xfb8] sm:$0xff]
    %v757 = vld [vmem:[#allocation4 + $0xfc0] sm:$0xff]
    %v758 = vld [vmem:[#allocation4 + $0xfc8] sm:$0xff]
    %v759 = vld [vmem:[#allocation4 + $0xfd0] sm:$0xff]
    %v760 = vld [vmem:[#allocation4 + $0xfd8] sm:$0xff]
    %v761 = vld [vmem:[#allocation4 + $0xfe0] sm:$0xff]
    %v762 = vld [vmem:[#allocation4 + $0xfe8] sm:$0xff]
    %v763 = vld [vmem:[#allocation4 + $0xff0] sm:$0xff]
    %v764 = vld [vmem:[#allocation4 + $0xff8] sm:$0xff]
    %v765 = vld [vmem:[#allocation4 + $0x1000] sm:$0xff]
    %v766 = vld [vmem:[#allocation4 + $0x1008] sm:$0xff]
    %v767 = vld [vmem:[#allocation4 + $0x1010] sm:$0xff]
    %v768 = vld [vmem:[#allocation4 + $0x1018] sm:$0xff]
    %v769 = vld [vmem:[#allocation4 + $0x1020] sm:$0xff]
    %v770 = vld [vmem:[#allocation4 + $0x1028] sm:$0xff]
    %v771 = vld [vmem:[#allocation4 + $0x1030] sm:$0xff]
    %v772 = vld [vmem:[#allocation4 + $0x1038] sm:$0xff]
    %v773 = vld [vmem:[#allocation4 + $0x1040] sm:$0xff]
    %v774 = vld [vmem:[#allocation4 + $0x1048] sm:$0xff]
    %v775 = vld [vmem:[#allocation4 + $0x1050] sm:$0xff]
    %v776 = vld [vmem:[#allocation4 + $0x1058] sm:$0xff]
    %v777 = vld [vmem:[#allocation4 + $0x1060] sm:$0xff]
    %v778 = vld [vmem:[#allocation4 + $0x1068] sm:$0xff]
    %v779 = vld [vmem:[#allocation4 + $0x1070] sm:$0xff]
    %v780 = vld [vmem:[#allocation4 + $0x1078] sm:$0xff]
    %v781 = vld [vmem:[#allocation4 + $0x1080] sm:$0xff]
    %v782 = vld [vmem:[#allocation4 + $0x1088] sm:$0xff]
    %v783 = vld [vmem:[#allocation4 + $0x1090] sm:$0xff]
    %v784 = vld [vmem:[#allocation4 + $0x1098] sm:$0xff]
    %v785 = vld [vmem:[#allocation4 + $0x10a0] sm:$0xff]
    %v786 = vld [vmem:[#allocation4 + $0x10a8] sm:$0xff]
    %v787 = vld [vmem:[#allocation4 + $0x10b0] sm:$0xff]
    %v788 = vld [vmem:[#allocation4 + $0x10b8] sm:$0xff]
    %v789 = vld [vmem:[#allocation4 + $0x10c0] sm:$0xff]
    %v790 = vld [vmem:[#allocation4 + $0x10c8] sm:$0xff]
    %v791 = vld [vmem:[#allocation4 + $0x10d0] sm:$0xff]
    %v792 = vld [vmem:[#allocation4 + $0x10d8] sm:$0xff]
    %v793 = vld [vmem:[#allocation4 + $0x10e0] sm:$0xff]
    %v794 = vld [vmem:[#allocation4 + $0x10e8] sm:$0xff]
    %v795 = vld [vmem:[#allocation4 + $0x10f0] sm:$0xff]
    %v796 = vld [vmem:[#allocation4 + $0x10f8] sm:$0xff]
    %v797 = vld [vmem:[#allocation4 + $0x1100] sm:$0xff]
    %v798 = vld [vmem:[#allocation4 + $0x1108] sm:$0xff]
    %v799 = vld [vmem:[#allocation4 + $0x1110] sm:$0xff]
    %v800 = vld [vmem:[#allocation4 + $0x1118] sm:$0xff]
    %v801 = vld [vmem:[#allocation4 + $0x1120] sm:$0xff]
    %v802 = vld [vmem:[#allocation4 + $0x1128] sm:$0xff]
    %v803 = vld [vmem:[#allocation4 + $0x1130] sm:$0xff]
    %v804 = vld [vmem:[#allocation4 + $0x1138] sm:$0xff]
    %v805 = vld [vmem:[#allocation4 + $0x1140] sm:$0xff]
    %v806 = vld [vmem:[#allocation4 + $0x1148] sm:$0xff]
    %v807 = vld [vmem:[#allocation4 + $0x1150] sm:$0xff]
    %v808 = vld [vmem:[#allocation4 + $0x1158] sm:$0xff]
    %v809 = vld [vmem:[#allocation4 + $0x1160] sm:$0xff]
    %v810 = vld [vmem:[#allocation4 + $0x1168] sm:$0xff]
    %v811 = vld [vmem:[#allocation4 + $0x1170] sm:$0xff]
    %v812 = vld [vmem:[#allocation4 + $0x1178] sm:$0xff]
    %v813 = vld [vmem:[#allocation4 + $0x1180] sm:$0xff]
    %v814 = vld [vmem:[#allocation4 + $0x1188] sm:$0xff]
    %v815 = vld [vmem:[#allocation4 + $0x1190] sm:$0xff]
    %v816 = vld [vmem:[#allocation4 + $0x1198] sm:$0xff]
    %v817 = vld [vmem:[#allocation4 + $0x11a0] sm:$0xff]
    %v818 = vld [vmem:[#allocation4 + $0x11a8] sm:$0xff]
    %v819 = vld [vmem:[#allocation4 + $0x11b0] sm:$0xff]
    %v820 = vld [vmem:[#allocation4 + $0x11b8] sm:$0xff]
    %v821 = vld [vmem:[#allocation4 + $0x11c0] sm:$0xff]
    %v822 = vld [vmem:[#allocation4 + $0x11c8] sm:$0xff]
    %v823 = vld [vmem:[#allocation4 + $0x11d0] sm:$0xff]
    %v824 = vld [vmem:[#allocation4 + $0x11d8] sm:$0xff]
    %v825 = vld [vmem:[#allocation4 + $0x11e0] sm:$0xff]
    %v826 = vld [vmem:[#allocation4 + $0x11e8] sm:$0xff]
    %v827 = vld [vmem:[#allocation4 + $0x11f0] sm:$0xff]
    %v828 = vld [vmem:[#allocation4 + $0x11f8] sm:$0xff]
    %v829 = vld [vmem:[#allocation4 + $0x1200] sm:$0xff]
    %v830 = vld [vmem:[#allocation4 + $0x1208] sm:$0xff]
    %v831 = vld [vmem:[#allocation4 + $0x1210] sm:$0xff]
    %v832 = vld [vmem:[#allocation4 + $0x1218] sm:$0xff]
    %v833 = vld [vmem:[#allocation4 + $0x1220] sm:$0xff]
    %v834 = vld [vmem:[#allocation4 + $0x1228] sm:$0xff]
    %v835 = vld [vmem:[#allocation4 + $0x1230] sm:$0xff]
    %v836 = vld [vmem:[#allocation4 + $0x1238] sm:$0xff]
    %v837 = vld [vmem:[#allocation4 + $0x1240] sm:$0xff]
    %v838 = vld [vmem:[#allocation4 + $0x1248] sm:$0xff]
    %v839 = vld [vmem:[#allocation4 + $0x1250] sm:$0xff]
    %v840 = vld [vmem:[#allocation4 + $0x1258] sm:$0xff]
    %v841 = vld [vmem:[#allocation4 + $0x1260] sm:$0xff]
    %v842 = vld [vmem:[#allocation4 + $0x1268] sm:$0xff]
    %v843 = vld [vmem:[#allocation4 + $0x1270] sm:$0xff]
    %v844 = vld [vmem:[#allocation4 + $0x1278] sm:$0xff]
    %v845 = vld [vmem:[#allocation4 + $0x1280] sm:$0xff]
    %v846 = vld [vmem:[#allocation4 + $0x1288] sm:$0xff]
    %v847 = vld [vmem:[#allocation4 + $0x1290] sm:$0xff]
    %v848 = vld [vmem:[#allocation4 + $0x1298] sm:$0xff]
    %v849 = vld [vmem:[#allocation4 + $0x12a0] sm:$0xff]
    %v850 = vld [vmem:[#allocation4 + $0x12a8] sm:$0xff]
    %v851 = vld [vmem:[#allocation4 + $0x12b0] sm:$0xff]
    %v852 = vld [vmem:[#allocation4 + $0x12b8] sm:$0xff]
    %v853 = vld [vmem:[#allocation4 + $0x12c0] sm:$0xff]
    %v854 = vld [vmem:[#allocation4 + $0x12c8] sm:$0xff]
    %v855 = vld [vmem:[#allocation4 + $0x12d0] sm:$0xff]
    %v856 = vld [vmem:[#allocation4 + $0x12d8] sm:$0xff]
    %v857 = vld [vmem:[#allocation4 + $0x12e0] sm:$0xff]
    %v858 = vld [vmem:[#allocation4 + $0x12e8] sm:$0xff]
    %v859 = vld [vmem:[#allocation4 + $0x12f0] sm:$0xff]
    %v860 = vld [vmem:[#allocation4 + $0x12f8] sm:$0xff]
    %v861 = vld [vmem:[#allocation4 + $0x1300] sm:$0xff]
    %v862 = vld [vmem:[#allocation4 + $0x1308] sm:$0xff]
    %v863 = vld [vmem:[#allocation4 + $0x1310] sm:$0xff]
    %v864 = vld [vmem:[#allocation4 + $0x1318] sm:$0xff]
    %v865 = vld [vmem:[#allocation4 + $0x1320] sm:$0xff]
    %v866 = vld [vmem:[#allocation4 + $0x1328] sm:$0xff]
    %v867 = vld [vmem:[#allocation4 + $0x1330] sm:$0xff]
    %v868 = vld [vmem:[#allocation4 + $0x1338] sm:$0xff]
    %v869 = vld [vmem:[#allocation4 + $0x1340] sm:$0xff]
    %v870 = vld [vmem:[#allocation4 + $0x1348] sm:$0xff]
    %v871 = vld [vmem:[#allocation4 + $0x1350] sm:$0xff]
    %v872 = vld [vmem:[#allocation4 + $0x1358] sm:$0xff]
    %v873 = vld [vmem:[#allocation4 + $0x1360] sm:$0xff]
    %v874 = vld [vmem:[#allocation4 + $0x1368] sm:$0xff]
    %v875 = vld [vmem:[#allocation4 + $0x1370] sm:$0xff]
    %v876 = vld [vmem:[#allocation4 + $0x1378] sm:$0xff]
    %v877 = vld [vmem:[#allocation4 + $0x1380] sm:$0xff]
    %v878 = vld [vmem:[#allocation4 + $0x1388] sm:$0xff]
    %v879 = vld [vmem:[#allocation4 + $0x1390] sm:$0xff]
    %v880 = vld [vmem:[#allocation4 + $0x1398] sm:$0xff]
    %v881 = vld [vmem:[#allocation4 + $0x13a0] sm:$0xff]
    %v882 = vld [vmem:[#allocation4 + $0x13a8] sm:$0xff]
    %v883 = vld [vmem:[#allocation4 + $0x13b0] sm:$0xff]
    %v884 = vld [vmem:[#allocation4 + $0x13b8] sm:$0xff]
    %v885 = vld [vmem:[#allocation4 + $0x13c0] sm:$0xff]
    %v886 = vld [vmem:[#allocation4 + $0x13c8] sm:$0xff]
    %v887 = vld [vmem:[#allocation4 + $0x13d0] sm:$0xff]
    %v888 = vld [vmem:[#allocation4 + $0x13d8] sm:$0xff]
    %v889 = vld [vmem:[#allocation4 + $0x13e0] sm:$0xff]
    %v890 = vld [vmem:[#allocation4 + $0x13e8] sm:$0xff]
    %v891 = vld [vmem:[#allocation4 + $0x13f0] sm:$0xff]
    %v892 = vld [vmem:[#allocation4 + $0x13f8] sm:$0xff]
    %v893 = vld [vmem:[#allocation4 + $0x1400] sm:$0xff]
    %v894 = vld [vmem:[#allocation4 + $0x1408] sm:$0xff]
    %v895 = vld [vmem:[#allocation4 + $0x1410] sm:$0xff]
    %v896 = vld [vmem:[#allocation4 + $0x1418] sm:$0xff]
    %v897 = vld [vmem:[#allocation4 + $0x1420] sm:$0xff]
    %v898 = vld [vmem:[#allocation4 + $0x1428] sm:$0xff]
    %v899 = vld [vmem:[#allocation4 + $0x1430] sm:$0xff]
    %v900 = vld [vmem:[#allocation4 + $0x1438] sm:$0xff]
    %v901 = vld [vmem:[#allocation4 + $0x1440] sm:$0xff]
    %v902 = vld [vmem:[#allocation4 + $0x1448] sm:$0xff]
    %v903 = vld [vmem:[#allocation4 + $0x1450] sm:$0xff]
    %v904 = vld [vmem:[#allocation4 + $0x1458] sm:$0xff]
    %v905 = vld [vmem:[#allocation4 + $0x1460] sm:$0xff]
    %v906 = vld [vmem:[#allocation4 + $0x1468] sm:$0xff]
    %v907 = vld [vmem:[#allocation4 + $0x1470] sm:$0xff]
    %v908 = vld [vmem:[#allocation4 + $0x1478] sm:$0xff]
    %v909 = vld [vmem:[#allocation4 + $0x1480] sm:$0xff]
    %v910 = vld [vmem:[#allocation4 + $0x1488] sm:$0xff]
    %v911 = vld [vmem:[#allocation4 + $0x1490] sm:$0xff]
    %v912 = vld [vmem:[#allocation4 + $0x1498] sm:$0xff]
    %v913 = vld [vmem:[#allocation4 + $0x14a0] sm:$0xff]
    %v914 = vld [vmem:[#allocation4 + $0x14a8] sm:$0xff]
    %v915 = vld [vmem:[#allocation4 + $0x14b0] sm:$0xff]
    %v916 = vld [vmem:[#allocation4 + $0x14b8] sm:$0xff]
    %v917 = vld [vmem:[#allocation4 + $0x14c0] sm:$0xff]
    %v918 = vld [vmem:[#allocation4 + $0x14c8] sm:$0xff]
    %v919 = vld [vmem:[#allocation4 + $0x14d0] sm:$0xff]
    %v920 = vld [vmem:[#allocation4 + $0x14d8] sm:$0xff]
    %v921 = vld [vmem:[#allocation4 + $0x14e0] sm:$0xff]
    %v922 = vld [vmem:[#allocation4 + $0x14e8] sm:$0xff]
    %v923 = vld [vmem:[#allocation4 + $0x14f0] sm:$0xff]
    %v924 = vld [vmem:[#allocation4 + $0x14f8] sm:$0xff]
    %v925 = vld [vmem:[#allocation4 + $0x1500] sm:$0xff]
    %v926 = vld [vmem:[#allocation4 + $0x1508] sm:$0xff]
    %v927 = vld [vmem:[#allocation4 + $0x1510] sm:$0xff]
    %v928 = vld [vmem:[#allocation4 + $0x1518] sm:$0xff]
    %v929 = vld [vmem:[#allocation4 + $0x1520] sm:$0xff]
    %v930 = vld [vmem:[#allocation4 + $0x1528] sm:$0xff]
    %v931 = vld [vmem:[#allocation4 + $0x1530] sm:$0xff]
    %v932 = vld [vmem:[#allocation4 + $0x1538] sm:$0xff]
    %v933 = vld [vmem:[#allocation4 + $0x1540] sm:$0xff]
    %v934 = vld [vmem:[#allocation4 + $0x1548] sm:$0xff]
    %v935 = vld [vmem:[#allocation4 + $0x1550] sm:$0xff]
    %v936 = vld [vmem:[#allocation4 + $0x1558] sm:$0xff]
    %v937 = vld [vmem:[#allocation4 + $0x1560] sm:$0xff]
    %v938 = vld [vmem:[#allocation4 + $0x1568] sm:$0xff]
    %v939 = vld [vmem:[#allocation4 + $0x1570] sm:$0xff]
    %v940 = vld [vmem:[#allocation4 + $0x1578] sm:$0xff]
    %v941 = vld [vmem:[#allocation4 + $0x1580] sm:$0xff]
    %v942 = vld [vmem:[#allocation4 + $0x1588] sm:$0xff]
    %v943 = vld [vmem:[#allocation4 + $0x1590] sm:$0xff]
    %v944 = vld [vmem:[#allocation4 + $0x1598] sm:$0xff]
    %v945 = vld [vmem:[#allocation4 + $0x15a0] sm:$0xff]
    %v946 = vld [vmem:[#allocation4 + $0x15a8] sm:$0xff]
    %v947 = vld [vmem:[#allocation4 + $0x15b0] sm:$0xff]
    %v948 = vld [vmem:[#allocation4 + $0x15b8] sm:$0xff]
    %v949 = vld [vmem:[#allocation4 + $0x15c0] sm:$0xff]
    %v950 = vld [vmem:[#allocation4 + $0x15c8] sm:$0xff]
    %v951 = vld [vmem:[#allocation4 + $0x15d0] sm:$0xff]
    %v952 = vld [vmem:[#allocation4 + $0x15d8] sm:$0xff]
    %v953 = vld [vmem:[#allocation4 + $0x15e0] sm:$0xff]
    %v954 = vld [vmem:[#allocation4 + $0x15e8] sm:$0xff]
    %v955 = vld [vmem:[#allocation4 + $0x15f0] sm:$0xff]
    %v956 = vld [vmem:[#allocation4 + $0x15f8] sm:$0xff]
    %v957 = vld [vmem:[#allocation4 + $0x1600] sm:$0xff]
    %v958 = vld [vmem:[#allocation4 + $0x1608] sm:$0xff]
    %v959 = vld [vmem:[#allocation4 + $0x1610] sm:$0xff]
    %v960 = vld [vmem:[#allocation4 + $0x1618] sm:$0xff]
    %v961 = vld [vmem:[#allocation4 + $0x1620] sm:$0xff]
    %v962 = vld [vmem:[#allocation4 + $0x1628] sm:$0xff]
    %v963 = vld [vmem:[#allocation4 + $0x1630] sm:$0xff]
    %v964 = vld [vmem:[#allocation4 + $0x1638] sm:$0xff]
    %v965 = vld [vmem:[#allocation4 + $0x1640] sm:$0xff]
    %v966 = vld [vmem:[#allocation4 + $0x1648] sm:$0xff]
    %v967 = vld [vmem:[#allocation4 + $0x1650] sm:$0xff]
    %v968 = vld [vmem:[#allocation4 + $0x1658] sm:$0xff]
    %v969 = vld [vmem:[#allocation4 + $0x1660] sm:$0xff]
    %v970 = vld [vmem:[#allocation4 + $0x1668] sm:$0xff]
    %v971 = vld [vmem:[#allocation4 + $0x1670] sm:$0xff]
    %v972 = vld [vmem:[#allocation4 + $0x1678] sm:$0xff]
    %v973 = vld [vmem:[#allocation4 + $0x1680] sm:$0xff]
    %v974 = vld [vmem:[#allocation4 + $0x1688] sm:$0xff]
    %v975 = vld [vmem:[#allocation4 + $0x1690] sm:$0xff]
    %v976 = vld [vmem:[#allocation4 + $0x1698] sm:$0xff]
    %v977 = vld [vmem:[#allocation4 + $0x16a0] sm:$0xff]
    %v978 = vld [vmem:[#allocation4 + $0x16a8] sm:$0xff]
    %v979 = vld [vmem:[#allocation4 + $0x16b0] sm:$0xff]
    %v980 = vld [vmem:[#allocation4 + $0x16b8] sm:$0xff]
    %v981 = vld [vmem:[#allocation4 + $0x16c0] sm:$0xff]
    %v982 = vld [vmem:[#allocation4 + $0x16c8] sm:$0xff]
    %v983 = vld [vmem:[#allocation4 + $0x16d0] sm:$0xff]
    %v984 = vld [vmem:[#allocation4 + $0x16d8] sm:$0xff]
    %v985 = vld [vmem:[#allocation4 + $0x16e0] sm:$0xff]
    %v986 = vld [vmem:[#allocation4 + $0x16e8] sm:$0xff]
    %v987 = vld [vmem:[#allocation4 + $0x16f0] sm:$0xff]
    %v988 = vld [vmem:[#allocation4 + $0x16f8] sm:$0xff]
    %v989 = vld [vmem:[#allocation4 + $0x1700] sm:$0xff]
    %v990 = vld [vmem:[#allocation4 + $0x1708] sm:$0xff]
    %v991 = vld [vmem:[#allocation4 + $0x1710] sm:$0xff]
    %v992 = vld [vmem:[#allocation4 + $0x1718] sm:$0xff]
    %v993 = vld [vmem:[#allocation4 + $0x1720] sm:$0xff]
    %v994 = vld [vmem:[#allocation4 + $0x1728] sm:$0xff]
    %v995 = vld [vmem:[#allocation4 + $0x1730] sm:$0xff]
    %v996 = vld [vmem:[#allocation4 + $0x1738] sm:$0xff]
    %v997 = vld [vmem:[#allocation4 + $0x1740] sm:$0xff]
    %v998 = vld [vmem:[#allocation4 + $0x1748] sm:$0xff]
    %v999 = vld [vmem:[#allocation4 + $0x1750] sm:$0xff]
    %v1000 = vld [vmem:[#allocation4 + $0x1758] sm:$0xff]
    %v1001 = vld [vmem:[#allocation4 + $0x1760] sm:$0xff]
    %v1002 = vld [vmem:[#allocation4 + $0x1768] sm:$0xff]
    %v1003 = vld [vmem:[#allocation4 + $0x1770] sm:$0xff]
    %v1004 = vld [vmem:[#allocation4 + $0x1778] sm:$0xff]
    %v1005 = vld [vmem:[#allocation4 + $0x1780] sm:$0xff]
    %v1006 = vld [vmem:[#allocation4 + $0x1788] sm:$0xff]
    %v1007 = vld [vmem:[#allocation4 + $0x1790] sm:$0xff]
    %v1008 = vld [vmem:[#allocation4 + $0x1798] sm:$0xff]
    %v1009 = vld [vmem:[#allocation4 + $0x17a0] sm:$0xff]
    %v1010 = vld [vmem:[#allocation4 + $0x17a8] sm:$0xff]
    %v1011 = vld [vmem:[#allocation4 + $0x17b0] sm:$0xff]
    %v1012 = vld [vmem:[#allocation4 + $0x17b8] sm:$0xff]
    %v1013 = vld [vmem:[#allocation4 + $0x17c0] sm:$0xff]
    %v1014 = vld [vmem:[#allocation4 + $0x17c8] sm:$0xff]
    %v1015 = vld [vmem:[#allocation4 + $0x17d0] sm:$0xff]
    %v1016 = vld [vmem:[#allocation4 + $0x17d8] sm:$0xff]
    %v1017 = vld [vmem:[#allocation4 + $0x17e0] sm:$0xff]
    %v1018 = vld [vmem:[#allocation4 + $0x17e8] sm:$0xff]
    %v1019 = vld [vmem:[#allocation4 + $0x17f0] sm:$0xff]
    %v1020 = vld [vmem:[#allocation4 + $0x17f8] sm:$0xff]
    %v1021 = vld [vmem:[#allocation4 + $0x1800] sm:$0xff]
    %v1022 = vld [vmem:[#allocation4 + $0x1808] sm:$0xff]
    %v1023 = vld [vmem:[#allocation4 + $0x1810] sm:$0xff]
    %v1024 = vld [vmem:[#allocation4 + $0x1818] sm:$0xff]
    %v1025 = vld [vmem:[#allocation4 + $0x1820] sm:$0xff]
    %v1026 = vld [vmem:[#allocation4 + $0x1828] sm:$0xff]
    %v1027 = vld [vmem:[#allocation4 + $0x1830] sm:$0xff]
    %v1028 = vld [vmem:[#allocation4 + $0x1838] sm:$0xff]
    %v1029 = vld [vmem:[#allocation4 + $0x1840] sm:$0xff]
    %v1030 = vld [vmem:[#allocation4 + $0x1848] sm:$0xff]
    %v1031 = vld [vmem:[#allocation4 + $0x1850] sm:$0xff]
    %v1032 = vld [vmem:[#allocation4 + $0x1858] sm:$0xff]
    %v1033 = vld [vmem:[#allocation4 + $0x1860] sm:$0xff]
    %v1034 = vld [vmem:[#allocation4 + $0x1868] sm:$0xff]
    %v1035 = vld [vmem:[#allocation4 + $0x1870] sm:$0xff]
    %v1036 = vld [vmem:[#allocation4 + $0x1878] sm:$0xff]
    %v1037 = vld [vmem:[#allocation4 + $0x1880] sm:$0xff]
    %v1038 = vld [vmem:[#allocation4 + $0x1888] sm:$0xff]
    %v1039 = vld [vmem:[#allocation4 + $0x1890] sm:$0xff]
    %v1040 = vld [vmem:[#allocation4 + $0x1898] sm:$0xff]
    %v1041 = vld [vmem:[#allocation4 + $0x18a0] sm:$0xff]
    %v1042 = vld [vmem:[#allocation4 + $0x18a8] sm:$0xff]
    %v1043 = vld [vmem:[#allocation4 + $0x18b0] sm:$0xff]
    %v1044 = vld [vmem:[#allocation4 + $0x18b8] sm:$0xff]
    %v1045 = vld [vmem:[#allocation4 + $0x18c0] sm:$0xff]
    %v1046 = vld [vmem:[#allocation4 + $0x18c8] sm:$0xff]
    %v1047 = vld [vmem:[#allocation4 + $0x18d0] sm:$0xff]
    %v1048 = vld [vmem:[#allocation4 + $0x18d8] sm:$0xff]
    %v1049 = vld [vmem:[#allocation4 + $0x18e0] sm:$0xff]
    %v1050 = vld [vmem:[#allocation4 + $0x18e8] sm:$0xff]
    %v1051 = vld [vmem:[#allocation4 + $0x18f0] sm:$0xff]
    %v1052 = vld [vmem:[#allocation4 + $0x18f8] sm:$0xff]
    %v1053 = vld [vmem:[#allocation4 + $0x1900] sm:$0xff]
    %v1054 = vld [vmem:[#allocation4 + $0x1908] sm:$0xff]
    %v1055 = vld [vmem:[#allocation4 + $0x1910] sm:$0xff]
    %v1056 = vld [vmem:[#allocation4 + $0x1918] sm:$0xff]
    %v1057 = vld [vmem:[#allocation4 + $0x1920] sm:$0xff]
    %v1058 = vld [vmem:[#allocation4 + $0x1928] sm:$0xff]
    %v1059 = vld [vmem:[#allocation4 + $0x1930] sm:$0xff]
    %v1060 = vld [vmem:[#allocation4 + $0x1938] sm:$0xff]
    %v1061 = vld [vmem:[#allocation4 + $0x1940] sm:$0xff]
    %v1062 = vld [vmem:[#allocation4 + $0x1948] sm:$0xff]
    %v1063 = vld [vmem:[#allocation4 + $0x1950] sm:$0xff]
    %v1064 = vld [vmem:[#allocation4 + $0x1958] sm:$0xff]
    %v1065 = vld [vmem:[#allocation4 + $0x1960] sm:$0xff]
    %v1066 = vld [vmem:[#allocation4 + $0x1968] sm:$0xff]
    %v1067 = vld [vmem:[#allocation4 + $0x1970] sm:$0xff]
    %v1068 = vld [vmem:[#allocation4 + $0x1978] sm:$0xff]
    %v1069 = vld [vmem:[#allocation4 + $0x1980] sm:$0xff]
    %v1070 = vld [vmem:[#allocation4 + $0x1988] sm:$0xff]
    %v1071 = vld [vmem:[#allocation4 + $0x1990] sm:$0xff]
    %v1072 = vld [vmem:[#allocation4 + $0x1998] sm:$0xff]
    %v1073 = vld [vmem:[#allocation4 + $0x19a0] sm:$0xff]
    %v1074 = vld [vmem:[#allocation4 + $0x19a8] sm:$0xff]
    %v1075 = vld [vmem:[#allocation4 + $0x19b0] sm:$0xff]
    %v1076 = vld [vmem:[#allocation4 + $0x19b8] sm:$0xff]
    %v1077 = vld [vmem:[#allocation4 + $0x19c0] sm:$0xff]
    %v1078 = vld [vmem:[#allocation4 + $0x19c8] sm:$0xff]
    %v1079 = vld [vmem:[#allocation4 + $0x19d0] sm:$0xff]
    %v1080 = vld [vmem:[#allocation4 + $0x19d8] sm:$0xff]
    %v1081 = vld [vmem:[#allocation4 + $0x19e0] sm:$0xff]
    %v1082 = vld [vmem:[#allocation4 + $0x19e8] sm:$0xff]
    %v1083 = vld [vmem:[#allocation4 + $0x19f0] sm:$0xff]
    %v1084 = vld [vmem:[#allocation4 + $0x19f8] sm:$0xff]
    %v1085 = vld [vmem:[#allocation4 + $0x1a00] sm:$0xff]
    %v1086 = vld [vmem:[#allocation4 + $0x1a08] sm:$0xff]
    %v1087 = vld [vmem:[#allocation4 + $0x1a10] sm:$0xff]
    %v1088 = vld [vmem:[#allocation4 + $0x1a18] sm:$0xff]
    %v1089 = vld [vmem:[#allocation4 + $0x1a20] sm:$0xff]
    %v1090 = vld [vmem:[#allocation4 + $0x1a28] sm:$0xff]
    %v1091 = vld [vmem:[#allocation4 + $0x1a30] sm:$0xff]
    %v1092 = vld [vmem:[#allocation4 + $0x1a38] sm:$0xff]
    %v1093 = vld [vmem:[#allocation4 + $0x1a40] sm:$0xff]
    %v1094 = vld [vmem:[#allocation4 + $0x1a48] sm:$0xff]
    %v1095 = vld [vmem:[#allocation4 + $0x1a50] sm:$0xff]
    %v1096 = vld [vmem:[#allocation4 + $0x1a58] sm:$0xff]
    %v1097 = vld [vmem:[#allocation4 + $0x1a60] sm:$0xff]
    %v1098 = vld [vmem:[#allocation4 + $0x1a68] sm:$0xff]
    %v1099 = vld [vmem:[#allocation4 + $0x1a70] sm:$0xff]
    %v1100 = vld [vmem:[#allocation4 + $0x1a78] sm:$0xff]
    %v1101 = vld [vmem:[#allocation4 + $0x1a80] sm:$0xff]
    %v1102 = vld [vmem:[#allocation4 + $0x1a88] sm:$0xff]
    %v1103 = vld [vmem:[#allocation4 + $0x1a90] sm:$0xff]
    %v1104 = vld [vmem:[#allocation4 + $0x1a98] sm:$0xff]
    %v1105 = vld [vmem:[#allocation4 + $0x1aa0] sm:$0xff]
    %v1106 = vld [vmem:[#allocation4 + $0x1aa8] sm:$0xff]
    %v1107 = vld [vmem:[#allocation4 + $0x1ab0] sm:$0xff]
    %v1108 = vld [vmem:[#allocation4 + $0x1ab8] sm:$0xff]
    %v1109 = vld [vmem:[#allocation4 + $0x1ac0] sm:$0xff]
    %v1110 = vld [vmem:[#allocation4 + $0x1ac8] sm:$0xff]
    %v1111 = vld [vmem:[#allocation4 + $0x1ad0] sm:$0xff]
    %v1112 = vld [vmem:[#allocation4 + $0x1ad8] sm:$0xff]
    %v1113 = vld [vmem:[#allocation4 + $0x1ae0] sm:$0xff]
    %v1114 = vld [vmem:[#allocation4 + $0x1ae8] sm:$0xff]
    %v1115 = vld [vmem:[#allocation4 + $0x1af0] sm:$0xff]
    %v1116 = vld [vmem:[#allocation4 + $0x1af8] sm:$0xff]
    %v1117 = vld [vmem:[#allocation4 + $0x1b00] sm:$0xff]
    %v1118 = vld [vmem:[#allocation4 + $0x1b08] sm:$0xff]
    %v1119 = vld [vmem:[#allocation4 + $0x1b10] sm:$0xff]
    %v1120 = vld [vmem:[#allocation4 + $0x1b18] sm:$0xff]
    %v1121 = vld [vmem:[#allocation4 + $0x1b20] sm:$0xff]
    %v1122 = vld [vmem:[#allocation4 + $0x1b28] sm:$0xff]
    %v1123 = vld [vmem:[#allocation4 + $0x1b30] sm:$0xff]
    %v1124 = vld [vmem:[#allocation4 + $0x1b38] sm:$0xff]
    %v1125 = vld [vmem:[#allocation4 + $0x1b40] sm:$0xff]
    %v1126 = vld [vmem:[#allocation4 + $0x1b48] sm:$0xff]
    %v1127 = vld [vmem:[#allocation4 + $0x1b50] sm:$0xff]
    %v1128 = vld [vmem:[#allocation4 + $0x1b58] sm:$0xff]
    %v1129 = vld [vmem:[#allocation4 + $0x1b60] sm:$0xff]
    %v1130 = vld [vmem:[#allocation4 + $0x1b68] sm:$0xff]
    %v1131 = vld [vmem:[#allocation4 + $0x1b70] sm:$0xff]
    %v1132 = vld [vmem:[#allocation4 + $0x1b78] sm:$0xff]
    %v1133 = vld [vmem:[#allocation4 + $0x1b80] sm:$0xff]
    %v1134 = vld [vmem:[#allocation4 + $0x1b88] sm:$0xff]
    %v1135 = vld [vmem:[#allocation4 + $0x1b90] sm:$0xff]
    %v1136 = vld [vmem:[#allocation4 + $0x1b98] sm:$0xff]
    %v1137 = vld [vmem:[#allocation4 + $0x1ba0] sm:$0xff]
    %v1138 = vld [vmem:[#allocation4 + $0x1ba8] sm:$0xff]
    %v1139 = vld [vmem:[#allocation4 + $0x1bb0] sm:$0xff]
    %v1140 = vld [vmem:[#allocation4 + $0x1bb8] sm:$0xff]
    %v1141 = vld [vmem:[#allocation4 + $0x1bc0] sm:$0xff]
    %v1142 = vld [vmem:[#allocation4 + $0x1bc8] sm:$0xff]
    %v1143 = vld [vmem:[#allocation4 + $0x1bd0] sm:$0xff]
    %v1144 = vld [vmem:[#allocation4 + $0x1bd8] sm:$0xff]
    %v1145 = vld [vmem:[#allocation4 + $0x1be0] sm:$0xff]
    %v1146 = vld [vmem:[#allocation4 + $0x1be8] sm:$0xff]
    %v1147 = vld [vmem:[#allocation4 + $0x1bf0] sm:$0xff]
    %v1148 = vld [vmem:[#allocation4 + $0x1bf8] sm:$0xff]
    %v1149 = vld [vmem:[#allocation4 + $0x1c00] sm:$0xff]
    %v1150 = vld [vmem:[#allocation4 + $0x1c08] sm:$0xff]
    %v1151 = vld [vmem:[#allocation4 + $0x1c10] sm:$0xff]
    %v1152 = vld [vmem:[#allocation4 + $0x1c18] sm:$0xff]
    %v1153 = vld [vmem:[#allocation4 + $0x1c20] sm:$0xff]
    %v1154 = vld [vmem:[#allocation4 + $0x1c28] sm:$0xff]
    %v1155 = vld [vmem:[#allocation4 + $0x1c30] sm:$0xff]
    %v1156 = vld [vmem:[#allocation4 + $0x1c38] sm:$0xff]
    %v1157 = vld [vmem:[#allocation4 + $0x1c40] sm:$0xff]
    %v1158 = vld [vmem:[#allocation4 + $0x1c48] sm:$0xff]
    %v1159 = vld [vmem:[#allocation4 + $0x1c50] sm:$0xff]
    %v1160 = vld [vmem:[#allocation4 + $0x1c58] sm:$0xff]
    %v1161 = vld [vmem:[#allocation4 + $0x1c60] sm:$0xff]
    %v1162 = vld [vmem:[#allocation4 + $0x1c68] sm:$0xff]
    %v1163 = vld [vmem:[#allocation4 + $0x1c70] sm:$0xff]
    %v1164 = vld [vmem:[#allocation4 + $0x1c78] sm:$0xff]
    %v1165 = vld [vmem:[#allocation4 + $0x1c80] sm:$0xff]
    %v1166 = vld [vmem:[#allocation4 + $0x1c88] sm:$0xff]
    %v1167 = vld [vmem:[#allocation4 + $0x1c90] sm:$0xff]
    %v1168 = vld [vmem:[#allocation4 + $0x1c98] sm:$0xff]
    %v1169 = vld [vmem:[#allocation4 + $0x1ca0] sm:$0xff]
    %v1170 = vld [vmem:[#allocation4 + $0x1ca8] sm:$0xff]
    %v1171 = vld [vmem:[#allocation4 + $0x1cb0] sm:$0xff]
    %v1172 = vld [vmem:[#allocation4 + $0x1cb8] sm:$0xff]
    %v1173 = vld [vmem:[#allocation4 + $0x1cc0] sm:$0xff]
    %v1174 = vld [vmem:[#allocation4 + $0x1cc8] sm:$0xff]
    %v1175 = vld [vmem:[#allocation4 + $0x1cd0] sm:$0xff]
    %v1176 = vld [vmem:[#allocation4 + $0x1cd8] sm:$0xff]
    %v1177 = vld [vmem:[#allocation4 + $0x1ce0] sm:$0xff]
    %v1178 = vld [vmem:[#allocation4 + $0x1ce8] sm:$0xff]
    %v1179 = vld [vmem:[#allocation4 + $0x1cf0] sm:$0xff]
    %v1180 = vld [vmem:[#allocation4 + $0x1cf8] sm:$0xff]
    %v1181 = vld [vmem:[#allocation4 + $0x1d00] sm:$0xff]
    %v1182 = vld [vmem:[#allocation4 + $0x1d08] sm:$0xff]
    %v1183 = vld [vmem:[#allocation4 + $0x1d10] sm:$0xff]
    %v1184 = vld [vmem:[#allocation4 + $0x1d18] sm:$0xff]
    %v1185 = vld [vmem:[#allocation4 + $0x1d20] sm:$0xff]
    %v1186 = vld [vmem:[#allocation4 + $0x1d28] sm:$0xff]
    %v1187 = vld [vmem:[#allocation4 + $0x1d30] sm:$0xff]
    %v1188 = vld [vmem:[#allocation4 + $0x1d38] sm:$0xff]
    %v1189 = vld [vmem:[#allocation4 + $0x1d40] sm:$0xff]
    %v1190 = vld [vmem:[#allocation4 + $0x1d48] sm:$0xff]
    %v1191 = vld [vmem:[#allocation4 + $0x1d50] sm:$0xff]
    %v1192 = vld [vmem:[#allocation4 + $0x1d58] sm:$0xff]
    %v1193 = vld [vmem:[#allocation4 + $0x1d60] sm:$0xff]
    %v1194 = vld [vmem:[#allocation4 + $0x1d68] sm:$0xff]
    %v1195 = vld [vmem:[#allocation4 + $0x1d70] sm:$0xff]
    %v1196 = vld [vmem:[#allocation4 + $0x1d78] sm:$0xff]
    %v1197 = vld [vmem:[#allocation4 + $0x1d80] sm:$0xff]
    %v1198 = vld [vmem:[#allocation4 + $0x1d88] sm:$0xff]
    %v1199 = vld [vmem:[#allocation4 + $0x1d90] sm:$0xff]
    %v1200 = vld [vmem:[#allocation4 + $0x1d98] sm:$0xff]
    %v1201 = vld [vmem:[#allocation4 + $0x1da0] sm:$0xff]
    %v1202 = vld [vmem:[#allocation4 + $0x1da8] sm:$0xff]
    %v1203 = vld [vmem:[#allocation4 + $0x1db0] sm:$0xff]
    %v1204 = vld [vmem:[#allocation4 + $0x1db8] sm:$0xff]
    %v1205 = vld [vmem:[#allocation4 + $0x1dc0] sm:$0xff]
    %v1206 = vld [vmem:[#allocation4 + $0x1dc8] sm:$0xff]
    %v1207 = vld [vmem:[#allocation4 + $0x1dd0] sm:$0xff]
    %v1208 = vld [vmem:[#allocation4 + $0x1dd8] sm:$0xff]
    %v1209 = vld [vmem:[#allocation4 + $0x1de0] sm:$0xff]
    %v1210 = vld [vmem:[#allocation4 + $0x1de8] sm:$0xff]
    %v1211 = vld [vmem:[#allocation4 + $0x1df0] sm:$0xff]
    %v1212 = vld [vmem:[#allocation4 + $0x1df8] sm:$0xff]
    %v1213 = vld [vmem:[#allocation4 + $0x1e00] sm:$0xff]
    %v1214 = vld [vmem:[#allocation4 + $0x1e08] sm:$0xff]
    %v1215 = vld [vmem:[#allocation4 + $0x1e10] sm:$0xff]
    %v1216 = vld [vmem:[#allocation4 + $0x1e18] sm:$0xff]
    %v1217 = vld [vmem:[#allocation4 + $0x1e20] sm:$0xff]
    %v1218 = vld [vmem:[#allocation4 + $0x1e28] sm:$0xff]
    %v1219 = vld [vmem:[#allocation4 + $0x1e30] sm:$0xff]
    %v1220 = vld [vmem:[#allocation4 + $0x1e38] sm:$0xff]
    %v1221 = vld [vmem:[#allocation4 + $0x1e40] sm:$0xff]
    %v1222 = vld [vmem:[#allocation4 + $0x1e48] sm:$0xff]
    %v1223 = vld [vmem:[#allocation4 + $0x1e50] sm:$0xff]
    %v1224 = vld [vmem:[#allocation4 + $0x1e58] sm:$0xff]
    %v1225 = vld [vmem:[#allocation4 + $0x1e60] sm:$0xff]
    %v1226 = vld [vmem:[#allocation4 + $0x1e68] sm:$0xff]
    %v1227 = vld [vmem:[#allocation4 + $0x1e70] sm:$0xff]
    %v1228 = vld [vmem:[#allocation4 + $0x1e78] sm:$0xff]
    %v1229 = vld [vmem:[#allocation4 + $0x1e80] sm:$0xff]
    %v1230 = vld [vmem:[#allocation4 + $0x1e88] sm:$0xff]
    %v1231 = vld [vmem:[#allocation4 + $0x1e90] sm:$0xff]
    %v1232 = vld [vmem:[#allocation4 + $0x1e98] sm:$0xff]
    %v1233 = vld [vmem:[#allocation4 + $0x1ea0] sm:$0xff]
    %v1234 = vld [vmem:[#allocation4 + $0x1ea8] sm:$0xff]
    %v1235 = vld [vmem:[#allocation4 + $0x1eb0] sm:$0xff]
    %v1236 = vld [vmem:[#allocation4 + $0x1eb8] sm:$0xff]
    %v1237 = vld [vmem:[#allocation4 + $0x1ec0] sm:$0xff]
    %v1238 = vld [vmem:[#allocation4 + $0x1ec8] sm:$0xff]
    %v1239 = vld [vmem:[#allocation4 + $0x1ed0] sm:$0xff]
    %v1240 = vld [vmem:[#allocation4 + $0x1ed8] sm:$0xff]
    %v1241 = vld [vmem:[#allocation4 + $0x1ee0] sm:$0xff]
    %v1242 = vld [vmem:[#allocation4 + $0x1ee8] sm:$0xff]
    %v1243 = vld [vmem:[#allocation4 + $0x1ef0] sm:$0xff]
    %v1244 = vld [vmem:[#allocation4 + $0x1ef8] sm:$0xff]
    %v1245 = vld [vmem:[#allocation4 + $0x1f00] sm:$0xff]
    %v1246 = vld [vmem:[#allocation4 + $0x1f08] sm:$0xff]
    %v1247 = vld [vmem:[#allocation4 + $0x1f10] sm:$0xff]
    %v1248 = vld [vmem:[#allocation4 + $0x1f18] sm:$0xff]
    %v1249 = vld [vmem:[#allocation4 + $0x1f20] sm:$0xff]
    %v1250 = vld [vmem:[#allocation4 + $0x1f28] sm:$0xff]
    %v1251 = vld [vmem:[#allocation4 + $0x1f30] sm:$0xff]
    %v1252 = vld [vmem:[#allocation4 + $0x1f38] sm:$0xff]
    %v1253 = vld [vmem:[#allocation4 + $0x1f40] sm:$0xff]
    %v1254 = vld [vmem:[#allocation4 + $0x1f48] sm:$0xff]
    %v1255 = vld [vmem:[#allocation4 + $0x1f50] sm:$0xff]
    %v1256 = vld [vmem:[#allocation4 + $0x1f58] sm:$0xff]
    %v1257 = vld [vmem:[#allocation4 + $0x1f60] sm:$0xff]
    %v1258 = vld [vmem:[#allocation4 + $0x1f68] sm:$0xff]
    %v1259 = vld [vmem:[#allocation4 + $0x1f70] sm:$0xff]
    %v1260 = vld [vmem:[#allocation4 + $0x1f78] sm:$0xff]
    %v1261 = vld [vmem:[#allocation4 + $0x1f80] sm:$0xff]
    %v1262 = vld [vmem:[#allocation4 + $0x1f88] sm:$0xff]
    %v1263 = vld [vmem:[#allocation4 + $0x1f90] sm:$0xff]
    %v1264 = vld [vmem:[#allocation4 + $0x1f98] sm:$0xff]
    %v1265 = vld [vmem:[#allocation4 + $0x1fa0] sm:$0xff]
    %v1266 = vld [vmem:[#allocation4 + $0x1fa8] sm:$0xff]
    %v1267 = vld [vmem:[#allocation4 + $0x1fb0] sm:$0xff]
    %v1268 = vld [vmem:[#allocation4 + $0x1fb8] sm:$0xff]
    %v1269 = vld [vmem:[#allocation4 + $0x1fc0] sm:$0xff]
    %v1270 = vld [vmem:[#allocation4 + $0x1fc8] sm:$0xff]
    %v1271 = vld [vmem:[#allocation4 + $0x1fd0] sm:$0xff]
    %v1272 = vld [vmem:[#allocation4 + $0x1fd8] sm:$0xff]
    %v1273 = vld [vmem:[#allocation4 + $0x1fe0] sm:$0xff]
    %v1274 = vld [vmem:[#allocation4 + $0x1fe8] sm:$0xff]
    %v1275 = vld [vmem:[#allocation4 + $0x1ff0] sm:$0xff]
    %v1276 = vld [vmem:[#allocation4 + $0x1ff8] sm:$0xff]
    %v1277 = vld [vmem:[#allocation6] sm:$0xff]
    %v1278 = vpack.c.bf16 %v237, %v237
    %v1279 = vpack.c.bf16 %v238, %v238
    %v1280 = vpack.c.bf16 %v239, %v239
    %v1281 = vpack.c.bf16 %v240, %v240
    %v1282 = vpack.c.bf16 %v241, %v241
    %v1283 = vpack.c.bf16 %v242, %v242
    %v1284 = vpack.c.bf16 %v243, %v243
    %v1285 = vpack.c.bf16 %v244, %v244
    %v1286 = vpack.c.bf16 %v245, %v245
    %v1287 = vpack.c.bf16 %v246, %v246
    %v1288 = vpack.c.bf16 %v247, %v247
    %v1289 = vpack.c.bf16 %v248, %v248
    %v1290 = vpack.c.bf16 %v249, %v249
    %v1291 = vpack.c.bf16 %v250, %v250
    %v1292 = vpack.c.bf16 %v251, %v251
    %v1293 = vpack.c.bf16 %v252, %v252
    %v1295 = vperm.slane %v1277, 0
    %v1296 = vperm.slane %v1277, 1
    %v1297 = vperm.slane %v1277, 2
    %v1298 = vperm.slane %v1277, 3
    %v1299 = vperm.slane %v1277, 4
    %v1300 = vperm.slane %v1277, 5
    %v1301 = vperm.slane %v1277, 6
    %v1302 = vperm.slane %v1277, 7
    %v2335 = vunpack.c.l.b16 %v253
    %v2336 = vunpack.c.h.b16 %v253
    %v2337 = vunpack.c.l.b16 %v254
    %v2338 = vunpack.c.h.b16 %v254
    %v2339 = vunpack.c.l.b16 %v255
    %v2340 = vunpack.c.h.b16 %v255
    %v2341 = vunpack.c.l.b16 %v256
    %v2342 = vunpack.c.h.b16 %v256
    %v2343 = vunpack.c.l.b16 %v257
    %v2344 = vunpack.c.h.b16 %v257
    %v2345 = vunpack.c.l.b16 %v258
    %v2346 = vunpack.c.h.b16 %v258
    %v2347 = vunpack.c.l.b16 %v259
    %v2348 = vunpack.c.h.b16 %v259
    %v2349 = vunpack.c.l.b16 %v260
    %v2350 = vunpack.c.h.b16 %v260
    %v2351 = vunpack.c.l.b16 %v261
    %v2352 = vunpack.c.h.b16 %v261
    %v2353 = vunpack.c.l.b16 %v262
    %v2354 = vunpack.c.h.b16 %v262
    %v2355 = vunpack.c.l.b16 %v263
    %v2356 = vunpack.c.h.b16 %v263
    %v2357 = vunpack.c.l.b16 %v264
    %v2358 = vunpack.c.h.b16 %v264
    %v2359 = vunpack.c.l.b16 %v265
    %v2360 = vunpack.c.h.b16 %v265
    %v2361 = vunpack.c.l.b16 %v266
    %v2362 = vunpack.c.h.b16 %v266
    %v2363 = vunpack.c.l.b16 %v267
    %v2364 = vunpack.c.h.b16 %v267
    %v2365 = vunpack.c.l.b16 %v268
    %v2366 = vunpack.c.h.b16 %v268
    %v2367 = vunpack.c.l.b16 %v269
    %v2368 = vunpack.c.h.b16 %v269
    %v2369 = vunpack.c.l.b16 %v270
    %v2370 = vunpack.c.h.b16 %v270
    %v2371 = vunpack.c.l.b16 %v271
    %v2372 = vunpack.c.h.b16 %v271
    %v2373 = vunpack.c.l.b16 %v272
    %v2374 = vunpack.c.h.b16 %v272
    %v2375 = vunpack.c.l.b16 %v273
    %v2376 = vunpack.c.h.b16 %v273
    %v2377 = vunpack.c.l.b16 %v274
    %v2378 = vunpack.c.h.b16 %v274
    %v2379 = vunpack.c.l.b16 %v275
    %v2380 = vunpack.c.h.b16 %v275
    %v2381 = vunpack.c.l.b16 %v276
    %v2382 = vunpack.c.h.b16 %v276
    %v2383 = vunpack.c.l.b16 %v277
    %v2384 = vunpack.c.h.b16 %v277
    %v2385 = vunpack.c.l.b16 %v278
    %v2386 = vunpack.c.h.b16 %v278
    %v2387 = vunpack.c.l.b16 %v279
    %v2388 = vunpack.c.h.b16 %v279
    %v2389 = vunpack.c.l.b16 %v280
    %v2390 = vunpack.c.h.b16 %v280
    %v2391 = vunpack.c.l.b16 %v281
    %v2392 = vunpack.c.h.b16 %v281
    %v2393 = vunpack.c.l.b16 %v282
    %v2394 = vunpack.c.h.b16 %v282
    %v2395 = vunpack.c.l.b16 %v283
    %v2396 = vunpack.c.h.b16 %v283
    %v2397 = vunpack.c.l.b16 %v284
    %v2398 = vunpack.c.h.b16 %v284
    %v2399 = vunpack.c.l.b16 %v285
    %v2400 = vunpack.c.h.b16 %v285
    %v2401 = vunpack.c.l.b16 %v286
    %v2402 = vunpack.c.h.b16 %v286
    %v2403 = vunpack.c.l.b16 %v287
    %v2404 = vunpack.c.h.b16 %v287
    %v2405 = vunpack.c.l.b16 %v288
    %v2406 = vunpack.c.h.b16 %v288
    %v2407 = vunpack.c.l.b16 %v289
    %v2408 = vunpack.c.h.b16 %v289
    %v2409 = vunpack.c.l.b16 %v290
    %v2410 = vunpack.c.h.b16 %v290
    %v2411 = vunpack.c.l.b16 %v291
    %v2412 = vunpack.c.h.b16 %v291
    %v2413 = vunpack.c.l.b16 %v292
    %v2414 = vunpack.c.h.b16 %v292
    %v2415 = vunpack.c.l.b16 %v293
    %v2416 = vunpack.c.h.b16 %v293
    %v2417 = vunpack.c.l.b16 %v294
    %v2418 = vunpack.c.h.b16 %v294
    %v2419 = vunpack.c.l.b16 %v295
    %v2420 = vunpack.c.h.b16 %v295
    %v2421 = vunpack.c.l.b16 %v296
    %v2422 = vunpack.c.h.b16 %v296
    %v2423 = vunpack.c.l.b16 %v297
    %v2424 = vunpack.c.h.b16 %v297
    %v2425 = vunpack.c.l.b16 %v298
    %v2426 = vunpack.c.h.b16 %v298
    %v2427 = vunpack.c.l.b16 %v299
    %v2428 = vunpack.c.h.b16 %v299
    %v2429 = vunpack.c.l.b16 %v300
    %v2430 = vunpack.c.h.b16 %v300
    %v2431 = vunpack.c.l.b16 %v301
    %v2432 = vunpack.c.h.b16 %v301
    %v2433 = vunpack.c.l.b16 %v302
    %v2434 = vunpack.c.h.b16 %v302
    %v2435 = vunpack.c.l.b16 %v303
    %v2436 = vunpack.c.h.b16 %v303
    %v2437 = vunpack.c.l.b16 %v304
    %v2438 = vunpack.c.h.b16 %v304
    %v2439 = vunpack.c.l.b16 %v305
    %v2440 = vunpack.c.h.b16 %v305
    %v2441 = vunpack.c.l.b16 %v306
    %v2442 = vunpack.c.h.b16 %v306
    %v2443 = vunpack.c.l.b16 %v307
    %v2444 = vunpack.c.h.b16 %v307
    %v2445 = vunpack.c.l.b16 %v308
    %v2446 = vunpack.c.h.b16 %v308
    %v2447 = vunpack.c.l.b16 %v309
    %v2448 = vunpack.c.h.b16 %v309
    %v2449 = vunpack.c.l.b16 %v310
    %v2450 = vunpack.c.h.b16 %v310
    %v2451 = vunpack.c.l.b16 %v311
    %v2452 = vunpack.c.h.b16 %v311
    %v2453 = vunpack.c.l.b16 %v312
    %v2454 = vunpack.c.h.b16 %v312
    %v2455 = vunpack.c.l.b16 %v313
    %v2456 = vunpack.c.h.b16 %v313
    %v2457 = vunpack.c.l.b16 %v314
    %v2458 = vunpack.c.h.b16 %v314
    %v2459 = vunpack.c.l.b16 %v315
    %v2460 = vunpack.c.h.b16 %v315
    %v2461 = vunpack.c.l.b16 %v316
    %v2462 = vunpack.c.h.b16 %v316
    %v2463 = vunpack.c.l.b16 %v317
    %v2464 = vunpack.c.h.b16 %v317
    %v2465 = vunpack.c.l.b16 %v318
    %v2466 = vunpack.c.h.b16 %v318
    %v2467 = vunpack.c.l.b16 %v319
    %v2468 = vunpack.c.h.b16 %v319
    %v2469 = vunpack.c.l.b16 %v320
    %v2470 = vunpack.c.h.b16 %v320
    %v2471 = vunpack.c.l.b16 %v321
    %v2472 = vunpack.c.h.b16 %v321
    %v2473 = vunpack.c.l.b16 %v322
    %v2474 = vunpack.c.h.b16 %v322
    %v2475 = vunpack.c.l.b16 %v323
    %v2476 = vunpack.c.h.b16 %v323
    %v2477 = vunpack.c.l.b16 %v324
    %v2478 = vunpack.c.h.b16 %v324
    %v2479 = vunpack.c.l.b16 %v325
    %v2480 = vunpack.c.h.b16 %v325
    %v2481 = vunpack.c.l.b16 %v326
    %v2482 = vunpack.c.h.b16 %v326
    %v2483 = vunpack.c.l.b16 %v327
    %v2484 = vunpack.c.h.b16 %v327
    %v2485 = vunpack.c.l.b16 %v328
    %v2486 = vunpack.c.h.b16 %v328
    %v2487 = vunpack.c.l.b16 %v329
    %v2488 = vunpack.c.h.b16 %v329
    %v2489 = vunpack.c.l.b16 %v330
    %v2490 = vunpack.c.h.b16 %v330
    %v2491 = vunpack.c.l.b16 %v331
    %v2492 = vunpack.c.h.b16 %v331
    %v2493 = vunpack.c.l.b16 %v332
    %v2494 = vunpack.c.h.b16 %v332
    %v2495 = vunpack.c.l.b16 %v333
    %v2496 = vunpack.c.h.b16 %v333
    %v2497 = vunpack.c.l.b16 %v334
    %v2498 = vunpack.c.h.b16 %v334
    %v2499 = vunpack.c.l.b16 %v335
    %v2500 = vunpack.c.h.b16 %v335
    %v2501 = vunpack.c.l.b16 %v336
    %v2502 = vunpack.c.h.b16 %v336
    %v2503 = vunpack.c.l.b16 %v337
    %v2504 = vunpack.c.h.b16 %v337
    %v2505 = vunpack.c.l.b16 %v338
    %v2506 = vunpack.c.h.b16 %v338
    %v2507 = vunpack.c.l.b16 %v339
    %v2508 = vunpack.c.h.b16 %v339
    %v2509 = vunpack.c.l.b16 %v340
    %v2510 = vunpack.c.h.b16 %v340
    %v2511 = vunpack.c.l.b16 %v341
    %v2512 = vunpack.c.h.b16 %v341
    %v2513 = vunpack.c.l.b16 %v342
    %v2514 = vunpack.c.h.b16 %v342
    %v2515 = vunpack.c.l.b16 %v343
    %v2516 = vunpack.c.h.b16 %v343
    %v2517 = vunpack.c.l.b16 %v344
    %v2518 = vunpack.c.h.b16 %v344
    %v2519 = vunpack.c.l.b16 %v345
    %v2520 = vunpack.c.h.b16 %v345
    %v2521 = vunpack.c.l.b16 %v346
    %v2522 = vunpack.c.h.b16 %v346
    %v2523 = vunpack.c.l.b16 %v347
    %v2524 = vunpack.c.h.b16 %v347
    %v2525 = vunpack.c.l.b16 %v348
    %v2526 = vunpack.c.h.b16 %v348
    %v2527 = vunpack.c.l.b16 %v349
    %v2528 = vunpack.c.h.b16 %v349
    %v2529 = vunpack.c.l.b16 %v350
    %v2530 = vunpack.c.h.b16 %v350
    %v2531 = vunpack.c.l.b16 %v351
    %v2532 = vunpack.c.h.b16 %v351
    %v2533 = vunpack.c.l.b16 %v352
    %v2534 = vunpack.c.h.b16 %v352
    %v2535 = vunpack.c.l.b16 %v353
    %v2536 = vunpack.c.h.b16 %v353
    %v2537 = vunpack.c.l.b16 %v354
    %v2538 = vunpack.c.h.b16 %v354
    %v2539 = vunpack.c.l.b16 %v355
    %v2540 = vunpack.c.h.b16 %v355
    %v2541 = vunpack.c.l.b16 %v356
    %v2542 = vunpack.c.h.b16 %v356
    %v2543 = vunpack.c.l.b16 %v357
    %v2544 = vunpack.c.h.b16 %v357
    %v2545 = vunpack.c.l.b16 %v358
    %v2546 = vunpack.c.h.b16 %v358
    %v2547 = vunpack.c.l.b16 %v359
    %v2548 = vunpack.c.h.b16 %v359
    %v2549 = vunpack.c.l.b16 %v360
    %v2550 = vunpack.c.h.b16 %v360
    %v2551 = vunpack.c.l.b16 %v361
    %v2552 = vunpack.c.h.b16 %v361
    %v2553 = vunpack.c.l.b16 %v362
    %v2554 = vunpack.c.h.b16 %v362
    %v2555 = vunpack.c.l.b16 %v363
    %v2556 = vunpack.c.h.b16 %v363
    %v2557 = vunpack.c.l.b16 %v364
    %v2558 = vunpack.c.h.b16 %v364
    %v2559 = vunpack.c.l.b16 %v365
    %v2560 = vunpack.c.h.b16 %v365
    %v2561 = vunpack.c.l.b16 %v366
    %v2562 = vunpack.c.h.b16 %v366
    %v2563 = vunpack.c.l.b16 %v367
    %v2564 = vunpack.c.h.b16 %v367
    %v2565 = vunpack.c.l.b16 %v368
    %v2566 = vunpack.c.h.b16 %v368
    %v2567 = vunpack.c.l.b16 %v369
    %v2568 = vunpack.c.h.b16 %v369
    %v2569 = vunpack.c.l.b16 %v370
    %v2570 = vunpack.c.h.b16 %v370
    %v2571 = vunpack.c.l.b16 %v371
    %v2572 = vunpack.c.h.b16 %v371
    %v2573 = vunpack.c.l.b16 %v372
    %v2574 = vunpack.c.h.b16 %v372
    %v2575 = vunpack.c.l.b16 %v373
    %v2576 = vunpack.c.h.b16 %v373
    %v2577 = vunpack.c.l.b16 %v374
    %v2578 = vunpack.c.h.b16 %v374
    %v2579 = vunpack.c.l.b16 %v375
    %v2580 = vunpack.c.h.b16 %v375
    %v2581 = vunpack.c.l.b16 %v376
    %v2582 = vunpack.c.h.b16 %v376
    %v2583 = vunpack.c.l.b16 %v377
    %v2584 = vunpack.c.h.b16 %v377
    %v2585 = vunpack.c.l.b16 %v378
    %v2586 = vunpack.c.h.b16 %v378
    %v2587 = vunpack.c.l.b16 %v379
    %v2588 = vunpack.c.h.b16 %v379
    %v2589 = vunpack.c.l.b16 %v380
    %v2590 = vunpack.c.h.b16 %v380
    %v2591 = vunpack.c.l.b16 %v381
    %v2592 = vunpack.c.h.b16 %v381
    %v2593 = vunpack.c.l.b16 %v382
    %v2594 = vunpack.c.h.b16 %v382
    %v2595 = vunpack.c.l.b16 %v383
    %v2596 = vunpack.c.h.b16 %v383
    %v2597 = vunpack.c.l.b16 %v384
    %v2598 = vunpack.c.h.b16 %v384
    %v2599 = vunpack.c.l.b16 %v385
    %v2600 = vunpack.c.h.b16 %v385
    %v2601 = vunpack.c.l.b16 %v386
    %v2602 = vunpack.c.h.b16 %v386
    %v2603 = vunpack.c.l.b16 %v387
    %v2604 = vunpack.c.h.b16 %v387
    %v2605 = vunpack.c.l.b16 %v388
    %v2606 = vunpack.c.h.b16 %v388
    %v2607 = vunpack.c.l.b16 %v389
    %v2608 = vunpack.c.h.b16 %v389
    %v2609 = vunpack.c.l.b16 %v390
    %v2610 = vunpack.c.h.b16 %v390
    %v2611 = vunpack.c.l.b16 %v391
    %v2612 = vunpack.c.h.b16 %v391
    %v2613 = vunpack.c.l.b16 %v392
    %v2614 = vunpack.c.h.b16 %v392
    %v2615 = vunpack.c.l.b16 %v393
    %v2616 = vunpack.c.h.b16 %v393
    %v2617 = vunpack.c.l.b16 %v394
    %v2618 = vunpack.c.h.b16 %v394
    %v2619 = vunpack.c.l.b16 %v395
    %v2620 = vunpack.c.h.b16 %v395
    %v2621 = vunpack.c.l.b16 %v396
    %v2622 = vunpack.c.h.b16 %v396
    %v2623 = vunpack.c.l.b16 %v397
    %v2624 = vunpack.c.h.b16 %v397
    %v2625 = vunpack.c.l.b16 %v398
    %v2626 = vunpack.c.h.b16 %v398
    %v2627 = vunpack.c.l.b16 %v399
    %v2628 = vunpack.c.h.b16 %v399
    %v2629 = vunpack.c.l.b16 %v400
    %v2630 = vunpack.c.h.b16 %v400
    %v2631 = vunpack.c.l.b16 %v401
    %v2632 = vunpack.c.h.b16 %v401
    %v2633 = vunpack.c.l.b16 %v402
    %v2634 = vunpack.c.h.b16 %v402
    %v2635 = vunpack.c.l.b16 %v403
    %v2636 = vunpack.c.h.b16 %v403
    %v2637 = vunpack.c.l.b16 %v404
    %v2638 = vunpack.c.h.b16 %v404
    %v2639 = vunpack.c.l.b16 %v405
    %v2640 = vunpack.c.h.b16 %v405
    %v2641 = vunpack.c.l.b16 %v406
    %v2642 = vunpack.c.h.b16 %v406
    %v2643 = vunpack.c.l.b16 %v407
    %v2644 = vunpack.c.h.b16 %v407
    %v2645 = vunpack.c.l.b16 %v408
    %v2646 = vunpack.c.h.b16 %v408
    %v2647 = vunpack.c.l.b16 %v409
    %v2648 = vunpack.c.h.b16 %v409
    %v2649 = vunpack.c.l.b16 %v410
    %v2650 = vunpack.c.h.b16 %v410
    %v2651 = vunpack.c.l.b16 %v411
    %v2652 = vunpack.c.h.b16 %v411
    %v2653 = vunpack.c.l.b16 %v412
    %v2654 = vunpack.c.h.b16 %v412
    %v2655 = vunpack.c.l.b16 %v413
    %v2656 = vunpack.c.h.b16 %v413
    %v2657 = vunpack.c.l.b16 %v414
    %v2658 = vunpack.c.h.b16 %v414
    %v2659 = vunpack.c.l.b16 %v415
    %v2660 = vunpack.c.h.b16 %v415
    %v2661 = vunpack.c.l.b16 %v416
    %v2662 = vunpack.c.h.b16 %v416
    %v2663 = vunpack.c.l.b16 %v417
    %v2664 = vunpack.c.h.b16 %v417
    %v2665 = vunpack.c.l.b16 %v418
    %v2666 = vunpack.c.h.b16 %v418
    %v2667 = vunpack.c.l.b16 %v419
    %v2668 = vunpack.c.h.b16 %v419
    %v2669 = vunpack.c.l.b16 %v420
    %v2670 = vunpack.c.h.b16 %v420
    %v2671 = vunpack.c.l.b16 %v421
    %v2672 = vunpack.c.h.b16 %v421
    %v2673 = vunpack.c.l.b16 %v422
    %v2674 = vunpack.c.h.b16 %v422
    %v2675 = vunpack.c.l.b16 %v423
    %v2676 = vunpack.c.h.b16 %v423
    %v2677 = vunpack.c.l.b16 %v424
    %v2678 = vunpack.c.h.b16 %v424
    %v2679 = vunpack.c.l.b16 %v425
    %v2680 = vunpack.c.h.b16 %v425
    %v2681 = vunpack.c.l.b16 %v426
    %v2682 = vunpack.c.h.b16 %v426
    %v2683 = vunpack.c.l.b16 %v427
    %v2684 = vunpack.c.h.b16 %v427
    %v2685 = vunpack.c.l.b16 %v428
    %v2686 = vunpack.c.h.b16 %v428
    %v2687 = vunpack.c.l.b16 %v429
    %v2688 = vunpack.c.h.b16 %v429
    %v2689 = vunpack.c.l.b16 %v430
    %v2690 = vunpack.c.h.b16 %v430
    %v2691 = vunpack.c.l.b16 %v431
    %v2692 = vunpack.c.h.b16 %v431
    %v2693 = vunpack.c.l.b16 %v432
    %v2694 = vunpack.c.h.b16 %v432
    %v2695 = vunpack.c.l.b16 %v433
    %v2696 = vunpack.c.h.b16 %v433
    %v2697 = vunpack.c.l.b16 %v434
    %v2698 = vunpack.c.h.b16 %v434
    %v2699 = vunpack.c.l.b16 %v435
    %v2700 = vunpack.c.h.b16 %v435
    %v2701 = vunpack.c.l.b16 %v436
    %v2702 = vunpack.c.h.b16 %v436
    %v2703 = vunpack.c.l.b16 %v437
    %v2704 = vunpack.c.h.b16 %v437
    %v2705 = vunpack.c.l.b16 %v438
    %v2706 = vunpack.c.h.b16 %v438
    %v2707 = vunpack.c.l.b16 %v439
    %v2708 = vunpack.c.h.b16 %v439
    %v2709 = vunpack.c.l.b16 %v440
    %v2710 = vunpack.c.h.b16 %v440
    %v2711 = vunpack.c.l.b16 %v441
    %v2712 = vunpack.c.h.b16 %v441
    %v2713 = vunpack.c.l.b16 %v442
    %v2714 = vunpack.c.h.b16 %v442
    %v2715 = vunpack.c.l.b16 %v443
    %v2716 = vunpack.c.h.b16 %v443
    %v2717 = vunpack.c.l.b16 %v444
    %v2718 = vunpack.c.h.b16 %v444
    %v2719 = vunpack.c.l.b16 %v445
    %v2720 = vunpack.c.h.b16 %v445
    %v2721 = vunpack.c.l.b16 %v446
    %v2722 = vunpack.c.h.b16 %v446
    %v2723 = vunpack.c.l.b16 %v447
    %v2724 = vunpack.c.h.b16 %v447
    %v2725 = vunpack.c.l.b16 %v448
    %v2726 = vunpack.c.h.b16 %v448
    %v2727 = vunpack.c.l.b16 %v449
    %v2728 = vunpack.c.h.b16 %v449
    %v2729 = vunpack.c.l.b16 %v450
    %v2730 = vunpack.c.h.b16 %v450
    %v2731 = vunpack.c.l.b16 %v451
    %v2732 = vunpack.c.h.b16 %v451
    %v2733 = vunpack.c.l.b16 %v452
    %v2734 = vunpack.c.h.b16 %v452
    %v2735 = vunpack.c.l.b16 %v453
    %v2736 = vunpack.c.h.b16 %v453
    %v2737 = vunpack.c.l.b16 %v454
    %v2738 = vunpack.c.h.b16 %v454
    %v2739 = vunpack.c.l.b16 %v455
    %v2740 = vunpack.c.h.b16 %v455
    %v2741 = vunpack.c.l.b16 %v456
    %v2742 = vunpack.c.h.b16 %v456
    %v2743 = vunpack.c.l.b16 %v457
    %v2744 = vunpack.c.h.b16 %v457
    %v2745 = vunpack.c.l.b16 %v458
    %v2746 = vunpack.c.h.b16 %v458
    %v2747 = vunpack.c.l.b16 %v459
    %v2748 = vunpack.c.h.b16 %v459
    %v2749 = vunpack.c.l.b16 %v460
    %v2750 = vunpack.c.h.b16 %v460
    %v2751 = vunpack.c.l.b16 %v461
    %v2752 = vunpack.c.h.b16 %v461
    %v2753 = vunpack.c.l.b16 %v462
    %v2754 = vunpack.c.h.b16 %v462
    %v2755 = vunpack.c.l.b16 %v463
    %v2756 = vunpack.c.h.b16 %v463
    %v2757 = vunpack.c.l.b16 %v464
    %v2758 = vunpack.c.h.b16 %v464
    %v2759 = vunpack.c.l.b16 %v465
    %v2760 = vunpack.c.h.b16 %v465
    %v2761 = vunpack.c.l.b16 %v466
    %v2762 = vunpack.c.h.b16 %v466
    %v2763 = vunpack.c.l.b16 %v467
    %v2764 = vunpack.c.h.b16 %v467
    %v2765 = vunpack.c.l.b16 %v468
    %v2766 = vunpack.c.h.b16 %v468
    %v2767 = vunpack.c.l.b16 %v469
    %v2768 = vunpack.c.h.b16 %v469
    %v2769 = vunpack.c.l.b16 %v470
    %v2770 = vunpack.c.h.b16 %v470
    %v2771 = vunpack.c.l.b16 %v471
    %v2772 = vunpack.c.h.b16 %v471
    %v2773 = vunpack.c.l.b16 %v472
    %v2774 = vunpack.c.h.b16 %v472
    %v2775 = vunpack.c.l.b16 %v473
    %v2776 = vunpack.c.h.b16 %v473
    %v2777 = vunpack.c.l.b16 %v474
    %v2778 = vunpack.c.h.b16 %v474
    %v2779 = vunpack.c.l.b16 %v475
    %v2780 = vunpack.c.h.b16 %v475
    %v2781 = vunpack.c.l.b16 %v476
    %v2782 = vunpack.c.h.b16 %v476
    %v2783 = vunpack.c.l.b16 %v477
    %v2784 = vunpack.c.h.b16 %v477
    %v2785 = vunpack.c.l.b16 %v478
    %v2786 = vunpack.c.h.b16 %v478
    %v2787 = vunpack.c.l.b16 %v479
    %v2788 = vunpack.c.h.b16 %v479
    %v2789 = vunpack.c.l.b16 %v480
    %v2790 = vunpack.c.h.b16 %v480
    %v2791 = vunpack.c.l.b16 %v481
    %v2792 = vunpack.c.h.b16 %v481
    %v2793 = vunpack.c.l.b16 %v482
    %v2794 = vunpack.c.h.b16 %v482
    %v2795 = vunpack.c.l.b16 %v483
    %v2796 = vunpack.c.h.b16 %v483
    %v2797 = vunpack.c.l.b16 %v484
    %v2798 = vunpack.c.h.b16 %v484
    %v2799 = vunpack.c.l.b16 %v485
    %v2800 = vunpack.c.h.b16 %v485
    %v2801 = vunpack.c.l.b16 %v486
    %v2802 = vunpack.c.h.b16 %v486
    %v2803 = vunpack.c.l.b16 %v487
    %v2804 = vunpack.c.h.b16 %v487
    %v2805 = vunpack.c.l.b16 %v488
    %v2806 = vunpack.c.h.b16 %v488
    %v2807 = vunpack.c.l.b16 %v489
    %v2808 = vunpack.c.h.b16 %v489
    %v2809 = vunpack.c.l.b16 %v490
    %v2810 = vunpack.c.h.b16 %v490
    %v2811 = vunpack.c.l.b16 %v491
    %v2812 = vunpack.c.h.b16 %v491
    %v2813 = vunpack.c.l.b16 %v492
    %v2814 = vunpack.c.h.b16 %v492
    %v2815 = vunpack.c.l.b16 %v493
    %v2816 = vunpack.c.h.b16 %v493
    %v2817 = vunpack.c.l.b16 %v494
    %v2818 = vunpack.c.h.b16 %v494
    %v2819 = vunpack.c.l.b16 %v495
    %v2820 = vunpack.c.h.b16 %v495
    %v2821 = vunpack.c.l.b16 %v496
    %v2822 = vunpack.c.h.b16 %v496
    %v2823 = vunpack.c.l.b16 %v497
    %v2824 = vunpack.c.h.b16 %v497
    %v2825 = vunpack.c.l.b16 %v498
    %v2826 = vunpack.c.h.b16 %v498
    %v2827 = vunpack.c.l.b16 %v499
    %v2828 = vunpack.c.h.b16 %v499
    %v2829 = vunpack.c.l.b16 %v500
    %v2830 = vunpack.c.h.b16 %v500
    %v2831 = vunpack.c.l.b16 %v501
    %v2832 = vunpack.c.h.b16 %v501
    %v2833 = vunpack.c.l.b16 %v502
    %v2834 = vunpack.c.h.b16 %v502
    %v2835 = vunpack.c.l.b16 %v503
    %v2836 = vunpack.c.h.b16 %v503
    %v2837 = vunpack.c.l.b16 %v504
    %v2838 = vunpack.c.h.b16 %v504
    %v2839 = vunpack.c.l.b16 %v505
    %v2840 = vunpack.c.h.b16 %v505
    %v2841 = vunpack.c.l.b16 %v506
    %v2842 = vunpack.c.h.b16 %v506
    %v2843 = vunpack.c.l.b16 %v507
    %v2844 = vunpack.c.h.b16 %v507
    %v2845 = vunpack.c.l.b16 %v508
    %v2846 = vunpack.c.h.b16 %v508
    %v2847 = vunpack.c.l.b16 %v509
    %v2848 = vunpack.c.h.b16 %v509
    %v2849 = vunpack.c.l.b16 %v510
    %v2850 = vunpack.c.h.b16 %v510
    %v2851 = vunpack.c.l.b16 %v511
    %v2852 = vunpack.c.h.b16 %v511
    %v2853 = vunpack.c.l.b16 %v512
    %v2854 = vunpack.c.h.b16 %v512
    %v2855 = vunpack.c.l.b16 %v513
    %v2856 = vunpack.c.h.b16 %v513
    %v2857 = vunpack.c.l.b16 %v514
    %v2858 = vunpack.c.h.b16 %v514
    %v2859 = vunpack.c.l.b16 %v515
    %v2860 = vunpack.c.h.b16 %v515
    %v2861 = vunpack.c.l.b16 %v516
    %v2862 = vunpack.c.h.b16 %v516
    %v2863 = vunpack.c.l.b16 %v517
    %v2864 = vunpack.c.h.b16 %v517
    %v2865 = vunpack.c.l.b16 %v518
    %v2866 = vunpack.c.h.b16 %v518
    %v2867 = vunpack.c.l.b16 %v519
    %v2868 = vunpack.c.h.b16 %v519
    %v2869 = vunpack.c.l.b16 %v520
    %v2870 = vunpack.c.h.b16 %v520
    %v2871 = vunpack.c.l.b16 %v521
    %v2872 = vunpack.c.h.b16 %v521
    %v2873 = vunpack.c.l.b16 %v522
    %v2874 = vunpack.c.h.b16 %v522
    %v2875 = vunpack.c.l.b16 %v523
    %v2876 = vunpack.c.h.b16 %v523
    %v2877 = vunpack.c.l.b16 %v524
    %v2878 = vunpack.c.h.b16 %v524
    %v2879 = vunpack.c.l.b16 %v525
    %v2880 = vunpack.c.h.b16 %v525
    %v2881 = vunpack.c.l.b16 %v526
    %v2882 = vunpack.c.h.b16 %v526
    %v2883 = vunpack.c.l.b16 %v527
    %v2884 = vunpack.c.h.b16 %v527
    %v2885 = vunpack.c.l.b16 %v528
    %v2886 = vunpack.c.h.b16 %v528
    %v2887 = vunpack.c.l.b16 %v529
    %v2888 = vunpack.c.h.b16 %v529
    %v2889 = vunpack.c.l.b16 %v530
    %v2890 = vunpack.c.h.b16 %v530
    %v2891 = vunpack.c.l.b16 %v531
    %v2892 = vunpack.c.h.b16 %v531
    %v2893 = vunpack.c.l.b16 %v532
    %v2894 = vunpack.c.h.b16 %v532
    %v2895 = vunpack.c.l.b16 %v533
    %v2896 = vunpack.c.h.b16 %v533
    %v2897 = vunpack.c.l.b16 %v534
    %v2898 = vunpack.c.h.b16 %v534
    %v2899 = vunpack.c.l.b16 %v535
    %v2900 = vunpack.c.h.b16 %v535
    %v2901 = vunpack.c.l.b16 %v536
    %v2902 = vunpack.c.h.b16 %v536
    %v2903 = vunpack.c.l.b16 %v537
    %v2904 = vunpack.c.h.b16 %v537
    %v2905 = vunpack.c.l.b16 %v538
    %v2906 = vunpack.c.h.b16 %v538
    %v2907 = vunpack.c.l.b16 %v539
    %v2908 = vunpack.c.h.b16 %v539
    %v2909 = vunpack.c.l.b16 %v540
    %v2910 = vunpack.c.h.b16 %v540
    %v2911 = vunpack.c.l.b16 %v541
    %v2912 = vunpack.c.h.b16 %v541
    %v2913 = vunpack.c.l.b16 %v542
    %v2914 = vunpack.c.h.b16 %v542
    %v2915 = vunpack.c.l.b16 %v543
    %v2916 = vunpack.c.h.b16 %v543
    %v2917 = vunpack.c.l.b16 %v544
    %v2918 = vunpack.c.h.b16 %v544
    %v2919 = vunpack.c.l.b16 %v545
    %v2920 = vunpack.c.h.b16 %v545
    %v2921 = vunpack.c.l.b16 %v546
    %v2922 = vunpack.c.h.b16 %v546
    %v2923 = vunpack.c.l.b16 %v547
    %v2924 = vunpack.c.h.b16 %v547
    %v2925 = vunpack.c.l.b16 %v548
    %v2926 = vunpack.c.h.b16 %v548
    %v2927 = vunpack.c.l.b16 %v549
    %v2928 = vunpack.c.h.b16 %v549
    %v2929 = vunpack.c.l.b16 %v550
    %v2930 = vunpack.c.h.b16 %v550
    %v2931 = vunpack.c.l.b16 %v551
    %v2932 = vunpack.c.h.b16 %v551
    %v2933 = vunpack.c.l.b16 %v552
    %v2934 = vunpack.c.h.b16 %v552
    %v2935 = vunpack.c.l.b16 %v553
    %v2936 = vunpack.c.h.b16 %v553
    %v2937 = vunpack.c.l.b16 %v554
    %v2938 = vunpack.c.h.b16 %v554
    %v2939 = vunpack.c.l.b16 %v555
    %v2940 = vunpack.c.h.b16 %v555
    %v2941 = vunpack.c.l.b16 %v556
    %v2942 = vunpack.c.h.b16 %v556
    %v2943 = vunpack.c.l.b16 %v557
    %v2944 = vunpack.c.h.b16 %v557
    %v2945 = vunpack.c.l.b16 %v558
    %v2946 = vunpack.c.h.b16 %v558
    %v2947 = vunpack.c.l.b16 %v559
    %v2948 = vunpack.c.h.b16 %v559
    %v2949 = vunpack.c.l.b16 %v560
    %v2950 = vunpack.c.h.b16 %v560
    %v2951 = vunpack.c.l.b16 %v561
    %v2952 = vunpack.c.h.b16 %v561
    %v2953 = vunpack.c.l.b16 %v562
    %v2954 = vunpack.c.h.b16 %v562
    %v2955 = vunpack.c.l.b16 %v563
    %v2956 = vunpack.c.h.b16 %v563
    %v2957 = vunpack.c.l.b16 %v564
    %v2958 = vunpack.c.h.b16 %v564
    %v2959 = vunpack.c.l.b16 %v565
    %v2960 = vunpack.c.h.b16 %v565
    %v2961 = vunpack.c.l.b16 %v566
    %v2962 = vunpack.c.h.b16 %v566
    %v2963 = vunpack.c.l.b16 %v567
    %v2964 = vunpack.c.h.b16 %v567
    %v2965 = vunpack.c.l.b16 %v568
    %v2966 = vunpack.c.h.b16 %v568
    %v2967 = vunpack.c.l.b16 %v569
    %v2968 = vunpack.c.h.b16 %v569
    %v2969 = vunpack.c.l.b16 %v570
    %v2970 = vunpack.c.h.b16 %v570
    %v2971 = vunpack.c.l.b16 %v571
    %v2972 = vunpack.c.h.b16 %v571
    %v2973 = vunpack.c.l.b16 %v572
    %v2974 = vunpack.c.h.b16 %v572
    %v2975 = vunpack.c.l.b16 %v573
    %v2976 = vunpack.c.h.b16 %v573
    %v2977 = vunpack.c.l.b16 %v574
    %v2978 = vunpack.c.h.b16 %v574
    %v2979 = vunpack.c.l.b16 %v575
    %v2980 = vunpack.c.h.b16 %v575
    %v2981 = vunpack.c.l.b16 %v576
    %v2982 = vunpack.c.h.b16 %v576
    %v2983 = vunpack.c.l.b16 %v577
    %v2984 = vunpack.c.h.b16 %v577
    %v2985 = vunpack.c.l.b16 %v578
    %v2986 = vunpack.c.h.b16 %v578
    %v2987 = vunpack.c.l.b16 %v579
    %v2988 = vunpack.c.h.b16 %v579
    %v2989 = vunpack.c.l.b16 %v580
    %v2990 = vunpack.c.h.b16 %v580
    %v2991 = vunpack.c.l.b16 %v581
    %v2992 = vunpack.c.h.b16 %v581
    %v2993 = vunpack.c.l.b16 %v582
    %v2994 = vunpack.c.h.b16 %v582
    %v2995 = vunpack.c.l.b16 %v583
    %v2996 = vunpack.c.h.b16 %v583
    %v2997 = vunpack.c.l.b16 %v584
    %v2998 = vunpack.c.h.b16 %v584
    %v2999 = vunpack.c.l.b16 %v585
    %v3000 = vunpack.c.h.b16 %v585
    %v3001 = vunpack.c.l.b16 %v586
    %v3002 = vunpack.c.h.b16 %v586
    %v3003 = vunpack.c.l.b16 %v587
    %v3004 = vunpack.c.h.b16 %v587
    %v3005 = vunpack.c.l.b16 %v588
    %v3006 = vunpack.c.h.b16 %v588
    %v3007 = vunpack.c.l.b16 %v589
    %v3008 = vunpack.c.h.b16 %v589
    %v3009 = vunpack.c.l.b16 %v590
    %v3010 = vunpack.c.h.b16 %v590
    %v3011 = vunpack.c.l.b16 %v591
    %v3012 = vunpack.c.h.b16 %v591
    %v3013 = vunpack.c.l.b16 %v592
    %v3014 = vunpack.c.h.b16 %v592
    %v3015 = vunpack.c.l.b16 %v593
    %v3016 = vunpack.c.h.b16 %v593
    %v3017 = vunpack.c.l.b16 %v594
    %v3018 = vunpack.c.h.b16 %v594
    %v3019 = vunpack.c.l.b16 %v595
    %v3020 = vunpack.c.h.b16 %v595
    %v3021 = vunpack.c.l.b16 %v596
    %v3022 = vunpack.c.h.b16 %v596
    %v3023 = vunpack.c.l.b16 %v597
    %v3024 = vunpack.c.h.b16 %v597
    %v3025 = vunpack.c.l.b16 %v598
    %v3026 = vunpack.c.h.b16 %v598
    %v3027 = vunpack.c.l.b16 %v599
    %v3028 = vunpack.c.h.b16 %v599
    %v3029 = vunpack.c.l.b16 %v600
    %v3030 = vunpack.c.h.b16 %v600
    %v3031 = vunpack.c.l.b16 %v601
    %v3032 = vunpack.c.h.b16 %v601
    %v3033 = vunpack.c.l.b16 %v602
    %v3034 = vunpack.c.h.b16 %v602
    %v3035 = vunpack.c.l.b16 %v603
    %v3036 = vunpack.c.h.b16 %v603
    %v3037 = vunpack.c.l.b16 %v604
    %v3038 = vunpack.c.h.b16 %v604
    %v3039 = vunpack.c.l.b16 %v605
    %v3040 = vunpack.c.h.b16 %v605
    %v3041 = vunpack.c.l.b16 %v606
    %v3042 = vunpack.c.h.b16 %v606
    %v3043 = vunpack.c.l.b16 %v607
    %v3044 = vunpack.c.h.b16 %v607
    %v3045 = vunpack.c.l.b16 %v608
    %v3046 = vunpack.c.h.b16 %v608
    %v3047 = vunpack.c.l.b16 %v609
    %v3048 = vunpack.c.h.b16 %v609
    %v3049 = vunpack.c.l.b16 %v610
    %v3050 = vunpack.c.h.b16 %v610
    %v3051 = vunpack.c.l.b16 %v611
    %v3052 = vunpack.c.h.b16 %v611
    %v3053 = vunpack.c.l.b16 %v612
    %v3054 = vunpack.c.h.b16 %v612
    %v3055 = vunpack.c.l.b16 %v613
    %v3056 = vunpack.c.h.b16 %v613
    %v3057 = vunpack.c.l.b16 %v614
    %v3058 = vunpack.c.h.b16 %v614
    %v3059 = vunpack.c.l.b16 %v615
    %v3060 = vunpack.c.h.b16 %v615
    %v3061 = vunpack.c.l.b16 %v616
    %v3062 = vunpack.c.h.b16 %v616
    %v3063 = vunpack.c.l.b16 %v617
    %v3064 = vunpack.c.h.b16 %v617
    %v3065 = vunpack.c.l.b16 %v618
    %v3066 = vunpack.c.h.b16 %v618
    %v3067 = vunpack.c.l.b16 %v619
    %v3068 = vunpack.c.h.b16 %v619
    %v3069 = vunpack.c.l.b16 %v620
    %v3070 = vunpack.c.h.b16 %v620
    %v3071 = vunpack.c.l.b16 %v621
    %v3072 = vunpack.c.h.b16 %v621
    %v3073 = vunpack.c.l.b16 %v622
    %v3074 = vunpack.c.h.b16 %v622
    %v3075 = vunpack.c.l.b16 %v623
    %v3076 = vunpack.c.h.b16 %v623
    %v3077 = vunpack.c.l.b16 %v624
    %v3078 = vunpack.c.h.b16 %v624
    %v3079 = vunpack.c.l.b16 %v625
    %v3080 = vunpack.c.h.b16 %v625
    %v3081 = vunpack.c.l.b16 %v626
    %v3082 = vunpack.c.h.b16 %v626
    %v3083 = vunpack.c.l.b16 %v627
    %v3084 = vunpack.c.h.b16 %v627
    %v3085 = vunpack.c.l.b16 %v628
    %v3086 = vunpack.c.h.b16 %v628
    %v3087 = vunpack.c.l.b16 %v629
    %v3088 = vunpack.c.h.b16 %v629
    %v3089 = vunpack.c.l.b16 %v630
    %v3090 = vunpack.c.h.b16 %v630
    %v3091 = vunpack.c.l.b16 %v631
    %v3092 = vunpack.c.h.b16 %v631
    %v3093 = vunpack.c.l.b16 %v632
    %v3094 = vunpack.c.h.b16 %v632
    %v3095 = vunpack.c.l.b16 %v633
    %v3096 = vunpack.c.h.b16 %v633
    %v3097 = vunpack.c.l.b16 %v634
    %v3098 = vunpack.c.h.b16 %v634
    %v3099 = vunpack.c.l.b16 %v635
    %v3100 = vunpack.c.h.b16 %v635
    %v3101 = vunpack.c.l.b16 %v636
    %v3102 = vunpack.c.h.b16 %v636
    %v3103 = vunpack.c.l.b16 %v637
    %v3104 = vunpack.c.h.b16 %v637
    %v3105 = vunpack.c.l.b16 %v638
    %v3106 = vunpack.c.h.b16 %v638
    %v3107 = vunpack.c.l.b16 %v639
    %v3108 = vunpack.c.h.b16 %v639
    %v3109 = vunpack.c.l.b16 %v640
    %v3110 = vunpack.c.h.b16 %v640
    %v3111 = vunpack.c.l.b16 %v641
    %v3112 = vunpack.c.h.b16 %v641
    %v3113 = vunpack.c.l.b16 %v642
    %v3114 = vunpack.c.h.b16 %v642
    %v3115 = vunpack.c.l.b16 %v643
    %v3116 = vunpack.c.h.b16 %v643
    %v3117 = vunpack.c.l.b16 %v644
    %v3118 = vunpack.c.h.b16 %v644
    %v3119 = vunpack.c.l.b16 %v645
    %v3120 = vunpack.c.h.b16 %v645
    %v3121 = vunpack.c.l.b16 %v646
    %v3122 = vunpack.c.h.b16 %v646
    %v3123 = vunpack.c.l.b16 %v647
    %v3124 = vunpack.c.h.b16 %v647
    %v3125 = vunpack.c.l.b16 %v648
    %v3126 = vunpack.c.h.b16 %v648
    %v3127 = vunpack.c.l.b16 %v649
    %v3128 = vunpack.c.h.b16 %v649
    %v3129 = vunpack.c.l.b16 %v650
    %v3130 = vunpack.c.h.b16 %v650
    %v3131 = vunpack.c.l.b16 %v651
    %v3132 = vunpack.c.h.b16 %v651
    %v3133 = vunpack.c.l.b16 %v652
    %v3134 = vunpack.c.h.b16 %v652
    %v3135 = vunpack.c.l.b16 %v653
    %v3136 = vunpack.c.h.b16 %v653
    %v3137 = vunpack.c.l.b16 %v654
    %v3138 = vunpack.c.h.b16 %v654
    %v3139 = vunpack.c.l.b16 %v655
    %v3140 = vunpack.c.h.b16 %v655
    %v3141 = vunpack.c.l.b16 %v656
    %v3142 = vunpack.c.h.b16 %v656
    %v3143 = vunpack.c.l.b16 %v657
    %v3144 = vunpack.c.h.b16 %v657
    %v3145 = vunpack.c.l.b16 %v658
    %v3146 = vunpack.c.h.b16 %v658
    %v3147 = vunpack.c.l.b16 %v659
    %v3148 = vunpack.c.h.b16 %v659
    %v3149 = vunpack.c.l.b16 %v660
    %v3150 = vunpack.c.h.b16 %v660
    %v3151 = vunpack.c.l.b16 %v661
    %v3152 = vunpack.c.h.b16 %v661
    %v3153 = vunpack.c.l.b16 %v662
    %v3154 = vunpack.c.h.b16 %v662
    %v3155 = vunpack.c.l.b16 %v663
    %v3156 = vunpack.c.h.b16 %v663
    %v3157 = vunpack.c.l.b16 %v664
    %v3158 = vunpack.c.h.b16 %v664
    %v3159 = vunpack.c.l.b16 %v665
    %v3160 = vunpack.c.h.b16 %v665
    %v3161 = vunpack.c.l.b16 %v666
    %v3162 = vunpack.c.h.b16 %v666
    %v3163 = vunpack.c.l.b16 %v667
    %v3164 = vunpack.c.h.b16 %v667
    %v3165 = vunpack.c.l.b16 %v668
    %v3166 = vunpack.c.h.b16 %v668
    %v3167 = vunpack.c.l.b16 %v669
    %v3168 = vunpack.c.h.b16 %v669
    %v3169 = vunpack.c.l.b16 %v670
    %v3170 = vunpack.c.h.b16 %v670
    %v3171 = vunpack.c.l.b16 %v671
    %v3172 = vunpack.c.h.b16 %v671
    %v3173 = vunpack.c.l.b16 %v672
    %v3174 = vunpack.c.h.b16 %v672
    %v3175 = vunpack.c.l.b16 %v673
    %v3176 = vunpack.c.h.b16 %v673
    %v3177 = vunpack.c.l.b16 %v674
    %v3178 = vunpack.c.h.b16 %v674
    %v3179 = vunpack.c.l.b16 %v675
    %v3180 = vunpack.c.h.b16 %v675
    %v3181 = vunpack.c.l.b16 %v676
    %v3182 = vunpack.c.h.b16 %v676
    %v3183 = vunpack.c.l.b16 %v677
    %v3184 = vunpack.c.h.b16 %v677
    %v3185 = vunpack.c.l.b16 %v678
    %v3186 = vunpack.c.h.b16 %v678
    %v3187 = vunpack.c.l.b16 %v679
    %v3188 = vunpack.c.h.b16 %v679
    %v3189 = vunpack.c.l.b16 %v680
    %v3190 = vunpack.c.h.b16 %v680
    %v3191 = vunpack.c.l.b16 %v681
    %v3192 = vunpack.c.h.b16 %v681
    %v3193 = vunpack.c.l.b16 %v682
    %v3194 = vunpack.c.h.b16 %v682
    %v3195 = vunpack.c.l.b16 %v683
    %v3196 = vunpack.c.h.b16 %v683
    %v3197 = vunpack.c.l.b16 %v684
    %v3198 = vunpack.c.h.b16 %v684
    %v3199 = vunpack.c.l.b16 %v685
    %v3200 = vunpack.c.h.b16 %v685
    %v3201 = vunpack.c.l.b16 %v686
    %v3202 = vunpack.c.h.b16 %v686
    %v3203 = vunpack.c.l.b16 %v687
    %v3204 = vunpack.c.h.b16 %v687
    %v3205 = vunpack.c.l.b16 %v688
    %v3206 = vunpack.c.h.b16 %v688
    %v3207 = vunpack.c.l.b16 %v689
    %v3208 = vunpack.c.h.b16 %v689
    %v3209 = vunpack.c.l.b16 %v690
    %v3210 = vunpack.c.h.b16 %v690
    %v3211 = vunpack.c.l.b16 %v691
    %v3212 = vunpack.c.h.b16 %v691
    %v3213 = vunpack.c.l.b16 %v692
    %v3214 = vunpack.c.h.b16 %v692
    %v3215 = vunpack.c.l.b16 %v693
    %v3216 = vunpack.c.h.b16 %v693
    %v3217 = vunpack.c.l.b16 %v694
    %v3218 = vunpack.c.h.b16 %v694
    %v3219 = vunpack.c.l.b16 %v695
    %v3220 = vunpack.c.h.b16 %v695
    %v3221 = vunpack.c.l.b16 %v696
    %v3222 = vunpack.c.h.b16 %v696
    %v3223 = vunpack.c.l.b16 %v697
    %v3224 = vunpack.c.h.b16 %v697
    %v3225 = vunpack.c.l.b16 %v698
    %v3226 = vunpack.c.h.b16 %v698
    %v3227 = vunpack.c.l.b16 %v699
    %v3228 = vunpack.c.h.b16 %v699
    %v3229 = vunpack.c.l.b16 %v700
    %v3230 = vunpack.c.h.b16 %v700
    %v3231 = vunpack.c.l.b16 %v701
    %v3232 = vunpack.c.h.b16 %v701
    %v3233 = vunpack.c.l.b16 %v702
    %v3234 = vunpack.c.h.b16 %v702
    %v3235 = vunpack.c.l.b16 %v703
    %v3236 = vunpack.c.h.b16 %v703
    %v3237 = vunpack.c.l.b16 %v704
    %v3238 = vunpack.c.h.b16 %v704
    %v3239 = vunpack.c.l.b16 %v705
    %v3240 = vunpack.c.h.b16 %v705
    %v3241 = vunpack.c.l.b16 %v706
    %v3242 = vunpack.c.h.b16 %v706
    %v3243 = vunpack.c.l.b16 %v707
    %v3244 = vunpack.c.h.b16 %v707
    %v3245 = vunpack.c.l.b16 %v708
    %v3246 = vunpack.c.h.b16 %v708
    %v3247 = vunpack.c.l.b16 %v709
    %v3248 = vunpack.c.h.b16 %v709
    %v3249 = vunpack.c.l.b16 %v710
    %v3250 = vunpack.c.h.b16 %v710
    %v3251 = vunpack.c.l.b16 %v711
    %v3252 = vunpack.c.h.b16 %v711
    %v3253 = vunpack.c.l.b16 %v712
    %v3254 = vunpack.c.h.b16 %v712
    %v3255 = vunpack.c.l.b16 %v713
    %v3256 = vunpack.c.h.b16 %v713
    %v3257 = vunpack.c.l.b16 %v714
    %v3258 = vunpack.c.h.b16 %v714
    %v3259 = vunpack.c.l.b16 %v715
    %v3260 = vunpack.c.h.b16 %v715
    %v3261 = vunpack.c.l.b16 %v716
    %v3262 = vunpack.c.h.b16 %v716
    %v3263 = vunpack.c.l.b16 %v717
    %v3264 = vunpack.c.h.b16 %v717
    %v3265 = vunpack.c.l.b16 %v718
    %v3266 = vunpack.c.h.b16 %v718
    %v3267 = vunpack.c.l.b16 %v719
    %v3268 = vunpack.c.h.b16 %v719
    %v3269 = vunpack.c.l.b16 %v720
    %v3270 = vunpack.c.h.b16 %v720
    %v3271 = vunpack.c.l.b16 %v721
    %v3272 = vunpack.c.h.b16 %v721
    %v3273 = vunpack.c.l.b16 %v722
    %v3274 = vunpack.c.h.b16 %v722
    %v3275 = vunpack.c.l.b16 %v723
    %v3276 = vunpack.c.h.b16 %v723
    %v3277 = vunpack.c.l.b16 %v724
    %v3278 = vunpack.c.h.b16 %v724
    %v3279 = vunpack.c.l.b16 %v725
    %v3280 = vunpack.c.h.b16 %v725
    %v3281 = vunpack.c.l.b16 %v726
    %v3282 = vunpack.c.h.b16 %v726
    %v3283 = vunpack.c.l.b16 %v727
    %v3284 = vunpack.c.h.b16 %v727
    %v3285 = vunpack.c.l.b16 %v728
    %v3286 = vunpack.c.h.b16 %v728
    %v3287 = vunpack.c.l.b16 %v729
    %v3288 = vunpack.c.h.b16 %v729
    %v3289 = vunpack.c.l.b16 %v730
    %v3290 = vunpack.c.h.b16 %v730
    %v3291 = vunpack.c.l.b16 %v731
    %v3292 = vunpack.c.h.b16 %v731
    %v3293 = vunpack.c.l.b16 %v732
    %v3294 = vunpack.c.h.b16 %v732
    %v3295 = vunpack.c.l.b16 %v733
    %v3296 = vunpack.c.h.b16 %v733
    %v3297 = vunpack.c.l.b16 %v734
    %v3298 = vunpack.c.h.b16 %v734
    %v3299 = vunpack.c.l.b16 %v735
    %v3300 = vunpack.c.h.b16 %v735
    %v3301 = vunpack.c.l.b16 %v736
    %v3302 = vunpack.c.h.b16 %v736
    %v3303 = vunpack.c.l.b16 %v737
    %v3304 = vunpack.c.h.b16 %v737
    %v3305 = vunpack.c.l.b16 %v738
    %v3306 = vunpack.c.h.b16 %v738
    %v3307 = vunpack.c.l.b16 %v739
    %v3308 = vunpack.c.h.b16 %v739
    %v3309 = vunpack.c.l.b16 %v740
    %v3310 = vunpack.c.h.b16 %v740
    %v3311 = vunpack.c.l.b16 %v741
    %v3312 = vunpack.c.h.b16 %v741
    %v3313 = vunpack.c.l.b16 %v742
    %v3314 = vunpack.c.h.b16 %v742
    %v3315 = vunpack.c.l.b16 %v743
    %v3316 = vunpack.c.h.b16 %v743
    %v3317 = vunpack.c.l.b16 %v744
    %v3318 = vunpack.c.h.b16 %v744
    %v3319 = vunpack.c.l.b16 %v745
    %v3320 = vunpack.c.h.b16 %v745
    %v3321 = vunpack.c.l.b16 %v746
    %v3322 = vunpack.c.h.b16 %v746
    %v3323 = vunpack.c.l.b16 %v747
    %v3324 = vunpack.c.h.b16 %v747
    %v3325 = vunpack.c.l.b16 %v748
    %v3326 = vunpack.c.h.b16 %v748
    %v3327 = vunpack.c.l.b16 %v749
    %v3328 = vunpack.c.h.b16 %v749
    %v3329 = vunpack.c.l.b16 %v750
    %v3330 = vunpack.c.h.b16 %v750
    %v3331 = vunpack.c.l.b16 %v751
    %v3332 = vunpack.c.h.b16 %v751
    %v3333 = vunpack.c.l.b16 %v752
    %v3334 = vunpack.c.h.b16 %v752
    %v3335 = vunpack.c.l.b16 %v753
    %v3336 = vunpack.c.h.b16 %v753
    %v3337 = vunpack.c.l.b16 %v754
    %v3338 = vunpack.c.h.b16 %v754
    %v3339 = vunpack.c.l.b16 %v755
    %v3340 = vunpack.c.h.b16 %v755
    %v3341 = vunpack.c.l.b16 %v756
    %v3342 = vunpack.c.h.b16 %v756
    %v3343 = vunpack.c.l.b16 %v757
    %v3344 = vunpack.c.h.b16 %v757
    %v3345 = vunpack.c.l.b16 %v758
    %v3346 = vunpack.c.h.b16 %v758
    %v3347 = vunpack.c.l.b16 %v759
    %v3348 = vunpack.c.h.b16 %v759
    %v3349 = vunpack.c.l.b16 %v760
    %v3350 = vunpack.c.h.b16 %v760
    %v3351 = vunpack.c.l.b16 %v761
    %v3352 = vunpack.c.h.b16 %v761
    %v3353 = vunpack.c.l.b16 %v762
    %v3354 = vunpack.c.h.b16 %v762
    %v3355 = vunpack.c.l.b16 %v763
    %v3356 = vunpack.c.h.b16 %v763
    %v3357 = vunpack.c.l.b16 %v764
    %v3358 = vunpack.c.h.b16 %v764
    %v3359 = vunpack.c.l.b16 %v765
    %v3360 = vunpack.c.h.b16 %v765
    %v3361 = vunpack.c.l.b16 %v766
    %v3362 = vunpack.c.h.b16 %v766
    %v3363 = vunpack.c.l.b16 %v767
    %v3364 = vunpack.c.h.b16 %v767
    %v3365 = vunpack.c.l.b16 %v768
    %v3366 = vunpack.c.h.b16 %v768
    %v3367 = vunpack.c.l.b16 %v769
    %v3368 = vunpack.c.h.b16 %v769
    %v3369 = vunpack.c.l.b16 %v770
    %v3370 = vunpack.c.h.b16 %v770
    %v3371 = vunpack.c.l.b16 %v771
    %v3372 = vunpack.c.h.b16 %v771
    %v3373 = vunpack.c.l.b16 %v772
    %v3374 = vunpack.c.h.b16 %v772
    %v3375 = vunpack.c.l.b16 %v773
    %v3376 = vunpack.c.h.b16 %v773
    %v3377 = vunpack.c.l.b16 %v774
    %v3378 = vunpack.c.h.b16 %v774
    %v3379 = vunpack.c.l.b16 %v775
    %v3380 = vunpack.c.h.b16 %v775
    %v3381 = vunpack.c.l.b16 %v776
    %v3382 = vunpack.c.h.b16 %v776
    %v3383 = vunpack.c.l.b16 %v777
    %v3384 = vunpack.c.h.b16 %v777
    %v3385 = vunpack.c.l.b16 %v778
    %v3386 = vunpack.c.h.b16 %v778
    %v3387 = vunpack.c.l.b16 %v779
    %v3388 = vunpack.c.h.b16 %v779
    %v3389 = vunpack.c.l.b16 %v780
    %v3390 = vunpack.c.h.b16 %v780
    %v3391 = vunpack.c.l.b16 %v781
    %v3392 = vunpack.c.h.b16 %v781
    %v3393 = vunpack.c.l.b16 %v782
    %v3394 = vunpack.c.h.b16 %v782
    %v3395 = vunpack.c.l.b16 %v783
    %v3396 = vunpack.c.h.b16 %v783
    %v3397 = vunpack.c.l.b16 %v784
    %v3398 = vunpack.c.h.b16 %v784
    %v3399 = vunpack.c.l.b16 %v785
    %v3400 = vunpack.c.h.b16 %v785
    %v3401 = vunpack.c.l.b16 %v786
    %v3402 = vunpack.c.h.b16 %v786
    %v3403 = vunpack.c.l.b16 %v787
    %v3404 = vunpack.c.h.b16 %v787
    %v3405 = vunpack.c.l.b16 %v788
    %v3406 = vunpack.c.h.b16 %v788
    %v3407 = vunpack.c.l.b16 %v789
    %v3408 = vunpack.c.h.b16 %v789
    %v3409 = vunpack.c.l.b16 %v790
    %v3410 = vunpack.c.h.b16 %v790
    %v3411 = vunpack.c.l.b16 %v791
    %v3412 = vunpack.c.h.b16 %v791
    %v3413 = vunpack.c.l.b16 %v792
    %v3414 = vunpack.c.h.b16 %v792
    %v3415 = vunpack.c.l.b16 %v793
    %v3416 = vunpack.c.h.b16 %v793
    %v3417 = vunpack.c.l.b16 %v794
    %v3418 = vunpack.c.h.b16 %v794
    %v3419 = vunpack.c.l.b16 %v795
    %v3420 = vunpack.c.h.b16 %v795
    %v3421 = vunpack.c.l.b16 %v796
    %v3422 = vunpack.c.h.b16 %v796
    %v3423 = vunpack.c.l.b16 %v797
    %v3424 = vunpack.c.h.b16 %v797
    %v3425 = vunpack.c.l.b16 %v798
    %v3426 = vunpack.c.h.b16 %v798
    %v3427 = vunpack.c.l.b16 %v799
    %v3428 = vunpack.c.h.b16 %v799
    %v3429 = vunpack.c.l.b16 %v800
    %v3430 = vunpack.c.h.b16 %v800
    %v3431 = vunpack.c.l.b16 %v801
    %v3432 = vunpack.c.h.b16 %v801
    %v3433 = vunpack.c.l.b16 %v802
    %v3434 = vunpack.c.h.b16 %v802
    %v3435 = vunpack.c.l.b16 %v803
    %v3436 = vunpack.c.h.b16 %v803
    %v3437 = vunpack.c.l.b16 %v804
    %v3438 = vunpack.c.h.b16 %v804
    %v3439 = vunpack.c.l.b16 %v805
    %v3440 = vunpack.c.h.b16 %v805
    %v3441 = vunpack.c.l.b16 %v806
    %v3442 = vunpack.c.h.b16 %v806
    %v3443 = vunpack.c.l.b16 %v807
    %v3444 = vunpack.c.h.b16 %v807
    %v3445 = vunpack.c.l.b16 %v808
    %v3446 = vunpack.c.h.b16 %v808
    %v3447 = vunpack.c.l.b16 %v809
    %v3448 = vunpack.c.h.b16 %v809
    %v3449 = vunpack.c.l.b16 %v810
    %v3450 = vunpack.c.h.b16 %v810
    %v3451 = vunpack.c.l.b16 %v811
    %v3452 = vunpack.c.h.b16 %v811
    %v3453 = vunpack.c.l.b16 %v812
    %v3454 = vunpack.c.h.b16 %v812
    %v3455 = vunpack.c.l.b16 %v813
    %v3456 = vunpack.c.h.b16 %v813
    %v3457 = vunpack.c.l.b16 %v814
    %v3458 = vunpack.c.h.b16 %v814
    %v3459 = vunpack.c.l.b16 %v815
    %v3460 = vunpack.c.h.b16 %v815
    %v3461 = vunpack.c.l.b16 %v816
    %v3462 = vunpack.c.h.b16 %v816
    %v3463 = vunpack.c.l.b16 %v817
    %v3464 = vunpack.c.h.b16 %v817
    %v3465 = vunpack.c.l.b16 %v818
    %v3466 = vunpack.c.h.b16 %v818
    %v3467 = vunpack.c.l.b16 %v819
    %v3468 = vunpack.c.h.b16 %v819
    %v3469 = vunpack.c.l.b16 %v820
    %v3470 = vunpack.c.h.b16 %v820
    %v3471 = vunpack.c.l.b16 %v821
    %v3472 = vunpack.c.h.b16 %v821
    %v3473 = vunpack.c.l.b16 %v822
    %v3474 = vunpack.c.h.b16 %v822
    %v3475 = vunpack.c.l.b16 %v823
    %v3476 = vunpack.c.h.b16 %v823
    %v3477 = vunpack.c.l.b16 %v824
    %v3478 = vunpack.c.h.b16 %v824
    %v3479 = vunpack.c.l.b16 %v825
    %v3480 = vunpack.c.h.b16 %v825
    %v3481 = vunpack.c.l.b16 %v826
    %v3482 = vunpack.c.h.b16 %v826
    %v3483 = vunpack.c.l.b16 %v827
    %v3484 = vunpack.c.h.b16 %v827
    %v3485 = vunpack.c.l.b16 %v828
    %v3486 = vunpack.c.h.b16 %v828
    %v3487 = vunpack.c.l.b16 %v829
    %v3488 = vunpack.c.h.b16 %v829
    %v3489 = vunpack.c.l.b16 %v830
    %v3490 = vunpack.c.h.b16 %v830
    %v3491 = vunpack.c.l.b16 %v831
    %v3492 = vunpack.c.h.b16 %v831
    %v3493 = vunpack.c.l.b16 %v832
    %v3494 = vunpack.c.h.b16 %v832
    %v3495 = vunpack.c.l.b16 %v833
    %v3496 = vunpack.c.h.b16 %v833
    %v3497 = vunpack.c.l.b16 %v834
    %v3498 = vunpack.c.h.b16 %v834
    %v3499 = vunpack.c.l.b16 %v835
    %v3500 = vunpack.c.h.b16 %v835
    %v3501 = vunpack.c.l.b16 %v836
    %v3502 = vunpack.c.h.b16 %v836
    %v3503 = vunpack.c.l.b16 %v837
    %v3504 = vunpack.c.h.b16 %v837
    %v3505 = vunpack.c.l.b16 %v838
    %v3506 = vunpack.c.h.b16 %v838
    %v3507 = vunpack.c.l.b16 %v839
    %v3508 = vunpack.c.h.b16 %v839
    %v3509 = vunpack.c.l.b16 %v840
    %v3510 = vunpack.c.h.b16 %v840
    %v3511 = vunpack.c.l.b16 %v841
    %v3512 = vunpack.c.h.b16 %v841
    %v3513 = vunpack.c.l.b16 %v842
    %v3514 = vunpack.c.h.b16 %v842
    %v3515 = vunpack.c.l.b16 %v843
    %v3516 = vunpack.c.h.b16 %v843
    %v3517 = vunpack.c.l.b16 %v844
    %v3518 = vunpack.c.h.b16 %v844
    %v3519 = vunpack.c.l.b16 %v845
    %v3520 = vunpack.c.h.b16 %v845
    %v3521 = vunpack.c.l.b16 %v846
    %v3522 = vunpack.c.h.b16 %v846
    %v3523 = vunpack.c.l.b16 %v847
    %v3524 = vunpack.c.h.b16 %v847
    %v3525 = vunpack.c.l.b16 %v848
    %v3526 = vunpack.c.h.b16 %v848
    %v3527 = vunpack.c.l.b16 %v849
    %v3528 = vunpack.c.h.b16 %v849
    %v3529 = vunpack.c.l.b16 %v850
    %v3530 = vunpack.c.h.b16 %v850
    %v3531 = vunpack.c.l.b16 %v851
    %v3532 = vunpack.c.h.b16 %v851
    %v3533 = vunpack.c.l.b16 %v852
    %v3534 = vunpack.c.h.b16 %v852
    %v3535 = vunpack.c.l.b16 %v853
    %v3536 = vunpack.c.h.b16 %v853
    %v3537 = vunpack.c.l.b16 %v854
    %v3538 = vunpack.c.h.b16 %v854
    %v3539 = vunpack.c.l.b16 %v855
    %v3540 = vunpack.c.h.b16 %v855
    %v3541 = vunpack.c.l.b16 %v856
    %v3542 = vunpack.c.h.b16 %v856
    %v3543 = vunpack.c.l.b16 %v857
    %v3544 = vunpack.c.h.b16 %v857
    %v3545 = vunpack.c.l.b16 %v858
    %v3546 = vunpack.c.h.b16 %v858
    %v3547 = vunpack.c.l.b16 %v859
    %v3548 = vunpack.c.h.b16 %v859
    %v3549 = vunpack.c.l.b16 %v860
    %v3550 = vunpack.c.h.b16 %v860
    %v3551 = vunpack.c.l.b16 %v861
    %v3552 = vunpack.c.h.b16 %v861
    %v3553 = vunpack.c.l.b16 %v862
    %v3554 = vunpack.c.h.b16 %v862
    %v3555 = vunpack.c.l.b16 %v863
    %v3556 = vunpack.c.h.b16 %v863
    %v3557 = vunpack.c.l.b16 %v864
    %v3558 = vunpack.c.h.b16 %v864
    %v3559 = vunpack.c.l.b16 %v865
    %v3560 = vunpack.c.h.b16 %v865
    %v3561 = vunpack.c.l.b16 %v866
    %v3562 = vunpack.c.h.b16 %v866
    %v3563 = vunpack.c.l.b16 %v867
    %v3564 = vunpack.c.h.b16 %v867
    %v3565 = vunpack.c.l.b16 %v868
    %v3566 = vunpack.c.h.b16 %v868
    %v3567 = vunpack.c.l.b16 %v869
    %v3568 = vunpack.c.h.b16 %v869
    %v3569 = vunpack.c.l.b16 %v870
    %v3570 = vunpack.c.h.b16 %v870
    %v3571 = vunpack.c.l.b16 %v871
    %v3572 = vunpack.c.h.b16 %v871
    %v3573 = vunpack.c.l.b16 %v872
    %v3574 = vunpack.c.h.b16 %v872
    %v3575 = vunpack.c.l.b16 %v873
    %v3576 = vunpack.c.h.b16 %v873
    %v3577 = vunpack.c.l.b16 %v874
    %v3578 = vunpack.c.h.b16 %v874
    %v3579 = vunpack.c.l.b16 %v875
    %v3580 = vunpack.c.h.b16 %v875
    %v3581 = vunpack.c.l.b16 %v876
    %v3582 = vunpack.c.h.b16 %v876
    %v3583 = vunpack.c.l.b16 %v877
    %v3584 = vunpack.c.h.b16 %v877
    %v3585 = vunpack.c.l.b16 %v878
    %v3586 = vunpack.c.h.b16 %v878
    %v3587 = vunpack.c.l.b16 %v879
    %v3588 = vunpack.c.h.b16 %v879
    %v3589 = vunpack.c.l.b16 %v880
    %v3590 = vunpack.c.h.b16 %v880
    %v3591 = vunpack.c.l.b16 %v881
    %v3592 = vunpack.c.h.b16 %v881
    %v3593 = vunpack.c.l.b16 %v882
    %v3594 = vunpack.c.h.b16 %v882
    %v3595 = vunpack.c.l.b16 %v883
    %v3596 = vunpack.c.h.b16 %v883
    %v3597 = vunpack.c.l.b16 %v884
    %v3598 = vunpack.c.h.b16 %v884
    %v3599 = vunpack.c.l.b16 %v885
    %v3600 = vunpack.c.h.b16 %v885
    %v3601 = vunpack.c.l.b16 %v886
    %v3602 = vunpack.c.h.b16 %v886
    %v3603 = vunpack.c.l.b16 %v887
    %v3604 = vunpack.c.h.b16 %v887
    %v3605 = vunpack.c.l.b16 %v888
    %v3606 = vunpack.c.h.b16 %v888
    %v3607 = vunpack.c.l.b16 %v889
    %v3608 = vunpack.c.h.b16 %v889
    %v3609 = vunpack.c.l.b16 %v890
    %v3610 = vunpack.c.h.b16 %v890
    %v3611 = vunpack.c.l.b16 %v891
    %v3612 = vunpack.c.h.b16 %v891
    %v3613 = vunpack.c.l.b16 %v892
    %v3614 = vunpack.c.h.b16 %v892
    %v3615 = vunpack.c.l.b16 %v893
    %v3616 = vunpack.c.h.b16 %v893
    %v3617 = vunpack.c.l.b16 %v894
    %v3618 = vunpack.c.h.b16 %v894
    %v3619 = vunpack.c.l.b16 %v895
    %v3620 = vunpack.c.h.b16 %v895
    %v3621 = vunpack.c.l.b16 %v896
    %v3622 = vunpack.c.h.b16 %v896
    %v3623 = vunpack.c.l.b16 %v897
    %v3624 = vunpack.c.h.b16 %v897
    %v3625 = vunpack.c.l.b16 %v898
    %v3626 = vunpack.c.h.b16 %v898
    %v3627 = vunpack.c.l.b16 %v899
    %v3628 = vunpack.c.h.b16 %v899
    %v3629 = vunpack.c.l.b16 %v900
    %v3630 = vunpack.c.h.b16 %v900
    %v3631 = vunpack.c.l.b16 %v901
    %v3632 = vunpack.c.h.b16 %v901
    %v3633 = vunpack.c.l.b16 %v902
    %v3634 = vunpack.c.h.b16 %v902
    %v3635 = vunpack.c.l.b16 %v903
    %v3636 = vunpack.c.h.b16 %v903
    %v3637 = vunpack.c.l.b16 %v904
    %v3638 = vunpack.c.h.b16 %v904
    %v3639 = vunpack.c.l.b16 %v905
    %v3640 = vunpack.c.h.b16 %v905
    %v3641 = vunpack.c.l.b16 %v906
    %v3642 = vunpack.c.h.b16 %v906
    %v3643 = vunpack.c.l.b16 %v907
    %v3644 = vunpack.c.h.b16 %v907
    %v3645 = vunpack.c.l.b16 %v908
    %v3646 = vunpack.c.h.b16 %v908
    %v3647 = vunpack.c.l.b16 %v909
    %v3648 = vunpack.c.h.b16 %v909
    %v3649 = vunpack.c.l.b16 %v910
    %v3650 = vunpack.c.h.b16 %v910
    %v3651 = vunpack.c.l.b16 %v911
    %v3652 = vunpack.c.h.b16 %v911
    %v3653 = vunpack.c.l.b16 %v912
    %v3654 = vunpack.c.h.b16 %v912
    %v3655 = vunpack.c.l.b16 %v913
    %v3656 = vunpack.c.h.b16 %v913
    %v3657 = vunpack.c.l.b16 %v914
    %v3658 = vunpack.c.h.b16 %v914
    %v3659 = vunpack.c.l.b16 %v915
    %v3660 = vunpack.c.h.b16 %v915
    %v3661 = vunpack.c.l.b16 %v916
    %v3662 = vunpack.c.h.b16 %v916
    %v3663 = vunpack.c.l.b16 %v917
    %v3664 = vunpack.c.h.b16 %v917
    %v3665 = vunpack.c.l.b16 %v918
    %v3666 = vunpack.c.h.b16 %v918
    %v3667 = vunpack.c.l.b16 %v919
    %v3668 = vunpack.c.h.b16 %v919
    %v3669 = vunpack.c.l.b16 %v920
    %v3670 = vunpack.c.h.b16 %v920
    %v3671 = vunpack.c.l.b16 %v921
    %v3672 = vunpack.c.h.b16 %v921
    %v3673 = vunpack.c.l.b16 %v922
    %v3674 = vunpack.c.h.b16 %v922
    %v3675 = vunpack.c.l.b16 %v923
    %v3676 = vunpack.c.h.b16 %v923
    %v3677 = vunpack.c.l.b16 %v924
    %v3678 = vunpack.c.h.b16 %v924
    %v3679 = vunpack.c.l.b16 %v925
    %v3680 = vunpack.c.h.b16 %v925
    %v3681 = vunpack.c.l.b16 %v926
    %v3682 = vunpack.c.h.b16 %v926
    %v3683 = vunpack.c.l.b16 %v927
    %v3684 = vunpack.c.h.b16 %v927
    %v3685 = vunpack.c.l.b16 %v928
    %v3686 = vunpack.c.h.b16 %v928
    %v3687 = vunpack.c.l.b16 %v929
    %v3688 = vunpack.c.h.b16 %v929
    %v3689 = vunpack.c.l.b16 %v930
    %v3690 = vunpack.c.h.b16 %v930
    %v3691 = vunpack.c.l.b16 %v931
    %v3692 = vunpack.c.h.b16 %v931
    %v3693 = vunpack.c.l.b16 %v932
    %v3694 = vunpack.c.h.b16 %v932
    %v3695 = vunpack.c.l.b16 %v933
    %v3696 = vunpack.c.h.b16 %v933
    %v3697 = vunpack.c.l.b16 %v934
    %v3698 = vunpack.c.h.b16 %v934
    %v3699 = vunpack.c.l.b16 %v935
    %v3700 = vunpack.c.h.b16 %v935
    %v3701 = vunpack.c.l.b16 %v936
    %v3702 = vunpack.c.h.b16 %v936
    %v3703 = vunpack.c.l.b16 %v937
    %v3704 = vunpack.c.h.b16 %v937
    %v3705 = vunpack.c.l.b16 %v938
    %v3706 = vunpack.c.h.b16 %v938
    %v3707 = vunpack.c.l.b16 %v939
    %v3708 = vunpack.c.h.b16 %v939
    %v3709 = vunpack.c.l.b16 %v940
    %v3710 = vunpack.c.h.b16 %v940
    %v3711 = vunpack.c.l.b16 %v941
    %v3712 = vunpack.c.h.b16 %v941
    %v3713 = vunpack.c.l.b16 %v942
    %v3714 = vunpack.c.h.b16 %v942
    %v3715 = vunpack.c.l.b16 %v943
    %v3716 = vunpack.c.h.b16 %v943
    %v3717 = vunpack.c.l.b16 %v944
    %v3718 = vunpack.c.h.b16 %v944
    %v3719 = vunpack.c.l.b16 %v945
    %v3720 = vunpack.c.h.b16 %v945
    %v3721 = vunpack.c.l.b16 %v946
    %v3722 = vunpack.c.h.b16 %v946
    %v3723 = vunpack.c.l.b16 %v947
    %v3724 = vunpack.c.h.b16 %v947
    %v3725 = vunpack.c.l.b16 %v948
    %v3726 = vunpack.c.h.b16 %v948
    %v3727 = vunpack.c.l.b16 %v949
    %v3728 = vunpack.c.h.b16 %v949
    %v3729 = vunpack.c.l.b16 %v950
    %v3730 = vunpack.c.h.b16 %v950
    %v3731 = vunpack.c.l.b16 %v951
    %v3732 = vunpack.c.h.b16 %v951
    %v3733 = vunpack.c.l.b16 %v952
    %v3734 = vunpack.c.h.b16 %v952
    %v3735 = vunpack.c.l.b16 %v953
    %v3736 = vunpack.c.h.b16 %v953
    %v3737 = vunpack.c.l.b16 %v954
    %v3738 = vunpack.c.h.b16 %v954
    %v3739 = vunpack.c.l.b16 %v955
    %v3740 = vunpack.c.h.b16 %v955
    %v3741 = vunpack.c.l.b16 %v956
    %v3742 = vunpack.c.h.b16 %v956
    %v3743 = vunpack.c.l.b16 %v957
    %v3744 = vunpack.c.h.b16 %v957
    %v3745 = vunpack.c.l.b16 %v958
    %v3746 = vunpack.c.h.b16 %v958
    %v3747 = vunpack.c.l.b16 %v959
    %v3748 = vunpack.c.h.b16 %v959
    %v3749 = vunpack.c.l.b16 %v960
    %v3750 = vunpack.c.h.b16 %v960
    %v3751 = vunpack.c.l.b16 %v961
    %v3752 = vunpack.c.h.b16 %v961
    %v3753 = vunpack.c.l.b16 %v962
    %v3754 = vunpack.c.h.b16 %v962
    %v3755 = vunpack.c.l.b16 %v963
    %v3756 = vunpack.c.h.b16 %v963
    %v3757 = vunpack.c.l.b16 %v964
    %v3758 = vunpack.c.h.b16 %v964
    %v3759 = vunpack.c.l.b16 %v965
    %v3760 = vunpack.c.h.b16 %v965
    %v3761 = vunpack.c.l.b16 %v966
    %v3762 = vunpack.c.h.b16 %v966
    %v3763 = vunpack.c.l.b16 %v967
    %v3764 = vunpack.c.h.b16 %v967
    %v3765 = vunpack.c.l.b16 %v968
    %v3766 = vunpack.c.h.b16 %v968
    %v3767 = vunpack.c.l.b16 %v969
    %v3768 = vunpack.c.h.b16 %v969
    %v3769 = vunpack.c.l.b16 %v970
    %v3770 = vunpack.c.h.b16 %v970
    %v3771 = vunpack.c.l.b16 %v971
    %v3772 = vunpack.c.h.b16 %v971
    %v3773 = vunpack.c.l.b16 %v972
    %v3774 = vunpack.c.h.b16 %v972
    %v3775 = vunpack.c.l.b16 %v973
    %v3776 = vunpack.c.h.b16 %v973
    %v3777 = vunpack.c.l.b16 %v974
    %v3778 = vunpack.c.h.b16 %v974
    %v3779 = vunpack.c.l.b16 %v975
    %v3780 = vunpack.c.h.b16 %v975
    %v3781 = vunpack.c.l.b16 %v976
    %v3782 = vunpack.c.h.b16 %v976
    %v3783 = vunpack.c.l.b16 %v977
    %v3784 = vunpack.c.h.b16 %v977
    %v3785 = vunpack.c.l.b16 %v978
    %v3786 = vunpack.c.h.b16 %v978
    %v3787 = vunpack.c.l.b16 %v979
    %v3788 = vunpack.c.h.b16 %v979
    %v3789 = vunpack.c.l.b16 %v980
    %v3790 = vunpack.c.h.b16 %v980
    %v3791 = vunpack.c.l.b16 %v981
    %v3792 = vunpack.c.h.b16 %v981
    %v3793 = vunpack.c.l.b16 %v982
    %v3794 = vunpack.c.h.b16 %v982
    %v3795 = vunpack.c.l.b16 %v983
    %v3796 = vunpack.c.h.b16 %v983
    %v3797 = vunpack.c.l.b16 %v984
    %v3798 = vunpack.c.h.b16 %v984
    %v3799 = vunpack.c.l.b16 %v985
    %v3800 = vunpack.c.h.b16 %v985
    %v3801 = vunpack.c.l.b16 %v986
    %v3802 = vunpack.c.h.b16 %v986
    %v3803 = vunpack.c.l.b16 %v987
    %v3804 = vunpack.c.h.b16 %v987
    %v3805 = vunpack.c.l.b16 %v988
    %v3806 = vunpack.c.h.b16 %v988
    %v3807 = vunpack.c.l.b16 %v989
    %v3808 = vunpack.c.h.b16 %v989
    %v3809 = vunpack.c.l.b16 %v990
    %v3810 = vunpack.c.h.b16 %v990
    %v3811 = vunpack.c.l.b16 %v991
    %v3812 = vunpack.c.h.b16 %v991
    %v3813 = vunpack.c.l.b16 %v992
    %v3814 = vunpack.c.h.b16 %v992
    %v3815 = vunpack.c.l.b16 %v993
    %v3816 = vunpack.c.h.b16 %v993
    %v3817 = vunpack.c.l.b16 %v994
    %v3818 = vunpack.c.h.b16 %v994
    %v3819 = vunpack.c.l.b16 %v995
    %v3820 = vunpack.c.h.b16 %v995
    %v3821 = vunpack.c.l.b16 %v996
    %v3822 = vunpack.c.h.b16 %v996
    %v3823 = vunpack.c.l.b16 %v997
    %v3824 = vunpack.c.h.b16 %v997
    %v3825 = vunpack.c.l.b16 %v998
    %v3826 = vunpack.c.h.b16 %v998
    %v3827 = vunpack.c.l.b16 %v999
    %v3828 = vunpack.c.h.b16 %v999
    %v3829 = vunpack.c.l.b16 %v1000
    %v3830 = vunpack.c.h.b16 %v1000
    %v3831 = vunpack.c.l.b16 %v1001
    %v3832 = vunpack.c.h.b16 %v1001
    %v3833 = vunpack.c.l.b16 %v1002
    %v3834 = vunpack.c.h.b16 %v1002
    %v3835 = vunpack.c.l.b16 %v1003
    %v3836 = vunpack.c.h.b16 %v1003
    %v3837 = vunpack.c.l.b16 %v1004
    %v3838 = vunpack.c.h.b16 %v1004
    %v3839 = vunpack.c.l.b16 %v1005
    %v3840 = vunpack.c.h.b16 %v1005
    %v3841 = vunpack.c.l.b16 %v1006
    %v3842 = vunpack.c.h.b16 %v1006
    %v3843 = vunpack.c.l.b16 %v1007
    %v3844 = vunpack.c.h.b16 %v1007
    %v3845 = vunpack.c.l.b16 %v1008
    %v3846 = vunpack.c.h.b16 %v1008
    %v3847 = vunpack.c.l.b16 %v1009
    %v3848 = vunpack.c.h.b16 %v1009
    %v3849 = vunpack.c.l.b16 %v1010
    %v3850 = vunpack.c.h.b16 %v1010
    %v3851 = vunpack.c.l.b16 %v1011
    %v3852 = vunpack.c.h.b16 %v1011
    %v3853 = vunpack.c.l.b16 %v1012
    %v3854 = vunpack.c.h.b16 %v1012
    %v3855 = vunpack.c.l.b16 %v1013
    %v3856 = vunpack.c.h.b16 %v1013
    %v3857 = vunpack.c.l.b16 %v1014
    %v3858 = vunpack.c.h.b16 %v1014
    %v3859 = vunpack.c.l.b16 %v1015
    %v3860 = vunpack.c.h.b16 %v1015
    %v3861 = vunpack.c.l.b16 %v1016
    %v3862 = vunpack.c.h.b16 %v1016
    %v3863 = vunpack.c.l.b16 %v1017
    %v3864 = vunpack.c.h.b16 %v1017
    %v3865 = vunpack.c.l.b16 %v1018
    %v3866 = vunpack.c.h.b16 %v1018
    %v3867 = vunpack.c.l.b16 %v1019
    %v3868 = vunpack.c.h.b16 %v1019
    %v3869 = vunpack.c.l.b16 %v1020
    %v3870 = vunpack.c.h.b16 %v1020
    %v3871 = vunpack.c.l.b16 %v1021
    %v3872 = vunpack.c.h.b16 %v1021
    %v3873 = vunpack.c.l.b16 %v1022
    %v3874 = vunpack.c.h.b16 %v1022
    %v3875 = vunpack.c.l.b16 %v1023
    %v3876 = vunpack.c.h.b16 %v1023
    %v3877 = vunpack.c.l.b16 %v1024
    %v3878 = vunpack.c.h.b16 %v1024
    %v3879 = vunpack.c.l.b16 %v1025
    %v3880 = vunpack.c.h.b16 %v1025
    %v3881 = vunpack.c.l.b16 %v1026
    %v3882 = vunpack.c.h.b16 %v1026
    %v3883 = vunpack.c.l.b16 %v1027
    %v3884 = vunpack.c.h.b16 %v1027
    %v3885 = vunpack.c.l.b16 %v1028
    %v3886 = vunpack.c.h.b16 %v1028
    %v3887 = vunpack.c.l.b16 %v1029
    %v3888 = vunpack.c.h.b16 %v1029
    %v3889 = vunpack.c.l.b16 %v1030
    %v3890 = vunpack.c.h.b16 %v1030
    %v3891 = vunpack.c.l.b16 %v1031
    %v3892 = vunpack.c.h.b16 %v1031
    %v3893 = vunpack.c.l.b16 %v1032
    %v3894 = vunpack.c.h.b16 %v1032
    %v3895 = vunpack.c.l.b16 %v1033
    %v3896 = vunpack.c.h.b16 %v1033
    %v3897 = vunpack.c.l.b16 %v1034
    %v3898 = vunpack.c.h.b16 %v1034
    %v3899 = vunpack.c.l.b16 %v1035
    %v3900 = vunpack.c.h.b16 %v1035
    %v3901 = vunpack.c.l.b16 %v1036
    %v3902 = vunpack.c.h.b16 %v1036
    %v3903 = vunpack.c.l.b16 %v1037
    %v3904 = vunpack.c.h.b16 %v1037
    %v3905 = vunpack.c.l.b16 %v1038
    %v3906 = vunpack.c.h.b16 %v1038
    %v3907 = vunpack.c.l.b16 %v1039
    %v3908 = vunpack.c.h.b16 %v1039
    %v3909 = vunpack.c.l.b16 %v1040
    %v3910 = vunpack.c.h.b16 %v1040
    %v3911 = vunpack.c.l.b16 %v1041
    %v3912 = vunpack.c.h.b16 %v1041
    %v3913 = vunpack.c.l.b16 %v1042
    %v3914 = vunpack.c.h.b16 %v1042
    %v3915 = vunpack.c.l.b16 %v1043
    %v3916 = vunpack.c.h.b16 %v1043
    %v3917 = vunpack.c.l.b16 %v1044
    %v3918 = vunpack.c.h.b16 %v1044
    %v3919 = vunpack.c.l.b16 %v1045
    %v3920 = vunpack.c.h.b16 %v1045
    %v3921 = vunpack.c.l.b16 %v1046
    %v3922 = vunpack.c.h.b16 %v1046
    %v3923 = vunpack.c.l.b16 %v1047
    %v3924 = vunpack.c.h.b16 %v1047
    %v3925 = vunpack.c.l.b16 %v1048
    %v3926 = vunpack.c.h.b16 %v1048
    %v3927 = vunpack.c.l.b16 %v1049
    %v3928 = vunpack.c.h.b16 %v1049
    %v3929 = vunpack.c.l.b16 %v1050
    %v3930 = vunpack.c.h.b16 %v1050
    %v3931 = vunpack.c.l.b16 %v1051
    %v3932 = vunpack.c.h.b16 %v1051
    %v3933 = vunpack.c.l.b16 %v1052
    %v3934 = vunpack.c.h.b16 %v1052
    %v3935 = vunpack.c.l.b16 %v1053
    %v3936 = vunpack.c.h.b16 %v1053
    %v3937 = vunpack.c.l.b16 %v1054
    %v3938 = vunpack.c.h.b16 %v1054
    %v3939 = vunpack.c.l.b16 %v1055
    %v3940 = vunpack.c.h.b16 %v1055
    %v3941 = vunpack.c.l.b16 %v1056
    %v3942 = vunpack.c.h.b16 %v1056
    %v3943 = vunpack.c.l.b16 %v1057
    %v3944 = vunpack.c.h.b16 %v1057
    %v3945 = vunpack.c.l.b16 %v1058
    %v3946 = vunpack.c.h.b16 %v1058
    %v3947 = vunpack.c.l.b16 %v1059
    %v3948 = vunpack.c.h.b16 %v1059
    %v3949 = vunpack.c.l.b16 %v1060
    %v3950 = vunpack.c.h.b16 %v1060
    %v3951 = vunpack.c.l.b16 %v1061
    %v3952 = vunpack.c.h.b16 %v1061
    %v3953 = vunpack.c.l.b16 %v1062
    %v3954 = vunpack.c.h.b16 %v1062
    %v3955 = vunpack.c.l.b16 %v1063
    %v3956 = vunpack.c.h.b16 %v1063
    %v3957 = vunpack.c.l.b16 %v1064
    %v3958 = vunpack.c.h.b16 %v1064
    %v3959 = vunpack.c.l.b16 %v1065
    %v3960 = vunpack.c.h.b16 %v1065
    %v3961 = vunpack.c.l.b16 %v1066
    %v3962 = vunpack.c.h.b16 %v1066
    %v3963 = vunpack.c.l.b16 %v1067
    %v3964 = vunpack.c.h.b16 %v1067
    %v3965 = vunpack.c.l.b16 %v1068
    %v3966 = vunpack.c.h.b16 %v1068
    %v3967 = vunpack.c.l.b16 %v1069
    %v3968 = vunpack.c.h.b16 %v1069
    %v3969 = vunpack.c.l.b16 %v1070
    %v3970 = vunpack.c.h.b16 %v1070
    %v3971 = vunpack.c.l.b16 %v1071
    %v3972 = vunpack.c.h.b16 %v1071
    %v3973 = vunpack.c.l.b16 %v1072
    %v3974 = vunpack.c.h.b16 %v1072
    %v3975 = vunpack.c.l.b16 %v1073
    %v3976 = vunpack.c.h.b16 %v1073
    %v3977 = vunpack.c.l.b16 %v1074
    %v3978 = vunpack.c.h.b16 %v1074
    %v3979 = vunpack.c.l.b16 %v1075
    %v3980 = vunpack.c.h.b16 %v1075
    %v3981 = vunpack.c.l.b16 %v1076
    %v3982 = vunpack.c.h.b16 %v1076
    %v3983 = vunpack.c.l.b16 %v1077
    %v3984 = vunpack.c.h.b16 %v1077
    %v3985 = vunpack.c.l.b16 %v1078
    %v3986 = vunpack.c.h.b16 %v1078
    %v3987 = vunpack.c.l.b16 %v1079
    %v3988 = vunpack.c.h.b16 %v1079
    %v3989 = vunpack.c.l.b16 %v1080
    %v3990 = vunpack.c.h.b16 %v1080
    %v3991 = vunpack.c.l.b16 %v1081
    %v3992 = vunpack.c.h.b16 %v1081
    %v3993 = vunpack.c.l.b16 %v1082
    %v3994 = vunpack.c.h.b16 %v1082
    %v3995 = vunpack.c.l.b16 %v1083
    %v3996 = vunpack.c.h.b16 %v1083
    %v3997 = vunpack.c.l.b16 %v1084
    %v3998 = vunpack.c.h.b16 %v1084
    %v3999 = vunpack.c.l.b16 %v1085
    %v4000 = vunpack.c.h.b16 %v1085
    %v4001 = vunpack.c.l.b16 %v1086
    %v4002 = vunpack.c.h.b16 %v1086
    %v4003 = vunpack.c.l.b16 %v1087
    %v4004 = vunpack.c.h.b16 %v1087
    %v4005 = vunpack.c.l.b16 %v1088
    %v4006 = vunpack.c.h.b16 %v1088
    %v4007 = vunpack.c.l.b16 %v1089
    %v4008 = vunpack.c.h.b16 %v1089
    %v4009 = vunpack.c.l.b16 %v1090
    %v4010 = vunpack.c.h.b16 %v1090
    %v4011 = vunpack.c.l.b16 %v1091
    %v4012 = vunpack.c.h.b16 %v1091
    %v4013 = vunpack.c.l.b16 %v1092
    %v4014 = vunpack.c.h.b16 %v1092
    %v4015 = vunpack.c.l.b16 %v1093
    %v4016 = vunpack.c.h.b16 %v1093
    %v4017 = vunpack.c.l.b16 %v1094
    %v4018 = vunpack.c.h.b16 %v1094
    %v4019 = vunpack.c.l.b16 %v1095
    %v4020 = vunpack.c.h.b16 %v1095
    %v4021 = vunpack.c.l.b16 %v1096
    %v4022 = vunpack.c.h.b16 %v1096
    %v4023 = vunpack.c.l.b16 %v1097
    %v4024 = vunpack.c.h.b16 %v1097
    %v4025 = vunpack.c.l.b16 %v1098
    %v4026 = vunpack.c.h.b16 %v1098
    %v4027 = vunpack.c.l.b16 %v1099
    %v4028 = vunpack.c.h.b16 %v1099
    %v4029 = vunpack.c.l.b16 %v1100
    %v4030 = vunpack.c.h.b16 %v1100
    %v4031 = vunpack.c.l.b16 %v1101
    %v4032 = vunpack.c.h.b16 %v1101
    %v4033 = vunpack.c.l.b16 %v1102
    %v4034 = vunpack.c.h.b16 %v1102
    %v4035 = vunpack.c.l.b16 %v1103
    %v4036 = vunpack.c.h.b16 %v1103
    %v4037 = vunpack.c.l.b16 %v1104
    %v4038 = vunpack.c.h.b16 %v1104
    %v4039 = vunpack.c.l.b16 %v1105
    %v4040 = vunpack.c.h.b16 %v1105
    %v4041 = vunpack.c.l.b16 %v1106
    %v4042 = vunpack.c.h.b16 %v1106
    %v4043 = vunpack.c.l.b16 %v1107
    %v4044 = vunpack.c.h.b16 %v1107
    %v4045 = vunpack.c.l.b16 %v1108
    %v4046 = vunpack.c.h.b16 %v1108
    %v4047 = vunpack.c.l.b16 %v1109
    %v4048 = vunpack.c.h.b16 %v1109
    %v4049 = vunpack.c.l.b16 %v1110
    %v4050 = vunpack.c.h.b16 %v1110
    %v4051 = vunpack.c.l.b16 %v1111
    %v4052 = vunpack.c.h.b16 %v1111
    %v4053 = vunpack.c.l.b16 %v1112
    %v4054 = vunpack.c.h.b16 %v1112
    %v4055 = vunpack.c.l.b16 %v1113
    %v4056 = vunpack.c.h.b16 %v1113
    %v4057 = vunpack.c.l.b16 %v1114
    %v4058 = vunpack.c.h.b16 %v1114
    %v4059 = vunpack.c.l.b16 %v1115
    %v4060 = vunpack.c.h.b16 %v1115
    %v4061 = vunpack.c.l.b16 %v1116
    %v4062 = vunpack.c.h.b16 %v1116
    %v4063 = vunpack.c.l.b16 %v1117
    %v4064 = vunpack.c.h.b16 %v1117
    %v4065 = vunpack.c.l.b16 %v1118
    %v4066 = vunpack.c.h.b16 %v1118
    %v4067 = vunpack.c.l.b16 %v1119
    %v4068 = vunpack.c.h.b16 %v1119
    %v4069 = vunpack.c.l.b16 %v1120
    %v4070 = vunpack.c.h.b16 %v1120
    %v4071 = vunpack.c.l.b16 %v1121
    %v4072 = vunpack.c.h.b16 %v1121
    %v4073 = vunpack.c.l.b16 %v1122
    %v4074 = vunpack.c.h.b16 %v1122
    %v4075 = vunpack.c.l.b16 %v1123
    %v4076 = vunpack.c.h.b16 %v1123
    %v4077 = vunpack.c.l.b16 %v1124
    %v4078 = vunpack.c.h.b16 %v1124
    %v4079 = vunpack.c.l.b16 %v1125
    %v4080 = vunpack.c.h.b16 %v1125
    %v4081 = vunpack.c.l.b16 %v1126
    %v4082 = vunpack.c.h.b16 %v1126
    %v4083 = vunpack.c.l.b16 %v1127
    %v4084 = vunpack.c.h.b16 %v1127
    %v4085 = vunpack.c.l.b16 %v1128
    %v4086 = vunpack.c.h.b16 %v1128
    %v4087 = vunpack.c.l.b16 %v1129
    %v4088 = vunpack.c.h.b16 %v1129
    %v4089 = vunpack.c.l.b16 %v1130
    %v4090 = vunpack.c.h.b16 %v1130
    %v4091 = vunpack.c.l.b16 %v1131
    %v4092 = vunpack.c.h.b16 %v1131
    %v4093 = vunpack.c.l.b16 %v1132
    %v4094 = vunpack.c.h.b16 %v1132
    %v4095 = vunpack.c.l.b16 %v1133
    %v4096 = vunpack.c.h.b16 %v1133
    %v4097 = vunpack.c.l.b16 %v1134
    %v4098 = vunpack.c.h.b16 %v1134
    %v4099 = vunpack.c.l.b16 %v1135
    %v4100 = vunpack.c.h.b16 %v1135
    %v4101 = vunpack.c.l.b16 %v1136
    %v4102 = vunpack.c.h.b16 %v1136
    %v4103 = vunpack.c.l.b16 %v1137
    %v4104 = vunpack.c.h.b16 %v1137
    %v4105 = vunpack.c.l.b16 %v1138
    %v4106 = vunpack.c.h.b16 %v1138
    %v4107 = vunpack.c.l.b16 %v1139
    %v4108 = vunpack.c.h.b16 %v1139
    %v4109 = vunpack.c.l.b16 %v1140
    %v4110 = vunpack.c.h.b16 %v1140
    %v4111 = vunpack.c.l.b16 %v1141
    %v4112 = vunpack.c.h.b16 %v1141
    %v4113 = vunpack.c.l.b16 %v1142
    %v4114 = vunpack.c.h.b16 %v1142
    %v4115 = vunpack.c.l.b16 %v1143
    %v4116 = vunpack.c.h.b16 %v1143
    %v4117 = vunpack.c.l.b16 %v1144
    %v4118 = vunpack.c.h.b16 %v1144
    %v4119 = vunpack.c.l.b16 %v1145
    %v4120 = vunpack.c.h.b16 %v1145
    %v4121 = vunpack.c.l.b16 %v1146
    %v4122 = vunpack.c.h.b16 %v1146
    %v4123 = vunpack.c.l.b16 %v1147
    %v4124 = vunpack.c.h.b16 %v1147
    %v4125 = vunpack.c.l.b16 %v1148
    %v4126 = vunpack.c.h.b16 %v1148
    %v4127 = vunpack.c.l.b16 %v1149
    %v4128 = vunpack.c.h.b16 %v1149
    %v4129 = vunpack.c.l.b16 %v1150
    %v4130 = vunpack.c.h.b16 %v1150
    %v4131 = vunpack.c.l.b16 %v1151
    %v4132 = vunpack.c.h.b16 %v1151
    %v4133 = vunpack.c.l.b16 %v1152
    %v4134 = vunpack.c.h.b16 %v1152
    %v4135 = vunpack.c.l.b16 %v1153
    %v4136 = vunpack.c.h.b16 %v1153
    %v4137 = vunpack.c.l.b16 %v1154
    %v4138 = vunpack.c.h.b16 %v1154
    %v4139 = vunpack.c.l.b16 %v1155
    %v4140 = vunpack.c.h.b16 %v1155
    %v4141 = vunpack.c.l.b16 %v1156
    %v4142 = vunpack.c.h.b16 %v1156
    %v4143 = vunpack.c.l.b16 %v1157
    %v4144 = vunpack.c.h.b16 %v1157
    %v4145 = vunpack.c.l.b16 %v1158
    %v4146 = vunpack.c.h.b16 %v1158
    %v4147 = vunpack.c.l.b16 %v1159
    %v4148 = vunpack.c.h.b16 %v1159
    %v4149 = vunpack.c.l.b16 %v1160
    %v4150 = vunpack.c.h.b16 %v1160
    %v4151 = vunpack.c.l.b16 %v1161
    %v4152 = vunpack.c.h.b16 %v1161
    %v4153 = vunpack.c.l.b16 %v1162
    %v4154 = vunpack.c.h.b16 %v1162
    %v4155 = vunpack.c.l.b16 %v1163
    %v4156 = vunpack.c.h.b16 %v1163
    %v4157 = vunpack.c.l.b16 %v1164
    %v4158 = vunpack.c.h.b16 %v1164
    %v4159 = vunpack.c.l.b16 %v1165
    %v4160 = vunpack.c.h.b16 %v1165
    %v4161 = vunpack.c.l.b16 %v1166
    %v4162 = vunpack.c.h.b16 %v1166
    %v4163 = vunpack.c.l.b16 %v1167
    %v4164 = vunpack.c.h.b16 %v1167
    %v4165 = vunpack.c.l.b16 %v1168
    %v4166 = vunpack.c.h.b16 %v1168
    %v4167 = vunpack.c.l.b16 %v1169
    %v4168 = vunpack.c.h.b16 %v1169
    %v4169 = vunpack.c.l.b16 %v1170
    %v4170 = vunpack.c.h.b16 %v1170
    %v4171 = vunpack.c.l.b16 %v1171
    %v4172 = vunpack.c.h.b16 %v1171
    %v4173 = vunpack.c.l.b16 %v1172
    %v4174 = vunpack.c.h.b16 %v1172
    %v4175 = vunpack.c.l.b16 %v1173
    %v4176 = vunpack.c.h.b16 %v1173
    %v4177 = vunpack.c.l.b16 %v1174
    %v4178 = vunpack.c.h.b16 %v1174
    %v4179 = vunpack.c.l.b16 %v1175
    %v4180 = vunpack.c.h.b16 %v1175
    %v4181 = vunpack.c.l.b16 %v1176
    %v4182 = vunpack.c.h.b16 %v1176
    %v4183 = vunpack.c.l.b16 %v1177
    %v4184 = vunpack.c.h.b16 %v1177
    %v4185 = vunpack.c.l.b16 %v1178
    %v4186 = vunpack.c.h.b16 %v1178
    %v4187 = vunpack.c.l.b16 %v1179
    %v4188 = vunpack.c.h.b16 %v1179
    %v4189 = vunpack.c.l.b16 %v1180
    %v4190 = vunpack.c.h.b16 %v1180
    %v4191 = vunpack.c.l.b16 %v1181
    %v4192 = vunpack.c.h.b16 %v1181
    %v4193 = vunpack.c.l.b16 %v1182
    %v4194 = vunpack.c.h.b16 %v1182
    %v4195 = vunpack.c.l.b16 %v1183
    %v4196 = vunpack.c.h.b16 %v1183
    %v4197 = vunpack.c.l.b16 %v1184
    %v4198 = vunpack.c.h.b16 %v1184
    %v4199 = vunpack.c.l.b16 %v1185
    %v4200 = vunpack.c.h.b16 %v1185
    %v4201 = vunpack.c.l.b16 %v1186
    %v4202 = vunpack.c.h.b16 %v1186
    %v4203 = vunpack.c.l.b16 %v1187
    %v4204 = vunpack.c.h.b16 %v1187
    %v4205 = vunpack.c.l.b16 %v1188
    %v4206 = vunpack.c.h.b16 %v1188
    %v4207 = vunpack.c.l.b16 %v1189
    %v4208 = vunpack.c.h.b16 %v1189
    %v4209 = vunpack.c.l.b16 %v1190
    %v4210 = vunpack.c.h.b16 %v1190
    %v4211 = vunpack.c.l.b16 %v1191
    %v4212 = vunpack.c.h.b16 %v1191
    %v4213 = vunpack.c.l.b16 %v1192
    %v4214 = vunpack.c.h.b16 %v1192
    %v4215 = vunpack.c.l.b16 %v1193
    %v4216 = vunpack.c.h.b16 %v1193
    %v4217 = vunpack.c.l.b16 %v1194
    %v4218 = vunpack.c.h.b16 %v1194
    %v4219 = vunpack.c.l.b16 %v1195
    %v4220 = vunpack.c.h.b16 %v1195
    %v4221 = vunpack.c.l.b16 %v1196
    %v4222 = vunpack.c.h.b16 %v1196
    %v4223 = vunpack.c.l.b16 %v1197
    %v4224 = vunpack.c.h.b16 %v1197
    %v4225 = vunpack.c.l.b16 %v1198
    %v4226 = vunpack.c.h.b16 %v1198
    %v4227 = vunpack.c.l.b16 %v1199
    %v4228 = vunpack.c.h.b16 %v1199
    %v4229 = vunpack.c.l.b16 %v1200
    %v4230 = vunpack.c.h.b16 %v1200
    %v4231 = vunpack.c.l.b16 %v1201
    %v4232 = vunpack.c.h.b16 %v1201
    %v4233 = vunpack.c.l.b16 %v1202
    %v4234 = vunpack.c.h.b16 %v1202
    %v4235 = vunpack.c.l.b16 %v1203
    %v4236 = vunpack.c.h.b16 %v1203
    %v4237 = vunpack.c.l.b16 %v1204
    %v4238 = vunpack.c.h.b16 %v1204
    %v4239 = vunpack.c.l.b16 %v1205
    %v4240 = vunpack.c.h.b16 %v1205
    %v4241 = vunpack.c.l.b16 %v1206
    %v4242 = vunpack.c.h.b16 %v1206
    %v4243 = vunpack.c.l.b16 %v1207
    %v4244 = vunpack.c.h.b16 %v1207
    %v4245 = vunpack.c.l.b16 %v1208
    %v4246 = vunpack.c.h.b16 %v1208
    %v4247 = vunpack.c.l.b16 %v1209
    %v4248 = vunpack.c.h.b16 %v1209
    %v4249 = vunpack.c.l.b16 %v1210
    %v4250 = vunpack.c.h.b16 %v1210
    %v4251 = vunpack.c.l.b16 %v1211
    %v4252 = vunpack.c.h.b16 %v1211
    %v4253 = vunpack.c.l.b16 %v1212
    %v4254 = vunpack.c.h.b16 %v1212
    %v4255 = vunpack.c.l.b16 %v1213
    %v4256 = vunpack.c.h.b16 %v1213
    %v4257 = vunpack.c.l.b16 %v1214
    %v4258 = vunpack.c.h.b16 %v1214
    %v4259 = vunpack.c.l.b16 %v1215
    %v4260 = vunpack.c.h.b16 %v1215
    %v4261 = vunpack.c.l.b16 %v1216
    %v4262 = vunpack.c.h.b16 %v1216
    %v4263 = vunpack.c.l.b16 %v1217
    %v4264 = vunpack.c.h.b16 %v1217
    %v4265 = vunpack.c.l.b16 %v1218
    %v4266 = vunpack.c.h.b16 %v1218
    %v4267 = vunpack.c.l.b16 %v1219
    %v4268 = vunpack.c.h.b16 %v1219
    %v4269 = vunpack.c.l.b16 %v1220
    %v4270 = vunpack.c.h.b16 %v1220
    %v4271 = vunpack.c.l.b16 %v1221
    %v4272 = vunpack.c.h.b16 %v1221
    %v4273 = vunpack.c.l.b16 %v1222
    %v4274 = vunpack.c.h.b16 %v1222
    %v4275 = vunpack.c.l.b16 %v1223
    %v4276 = vunpack.c.h.b16 %v1223
    %v4277 = vunpack.c.l.b16 %v1224
    %v4278 = vunpack.c.h.b16 %v1224
    %v4279 = vunpack.c.l.b16 %v1225
    %v4280 = vunpack.c.h.b16 %v1225
    %v4281 = vunpack.c.l.b16 %v1226
    %v4282 = vunpack.c.h.b16 %v1226
    %v4283 = vunpack.c.l.b16 %v1227
    %v4284 = vunpack.c.h.b16 %v1227
    %v4285 = vunpack.c.l.b16 %v1228
    %v4286 = vunpack.c.h.b16 %v1228
    %v4287 = vunpack.c.l.b16 %v1229
    %v4288 = vunpack.c.h.b16 %v1229
    %v4289 = vunpack.c.l.b16 %v1230
    %v4290 = vunpack.c.h.b16 %v1230
    %v4291 = vunpack.c.l.b16 %v1231
    %v4292 = vunpack.c.h.b16 %v1231
    %v4293 = vunpack.c.l.b16 %v1232
    %v4294 = vunpack.c.h.b16 %v1232
    %v4295 = vunpack.c.l.b16 %v1233
    %v4296 = vunpack.c.h.b16 %v1233
    %v4297 = vunpack.c.l.b16 %v1234
    %v4298 = vunpack.c.h.b16 %v1234
    %v4299 = vunpack.c.l.b16 %v1235
    %v4300 = vunpack.c.h.b16 %v1235
    %v4301 = vunpack.c.l.b16 %v1236
    %v4302 = vunpack.c.h.b16 %v1236
    %v4303 = vunpack.c.l.b16 %v1237
    %v4304 = vunpack.c.h.b16 %v1237
    %v4305 = vunpack.c.l.b16 %v1238
    %v4306 = vunpack.c.h.b16 %v1238
    %v4307 = vunpack.c.l.b16 %v1239
    %v4308 = vunpack.c.h.b16 %v1239
    %v4309 = vunpack.c.l.b16 %v1240
    %v4310 = vunpack.c.h.b16 %v1240
    %v4311 = vunpack.c.l.b16 %v1241
    %v4312 = vunpack.c.h.b16 %v1241
    %v4313 = vunpack.c.l.b16 %v1242
    %v4314 = vunpack.c.h.b16 %v1242
    %v4315 = vunpack.c.l.b16 %v1243
    %v4316 = vunpack.c.h.b16 %v1243
    %v4317 = vunpack.c.l.b16 %v1244
    %v4318 = vunpack.c.h.b16 %v1244
    %v4319 = vunpack.c.l.b16 %v1245
    %v4320 = vunpack.c.h.b16 %v1245
    %v4321 = vunpack.c.l.b16 %v1246
    %v4322 = vunpack.c.h.b16 %v1246
    %v4323 = vunpack.c.l.b16 %v1247
    %v4324 = vunpack.c.h.b16 %v1247
    %v4325 = vunpack.c.l.b16 %v1248
    %v4326 = vunpack.c.h.b16 %v1248
    %v4327 = vunpack.c.l.b16 %v1249
    %v4328 = vunpack.c.h.b16 %v1249
    %v4329 = vunpack.c.l.b16 %v1250
    %v4330 = vunpack.c.h.b16 %v1250
    %v4331 = vunpack.c.l.b16 %v1251
    %v4332 = vunpack.c.h.b16 %v1251
    %v4333 = vunpack.c.l.b16 %v1252
    %v4334 = vunpack.c.h.b16 %v1252
    %v4335 = vunpack.c.l.b16 %v1253
    %v4336 = vunpack.c.h.b16 %v1253
    %v4337 = vunpack.c.l.b16 %v1254
    %v4338 = vunpack.c.h.b16 %v1254
    %v4339 = vunpack.c.l.b16 %v1255
    %v4340 = vunpack.c.h.b16 %v1255
    %v4341 = vunpack.c.l.b16 %v1256
    %v4342 = vunpack.c.h.b16 %v1256
    %v4343 = vunpack.c.l.b16 %v1257
    %v4344 = vunpack.c.h.b16 %v1257
    %v4345 = vunpack.c.l.b16 %v1258
    %v4346 = vunpack.c.h.b16 %v1258
    %v4347 = vunpack.c.l.b16 %v1259
    %v4348 = vunpack.c.h.b16 %v1259
    %v4349 = vunpack.c.l.b16 %v1260
    %v4350 = vunpack.c.h.b16 %v1260
    %v4351 = vunpack.c.l.b16 %v1261
    %v4352 = vunpack.c.h.b16 %v1261
    %v4353 = vunpack.c.l.b16 %v1262
    %v4354 = vunpack.c.h.b16 %v1262
    %v4355 = vunpack.c.l.b16 %v1263
    %v4356 = vunpack.c.h.b16 %v1263
    %v4357 = vunpack.c.l.b16 %v1264
    %v4358 = vunpack.c.h.b16 %v1264
    %v4359 = vunpack.c.l.b16 %v1265
    %v4360 = vunpack.c.h.b16 %v1265
    %v4361 = vunpack.c.l.b16 %v1266
    %v4362 = vunpack.c.h.b16 %v1266
    %v4363 = vunpack.c.l.b16 %v1267
    %v4364 = vunpack.c.h.b16 %v1267
    %v4365 = vunpack.c.l.b16 %v1268
    %v4366 = vunpack.c.h.b16 %v1268
    %v4367 = vunpack.c.l.b16 %v1269
    %v4368 = vunpack.c.h.b16 %v1269
    %v4369 = vunpack.c.l.b16 %v1270
    %v4370 = vunpack.c.h.b16 %v1270
    %v4371 = vunpack.c.l.b16 %v1271
    %v4372 = vunpack.c.h.b16 %v1271
    %v4373 = vunpack.c.l.b16 %v1272
    %v4374 = vunpack.c.h.b16 %v1272
    %v4375 = vunpack.c.l.b16 %v1273
    %v4376 = vunpack.c.h.b16 %v1273
    %v4377 = vunpack.c.l.b16 %v1274
    %v4378 = vunpack.c.h.b16 %v1274
    %v4379 = vunpack.c.l.b16 %v1275
    %v4380 = vunpack.c.h.b16 %v1275
    %v4381 = vunpack.c.l.b16 %v1276
    %v4382 = vunpack.c.h.b16 %v1276
    %v4383 = vpack.c.b16 %v2343, %v2335
    %v4384 = vpack.c.b16 %v2344, %v2336
    %v4385 = vpack.c.b16 %v2345, %v2337
    %v4386 = vpack.c.b16 %v2346, %v2338
    %v4387 = vpack.c.b16 %v2347, %v2339
    %v4388 = vpack.c.b16 %v2348, %v2340
    %v4389 = vpack.c.b16 %v2349, %v2341
    %v4390 = vpack.c.b16 %v2350, %v2342
    %v4391 = vpack.c.b16 %v2359, %v2351
    %v4392 = vpack.c.b16 %v2360, %v2352
    %v4393 = vpack.c.b16 %v2361, %v2353
    %v4394 = vpack.c.b16 %v2362, %v2354
    %v4395 = vpack.c.b16 %v2363, %v2355
    %v4396 = vpack.c.b16 %v2364, %v2356
    %v4397 = vpack.c.b16 %v2365, %v2357
    %v4398 = vpack.c.b16 %v2366, %v2358
    %v4399 = vpack.c.b16 %v2375, %v2367
    %v4400 = vpack.c.b16 %v2376, %v2368
    %v4401 = vpack.c.b16 %v2377, %v2369
    %v4402 = vpack.c.b16 %v2378, %v2370
    %v4403 = vpack.c.b16 %v2379, %v2371
    %v4404 = vpack.c.b16 %v2380, %v2372
    %v4405 = vpack.c.b16 %v2381, %v2373
    %v4406 = vpack.c.b16 %v2382, %v2374
    %v4407 = vpack.c.b16 %v2391, %v2383
    %v4408 = vpack.c.b16 %v2392, %v2384
    %v4409 = vpack.c.b16 %v2393, %v2385
    %v4410 = vpack.c.b16 %v2394, %v2386
    %v4411 = vpack.c.b16 %v2395, %v2387
    %v4412 = vpack.c.b16 %v2396, %v2388
    %v4413 = vpack.c.b16 %v2397, %v2389
    %v4414 = vpack.c.b16 %v2398, %v2390
    %v4415 = vpack.c.b16 %v2407, %v2399
    %v4416 = vpack.c.b16 %v2408, %v2400
    %v4417 = vpack.c.b16 %v2409, %v2401
    %v4418 = vpack.c.b16 %v2410, %v2402
    %v4419 = vpack.c.b16 %v2411, %v2403
    %v4420 = vpack.c.b16 %v2412, %v2404
    %v4421 = vpack.c.b16 %v2413, %v2405
    %v4422 = vpack.c.b16 %v2414, %v2406
    %v4423 = vpack.c.b16 %v2423, %v2415
    %v4424 = vpack.c.b16 %v2424, %v2416
    %v4425 = vpack.c.b16 %v2425, %v2417
    %v4426 = vpack.c.b16 %v2426, %v2418
    %v4427 = vpack.c.b16 %v2427, %v2419
    %v4428 = vpack.c.b16 %v2428, %v2420
    %v4429 = vpack.c.b16 %v2429, %v2421
    %v4430 = vpack.c.b16 %v2430, %v2422
    %v4431 = vpack.c.b16 %v2439, %v2431
    %v4432 = vpack.c.b16 %v2440, %v2432
    %v4433 = vpack.c.b16 %v2441, %v2433
    %v4434 = vpack.c.b16 %v2442, %v2434
    %v4435 = vpack.c.b16 %v2443, %v2435
    %v4436 = vpack.c.b16 %v2444, %v2436
    %v4437 = vpack.c.b16 %v2445, %v2437
    %v4438 = vpack.c.b16 %v2446, %v2438
    %v4439 = vpack.c.b16 %v2455, %v2447
    %v4440 = vpack.c.b16 %v2456, %v2448
    %v4441 = vpack.c.b16 %v2457, %v2449
    %v4442 = vpack.c.b16 %v2458, %v2450
    %v4443 = vpack.c.b16 %v2459, %v2451
    %v4444 = vpack.c.b16 %v2460, %v2452
    %v4445 = vpack.c.b16 %v2461, %v2453
    %v4446 = vpack.c.b16 %v2462, %v2454
    %v4447 = vpack.c.b16 %v2471, %v2463
    %v4448 = vpack.c.b16 %v2472, %v2464
    %v4449 = vpack.c.b16 %v2473, %v2465
    %v4450 = vpack.c.b16 %v2474, %v2466
    %v4451 = vpack.c.b16 %v2475, %v2467
    %v4452 = vpack.c.b16 %v2476, %v2468
    %v4453 = vpack.c.b16 %v2477, %v2469
    %v4454 = vpack.c.b16 %v2478, %v2470
    %v4455 = vpack.c.b16 %v2487, %v2479
    %v4456 = vpack.c.b16 %v2488, %v2480
    %v4457 = vpack.c.b16 %v2489, %v2481
    %v4458 = vpack.c.b16 %v2490, %v2482
    %v4459 = vpack.c.b16 %v2491, %v2483
    %v4460 = vpack.c.b16 %v2492, %v2484
    %v4461 = vpack.c.b16 %v2493, %v2485
    %v4462 = vpack.c.b16 %v2494, %v2486
    %v4463 = vpack.c.b16 %v2503, %v2495
    %v4464 = vpack.c.b16 %v2504, %v2496
    %v4465 = vpack.c.b16 %v2505, %v2497
    %v4466 = vpack.c.b16 %v2506, %v2498
    %v4467 = vpack.c.b16 %v2507, %v2499
    %v4468 = vpack.c.b16 %v2508, %v2500
    %v4469 = vpack.c.b16 %v2509, %v2501
    %v4470 = vpack.c.b16 %v2510, %v2502
    %v4471 = vpack.c.b16 %v2519, %v2511
    %v4472 = vpack.c.b16 %v2520, %v2512
    %v4473 = vpack.c.b16 %v2521, %v2513
    %v4474 = vpack.c.b16 %v2522, %v2514
    %v4475 = vpack.c.b16 %v2523, %v2515
    %v4476 = vpack.c.b16 %v2524, %v2516
    %v4477 = vpack.c.b16 %v2525, %v2517
    %v4478 = vpack.c.b16 %v2526, %v2518
    %v4479 = vpack.c.b16 %v2535, %v2527
    %v4480 = vpack.c.b16 %v2536, %v2528
    %v4481 = vpack.c.b16 %v2537, %v2529
    %v4482 = vpack.c.b16 %v2538, %v2530
    %v4483 = vpack.c.b16 %v2539, %v2531
    %v4484 = vpack.c.b16 %v2540, %v2532
    %v4485 = vpack.c.b16 %v2541, %v2533
    %v4486 = vpack.c.b16 %v2542, %v2534
    %v4487 = vpack.c.b16 %v2551, %v2543
    %v4488 = vpack.c.b16 %v2552, %v2544
    %v4489 = vpack.c.b16 %v2553, %v2545
    %v4490 = vpack.c.b16 %v2554, %v2546
    %v4491 = vpack.c.b16 %v2555, %v2547
    %v4492 = vpack.c.b16 %v2556, %v2548
    %v4493 = vpack.c.b16 %v2557, %v2549
    %v4494 = vpack.c.b16 %v2558, %v2550
    %v4495 = vpack.c.b16 %v2567, %v2559
    %v4496 = vpack.c.b16 %v2568, %v2560
    %v4497 = vpack.c.b16 %v2569, %v2561
    %v4498 = vpack.c.b16 %v2570, %v2562
    %v4499 = vpack.c.b16 %v2571, %v2563
    %v4500 = vpack.c.b16 %v2572, %v2564
    %v4501 = vpack.c.b16 %v2573, %v2565
    %v4502 = vpack.c.b16 %v2574, %v2566
    %v4503 = vpack.c.b16 %v2583, %v2575
    %v4504 = vpack.c.b16 %v2584, %v2576
    %v4505 = vpack.c.b16 %v2585, %v2577
    %v4506 = vpack.c.b16 %v2586, %v2578
    %v4507 = vpack.c.b16 %v2587, %v2579
    %v4508 = vpack.c.b16 %v2588, %v2580
    %v4509 = vpack.c.b16 %v2589, %v2581
    %v4510 = vpack.c.b16 %v2590, %v2582
    %v4511 = vpack.c.b16 %v2599, %v2591
    %v4512 = vpack.c.b16 %v2600, %v2592
    %v4513 = vpack.c.b16 %v2601, %v2593
    %v4514 = vpack.c.b16 %v2602, %v2594
    %v4515 = vpack.c.b16 %v2603, %v2595
    %v4516 = vpack.c.b16 %v2604, %v2596
    %v4517 = vpack.c.b16 %v2605, %v2597
    %v4518 = vpack.c.b16 %v2606, %v2598
    %v4519 = vpack.c.b16 %v2615, %v2607
    %v4520 = vpack.c.b16 %v2616, %v2608
    %v4521 = vpack.c.b16 %v2617, %v2609
    %v4522 = vpack.c.b16 %v2618, %v2610
    %v4523 = vpack.c.b16 %v2619, %v2611
    %v4524 = vpack.c.b16 %v2620, %v2612
    %v4525 = vpack.c.b16 %v2621, %v2613
    %v4526 = vpack.c.b16 %v2622, %v2614
    %v4527 = vpack.c.b16 %v2631, %v2623
    %v4528 = vpack.c.b16 %v2632, %v2624
    %v4529 = vpack.c.b16 %v2633, %v2625
    %v4530 = vpack.c.b16 %v2634, %v2626
    %v4531 = vpack.c.b16 %v2635, %v2627
    %v4532 = vpack.c.b16 %v2636, %v2628
    %v4533 = vpack.c.b16 %v2637, %v2629
    %v4534 = vpack.c.b16 %v2638, %v2630
    %v4535 = vpack.c.b16 %v2647, %v2639
    %v4536 = vpack.c.b16 %v2648, %v2640
    %v4537 = vpack.c.b16 %v2649, %v2641
    %v4538 = vpack.c.b16 %v2650, %v2642
    %v4539 = vpack.c.b16 %v2651, %v2643
    %v4540 = vpack.c.b16 %v2652, %v2644
    %v4541 = vpack.c.b16 %v2653, %v2645
    %v4542 = vpack.c.b16 %v2654, %v2646
    %v4543 = vpack.c.b16 %v2663, %v2655
    %v4544 = vpack.c.b16 %v2664, %v2656
    %v4545 = vpack.c.b16 %v2665, %v2657
    %v4546 = vpack.c.b16 %v2666, %v2658
    %v4547 = vpack.c.b16 %v2667, %v2659
    %v4548 = vpack.c.b16 %v2668, %v2660
    %v4549 = vpack.c.b16 %v2669, %v2661
    %v4550 = vpack.c.b16 %v2670, %v2662
    %v4551 = vpack.c.b16 %v2679, %v2671
    %v4552 = vpack.c.b16 %v2680, %v2672
    %v4553 = vpack.c.b16 %v2681, %v2673
    %v4554 = vpack.c.b16 %v2682, %v2674
    %v4555 = vpack.c.b16 %v2683, %v2675
    %v4556 = vpack.c.b16 %v2684, %v2676
    %v4557 = vpack.c.b16 %v2685, %v2677
    %v4558 = vpack.c.b16 %v2686, %v2678
    %v4559 = vpack.c.b16 %v2695, %v2687
    %v4560 = vpack.c.b16 %v2696, %v2688
    %v4561 = vpack.c.b16 %v2697, %v2689
    %v4562 = vpack.c.b16 %v2698, %v2690
    %v4563 = vpack.c.b16 %v2699, %v2691
    %v4564 = vpack.c.b16 %v2700, %v2692
    %v4565 = vpack.c.b16 %v2701, %v2693
    %v4566 = vpack.c.b16 %v2702, %v2694
    %v4567 = vpack.c.b16 %v2711, %v2703
    %v4568 = vpack.c.b16 %v2712, %v2704
    %v4569 = vpack.c.b16 %v2713, %v2705
    %v4570 = vpack.c.b16 %v2714, %v2706
    %v4571 = vpack.c.b16 %v2715, %v2707
    %v4572 = vpack.c.b16 %v2716, %v2708
    %v4573 = vpack.c.b16 %v2717, %v2709
    %v4574 = vpack.c.b16 %v2718, %v2710
    %v4575 = vpack.c.b16 %v2727, %v2719
    %v4576 = vpack.c.b16 %v2728, %v2720
    %v4577 = vpack.c.b16 %v2729, %v2721
    %v4578 = vpack.c.b16 %v2730, %v2722
    %v4579 = vpack.c.b16 %v2731, %v2723
    %v4580 = vpack.c.b16 %v2732, %v2724
    %v4581 = vpack.c.b16 %v2733, %v2725
    %v4582 = vpack.c.b16 %v2734, %v2726
    %v4583 = vpack.c.b16 %v2743, %v2735
    %v4584 = vpack.c.b16 %v2744, %v2736
    %v4585 = vpack.c.b16 %v2745, %v2737
    %v4586 = vpack.c.b16 %v2746, %v2738
    %v4587 = vpack.c.b16 %v2747, %v2739
    %v4588 = vpack.c.b16 %v2748, %v2740
    %v4589 = vpack.c.b16 %v2749, %v2741
    %v4590 = vpack.c.b16 %v2750, %v2742
    %v4591 = vpack.c.b16 %v2759, %v2751
    %v4592 = vpack.c.b16 %v2760, %v2752
    %v4593 = vpack.c.b16 %v2761, %v2753
    %v4594 = vpack.c.b16 %v2762, %v2754
    %v4595 = vpack.c.b16 %v2763, %v2755
    %v4596 = vpack.c.b16 %v2764, %v2756
    %v4597 = vpack.c.b16 %v2765, %v2757
    %v4598 = vpack.c.b16 %v2766, %v2758
    %v4599 = vpack.c.b16 %v2775, %v2767
    %v4600 = vpack.c.b16 %v2776, %v2768
    %v4601 = vpack.c.b16 %v2777, %v2769
    %v4602 = vpack.c.b16 %v2778, %v2770
    %v4603 = vpack.c.b16 %v2779, %v2771
    %v4604 = vpack.c.b16 %v2780, %v2772
    %v4605 = vpack.c.b16 %v2781, %v2773
    %v4606 = vpack.c.b16 %v2782, %v2774
    %v4607 = vpack.c.b16 %v2791, %v2783
    %v4608 = vpack.c.b16 %v2792, %v2784
    %v4609 = vpack.c.b16 %v2793, %v2785
    %v4610 = vpack.c.b16 %v2794, %v2786
    %v4611 = vpack.c.b16 %v2795, %v2787
    %v4612 = vpack.c.b16 %v2796, %v2788
    %v4613 = vpack.c.b16 %v2797, %v2789
    %v4614 = vpack.c.b16 %v2798, %v2790
    %v4615 = vpack.c.b16 %v2807, %v2799
    %v4616 = vpack.c.b16 %v2808, %v2800
    %v4617 = vpack.c.b16 %v2809, %v2801
    %v4618 = vpack.c.b16 %v2810, %v2802
    %v4619 = vpack.c.b16 %v2811, %v2803
    %v4620 = vpack.c.b16 %v2812, %v2804
    %v4621 = vpack.c.b16 %v2813, %v2805
    %v4622 = vpack.c.b16 %v2814, %v2806
    %v4623 = vpack.c.b16 %v2823, %v2815
    %v4624 = vpack.c.b16 %v2824, %v2816
    %v4625 = vpack.c.b16 %v2825, %v2817
    %v4626 = vpack.c.b16 %v2826, %v2818
    %v4627 = vpack.c.b16 %v2827, %v2819
    %v4628 = vpack.c.b16 %v2828, %v2820
    %v4629 = vpack.c.b16 %v2829, %v2821
    %v4630 = vpack.c.b16 %v2830, %v2822
    %v4631 = vpack.c.b16 %v2839, %v2831
    %v4632 = vpack.c.b16 %v2840, %v2832
    %v4633 = vpack.c.b16 %v2841, %v2833
    %v4634 = vpack.c.b16 %v2842, %v2834
    %v4635 = vpack.c.b16 %v2843, %v2835
    %v4636 = vpack.c.b16 %v2844, %v2836
    %v4637 = vpack.c.b16 %v2845, %v2837
    %v4638 = vpack.c.b16 %v2846, %v2838
    %v4639 = vpack.c.b16 %v2855, %v2847
    %v4640 = vpack.c.b16 %v2856, %v2848
    %v4641 = vpack.c.b16 %v2857, %v2849
    %v4642 = vpack.c.b16 %v2858, %v2850
    %v4643 = vpack.c.b16 %v2859, %v2851
    %v4644 = vpack.c.b16 %v2860, %v2852
    %v4645 = vpack.c.b16 %v2861, %v2853
    %v4646 = vpack.c.b16 %v2862, %v2854
    %v4647 = vpack.c.b16 %v2871, %v2863
    %v4648 = vpack.c.b16 %v2872, %v2864
    %v4649 = vpack.c.b16 %v2873, %v2865
    %v4650 = vpack.c.b16 %v2874, %v2866
    %v4651 = vpack.c.b16 %v2875, %v2867
    %v4652 = vpack.c.b16 %v2876, %v2868
    %v4653 = vpack.c.b16 %v2877, %v2869
    %v4654 = vpack.c.b16 %v2878, %v2870
    %v4655 = vpack.c.b16 %v2887, %v2879
    %v4656 = vpack.c.b16 %v2888, %v2880
    %v4657 = vpack.c.b16 %v2889, %v2881
    %v4658 = vpack.c.b16 %v2890, %v2882
    %v4659 = vpack.c.b16 %v2891, %v2883
    %v4660 = vpack.c.b16 %v2892, %v2884
    %v4661 = vpack.c.b16 %v2893, %v2885
    %v4662 = vpack.c.b16 %v2894, %v2886
    %v4663 = vpack.c.b16 %v2903, %v2895
    %v4664 = vpack.c.b16 %v2904, %v2896
    %v4665 = vpack.c.b16 %v2905, %v2897
    %v4666 = vpack.c.b16 %v2906, %v2898
    %v4667 = vpack.c.b16 %v2907, %v2899
    %v4668 = vpack.c.b16 %v2908, %v2900
    %v4669 = vpack.c.b16 %v2909, %v2901
    %v4670 = vpack.c.b16 %v2910, %v2902
    %v4671 = vpack.c.b16 %v2919, %v2911
    %v4672 = vpack.c.b16 %v2920, %v2912
    %v4673 = vpack.c.b16 %v2921, %v2913
    %v4674 = vpack.c.b16 %v2922, %v2914
    %v4675 = vpack.c.b16 %v2923, %v2915
    %v4676 = vpack.c.b16 %v2924, %v2916
    %v4677 = vpack.c.b16 %v2925, %v2917
    %v4678 = vpack.c.b16 %v2926, %v2918
    %v4679 = vpack.c.b16 %v2935, %v2927
    %v4680 = vpack.c.b16 %v2936, %v2928
    %v4681 = vpack.c.b16 %v2937, %v2929
    %v4682 = vpack.c.b16 %v2938, %v2930
    %v4683 = vpack.c.b16 %v2939, %v2931
    %v4684 = vpack.c.b16 %v2940, %v2932
    %v4685 = vpack.c.b16 %v2941, %v2933
    %v4686 = vpack.c.b16 %v2942, %v2934
    %v4687 = vpack.c.b16 %v2951, %v2943
    %v4688 = vpack.c.b16 %v2952, %v2944
    %v4689 = vpack.c.b16 %v2953, %v2945
    %v4690 = vpack.c.b16 %v2954, %v2946
    %v4691 = vpack.c.b16 %v2955, %v2947
    %v4692 = vpack.c.b16 %v2956, %v2948
    %v4693 = vpack.c.b16 %v2957, %v2949
    %v4694 = vpack.c.b16 %v2958, %v2950
    %v4695 = vpack.c.b16 %v2967, %v2959
    %v4696 = vpack.c.b16 %v2968, %v2960
    %v4697 = vpack.c.b16 %v2969, %v2961
    %v4698 = vpack.c.b16 %v2970, %v2962
    %v4699 = vpack.c.b16 %v2971, %v2963
    %v4700 = vpack.c.b16 %v2972, %v2964
    %v4701 = vpack.c.b16 %v2973, %v2965
    %v4702 = vpack.c.b16 %v2974, %v2966
    %v4703 = vpack.c.b16 %v2983, %v2975
    %v4704 = vpack.c.b16 %v2984, %v2976
    %v4705 = vpack.c.b16 %v2985, %v2977
    %v4706 = vpack.c.b16 %v2986, %v2978
    %v4707 = vpack.c.b16 %v2987, %v2979
    %v4708 = vpack.c.b16 %v2988, %v2980
    %v4709 = vpack.c.b16 %v2989, %v2981
    %v4710 = vpack.c.b16 %v2990, %v2982
    %v4711 = vpack.c.b16 %v2999, %v2991
    %v4712 = vpack.c.b16 %v3000, %v2992
    %v4713 = vpack.c.b16 %v3001, %v2993
    %v4714 = vpack.c.b16 %v3002, %v2994
    %v4715 = vpack.c.b16 %v3003, %v2995
    %v4716 = vpack.c.b16 %v3004, %v2996
    %v4717 = vpack.c.b16 %v3005, %v2997
    %v4718 = vpack.c.b16 %v3006, %v2998
    %v4719 = vpack.c.b16 %v3015, %v3007
    %v4720 = vpack.c.b16 %v3016, %v3008
    %v4721 = vpack.c.b16 %v3017, %v3009
    %v4722 = vpack.c.b16 %v3018, %v3010
    %v4723 = vpack.c.b16 %v3019, %v3011
    %v4724 = vpack.c.b16 %v3020, %v3012
    %v4725 = vpack.c.b16 %v3021, %v3013
    %v4726 = vpack.c.b16 %v3022, %v3014
    %v4727 = vpack.c.b16 %v3031, %v3023
    %v4728 = vpack.c.b16 %v3032, %v3024
    %v4729 = vpack.c.b16 %v3033, %v3025
    %v4730 = vpack.c.b16 %v3034, %v3026
    %v4731 = vpack.c.b16 %v3035, %v3027
    %v4732 = vpack.c.b16 %v3036, %v3028
    %v4733 = vpack.c.b16 %v3037, %v3029
    %v4734 = vpack.c.b16 %v3038, %v3030
    %v4735 = vpack.c.b16 %v3047, %v3039
    %v4736 = vpack.c.b16 %v3048, %v3040
    %v4737 = vpack.c.b16 %v3049, %v3041
    %v4738 = vpack.c.b16 %v3050, %v3042
    %v4739 = vpack.c.b16 %v3051, %v3043
    %v4740 = vpack.c.b16 %v3052, %v3044
    %v4741 = vpack.c.b16 %v3053, %v3045
    %v4742 = vpack.c.b16 %v3054, %v3046
    %v4743 = vpack.c.b16 %v3063, %v3055
    %v4744 = vpack.c.b16 %v3064, %v3056
    %v4745 = vpack.c.b16 %v3065, %v3057
    %v4746 = vpack.c.b16 %v3066, %v3058
    %v4747 = vpack.c.b16 %v3067, %v3059
    %v4748 = vpack.c.b16 %v3068, %v3060
    %v4749 = vpack.c.b16 %v3069, %v3061
    %v4750 = vpack.c.b16 %v3070, %v3062
    %v4751 = vpack.c.b16 %v3079, %v3071
    %v4752 = vpack.c.b16 %v3080, %v3072
    %v4753 = vpack.c.b16 %v3081, %v3073
    %v4754 = vpack.c.b16 %v3082, %v3074
    %v4755 = vpack.c.b16 %v3083, %v3075
    %v4756 = vpack.c.b16 %v3084, %v3076
    %v4757 = vpack.c.b16 %v3085, %v3077
    %v4758 = vpack.c.b16 %v3086, %v3078
    %v4759 = vpack.c.b16 %v3095, %v3087
    %v4760 = vpack.c.b16 %v3096, %v3088
    %v4761 = vpack.c.b16 %v3097, %v3089
    %v4762 = vpack.c.b16 %v3098, %v3090
    %v4763 = vpack.c.b16 %v3099, %v3091
    %v4764 = vpack.c.b16 %v3100, %v3092
    %v4765 = vpack.c.b16 %v3101, %v3093
    %v4766 = vpack.c.b16 %v3102, %v3094
    %v4767 = vpack.c.b16 %v3111, %v3103
    %v4768 = vpack.c.b16 %v3112, %v3104
    %v4769 = vpack.c.b16 %v3113, %v3105
    %v4770 = vpack.c.b16 %v3114, %v3106
    %v4771 = vpack.c.b16 %v3115, %v3107
    %v4772 = vpack.c.b16 %v3116, %v3108
    %v4773 = vpack.c.b16 %v3117, %v3109
    %v4774 = vpack.c.b16 %v3118, %v3110
    %v4775 = vpack.c.b16 %v3127, %v3119
    %v4776 = vpack.c.b16 %v3128, %v3120
    %v4777 = vpack.c.b16 %v3129, %v3121
    %v4778 = vpack.c.b16 %v3130, %v3122
    %v4779 = vpack.c.b16 %v3131, %v3123
    %v4780 = vpack.c.b16 %v3132, %v3124
    %v4781 = vpack.c.b16 %v3133, %v3125
    %v4782 = vpack.c.b16 %v3134, %v3126
    %v4783 = vpack.c.b16 %v3143, %v3135
    %v4784 = vpack.c.b16 %v3144, %v3136
    %v4785 = vpack.c.b16 %v3145, %v3137
    %v4786 = vpack.c.b16 %v3146, %v3138
    %v4787 = vpack.c.b16 %v3147, %v3139
    %v4788 = vpack.c.b16 %v3148, %v3140
    %v4789 = vpack.c.b16 %v3149, %v3141
    %v4790 = vpack.c.b16 %v3150, %v3142
    %v4791 = vpack.c.b16 %v3159, %v3151
    %v4792 = vpack.c.b16 %v3160, %v3152
    %v4793 = vpack.c.b16 %v3161, %v3153
    %v4794 = vpack.c.b16 %v3162, %v3154
    %v4795 = vpack.c.b16 %v3163, %v3155
    %v4796 = vpack.c.b16 %v3164, %v3156
    %v4797 = vpack.c.b16 %v3165, %v3157
    %v4798 = vpack.c.b16 %v3166, %v3158
    %v4799 = vpack.c.b16 %v3175, %v3167
    %v4800 = vpack.c.b16 %v3176, %v3168
    %v4801 = vpack.c.b16 %v3177, %v3169
    %v4802 = vpack.c.b16 %v3178, %v3170
    %v4803 = vpack.c.b16 %v3179, %v3171
    %v4804 = vpack.c.b16 %v3180, %v3172
    %v4805 = vpack.c.b16 %v3181, %v3173
    %v4806 = vpack.c.b16 %v3182, %v3174
    %v4807 = vpack.c.b16 %v3191, %v3183
    %v4808 = vpack.c.b16 %v3192, %v3184
    %v4809 = vpack.c.b16 %v3193, %v3185
    %v4810 = vpack.c.b16 %v3194, %v3186
    %v4811 = vpack.c.b16 %v3195, %v3187
    %v4812 = vpack.c.b16 %v3196, %v3188
    %v4813 = vpack.c.b16 %v3197, %v3189
    %v4814 = vpack.c.b16 %v3198, %v3190
    %v4815 = vpack.c.b16 %v3207, %v3199
    %v4816 = vpack.c.b16 %v3208, %v3200
    %v4817 = vpack.c.b16 %v3209, %v3201
    %v4818 = vpack.c.b16 %v3210, %v3202
    %v4819 = vpack.c.b16 %v3211, %v3203
    %v4820 = vpack.c.b16 %v3212, %v3204
    %v4821 = vpack.c.b16 %v3213, %v3205
    %v4822 = vpack.c.b16 %v3214, %v3206
    %v4823 = vpack.c.b16 %v3223, %v3215
    %v4824 = vpack.c.b16 %v3224, %v3216
    %v4825 = vpack.c.b16 %v3225, %v3217
    %v4826 = vpack.c.b16 %v3226, %v3218
    %v4827 = vpack.c.b16 %v3227, %v3219
    %v4828 = vpack.c.b16 %v3228, %v3220
    %v4829 = vpack.c.b16 %v3229, %v3221
    %v4830 = vpack.c.b16 %v3230, %v3222
    %v4831 = vpack.c.b16 %v3239, %v3231
    %v4832 = vpack.c.b16 %v3240, %v3232
    %v4833 = vpack.c.b16 %v3241, %v3233
    %v4834 = vpack.c.b16 %v3242, %v3234
    %v4835 = vpack.c.b16 %v3243, %v3235
    %v4836 = vpack.c.b16 %v3244, %v3236
    %v4837 = vpack.c.b16 %v3245, %v3237
    %v4838 = vpack.c.b16 %v3246, %v3238
    %v4839 = vpack.c.b16 %v3255, %v3247
    %v4840 = vpack.c.b16 %v3256, %v3248
    %v4841 = vpack.c.b16 %v3257, %v3249
    %v4842 = vpack.c.b16 %v3258, %v3250
    %v4843 = vpack.c.b16 %v3259, %v3251
    %v4844 = vpack.c.b16 %v3260, %v3252
    %v4845 = vpack.c.b16 %v3261, %v3253
    %v4846 = vpack.c.b16 %v3262, %v3254
    %v4847 = vpack.c.b16 %v3271, %v3263
    %v4848 = vpack.c.b16 %v3272, %v3264
    %v4849 = vpack.c.b16 %v3273, %v3265
    %v4850 = vpack.c.b16 %v3274, %v3266
    %v4851 = vpack.c.b16 %v3275, %v3267
    %v4852 = vpack.c.b16 %v3276, %v3268
    %v4853 = vpack.c.b16 %v3277, %v3269
    %v4854 = vpack.c.b16 %v3278, %v3270
    %v4855 = vpack.c.b16 %v3287, %v3279
    %v4856 = vpack.c.b16 %v3288, %v3280
    %v4857 = vpack.c.b16 %v3289, %v3281
    %v4858 = vpack.c.b16 %v3290, %v3282
    %v4859 = vpack.c.b16 %v3291, %v3283
    %v4860 = vpack.c.b16 %v3292, %v3284
    %v4861 = vpack.c.b16 %v3293, %v3285
    %v4862 = vpack.c.b16 %v3294, %v3286
    %v4863 = vpack.c.b16 %v3303, %v3295
    %v4864 = vpack.c.b16 %v3304, %v3296
    %v4865 = vpack.c.b16 %v3305, %v3297
    %v4866 = vpack.c.b16 %v3306, %v3298
    %v4867 = vpack.c.b16 %v3307, %v3299
    %v4868 = vpack.c.b16 %v3308, %v3300
    %v4869 = vpack.c.b16 %v3309, %v3301
    %v4870 = vpack.c.b16 %v3310, %v3302
    %v4871 = vpack.c.b16 %v3319, %v3311
    %v4872 = vpack.c.b16 %v3320, %v3312
    %v4873 = vpack.c.b16 %v3321, %v3313
    %v4874 = vpack.c.b16 %v3322, %v3314
    %v4875 = vpack.c.b16 %v3323, %v3315
    %v4876 = vpack.c.b16 %v3324, %v3316
    %v4877 = vpack.c.b16 %v3325, %v3317
    %v4878 = vpack.c.b16 %v3326, %v3318
    %v4879 = vpack.c.b16 %v3335, %v3327
    %v4880 = vpack.c.b16 %v3336, %v3328
    %v4881 = vpack.c.b16 %v3337, %v3329
    %v4882 = vpack.c.b16 %v3338, %v3330
    %v4883 = vpack.c.b16 %v3339, %v3331
    %v4884 = vpack.c.b16 %v3340, %v3332
    %v4885 = vpack.c.b16 %v3341, %v3333
    %v4886 = vpack.c.b16 %v3342, %v3334
    %v4887 = vpack.c.b16 %v3351, %v3343
    %v4888 = vpack.c.b16 %v3352, %v3344
    %v4889 = vpack.c.b16 %v3353, %v3345
    %v4890 = vpack.c.b16 %v3354, %v3346
    %v4891 = vpack.c.b16 %v3355, %v3347
    %v4892 = vpack.c.b16 %v3356, %v3348
    %v4893 = vpack.c.b16 %v3357, %v3349
    %v4894 = vpack.c.b16 %v3358, %v3350
    %v4895 = vpack.c.b16 %v3367, %v3359
    %v4896 = vpack.c.b16 %v3368, %v3360
    %v4897 = vpack.c.b16 %v3369, %v3361
    %v4898 = vpack.c.b16 %v3370, %v3362
    %v4899 = vpack.c.b16 %v3371, %v3363
    %v4900 = vpack.c.b16 %v3372, %v3364
    %v4901 = vpack.c.b16 %v3373, %v3365
    %v4902 = vpack.c.b16 %v3374, %v3366
    %v4903 = vpack.c.b16 %v3383, %v3375
    %v4904 = vpack.c.b16 %v3384, %v3376
    %v4905 = vpack.c.b16 %v3385, %v3377
    %v4906 = vpack.c.b16 %v3386, %v3378
    %v4907 = vpack.c.b16 %v3387, %v3379
    %v4908 = vpack.c.b16 %v3388, %v3380
    %v4909 = vpack.c.b16 %v3389, %v3381
    %v4910 = vpack.c.b16 %v3390, %v3382
    %v4911 = vpack.c.b16 %v3399, %v3391
    %v4912 = vpack.c.b16 %v3400, %v3392
    %v4913 = vpack.c.b16 %v3401, %v3393
    %v4914 = vpack.c.b16 %v3402, %v3394
    %v4915 = vpack.c.b16 %v3403, %v3395
    %v4916 = vpack.c.b16 %v3404, %v3396
    %v4917 = vpack.c.b16 %v3405, %v3397
    %v4918 = vpack.c.b16 %v3406, %v3398
    %v4919 = vpack.c.b16 %v3415, %v3407
    %v4920 = vpack.c.b16 %v3416, %v3408
    %v4921 = vpack.c.b16 %v3417, %v3409
    %v4922 = vpack.c.b16 %v3418, %v3410
    %v4923 = vpack.c.b16 %v3419, %v3411
    %v4924 = vpack.c.b16 %v3420, %v3412
    %v4925 = vpack.c.b16 %v3421, %v3413
    %v4926 = vpack.c.b16 %v3422, %v3414
    %v4927 = vpack.c.b16 %v3431, %v3423
    %v4928 = vpack.c.b16 %v3432, %v3424
    %v4929 = vpack.c.b16 %v3433, %v3425
    %v4930 = vpack.c.b16 %v3434, %v3426
    %v4931 = vpack.c.b16 %v3435, %v3427
    %v4932 = vpack.c.b16 %v3436, %v3428
    %v4933 = vpack.c.b16 %v3437, %v3429
    %v4934 = vpack.c.b16 %v3438, %v3430
    %v4935 = vpack.c.b16 %v3447, %v3439
    %v4936 = vpack.c.b16 %v3448, %v3440
    %v4937 = vpack.c.b16 %v3449, %v3441
    %v4938 = vpack.c.b16 %v3450, %v3442
    %v4939 = vpack.c.b16 %v3451, %v3443
    %v4940 = vpack.c.b16 %v3452, %v3444
    %v4941 = vpack.c.b16 %v3453, %v3445
    %v4942 = vpack.c.b16 %v3454, %v3446
    %v4943 = vpack.c.b16 %v3463, %v3455
    %v4944 = vpack.c.b16 %v3464, %v3456
    %v4945 = vpack.c.b16 %v3465, %v3457
    %v4946 = vpack.c.b16 %v3466, %v3458
    %v4947 = vpack.c.b16 %v3467, %v3459
    %v4948 = vpack.c.b16 %v3468, %v3460
    %v4949 = vpack.c.b16 %v3469, %v3461
    %v4950 = vpack.c.b16 %v3470, %v3462
    %v4951 = vpack.c.b16 %v3479, %v3471
    %v4952 = vpack.c.b16 %v3480, %v3472
    %v4953 = vpack.c.b16 %v3481, %v3473
    %v4954 = vpack.c.b16 %v3482, %v3474
    %v4955 = vpack.c.b16 %v3483, %v3475
    %v4956 = vpack.c.b16 %v3484, %v3476
    %v4957 = vpack.c.b16 %v3485, %v3477
    %v4958 = vpack.c.b16 %v3486, %v3478
    %v4959 = vpack.c.b16 %v3495, %v3487
    %v4960 = vpack.c.b16 %v3496, %v3488
    %v4961 = vpack.c.b16 %v3497, %v3489
    %v4962 = vpack.c.b16 %v3498, %v3490
    %v4963 = vpack.c.b16 %v3499, %v3491
    %v4964 = vpack.c.b16 %v3500, %v3492
    %v4965 = vpack.c.b16 %v3501, %v3493
    %v4966 = vpack.c.b16 %v3502, %v3494
    %v4967 = vpack.c.b16 %v3511, %v3503
    %v4968 = vpack.c.b16 %v3512, %v3504
    %v4969 = vpack.c.b16 %v3513, %v3505
    %v4970 = vpack.c.b16 %v3514, %v3506
    %v4971 = vpack.c.b16 %v3515, %v3507
    %v4972 = vpack.c.b16 %v3516, %v3508
    %v4973 = vpack.c.b16 %v3517, %v3509
    %v4974 = vpack.c.b16 %v3518, %v3510
    %v4975 = vpack.c.b16 %v3527, %v3519
    %v4976 = vpack.c.b16 %v3528, %v3520
    %v4977 = vpack.c.b16 %v3529, %v3521
    %v4978 = vpack.c.b16 %v3530, %v3522
    %v4979 = vpack.c.b16 %v3531, %v3523
    %v4980 = vpack.c.b16 %v3532, %v3524
    %v4981 = vpack.c.b16 %v3533, %v3525
    %v4982 = vpack.c.b16 %v3534, %v3526
    %v4983 = vpack.c.b16 %v3543, %v3535
    %v4984 = vpack.c.b16 %v3544, %v3536
    %v4985 = vpack.c.b16 %v3545, %v3537
    %v4986 = vpack.c.b16 %v3546, %v3538
    %v4987 = vpack.c.b16 %v3547, %v3539
    %v4988 = vpack.c.b16 %v3548, %v3540
    %v4989 = vpack.c.b16 %v3549, %v3541
    %v4990 = vpack.c.b16 %v3550, %v3542
    %v4991 = vpack.c.b16 %v3559, %v3551
    %v4992 = vpack.c.b16 %v3560, %v3552
    %v4993 = vpack.c.b16 %v3561, %v3553
    %v4994 = vpack.c.b16 %v3562, %v3554
    %v4995 = vpack.c.b16 %v3563, %v3555
    %v4996 = vpack.c.b16 %v3564, %v3556
    %v4997 = vpack.c.b16 %v3565, %v3557
    %v4998 = vpack.c.b16 %v3566, %v3558
    %v4999 = vpack.c.b16 %v3575, %v3567
    %v5000 = vpack.c.b16 %v3576, %v3568
    %v5001 = vpack.c.b16 %v3577, %v3569
    %v5002 = vpack.c.b16 %v3578, %v3570
    %v5003 = vpack.c.b16 %v3579, %v3571
    %v5004 = vpack.c.b16 %v3580, %v3572
    %v5005 = vpack.c.b16 %v3581, %v3573
    %v5006 = vpack.c.b16 %v3582, %v3574
    %v5007 = vpack.c.b16 %v3591, %v3583
    %v5008 = vpack.c.b16 %v3592, %v3584
    %v5009 = vpack.c.b16 %v3593, %v3585
    %v5010 = vpack.c.b16 %v3594, %v3586
    %v5011 = vpack.c.b16 %v3595, %v3587
    %v5012 = vpack.c.b16 %v3596, %v3588
    %v5013 = vpack.c.b16 %v3597, %v3589
    %v5014 = vpack.c.b16 %v3598, %v3590
    %v5015 = vpack.c.b16 %v3607, %v3599
    %v5016 = vpack.c.b16 %v3608, %v3600
    %v5017 = vpack.c.b16 %v3609, %v3601
    %v5018 = vpack.c.b16 %v3610, %v3602
    %v5019 = vpack.c.b16 %v3611, %v3603
    %v5020 = vpack.c.b16 %v3612, %v3604
    %v5021 = vpack.c.b16 %v3613, %v3605
    %v5022 = vpack.c.b16 %v3614, %v3606
    %v5023 = vpack.c.b16 %v3623, %v3615
    %v5024 = vpack.c.b16 %v3624, %v3616
    %v5025 = vpack.c.b16 %v3625, %v3617
    %v5026 = vpack.c.b16 %v3626, %v3618
    %v5027 = vpack.c.b16 %v3627, %v3619
    %v5028 = vpack.c.b16 %v3628, %v3620
    %v5029 = vpack.c.b16 %v3629, %v3621
    %v5030 = vpack.c.b16 %v3630, %v3622
    %v5031 = vpack.c.b16 %v3639, %v3631
    %v5032 = vpack.c.b16 %v3640, %v3632
    %v5033 = vpack.c.b16 %v3641, %v3633
    %v5034 = vpack.c.b16 %v3642, %v3634
    %v5035 = vpack.c.b16 %v3643, %v3635
    %v5036 = vpack.c.b16 %v3644, %v3636
    %v5037 = vpack.c.b16 %v3645, %v3637
    %v5038 = vpack.c.b16 %v3646, %v3638
    %v5039 = vpack.c.b16 %v3655, %v3647
    %v5040 = vpack.c.b16 %v3656, %v3648
    %v5041 = vpack.c.b16 %v3657, %v3649
    %v5042 = vpack.c.b16 %v3658, %v3650
    %v5043 = vpack.c.b16 %v3659, %v3651
    %v5044 = vpack.c.b16 %v3660, %v3652
    %v5045 = vpack.c.b16 %v3661, %v3653
    %v5046 = vpack.c.b16 %v3662, %v3654
    %v5047 = vpack.c.b16 %v3671, %v3663
    %v5048 = vpack.c.b16 %v3672, %v3664
    %v5049 = vpack.c.b16 %v3673, %v3665
    %v5050 = vpack.c.b16 %v3674, %v3666
    %v5051 = vpack.c.b16 %v3675, %v3667
    %v5052 = vpack.c.b16 %v3676, %v3668
    %v5053 = vpack.c.b16 %v3677, %v3669
    %v5054 = vpack.c.b16 %v3678, %v3670
    %v5055 = vpack.c.b16 %v3687, %v3679
    %v5056 = vpack.c.b16 %v3688, %v3680
    %v5057 = vpack.c.b16 %v3689, %v3681
    %v5058 = vpack.c.b16 %v3690, %v3682
    %v5059 = vpack.c.b16 %v3691, %v3683
    %v5060 = vpack.c.b16 %v3692, %v3684
    %v5061 = vpack.c.b16 %v3693, %v3685
    %v5062 = vpack.c.b16 %v3694, %v3686
    %v5063 = vpack.c.b16 %v3703, %v3695
    %v5064 = vpack.c.b16 %v3704, %v3696
    %v5065 = vpack.c.b16 %v3705, %v3697
    %v5066 = vpack.c.b16 %v3706, %v3698
    %v5067 = vpack.c.b16 %v3707, %v3699
    %v5068 = vpack.c.b16 %v3708, %v3700
    %v5069 = vpack.c.b16 %v3709, %v3701
    %v5070 = vpack.c.b16 %v3710, %v3702
    %v5071 = vpack.c.b16 %v3719, %v3711
    %v5072 = vpack.c.b16 %v3720, %v3712
    %v5073 = vpack.c.b16 %v3721, %v3713
    %v5074 = vpack.c.b16 %v3722, %v3714
    %v5075 = vpack.c.b16 %v3723, %v3715
    %v5076 = vpack.c.b16 %v3724, %v3716
    %v5077 = vpack.c.b16 %v3725, %v3717
    %v5078 = vpack.c.b16 %v3726, %v3718
    %v5079 = vpack.c.b16 %v3735, %v3727
    %v5080 = vpack.c.b16 %v3736, %v3728
    %v5081 = vpack.c.b16 %v3737, %v3729
    %v5082 = vpack.c.b16 %v3738, %v3730
    %v5083 = vpack.c.b16 %v3739, %v3731
    %v5084 = vpack.c.b16 %v3740, %v3732
    %v5085 = vpack.c.b16 %v3741, %v3733
    %v5086 = vpack.c.b16 %v3742, %v3734
    %v5087 = vpack.c.b16 %v3751, %v3743
    %v5088 = vpack.c.b16 %v3752, %v3744
    %v5089 = vpack.c.b16 %v3753, %v3745
    %v5090 = vpack.c.b16 %v3754, %v3746
    %v5091 = vpack.c.b16 %v3755, %v3747
    %v5092 = vpack.c.b16 %v3756, %v3748
    %v5093 = vpack.c.b16 %v3757, %v3749
    %v5094 = vpack.c.b16 %v3758, %v3750
    %v5095 = vpack.c.b16 %v3767, %v3759
    %v5096 = vpack.c.b16 %v3768, %v3760
    %v5097 = vpack.c.b16 %v3769, %v3761
    %v5098 = vpack.c.b16 %v3770, %v3762
    %v5099 = vpack.c.b16 %v3771, %v3763
    %v5100 = vpack.c.b16 %v3772, %v3764
    %v5101 = vpack.c.b16 %v3773, %v3765
    %v5102 = vpack.c.b16 %v3774, %v3766
    %v5103 = vpack.c.b16 %v3783, %v3775
    %v5104 = vpack.c.b16 %v3784, %v3776
    %v5105 = vpack.c.b16 %v3785, %v3777
    %v5106 = vpack.c.b16 %v3786, %v3778
    %v5107 = vpack.c.b16 %v3787, %v3779
    %v5108 = vpack.c.b16 %v3788, %v3780
    %v5109 = vpack.c.b16 %v3789, %v3781
    %v5110 = vpack.c.b16 %v3790, %v3782
    %v5111 = vpack.c.b16 %v3799, %v3791
    %v5112 = vpack.c.b16 %v3800, %v3792
    %v5113 = vpack.c.b16 %v3801, %v3793
    %v5114 = vpack.c.b16 %v3802, %v3794
    %v5115 = vpack.c.b16 %v3803, %v3795
    %v5116 = vpack.c.b16 %v3804, %v3796
    %v5117 = vpack.c.b16 %v3805, %v3797
    %v5118 = vpack.c.b16 %v3806, %v3798
    %v5119 = vpack.c.b16 %v3815, %v3807
    %v5120 = vpack.c.b16 %v3816, %v3808
    %v5121 = vpack.c.b16 %v3817, %v3809
    %v5122 = vpack.c.b16 %v3818, %v3810
    %v5123 = vpack.c.b16 %v3819, %v3811
    %v5124 = vpack.c.b16 %v3820, %v3812
    %v5125 = vpack.c.b16 %v3821, %v3813
    %v5126 = vpack.c.b16 %v3822, %v3814
    %v5127 = vpack.c.b16 %v3831, %v3823
    %v5128 = vpack.c.b16 %v3832, %v3824
    %v5129 = vpack.c.b16 %v3833, %v3825
    %v5130 = vpack.c.b16 %v3834, %v3826
    %v5131 = vpack.c.b16 %v3835, %v3827
    %v5132 = vpack.c.b16 %v3836, %v3828
    %v5133 = vpack.c.b16 %v3837, %v3829
    %v5134 = vpack.c.b16 %v3838, %v3830
    %v5135 = vpack.c.b16 %v3847, %v3839
    %v5136 = vpack.c.b16 %v3848, %v3840
    %v5137 = vpack.c.b16 %v3849, %v3841
    %v5138 = vpack.c.b16 %v3850, %v3842
    %v5139 = vpack.c.b16 %v3851, %v3843
    %v5140 = vpack.c.b16 %v3852, %v3844
    %v5141 = vpack.c.b16 %v3853, %v3845
    %v5142 = vpack.c.b16 %v3854, %v3846
    %v5143 = vpack.c.b16 %v3863, %v3855
    %v5144 = vpack.c.b16 %v3864, %v3856
    %v5145 = vpack.c.b16 %v3865, %v3857
    %v5146 = vpack.c.b16 %v3866, %v3858
    %v5147 = vpack.c.b16 %v3867, %v3859
    %v5148 = vpack.c.b16 %v3868, %v3860
    %v5149 = vpack.c.b16 %v3869, %v3861
    %v5150 = vpack.c.b16 %v3870, %v3862
    %v5151 = vpack.c.b16 %v3879, %v3871
    %v5152 = vpack.c.b16 %v3880, %v3872
    %v5153 = vpack.c.b16 %v3881, %v3873
    %v5154 = vpack.c.b16 %v3882, %v3874
    %v5155 = vpack.c.b16 %v3883, %v3875
    %v5156 = vpack.c.b16 %v3884, %v3876
    %v5157 = vpack.c.b16 %v3885, %v3877
    %v5158 = vpack.c.b16 %v3886, %v3878
    %v5159 = vpack.c.b16 %v3895, %v3887
    %v5160 = vpack.c.b16 %v3896, %v3888
    %v5161 = vpack.c.b16 %v3897, %v3889
    %v5162 = vpack.c.b16 %v3898, %v3890
    %v5163 = vpack.c.b16 %v3899, %v3891
    %v5164 = vpack.c.b16 %v3900, %v3892
    %v5165 = vpack.c.b16 %v3901, %v3893
    %v5166 = vpack.c.b16 %v3902, %v3894
    %v5167 = vpack.c.b16 %v3911, %v3903
    %v5168 = vpack.c.b16 %v3912, %v3904
    %v5169 = vpack.c.b16 %v3913, %v3905
    %v5170 = vpack.c.b16 %v3914, %v3906
    %v5171 = vpack.c.b16 %v3915, %v3907
    %v5172 = vpack.c.b16 %v3916, %v3908
    %v5173 = vpack.c.b16 %v3917, %v3909
    %v5174 = vpack.c.b16 %v3918, %v3910
    %v5175 = vpack.c.b16 %v3927, %v3919
    %v5176 = vpack.c.b16 %v3928, %v3920
    %v5177 = vpack.c.b16 %v3929, %v3921
    %v5178 = vpack.c.b16 %v3930, %v3922
    %v5179 = vpack.c.b16 %v3931, %v3923
    %v5180 = vpack.c.b16 %v3932, %v3924
    %v5181 = vpack.c.b16 %v3933, %v3925
    %v5182 = vpack.c.b16 %v3934, %v3926
    %v5183 = vpack.c.b16 %v3943, %v3935
    %v5184 = vpack.c.b16 %v3944, %v3936
    %v5185 = vpack.c.b16 %v3945, %v3937
    %v5186 = vpack.c.b16 %v3946, %v3938
    %v5187 = vpack.c.b16 %v3947, %v3939
    %v5188 = vpack.c.b16 %v3948, %v3940
    %v5189 = vpack.c.b16 %v3949, %v3941
    %v5190 = vpack.c.b16 %v3950, %v3942
    %v5191 = vpack.c.b16 %v3959, %v3951
    %v5192 = vpack.c.b16 %v3960, %v3952
    %v5193 = vpack.c.b16 %v3961, %v3953
    %v5194 = vpack.c.b16 %v3962, %v3954
    %v5195 = vpack.c.b16 %v3963, %v3955
    %v5196 = vpack.c.b16 %v3964, %v3956
    %v5197 = vpack.c.b16 %v3965, %v3957
    %v5198 = vpack.c.b16 %v3966, %v3958
    %v5199 = vpack.c.b16 %v3975, %v3967
    %v5200 = vpack.c.b16 %v3976, %v3968
    %v5201 = vpack.c.b16 %v3977, %v3969
    %v5202 = vpack.c.b16 %v3978, %v3970
    %v5203 = vpack.c.b16 %v3979, %v3971
    %v5204 = vpack.c.b16 %v3980, %v3972
    %v5205 = vpack.c.b16 %v3981, %v3973
    %v5206 = vpack.c.b16 %v3982, %v3974
    %v5207 = vpack.c.b16 %v3991, %v3983
    %v5208 = vpack.c.b16 %v3992, %v3984
    %v5209 = vpack.c.b16 %v3993, %v3985
    %v5210 = vpack.c.b16 %v3994, %v3986
    %v5211 = vpack.c.b16 %v3995, %v3987
    %v5212 = vpack.c.b16 %v3996, %v3988
    %v5213 = vpack.c.b16 %v3997, %v3989
    %v5214 = vpack.c.b16 %v3998, %v3990
    %v5215 = vpack.c.b16 %v4007, %v3999
    %v5216 = vpack.c.b16 %v4008, %v4000
    %v5217 = vpack.c.b16 %v4009, %v4001
    %v5218 = vpack.c.b16 %v4010, %v4002
    %v5219 = vpack.c.b16 %v4011, %v4003
    %v5220 = vpack.c.b16 %v4012, %v4004
    %v5221 = vpack.c.b16 %v4013, %v4005
    %v5222 = vpack.c.b16 %v4014, %v4006
    %v5223 = vpack.c.b16 %v4023, %v4015
    %v5224 = vpack.c.b16 %v4024, %v4016
    %v5225 = vpack.c.b16 %v4025, %v4017
    %v5226 = vpack.c.b16 %v4026, %v4018
    %v5227 = vpack.c.b16 %v4027, %v4019
    %v5228 = vpack.c.b16 %v4028, %v4020
    %v5229 = vpack.c.b16 %v4029, %v4021
    %v5230 = vpack.c.b16 %v4030, %v4022
    %v5231 = vpack.c.b16 %v4039, %v4031
    %v5232 = vpack.c.b16 %v4040, %v4032
    %v5233 = vpack.c.b16 %v4041, %v4033
    %v5234 = vpack.c.b16 %v4042, %v4034
    %v5235 = vpack.c.b16 %v4043, %v4035
    %v5236 = vpack.c.b16 %v4044, %v4036
    %v5237 = vpack.c.b16 %v4045, %v4037
    %v5238 = vpack.c.b16 %v4046, %v4038
    %v5239 = vpack.c.b16 %v4055, %v4047
    %v5240 = vpack.c.b16 %v4056, %v4048
    %v5241 = vpack.c.b16 %v4057, %v4049
    %v5242 = vpack.c.b16 %v4058, %v4050
    %v5243 = vpack.c.b16 %v4059, %v4051
    %v5244 = vpack.c.b16 %v4060, %v4052
    %v5245 = vpack.c.b16 %v4061, %v4053
    %v5246 = vpack.c.b16 %v4062, %v4054
    %v5247 = vpack.c.b16 %v4071, %v4063
    %v5248 = vpack.c.b16 %v4072, %v4064
    %v5249 = vpack.c.b16 %v4073, %v4065
    %v5250 = vpack.c.b16 %v4074, %v4066
    %v5251 = vpack.c.b16 %v4075, %v4067
    %v5252 = vpack.c.b16 %v4076, %v4068
    %v5253 = vpack.c.b16 %v4077, %v4069
    %v5254 = vpack.c.b16 %v4078, %v4070
    %v5255 = vpack.c.b16 %v4087, %v4079
    %v5256 = vpack.c.b16 %v4088, %v4080
    %v5257 = vpack.c.b16 %v4089, %v4081
    %v5258 = vpack.c.b16 %v4090, %v4082
    %v5259 = vpack.c.b16 %v4091, %v4083
    %v5260 = vpack.c.b16 %v4092, %v4084
    %v5261 = vpack.c.b16 %v4093, %v4085
    %v5262 = vpack.c.b16 %v4094, %v4086
    %v5263 = vpack.c.b16 %v4103, %v4095
    %v5264 = vpack.c.b16 %v4104, %v4096
    %v5265 = vpack.c.b16 %v4105, %v4097
    %v5266 = vpack.c.b16 %v4106, %v4098
    %v5267 = vpack.c.b16 %v4107, %v4099
    %v5268 = vpack.c.b16 %v4108, %v4100
    %v5269 = vpack.c.b16 %v4109, %v4101
    %v5270 = vpack.c.b16 %v4110, %v4102
    %v5271 = vpack.c.b16 %v4119, %v4111
    %v5272 = vpack.c.b16 %v4120, %v4112
    %v5273 = vpack.c.b16 %v4121, %v4113
    %v5274 = vpack.c.b16 %v4122, %v4114
    %v5275 = vpack.c.b16 %v4123, %v4115
    %v5276 = vpack.c.b16 %v4124, %v4116
    %v5277 = vpack.c.b16 %v4125, %v4117
    %v5278 = vpack.c.b16 %v4126, %v4118
    %v5279 = vpack.c.b16 %v4135, %v4127
    %v5280 = vpack.c.b16 %v4136, %v4128
    %v5281 = vpack.c.b16 %v4137, %v4129
    %v5282 = vpack.c.b16 %v4138, %v4130
    %v5283 = vpack.c.b16 %v4139, %v4131
    %v5284 = vpack.c.b16 %v4140, %v4132
    %v5285 = vpack.c.b16 %v4141, %v4133
    %v5286 = vpack.c.b16 %v4142, %v4134
    %v5287 = vpack.c.b16 %v4151, %v4143
    %v5288 = vpack.c.b16 %v4152, %v4144
    %v5289 = vpack.c.b16 %v4153, %v4145
    %v5290 = vpack.c.b16 %v4154, %v4146
    %v5291 = vpack.c.b16 %v4155, %v4147
    %v5292 = vpack.c.b16 %v4156, %v4148
    %v5293 = vpack.c.b16 %v4157, %v4149
    %v5294 = vpack.c.b16 %v4158, %v4150
    %v5295 = vpack.c.b16 %v4167, %v4159
    %v5296 = vpack.c.b16 %v4168, %v4160
    %v5297 = vpack.c.b16 %v4169, %v4161
    %v5298 = vpack.c.b16 %v4170, %v4162
    %v5299 = vpack.c.b16 %v4171, %v4163
    %v5300 = vpack.c.b16 %v4172, %v4164
    %v5301 = vpack.c.b16 %v4173, %v4165
    %v5302 = vpack.c.b16 %v4174, %v4166
    %v5303 = vpack.c.b16 %v4183, %v4175
    %v5304 = vpack.c.b16 %v4184, %v4176
    %v5305 = vpack.c.b16 %v4185, %v4177
    %v5306 = vpack.c.b16 %v4186, %v4178
    %v5307 = vpack.c.b16 %v4187, %v4179
    %v5308 = vpack.c.b16 %v4188, %v4180
    %v5309 = vpack.c.b16 %v4189, %v4181
    %v5310 = vpack.c.b16 %v4190, %v4182
    %v5311 = vpack.c.b16 %v4199, %v4191
    %v5312 = vpack.c.b16 %v4200, %v4192
    %v5313 = vpack.c.b16 %v4201, %v4193
    %v5314 = vpack.c.b16 %v4202, %v4194
    %v5315 = vpack.c.b16 %v4203, %v4195
    %v5316 = vpack.c.b16 %v4204, %v4196
    %v5317 = vpack.c.b16 %v4205, %v4197
    %v5318 = vpack.c.b16 %v4206, %v4198
    %v5319 = vpack.c.b16 %v4215, %v4207
    %v5320 = vpack.c.b16 %v4216, %v4208
    %v5321 = vpack.c.b16 %v4217, %v4209
    %v5322 = vpack.c.b16 %v4218, %v4210
    %v5323 = vpack.c.b16 %v4219, %v4211
    %v5324 = vpack.c.b16 %v4220, %v4212
    %v5325 = vpack.c.b16 %v4221, %v4213
    %v5326 = vpack.c.b16 %v4222, %v4214
    %v5327 = vpack.c.b16 %v4231, %v4223
    %v5328 = vpack.c.b16 %v4232, %v4224
    %v5329 = vpack.c.b16 %v4233, %v4225
    %v5330 = vpack.c.b16 %v4234, %v4226
    %v5331 = vpack.c.b16 %v4235, %v4227
    %v5332 = vpack.c.b16 %v4236, %v4228
    %v5333 = vpack.c.b16 %v4237, %v4229
    %v5334 = vpack.c.b16 %v4238, %v4230
    %v5335 = vpack.c.b16 %v4247, %v4239
    %v5336 = vpack.c.b16 %v4248, %v4240
    %v5337 = vpack.c.b16 %v4249, %v4241
    %v5338 = vpack.c.b16 %v4250, %v4242
    %v5339 = vpack.c.b16 %v4251, %v4243
    %v5340 = vpack.c.b16 %v4252, %v4244
    %v5341 = vpack.c.b16 %v4253, %v4245
    %v5342 = vpack.c.b16 %v4254, %v4246
    %v5343 = vpack.c.b16 %v4263, %v4255
    %v5344 = vpack.c.b16 %v4264, %v4256
    %v5345 = vpack.c.b16 %v4265, %v4257
    %v5346 = vpack.c.b16 %v4266, %v4258
    %v5347 = vpack.c.b16 %v4267, %v4259
    %v5348 = vpack.c.b16 %v4268, %v4260
    %v5349 = vpack.c.b16 %v4269, %v4261
    %v5350 = vpack.c.b16 %v4270, %v4262
    %v5351 = vpack.c.b16 %v4279, %v4271
    %v5352 = vpack.c.b16 %v4280, %v4272
    %v5353 = vpack.c.b16 %v4281, %v4273
    %v5354 = vpack.c.b16 %v4282, %v4274
    %v5355 = vpack.c.b16 %v4283, %v4275
    %v5356 = vpack.c.b16 %v4284, %v4276
    %v5357 = vpack.c.b16 %v4285, %v4277
    %v5358 = vpack.c.b16 %v4286, %v4278
    %v5359 = vpack.c.b16 %v4295, %v4287
    %v5360 = vpack.c.b16 %v4296, %v4288
    %v5361 = vpack.c.b16 %v4297, %v4289
    %v5362 = vpack.c.b16 %v4298, %v4290
    %v5363 = vpack.c.b16 %v4299, %v4291
    %v5364 = vpack.c.b16 %v4300, %v4292
    %v5365 = vpack.c.b16 %v4301, %v4293
    %v5366 = vpack.c.b16 %v4302, %v4294
    %v5367 = vpack.c.b16 %v4311, %v4303
    %v5368 = vpack.c.b16 %v4312, %v4304
    %v5369 = vpack.c.b16 %v4313, %v4305
    %v5370 = vpack.c.b16 %v4314, %v4306
    %v5371 = vpack.c.b16 %v4315, %v4307
    %v5372 = vpack.c.b16 %v4316, %v4308
    %v5373 = vpack.c.b16 %v4317, %v4309
    %v5374 = vpack.c.b16 %v4318, %v4310
    %v5375 = vpack.c.b16 %v4327, %v4319
    %v5376 = vpack.c.b16 %v4328, %v4320
    %v5377 = vpack.c.b16 %v4329, %v4321
    %v5378 = vpack.c.b16 %v4330, %v4322
    %v5379 = vpack.c.b16 %v4331, %v4323
    %v5380 = vpack.c.b16 %v4332, %v4324
    %v5381 = vpack.c.b16 %v4333, %v4325
    %v5382 = vpack.c.b16 %v4334, %v4326
    %v5383 = vpack.c.b16 %v4343, %v4335
    %v5384 = vpack.c.b16 %v4344, %v4336
    %v5385 = vpack.c.b16 %v4345, %v4337
    %v5386 = vpack.c.b16 %v4346, %v4338
    %v5387 = vpack.c.b16 %v4347, %v4339
    %v5388 = vpack.c.b16 %v4348, %v4340
    %v5389 = vpack.c.b16 %v4349, %v4341
    %v5390 = vpack.c.b16 %v4350, %v4342
    %v5391 = vpack.c.b16 %v4359, %v4351
    %v5392 = vpack.c.b16 %v4360, %v4352
    %v5393 = vpack.c.b16 %v4361, %v4353
    %v5394 = vpack.c.b16 %v4362, %v4354
    %v5395 = vpack.c.b16 %v4363, %v4355
    %v5396 = vpack.c.b16 %v4364, %v4356
    %v5397 = vpack.c.b16 %v4365, %v4357
    %v5398 = vpack.c.b16 %v4366, %v4358
    %v5399 = vpack.c.b16 %v4375, %v4367
    %v5400 = vpack.c.b16 %v4376, %v4368
    %v5401 = vpack.c.b16 %v4377, %v4369
    %v5402 = vpack.c.b16 %v4378, %v4370
    %v5403 = vpack.c.b16 %v4379, %v4371
    %v5404 = vpack.c.b16 %v4380, %v4372
    %v5405 = vpack.c.b16 %v4381, %v4373
    %v5406 = vpack.c.b16 %v4382, %v4374
    %6431 = vmatpush.bf16.msra.mxu0 %v4439
    %6432 = vmatpush.bf16.msra.mxu0 %v4431
    %6433 = vmatpush.bf16.msra.mxu0 %v4423
    %6434 = vmatpush.bf16.msra.mxu0 %v4415
    %6435 = vmatpush.bf16.msra.mxu0 %v4407
    %6436 = vmatpush.bf16.msra.mxu0 %v4399
    %6437 = vmatpush.bf16.msra.mxu0 %v4391
    %6438 = vmatpush.bf16.msra.mxu0 %v4383
    %6439 = vmatmul.bf16.gmra.mxu0 %v1278
    %v6440 = vpop.f32.mrf.mxu0
    %v6441 = vadd.f32 %v1295, %v6440
    %v6442 = vpop.f32.mrf.mxu0
    %6443 = vdwg.mxu0
    %6444 = vmatpush.bf16.msra.mxu0 %v4503
    %6445 = vmatpush.bf16.msra.mxu0 %v4495
    %6446 = vmatpush.bf16.msra.mxu0 %v4487
    %6447 = vmatpush.bf16.msra.mxu0 %v4479
    %6448 = vmatpush.bf16.msra.mxu0 %v4471
    %6449 = vmatpush.bf16.msra.mxu0 %v4463
    %6450 = vmatpush.bf16.msra.mxu0 %v4455
    %6451 = vmatpush.bf16.msra.mxu0 %v4447
    %6452 = vmatmul.bf16.gmra.mxu0 %v1279
    %v6453 = vpop.f32.mrf.mxu0
    %v6454 = vadd.f32 %v6441, %v6453
    %v6455 = vpop.f32.mrf.mxu0
    %6456 = vdwg.mxu0
    %6457 = vmatpush.bf16.msra.mxu0 %v4567
    %6458 = vmatpush.bf16.msra.mxu0 %v4559
    %6459 = vmatpush.bf16.msra.mxu0 %v4551
    %6460 = vmatpush.bf16.msra.mxu0 %v4543
    %6461 = vmatpush.bf16.msra.mxu0 %v4535
    %6462 = vmatpush.bf16.msra.mxu0 %v4527
    %6463 = vmatpush.bf16.msra.mxu0 %v4519
    %6464 = vmatpush.bf16.msra.mxu0 %v4511
    %6465 = vmatmul.bf16.gmra.mxu0 %v1280
    %v6466 = vpop.f32.mrf.mxu0
    %v6467 = vadd.f32 %v6454, %v6466
    %v6468 = vpop.f32.mrf.mxu0
    %6469 = vdwg.mxu0
    %6470 = vmatpush.bf16.msra.mxu0 %v4631
    %6471 = vmatpush.bf16.msra.mxu0 %v4623
    %6472 = vmatpush.bf16.msra.mxu0 %v4615
    %6473 = vmatpush.bf16.msra.mxu0 %v4607
    %6474 = vmatpush.bf16.msra.mxu0 %v4599
    %6475 = vmatpush.bf16.msra.mxu0 %v4591
    %6476 = vmatpush.bf16.msra.mxu0 %v4583
    %6477 = vmatpush.bf16.msra.mxu0 %v4575
    %6478 = vmatmul.bf16.gmra.mxu0 %v1281
    %v6479 = vpop.f32.mrf.mxu0
    %v6480 = vadd.f32 %v6467, %v6479
    %v6481 = vpop.f32.mrf.mxu0
    %6482 = vdwg.mxu0
    %6483 = vmatpush.bf16.msra.mxu0 %v4695
    %6484 = vmatpush.bf16.msra.mxu0 %v4687
    %6485 = vmatpush.bf16.msra.mxu0 %v4679
    %6486 = vmatpush.bf16.msra.mxu0 %v4671
    %6487 = vmatpush.bf16.msra.mxu0 %v4663
    %6488 = vmatpush.bf16.msra.mxu0 %v4655
    %6489 = vmatpush.bf16.msra.mxu0 %v4647
    %6490 = vmatpush.bf16.msra.mxu0 %v4639
    %6491 = vmatmul.bf16.gmra.mxu0 %v1282
    %v6492 = vpop.f32.mrf.mxu0
    %v6493 = vadd.f32 %v6480, %v6492
    %v6494 = vpop.f32.mrf.mxu0
    %6495 = vdwg.mxu0
    %6496 = vmatpush.bf16.msra.mxu0 %v4759
    %6497 = vmatpush.bf16.msra.mxu0 %v4751
    %6498 = vmatpush.bf16.msra.mxu0 %v4743
    %6499 = vmatpush.bf16.msra.mxu0 %v4735
    %6500 = vmatpush.bf16.msra.mxu0 %v4727
    %6501 = vmatpush.bf16.msra.mxu0 %v4719
    %6502 = vmatpush.bf16.msra.mxu0 %v4711
    %6503 = vmatpush.bf16.msra.mxu0 %v4703
    %6504 = vmatmul.bf16.gmra.mxu0 %v1283
    %v6505 = vpop.f32.mrf.mxu0
    %v6506 = vadd.f32 %v6493, %v6505
    %v6507 = vpop.f32.mrf.mxu0
    %6508 = vdwg.mxu0
    %6509 = vmatpush.bf16.msra.mxu0 %v4823
    %6510 = vmatpush.bf16.msra.mxu0 %v4815
    %6511 = vmatpush.bf16.msra.mxu0 %v4807
    %6512 = vmatpush.bf16.msra.mxu0 %v4799
    %6513 = vmatpush.bf16.msra.mxu0 %v4791
    %6514 = vmatpush.bf16.msra.mxu0 %v4783
    %6515 = vmatpush.bf16.msra.mxu0 %v4775
    %6516 = vmatpush.bf16.msra.mxu0 %v4767
    %6517 = vmatmul.bf16.gmra.mxu0 %v1284
    %v6518 = vpop.f32.mrf.mxu0
    %v6519 = vadd.f32 %v6506, %v6518
    %v6520 = vpop.f32.mrf.mxu0
    %6521 = vdwg.mxu0
    %6522 = vmatpush.bf16.msra.mxu0 %v4887
    %6523 = vmatpush.bf16.msra.mxu0 %v4879
    %6524 = vmatpush.bf16.msra.mxu0 %v4871
    %6525 = vmatpush.bf16.msra.mxu0 %v4863
    %6526 = vmatpush.bf16.msra.mxu0 %v4855
    %6527 = vmatpush.bf16.msra.mxu0 %v4847
    %6528 = vmatpush.bf16.msra.mxu0 %v4839
    %6529 = vmatpush.bf16.msra.mxu0 %v4831
    %6530 = vmatmul.bf16.gmra.mxu0 %v1285
    %v6531 = vpop.f32.mrf.mxu0
    %v6532 = vadd.f32 %v6519, %v6531
    %v6533 = vpop.f32.mrf.mxu0
    %6534 = vdwg.mxu0
    %6535 = vmatpush.bf16.msra.mxu0 %v4951
    %6536 = vmatpush.bf16.msra.mxu0 %v4943
    %6537 = vmatpush.bf16.msra.mxu0 %v4935
    %6538 = vmatpush.bf16.msra.mxu0 %v4927
    %6539 = vmatpush.bf16.msra.mxu0 %v4919
    %6540 = vmatpush.bf16.msra.mxu0 %v4911
    %6541 = vmatpush.bf16.msra.mxu0 %v4903
    %6542 = vmatpush.bf16.msra.mxu0 %v4895
    %6543 = vmatmul.bf16.gmra.mxu0 %v1286
    %v6544 = vpop.f32.mrf.mxu0
    %v6545 = vadd.f32 %v6532, %v6544
    %v6546 = vpop.f32.mrf.mxu0
    %6547 = vdwg.mxu0
    %6548 = vmatpush.bf16.msra.mxu0 %v5015
    %6549 = vmatpush.bf16.msra.mxu0 %v5007
    %6550 = vmatpush.bf16.msra.mxu0 %v4999
    %6551 = vmatpush.bf16.msra.mxu0 %v4991
    %6552 = vmatpush.bf16.msra.mxu0 %v4983
    %6553 = vmatpush.bf16.msra.mxu0 %v4975
    %6554 = vmatpush.bf16.msra.mxu0 %v4967
    %6555 = vmatpush.bf16.msra.mxu0 %v4959
    %6556 = vmatmul.bf16.gmra.mxu0 %v1287
    %v6557 = vpop.f32.mrf.mxu0
    %v6558 = vadd.f32 %v6545, %v6557
    %v6559 = vpop.f32.mrf.mxu0
    %6560 = vdwg.mxu0
    %6561 = vmatpush.bf16.msra.mxu0 %v5079
    %6562 = vmatpush.bf16.msra.mxu0 %v5071
    %6563 = vmatpush.bf16.msra.mxu0 %v5063
    %6564 = vmatpush.bf16.msra.mxu0 %v5055
    %6565 = vmatpush.bf16.msra.mxu0 %v5047
    %6566 = vmatpush.bf16.msra.mxu0 %v5039
    %6567 = vmatpush.bf16.msra.mxu0 %v5031
    %6568 = vmatpush.bf16.msra.mxu0 %v5023
    %6569 = vmatmul.bf16.gmra.mxu0 %v1288
    %v6570 = vpop.f32.mrf.mxu0
    %v6571 = vadd.f32 %v6558, %v6570
    %v6572 = vpop.f32.mrf.mxu0
    %6573 = vdwg.mxu0
    %6574 = vmatpush.bf16.msra.mxu0 %v5143
    %6575 = vmatpush.bf16.msra.mxu0 %v5135
    %6576 = vmatpush.bf16.msra.mxu0 %v5127
    %6577 = vmatpush.bf16.msra.mxu0 %v5119
    %6578 = vmatpush.bf16.msra.mxu0 %v5111
    %6579 = vmatpush.bf16.msra.mxu0 %v5103
    %6580 = vmatpush.bf16.msra.mxu0 %v5095
    %6581 = vmatpush.bf16.msra.mxu0 %v5087
    %6582 = vmatmul.bf16.gmra.mxu0 %v1289
    %v6583 = vpop.f32.mrf.mxu0
    %v6584 = vadd.f32 %v6571, %v6583
    %v6585 = vpop.f32.mrf.mxu0
    %6586 = vdwg.mxu0
    %6587 = vmatpush.bf16.msra.mxu0 %v5207
    %6588 = vmatpush.bf16.msra.mxu0 %v5199
    %6589 = vmatpush.bf16.msra.mxu0 %v5191
    %6590 = vmatpush.bf16.msra.mxu0 %v5183
    %6591 = vmatpush.bf16.msra.mxu0 %v5175
    %6592 = vmatpush.bf16.msra.mxu0 %v5167
    %6593 = vmatpush.bf16.msra.mxu0 %v5159
    %6594 = vmatpush.bf16.msra.mxu0 %v5151
    %6595 = vmatmul.bf16.gmra.mxu0 %v1290
    %v6596 = vpop.f32.mrf.mxu0
    %v6597 = vadd.f32 %v6584, %v6596
    %v6598 = vpop.f32.mrf.mxu0
    %6599 = vdwg.mxu0
    %6600 = vmatpush.bf16.msra.mxu0 %v5271
    %6601 = vmatpush.bf16.msra.mxu0 %v5263
    %6602 = vmatpush.bf16.msra.mxu0 %v5255
    %6603 = vmatpush.bf16.msra.mxu0 %v5247
    %6604 = vmatpush.bf16.msra.mxu0 %v5239
    %6605 = vmatpush.bf16.msra.mxu0 %v5231
    %6606 = vmatpush.bf16.msra.mxu0 %v5223
    %6607 = vmatpush.bf16.msra.mxu0 %v5215
    %6608 = vmatmul.bf16.gmra.mxu0 %v1291
    %v6609 = vpop.f32.mrf.mxu0
    %v6610 = vadd.f32 %v6597, %v6609
    %v6611 = vpop.f32.mrf.mxu0
    %6612 = vdwg.mxu0
    %6613 = vmatpush.bf16.msra.mxu0 %v5335
    %6614 = vmatpush.bf16.msra.mxu0 %v5327
    %6615 = vmatpush.bf16.msra.mxu0 %v5319
    %6616 = vmatpush.bf16.msra.mxu0 %v5311
    %6617 = vmatpush.bf16.msra.mxu0 %v5303
    %6618 = vmatpush.bf16.msra.mxu0 %v5295
    %6619 = vmatpush.bf16.msra.mxu0 %v5287
    %6620 = vmatpush.bf16.msra.mxu0 %v5279
    %6621 = vmatmul.bf16.gmra.mxu0 %v1292
    %v6622 = vpop.f32.mrf.mxu0
    %v6623 = vadd.f32 %v6610, %v6622
    %v6624 = vpop.f32.mrf.mxu0
    %6625 = vdwg.mxu0
    %6626 = vmatpush.bf16.msra.mxu0 %v5399
    %6627 = vmatpush.bf16.msra.mxu0 %v5391
    %6628 = vmatpush.bf16.msra.mxu0 %v5383
    %6629 = vmatpush.bf16.msra.mxu0 %v5375
    %6630 = vmatpush.bf16.msra.mxu0 %v5367
    %6631 = vmatpush.bf16.msra.mxu0 %v5359
    %6632 = vmatpush.bf16.msra.mxu0 %v5351
    %6633 = vmatpush.bf16.msra.mxu0 %v5343
    %6634 = vmatmul.bf16.gmra.mxu0 %v1293
    %v6635 = vpop.f32.mrf.mxu0
    %v6636 = vadd.f32 %v6623, %v6635
    %v6637 = vpop.f32.mrf.mxu0
    %6638 = vdwg.mxu0
    %6639 = vmatpush.bf16.msra.mxu0 %v4440
    %6640 = vmatpush.bf16.msra.mxu0 %v4432
    %6641 = vmatpush.bf16.msra.mxu0 %v4424
    %6642 = vmatpush.bf16.msra.mxu0 %v4416
    %6643 = vmatpush.bf16.msra.mxu0 %v4408
    %6644 = vmatpush.bf16.msra.mxu0 %v4400
    %6645 = vmatpush.bf16.msra.mxu0 %v4392
    %6646 = vmatpush.bf16.msra.mxu0 %v4384
    %6647 = vmatmul.bf16.gmra.mxu0 %v1278
    %v6648 = vpop.f32.mrf.mxu0
    %v6649 = vadd.f32 %v1296, %v6648
    %v6650 = vpop.f32.mrf.mxu0
    %6651 = vdwg.mxu0
    %6652 = vmatpush.bf16.msra.mxu0 %v4504
    %6653 = vmatpush.bf16.msra.mxu0 %v4496
    %6654 = vmatpush.bf16.msra.mxu0 %v4488
    %6655 = vmatpush.bf16.msra.mxu0 %v4480
    %6656 = vmatpush.bf16.msra.mxu0 %v4472
    %6657 = vmatpush.bf16.msra.mxu0 %v4464
    %6658 = vmatpush.bf16.msra.mxu0 %v4456
    %6659 = vmatpush.bf16.msra.mxu0 %v4448
    %6660 = vmatmul.bf16.gmra.mxu0 %v1279
    %v6661 = vpop.f32.mrf.mxu0
    %v6662 = vadd.f32 %v6649, %v6661
    %v6663 = vpop.f32.mrf.mxu0
    %6664 = vdwg.mxu0
    %6665 = vmatpush.bf16.msra.mxu0 %v4568
    %6666 = vmatpush.bf16.msra.mxu0 %v4560
    %6667 = vmatpush.bf16.msra.mxu0 %v4552
    %6668 = vmatpush.bf16.msra.mxu0 %v4544
    %6669 = vmatpush.bf16.msra.mxu0 %v4536
    %6670 = vmatpush.bf16.msra.mxu0 %v4528
    %6671 = vmatpush.bf16.msra.mxu0 %v4520
    %6672 = vmatpush.bf16.msra.mxu0 %v4512
    %6673 = vmatmul.bf16.gmra.mxu0 %v1280
    %v6674 = vpop.f32.mrf.mxu0
    %v6675 = vadd.f32 %v6662, %v6674
    %v6676 = vpop.f32.mrf.mxu0
    %6677 = vdwg.mxu0
    %6678 = vmatpush.bf16.msra.mxu0 %v4632
    %6679 = vmatpush.bf16.msra.mxu0 %v4624
    %6680 = vmatpush.bf16.msra.mxu0 %v4616
    %6681 = vmatpush.bf16.msra.mxu0 %v4608
    %6682 = vmatpush.bf16.msra.mxu0 %v4600
    %6683 = vmatpush.bf16.msra.mxu0 %v4592
    %6684 = vmatpush.bf16.msra.mxu0 %v4584
    %6685 = vmatpush.bf16.msra.mxu0 %v4576
    %6686 = vmatmul.bf16.gmra.mxu0 %v1281
    %v6687 = vpop.f32.mrf.mxu0
    %v6688 = vadd.f32 %v6675, %v6687
    %v6689 = vpop.f32.mrf.mxu0
    %6690 = vdwg.mxu0
    %6691 = vmatpush.bf16.msra.mxu0 %v4696
    %6692 = vmatpush.bf16.msra.mxu0 %v4688
    %6693 = vmatpush.bf16.msra.mxu0 %v4680
    %6694 = vmatpush.bf16.msra.mxu0 %v4672
    %6695 = vmatpush.bf16.msra.mxu0 %v4664
    %6696 = vmatpush.bf16.msra.mxu0 %v4656
    %6697 = vmatpush.bf16.msra.mxu0 %v4648
    %6698 = vmatpush.bf16.msra.mxu0 %v4640
    %6699 = vmatmul.bf16.gmra.mxu0 %v1282
    %v6700 = vpop.f32.mrf.mxu0
    %v6701 = vadd.f32 %v6688, %v6700
    %v6702 = vpop.f32.mrf.mxu0
    %6703 = vdwg.mxu0
    %6704 = vmatpush.bf16.msra.mxu0 %v4760
    %6705 = vmatpush.bf16.msra.mxu0 %v4752
    %6706 = vmatpush.bf16.msra.mxu0 %v4744
    %6707 = vmatpush.bf16.msra.mxu0 %v4736
    %6708 = vmatpush.bf16.msra.mxu0 %v4728
    %6709 = vmatpush.bf16.msra.mxu0 %v4720
    %6710 = vmatpush.bf16.msra.mxu0 %v4712
    %6711 = vmatpush.bf16.msra.mxu0 %v4704
    %6712 = vmatmul.bf16.gmra.mxu0 %v1283
    %v6713 = vpop.f32.mrf.mxu0
    %v6714 = vadd.f32 %v6701, %v6713
    %v6715 = vpop.f32.mrf.mxu0
    %6716 = vdwg.mxu0
    %6717 = vmatpush.bf16.msra.mxu0 %v4824
    %6718 = vmatpush.bf16.msra.mxu0 %v4816
    %6719 = vmatpush.bf16.msra.mxu0 %v4808
    %6720 = vmatpush.bf16.msra.mxu0 %v4800
    %6721 = vmatpush.bf16.msra.mxu0 %v4792
    %6722 = vmatpush.bf16.msra.mxu0 %v4784
    %6723 = vmatpush.bf16.msra.mxu0 %v4776
    %6724 = vmatpush.bf16.msra.mxu0 %v4768
    %6725 = vmatmul.bf16.gmra.mxu0 %v1284
    %v6726 = vpop.f32.mrf.mxu0
    %v6727 = vadd.f32 %v6714, %v6726
    %v6728 = vpop.f32.mrf.mxu0
    %6729 = vdwg.mxu0
    %6730 = vmatpush.bf16.msra.mxu0 %v4888
    %6731 = vmatpush.bf16.msra.mxu0 %v4880
    %6732 = vmatpush.bf16.msra.mxu0 %v4872
    %6733 = vmatpush.bf16.msra.mxu0 %v4864
    %6734 = vmatpush.bf16.msra.mxu0 %v4856
    %6735 = vmatpush.bf16.msra.mxu0 %v4848
    %6736 = vmatpush.bf16.msra.mxu0 %v4840
    %6737 = vmatpush.bf16.msra.mxu0 %v4832
    %6738 = vmatmul.bf16.gmra.mxu0 %v1285
    %v6739 = vpop.f32.mrf.mxu0
    %v6740 = vadd.f32 %v6727, %v6739
    %v6741 = vpop.f32.mrf.mxu0
    %6742 = vdwg.mxu0
    %6743 = vmatpush.bf16.msra.mxu0 %v4952
    %6744 = vmatpush.bf16.msra.mxu0 %v4944
    %6745 = vmatpush.bf16.msra.mxu0 %v4936
    %6746 = vmatpush.bf16.msra.mxu0 %v4928
    %6747 = vmatpush.bf16.msra.mxu0 %v4920
    %6748 = vmatpush.bf16.msra.mxu0 %v4912
    %6749 = vmatpush.bf16.msra.mxu0 %v4904
    %6750 = vmatpush.bf16.msra.mxu0 %v4896
    %6751 = vmatmul.bf16.gmra.mxu0 %v1286
    %v6752 = vpop.f32.mrf.mxu0
    %v6753 = vadd.f32 %v6740, %v6752
    %v6754 = vpop.f32.mrf.mxu0
    %6755 = vdwg.mxu0
    %6756 = vmatpush.bf16.msra.mxu0 %v5016
    %6757 = vmatpush.bf16.msra.mxu0 %v5008
    %6758 = vmatpush.bf16.msra.mxu0 %v5000
    %6759 = vmatpush.bf16.msra.mxu0 %v4992
    %6760 = vmatpush.bf16.msra.mxu0 %v4984
    %6761 = vmatpush.bf16.msra.mxu0 %v4976
    %6762 = vmatpush.bf16.msra.mxu0 %v4968
    %6763 = vmatpush.bf16.msra.mxu0 %v4960
    %6764 = vmatmul.bf16.gmra.mxu0 %v1287
    %v6765 = vpop.f32.mrf.mxu0
    %v6766 = vadd.f32 %v6753, %v6765
    %v6767 = vpop.f32.mrf.mxu0
    %6768 = vdwg.mxu0
    %6769 = vmatpush.bf16.msra.mxu0 %v5080
    %6770 = vmatpush.bf16.msra.mxu0 %v5072
    %6771 = vmatpush.bf16.msra.mxu0 %v5064
    %6772 = vmatpush.bf16.msra.mxu0 %v5056
    %6773 = vmatpush.bf16.msra.mxu0 %v5048
    %6774 = vmatpush.bf16.msra.mxu0 %v5040
    %6775 = vmatpush.bf16.msra.mxu0 %v5032
    %6776 = vmatpush.bf16.msra.mxu0 %v5024
    %6777 = vmatmul.bf16.gmra.mxu0 %v1288
    %v6778 = vpop.f32.mrf.mxu0
    %v6779 = vadd.f32 %v6766, %v6778
    %v6780 = vpop.f32.mrf.mxu0
    %6781 = vdwg.mxu0
    %6782 = vmatpush.bf16.msra.mxu0 %v5144
    %6783 = vmatpush.bf16.msra.mxu0 %v5136
    %6784 = vmatpush.bf16.msra.mxu0 %v5128
    %6785 = vmatpush.bf16.msra.mxu0 %v5120
    %6786 = vmatpush.bf16.msra.mxu0 %v5112
    %6787 = vmatpush.bf16.msra.mxu0 %v5104
    %6788 = vmatpush.bf16.msra.mxu0 %v5096
    %6789 = vmatpush.bf16.msra.mxu0 %v5088
    %6790 = vmatmul.bf16.gmra.mxu0 %v1289
    %v6791 = vpop.f32.mrf.mxu0
    %v6792 = vadd.f32 %v6779, %v6791
    %v6793 = vpop.f32.mrf.mxu0
    %6794 = vdwg.mxu0
    %6795 = vmatpush.bf16.msra.mxu0 %v5208
    %6796 = vmatpush.bf16.msra.mxu0 %v5200
    %6797 = vmatpush.bf16.msra.mxu0 %v5192
    %6798 = vmatpush.bf16.msra.mxu0 %v5184
    %6799 = vmatpush.bf16.msra.mxu0 %v5176
    %6800 = vmatpush.bf16.msra.mxu0 %v5168
    %6801 = vmatpush.bf16.msra.mxu0 %v5160
    %6802 = vmatpush.bf16.msra.mxu0 %v5152
    %6803 = vmatmul.bf16.gmra.mxu0 %v1290
    %v6804 = vpop.f32.mrf.mxu0
    %v6805 = vadd.f32 %v6792, %v6804
    %v6806 = vpop.f32.mrf.mxu0
    %6807 = vdwg.mxu0
    %6808 = vmatpush.bf16.msra.mxu0 %v5272
    %6809 = vmatpush.bf16.msra.mxu0 %v5264
    %6810 = vmatpush.bf16.msra.mxu0 %v5256
    %6811 = vmatpush.bf16.msra.mxu0 %v5248
    %6812 = vmatpush.bf16.msra.mxu0 %v5240
    %6813 = vmatpush.bf16.msra.mxu0 %v5232
    %6814 = vmatpush.bf16.msra.mxu0 %v5224
    %6815 = vmatpush.bf16.msra.mxu0 %v5216
    %6816 = vmatmul.bf16.gmra.mxu0 %v1291
    %v6817 = vpop.f32.mrf.mxu0
    %v6818 = vadd.f32 %v6805, %v6817
    %v6819 = vpop.f32.mrf.mxu0
    %6820 = vdwg.mxu0
    %6821 = vmatpush.bf16.msra.mxu0 %v5336
    %6822 = vmatpush.bf16.msra.mxu0 %v5328
    %6823 = vmatpush.bf16.msra.mxu0 %v5320
    %6824 = vmatpush.bf16.msra.mxu0 %v5312
    %6825 = vmatpush.bf16.msra.mxu0 %v5304
    %6826 = vmatpush.bf16.msra.mxu0 %v5296
    %6827 = vmatpush.bf16.msra.mxu0 %v5288
    %6828 = vmatpush.bf16.msra.mxu0 %v5280
    %6829 = vmatmul.bf16.gmra.mxu0 %v1292
    %v6830 = vpop.f32.mrf.mxu0
    %v6831 = vadd.f32 %v6818, %v6830
    %v6832 = vpop.f32.mrf.mxu0
    %6833 = vdwg.mxu0
    %6834 = vmatpush.bf16.msra.mxu0 %v5400
    %6835 = vmatpush.bf16.msra.mxu0 %v5392
    %6836 = vmatpush.bf16.msra.mxu0 %v5384
    %6837 = vmatpush.bf16.msra.mxu0 %v5376
    %6838 = vmatpush.bf16.msra.mxu0 %v5368
    %6839 = vmatpush.bf16.msra.mxu0 %v5360
    %6840 = vmatpush.bf16.msra.mxu0 %v5352
    %6841 = vmatpush.bf16.msra.mxu0 %v5344
    %6842 = vmatmul.bf16.gmra.mxu0 %v1293
    %v6843 = vpop.f32.mrf.mxu0
    %v6844 = vadd.f32 %v6831, %v6843
    %v6845 = vpop.f32.mrf.mxu0
    %6846 = vdwg.mxu0
    %6847 = vmatpush.bf16.msra.mxu0 %v4441
    %6848 = vmatpush.bf16.msra.mxu0 %v4433
    %6849 = vmatpush.bf16.msra.mxu0 %v4425
    %6850 = vmatpush.bf16.msra.mxu0 %v4417
    %6851 = vmatpush.bf16.msra.mxu0 %v4409
    %6852 = vmatpush.bf16.msra.mxu0 %v4401
    %6853 = vmatpush.bf16.msra.mxu0 %v4393
    %6854 = vmatpush.bf16.msra.mxu0 %v4385
    %6855 = vmatmul.bf16.gmra.mxu0 %v1278
    %v6856 = vpop.f32.mrf.mxu0
    %v6857 = vadd.f32 %v1297, %v6856
    %v6858 = vpop.f32.mrf.mxu0
    %6859 = vdwg.mxu0
    %6860 = vmatpush.bf16.msra.mxu0 %v4505
    %6861 = vmatpush.bf16.msra.mxu0 %v4497
    %6862 = vmatpush.bf16.msra.mxu0 %v4489
    %6863 = vmatpush.bf16.msra.mxu0 %v4481
    %6864 = vmatpush.bf16.msra.mxu0 %v4473
    %6865 = vmatpush.bf16.msra.mxu0 %v4465
    %6866 = vmatpush.bf16.msra.mxu0 %v4457
    %6867 = vmatpush.bf16.msra.mxu0 %v4449
    %6868 = vmatmul.bf16.gmra.mxu0 %v1279
    %v6869 = vpop.f32.mrf.mxu0
    %v6870 = vadd.f32 %v6857, %v6869
    %v6871 = vpop.f32.mrf.mxu0
    %6872 = vdwg.mxu0
    %6873 = vmatpush.bf16.msra.mxu0 %v4569
    %6874 = vmatpush.bf16.msra.mxu0 %v4561
    %6875 = vmatpush.bf16.msra.mxu0 %v4553
    %6876 = vmatpush.bf16.msra.mxu0 %v4545
    %6877 = vmatpush.bf16.msra.mxu0 %v4537
    %6878 = vmatpush.bf16.msra.mxu0 %v4529
    %6879 = vmatpush.bf16.msra.mxu0 %v4521
    %6880 = vmatpush.bf16.msra.mxu0 %v4513
    %6881 = vmatmul.bf16.gmra.mxu0 %v1280
    %v6882 = vpop.f32.mrf.mxu0
    %v6883 = vadd.f32 %v6870, %v6882
    %v6884 = vpop.f32.mrf.mxu0
    %6885 = vdwg.mxu0
    %6886 = vmatpush.bf16.msra.mxu0 %v4633
    %6887 = vmatpush.bf16.msra.mxu0 %v4625
    %6888 = vmatpush.bf16.msra.mxu0 %v4617
    %6889 = vmatpush.bf16.msra.mxu0 %v4609
    %6890 = vmatpush.bf16.msra.mxu0 %v4601
    %6891 = vmatpush.bf16.msra.mxu0 %v4593
    %6892 = vmatpush.bf16.msra.mxu0 %v4585
    %6893 = vmatpush.bf16.msra.mxu0 %v4577
    %6894 = vmatmul.bf16.gmra.mxu0 %v1281
    %v6895 = vpop.f32.mrf.mxu0
    %v6896 = vadd.f32 %v6883, %v6895
    %v6897 = vpop.f32.mrf.mxu0
    %6898 = vdwg.mxu0
    %6899 = vmatpush.bf16.msra.mxu0 %v4697
    %6900 = vmatpush.bf16.msra.mxu0 %v4689
    %6901 = vmatpush.bf16.msra.mxu0 %v4681
    %6902 = vmatpush.bf16.msra.mxu0 %v4673
    %6903 = vmatpush.bf16.msra.mxu0 %v4665
    %6904 = vmatpush.bf16.msra.mxu0 %v4657
    %6905 = vmatpush.bf16.msra.mxu0 %v4649
    %6906 = vmatpush.bf16.msra.mxu0 %v4641
    %6907 = vmatmul.bf16.gmra.mxu0 %v1282
    %v6908 = vpop.f32.mrf.mxu0
    %v6909 = vadd.f32 %v6896, %v6908
    %v6910 = vpop.f32.mrf.mxu0
    %6911 = vdwg.mxu0
    %6912 = vmatpush.bf16.msra.mxu0 %v4761
    %6913 = vmatpush.bf16.msra.mxu0 %v4753
    %6914 = vmatpush.bf16.msra.mxu0 %v4745
    %6915 = vmatpush.bf16.msra.mxu0 %v4737
    %6916 = vmatpush.bf16.msra.mxu0 %v4729
    %6917 = vmatpush.bf16.msra.mxu0 %v4721
    %6918 = vmatpush.bf16.msra.mxu0 %v4713
    %6919 = vmatpush.bf16.msra.mxu0 %v4705
    %6920 = vmatmul.bf16.gmra.mxu0 %v1283
    %v6921 = vpop.f32.mrf.mxu0
    %v6922 = vadd.f32 %v6909, %v6921
    %v6923 = vpop.f32.mrf.mxu0
    %6924 = vdwg.mxu0
    %6925 = vmatpush.bf16.msra.mxu0 %v4825
    %6926 = vmatpush.bf16.msra.mxu0 %v4817
    %6927 = vmatpush.bf16.msra.mxu0 %v4809
    %6928 = vmatpush.bf16.msra.mxu0 %v4801
    %6929 = vmatpush.bf16.msra.mxu0 %v4793
    %6930 = vmatpush.bf16.msra.mxu0 %v4785
    %6931 = vmatpush.bf16.msra.mxu0 %v4777
    %6932 = vmatpush.bf16.msra.mxu0 %v4769
    %6933 = vmatmul.bf16.gmra.mxu0 %v1284
    %v6934 = vpop.f32.mrf.mxu0
    %v6935 = vadd.f32 %v6922, %v6934
    %v6936 = vpop.f32.mrf.mxu0
    %6937 = vdwg.mxu0
    %6938 = vmatpush.bf16.msra.mxu0 %v4889
    %6939 = vmatpush.bf16.msra.mxu0 %v4881
    %6940 = vmatpush.bf16.msra.mxu0 %v4873
    %6941 = vmatpush.bf16.msra.mxu0 %v4865
    %6942 = vmatpush.bf16.msra.mxu0 %v4857
    %6943 = vmatpush.bf16.msra.mxu0 %v4849
    %6944 = vmatpush.bf16.msra.mxu0 %v4841
    %6945 = vmatpush.bf16.msra.mxu0 %v4833
    %6946 = vmatmul.bf16.gmra.mxu0 %v1285
    %v6947 = vpop.f32.mrf.mxu0
    %v6948 = vadd.f32 %v6935, %v6947
    %v6949 = vpop.f32.mrf.mxu0
    %6950 = vdwg.mxu0
    %6951 = vmatpush.bf16.msra.mxu0 %v4953
    %6952 = vmatpush.bf16.msra.mxu0 %v4945
    %6953 = vmatpush.bf16.msra.mxu0 %v4937
    %6954 = vmatpush.bf16.msra.mxu0 %v4929
    %6955 = vmatpush.bf16.msra.mxu0 %v4921
    %6956 = vmatpush.bf16.msra.mxu0 %v4913
    %6957 = vmatpush.bf16.msra.mxu0 %v4905
    %6958 = vmatpush.bf16.msra.mxu0 %v4897
    %6959 = vmatmul.bf16.gmra.mxu0 %v1286
    %v6960 = vpop.f32.mrf.mxu0
    %v6961 = vadd.f32 %v6948, %v6960
    %v6962 = vpop.f32.mrf.mxu0
    %6963 = vdwg.mxu0
    %6964 = vmatpush.bf16.msra.mxu0 %v5017
    %6965 = vmatpush.bf16.msra.mxu0 %v5009
    %6966 = vmatpush.bf16.msra.mxu0 %v5001
    %6967 = vmatpush.bf16.msra.mxu0 %v4993
    %6968 = vmatpush.bf16.msra.mxu0 %v4985
    %6969 = vmatpush.bf16.msra.mxu0 %v4977
    %6970 = vmatpush.bf16.msra.mxu0 %v4969
    %6971 = vmatpush.bf16.msra.mxu0 %v4961
    %6972 = vmatmul.bf16.gmra.mxu0 %v1287
    %v6973 = vpop.f32.mrf.mxu0
    %v6974 = vadd.f32 %v6961, %v6973
    %v6975 = vpop.f32.mrf.mxu0
    %6976 = vdwg.mxu0
    %6977 = vmatpush.bf16.msra.mxu0 %v5081
    %6978 = vmatpush.bf16.msra.mxu0 %v5073
    %6979 = vmatpush.bf16.msra.mxu0 %v5065
    %6980 = vmatpush.bf16.msra.mxu0 %v5057
    %6981 = vmatpush.bf16.msra.mxu0 %v5049
    %6982 = vmatpush.bf16.msra.mxu0 %v5041
    %6983 = vmatpush.bf16.msra.mxu0 %v5033
    %6984 = vmatpush.bf16.msra.mxu0 %v5025
    %6985 = vmatmul.bf16.gmra.mxu0 %v1288
    %v6986 = vpop.f32.mrf.mxu0
    %v6987 = vadd.f32 %v6974, %v6986
    %v6988 = vpop.f32.mrf.mxu0
    %6989 = vdwg.mxu0
    %6990 = vmatpush.bf16.msra.mxu0 %v5145
    %6991 = vmatpush.bf16.msra.mxu0 %v5137
    %6992 = vmatpush.bf16.msra.mxu0 %v5129
    %6993 = vmatpush.bf16.msra.mxu0 %v5121
    %6994 = vmatpush.bf16.msra.mxu0 %v5113
    %6995 = vmatpush.bf16.msra.mxu0 %v5105
    %6996 = vmatpush.bf16.msra.mxu0 %v5097
    %6997 = vmatpush.bf16.msra.mxu0 %v5089
    %6998 = vmatmul.bf16.gmra.mxu0 %v1289
    %v6999 = vpop.f32.mrf.mxu0
    %v7000 = vadd.f32 %v6987, %v6999
    %v7001 = vpop.f32.mrf.mxu0
    %7002 = vdwg.mxu0
    %7003 = vmatpush.bf16.msra.mxu0 %v5209
    %7004 = vmatpush.bf16.msra.mxu0 %v5201
    %7005 = vmatpush.bf16.msra.mxu0 %v5193
    %7006 = vmatpush.bf16.msra.mxu0 %v5185
    %7007 = vmatpush.bf16.msra.mxu0 %v5177
    %7008 = vmatpush.bf16.msra.mxu0 %v5169
    %7009 = vmatpush.bf16.msra.mxu0 %v5161
    %7010 = vmatpush.bf16.msra.mxu0 %v5153
    %7011 = vmatmul.bf16.gmra.mxu0 %v1290
    %v7012 = vpop.f32.mrf.mxu0
    %v7013 = vadd.f32 %v7000, %v7012
    %v7014 = vpop.f32.mrf.mxu0
    %7015 = vdwg.mxu0
    %7016 = vmatpush.bf16.msra.mxu0 %v5273
    %7017 = vmatpush.bf16.msra.mxu0 %v5265
    %7018 = vmatpush.bf16.msra.mxu0 %v5257
    %7019 = vmatpush.bf16.msra.mxu0 %v5249
    %7020 = vmatpush.bf16.msra.mxu0 %v5241
    %7021 = vmatpush.bf16.msra.mxu0 %v5233
    %7022 = vmatpush.bf16.msra.mxu0 %v5225
    %7023 = vmatpush.bf16.msra.mxu0 %v5217
    %7024 = vmatmul.bf16.gmra.mxu0 %v1291
    %v7025 = vpop.f32.mrf.mxu0
    %v7026 = vadd.f32 %v7013, %v7025
    %v7027 = vpop.f32.mrf.mxu0
    %7028 = vdwg.mxu0
    %7029 = vmatpush.bf16.msra.mxu0 %v5337
    %7030 = vmatpush.bf16.msra.mxu0 %v5329
    %7031 = vmatpush.bf16.msra.mxu0 %v5321
    %7032 = vmatpush.bf16.msra.mxu0 %v5313
    %7033 = vmatpush.bf16.msra.mxu0 %v5305
    %7034 = vmatpush.bf16.msra.mxu0 %v5297
    %7035 = vmatpush.bf16.msra.mxu0 %v5289
    %7036 = vmatpush.bf16.msra.mxu0 %v5281
    %7037 = vmatmul.bf16.gmra.mxu0 %v1292
    %v7038 = vpop.f32.mrf.mxu0
    %v7039 = vadd.f32 %v7026, %v7038
    %v7040 = vpop.f32.mrf.mxu0
    %7041 = vdwg.mxu0
    %7042 = vmatpush.bf16.msra.mxu0 %v5401
    %7043 = vmatpush.bf16.msra.mxu0 %v5393
    %7044 = vmatpush.bf16.msra.mxu0 %v5385
    %7045 = vmatpush.bf16.msra.mxu0 %v5377
    %7046 = vmatpush.bf16.msra.mxu0 %v5369
    %7047 = vmatpush.bf16.msra.mxu0 %v5361
    %7048 = vmatpush.bf16.msra.mxu0 %v5353
    %7049 = vmatpush.bf16.msra.mxu0 %v5345
    %7050 = vmatmul.bf16.gmra.mxu0 %v1293
    %v7051 = vpop.f32.mrf.mxu0
    %v7052 = vadd.f32 %v7039, %v7051
    %v7053 = vpop.f32.mrf.mxu0
    %7054 = vdwg.mxu0
    %7055 = vmatpush.bf16.msra.mxu0 %v4442
    %7056 = vmatpush.bf16.msra.mxu0 %v4434
    %7057 = vmatpush.bf16.msra.mxu0 %v4426
    %7058 = vmatpush.bf16.msra.mxu0 %v4418
    %7059 = vmatpush.bf16.msra.mxu0 %v4410
    %7060 = vmatpush.bf16.msra.mxu0 %v4402
    %7061 = vmatpush.bf16.msra.mxu0 %v4394
    %7062 = vmatpush.bf16.msra.mxu0 %v4386
    %7063 = vmatmul.bf16.gmra.mxu0 %v1278
    %v7064 = vpop.f32.mrf.mxu0
    %v7065 = vadd.f32 %v1298, %v7064
    %v7066 = vpop.f32.mrf.mxu0
    %7067 = vdwg.mxu0
    %7068 = vmatpush.bf16.msra.mxu0 %v4506
    %7069 = vmatpush.bf16.msra.mxu0 %v4498
    %7070 = vmatpush.bf16.msra.mxu0 %v4490
    %7071 = vmatpush.bf16.msra.mxu0 %v4482
    %7072 = vmatpush.bf16.msra.mxu0 %v4474
    %7073 = vmatpush.bf16.msra.mxu0 %v4466
    %7074 = vmatpush.bf16.msra.mxu0 %v4458
    %7075 = vmatpush.bf16.msra.mxu0 %v4450
    %7076 = vmatmul.bf16.gmra.mxu0 %v1279
    %v7077 = vpop.f32.mrf.mxu0
    %v7078 = vadd.f32 %v7065, %v7077
    %v7079 = vpop.f32.mrf.mxu0
    %7080 = vdwg.mxu0
    %7081 = vmatpush.bf16.msra.mxu0 %v4570
    %7082 = vmatpush.bf16.msra.mxu0 %v4562
    %7083 = vmatpush.bf16.msra.mxu0 %v4554
    %7084 = vmatpush.bf16.msra.mxu0 %v4546
    %7085 = vmatpush.bf16.msra.mxu0 %v4538
    %7086 = vmatpush.bf16.msra.mxu0 %v4530
    %7087 = vmatpush.bf16.msra.mxu0 %v4522
    %7088 = vmatpush.bf16.msra.mxu0 %v4514
    %7089 = vmatmul.bf16.gmra.mxu0 %v1280
    %v7090 = vpop.f32.mrf.mxu0
    %v7091 = vadd.f32 %v7078, %v7090
    %v7092 = vpop.f32.mrf.mxu0
    %7093 = vdwg.mxu0
    %7094 = vmatpush.bf16.msra.mxu0 %v4634
    %7095 = vmatpush.bf16.msra.mxu0 %v4626
    %7096 = vmatpush.bf16.msra.mxu0 %v4618
    %7097 = vmatpush.bf16.msra.mxu0 %v4610
    %7098 = vmatpush.bf16.msra.mxu0 %v4602
    %7099 = vmatpush.bf16.msra.mxu0 %v4594
    %7100 = vmatpush.bf16.msra.mxu0 %v4586
    %7101 = vmatpush.bf16.msra.mxu0 %v4578
    %7102 = vmatmul.bf16.gmra.mxu0 %v1281
    %v7103 = vpop.f32.mrf.mxu0
    %v7104 = vadd.f32 %v7091, %v7103
    %v7105 = vpop.f32.mrf.mxu0
    %7106 = vdwg.mxu0
    %7107 = vmatpush.bf16.msra.mxu0 %v4698
    %7108 = vmatpush.bf16.msra.mxu0 %v4690
    %7109 = vmatpush.bf16.msra.mxu0 %v4682
    %7110 = vmatpush.bf16.msra.mxu0 %v4674
    %7111 = vmatpush.bf16.msra.mxu0 %v4666
    %7112 = vmatpush.bf16.msra.mxu0 %v4658
    %7113 = vmatpush.bf16.msra.mxu0 %v4650
    %7114 = vmatpush.bf16.msra.mxu0 %v4642
    %7115 = vmatmul.bf16.gmra.mxu0 %v1282
    %v7116 = vpop.f32.mrf.mxu0
    %v7117 = vadd.f32 %v7104, %v7116
    %v7118 = vpop.f32.mrf.mxu0
    %7119 = vdwg.mxu0
    %7120 = vmatpush.bf16.msra.mxu0 %v4762
    %7121 = vmatpush.bf16.msra.mxu0 %v4754
    %7122 = vmatpush.bf16.msra.mxu0 %v4746
    %7123 = vmatpush.bf16.msra.mxu0 %v4738
    %7124 = vmatpush.bf16.msra.mxu0 %v4730
    %7125 = vmatpush.bf16.msra.mxu0 %v4722
    %7126 = vmatpush.bf16.msra.mxu0 %v4714
    %7127 = vmatpush.bf16.msra.mxu0 %v4706
    %7128 = vmatmul.bf16.gmra.mxu0 %v1283
    %v7129 = vpop.f32.mrf.mxu0
    %v7130 = vadd.f32 %v7117, %v7129
    %v7131 = vpop.f32.mrf.mxu0
    %7132 = vdwg.mxu0
    %7133 = vmatpush.bf16.msra.mxu0 %v4826
    %7134 = vmatpush.bf16.msra.mxu0 %v4818
    %7135 = vmatpush.bf16.msra.mxu0 %v4810
    %7136 = vmatpush.bf16.msra.mxu0 %v4802
    %7137 = vmatpush.bf16.msra.mxu0 %v4794
    %7138 = vmatpush.bf16.msra.mxu0 %v4786
    %7139 = vmatpush.bf16.msra.mxu0 %v4778
    %7140 = vmatpush.bf16.msra.mxu0 %v4770
    %7141 = vmatmul.bf16.gmra.mxu0 %v1284
    %v7142 = vpop.f32.mrf.mxu0
    %v7143 = vadd.f32 %v7130, %v7142
    %v7144 = vpop.f32.mrf.mxu0
    %7145 = vdwg.mxu0
    %7146 = vmatpush.bf16.msra.mxu0 %v4890
    %7147 = vmatpush.bf16.msra.mxu0 %v4882
    %7148 = vmatpush.bf16.msra.mxu0 %v4874
    %7149 = vmatpush.bf16.msra.mxu0 %v4866
    %7150 = vmatpush.bf16.msra.mxu0 %v4858
    %7151 = vmatpush.bf16.msra.mxu0 %v4850
    %7152 = vmatpush.bf16.msra.mxu0 %v4842
    %7153 = vmatpush.bf16.msra.mxu0 %v4834
    %7154 = vmatmul.bf16.gmra.mxu0 %v1285
    %v7155 = vpop.f32.mrf.mxu0
    %v7156 = vadd.f32 %v7143, %v7155
    %v7157 = vpop.f32.mrf.mxu0
    %7158 = vdwg.mxu0
    %7159 = vmatpush.bf16.msra.mxu0 %v4954
    %7160 = vmatpush.bf16.msra.mxu0 %v4946
    %7161 = vmatpush.bf16.msra.mxu0 %v4938
    %7162 = vmatpush.bf16.msra.mxu0 %v4930
    %7163 = vmatpush.bf16.msra.mxu0 %v4922
    %7164 = vmatpush.bf16.msra.mxu0 %v4914
    %7165 = vmatpush.bf16.msra.mxu0 %v4906
    %7166 = vmatpush.bf16.msra.mxu0 %v4898
    %7167 = vmatmul.bf16.gmra.mxu0 %v1286
    %v7168 = vpop.f32.mrf.mxu0
    %v7169 = vadd.f32 %v7156, %v7168
    %v7170 = vpop.f32.mrf.mxu0
    %7171 = vdwg.mxu0
    %7172 = vmatpush.bf16.msra.mxu0 %v5018
    %7173 = vmatpush.bf16.msra.mxu0 %v5010
    %7174 = vmatpush.bf16.msra.mxu0 %v5002
    %7175 = vmatpush.bf16.msra.mxu0 %v4994
    %7176 = vmatpush.bf16.msra.mxu0 %v4986
    %7177 = vmatpush.bf16.msra.mxu0 %v4978
    %7178 = vmatpush.bf16.msra.mxu0 %v4970
    %7179 = vmatpush.bf16.msra.mxu0 %v4962
    %7180 = vmatmul.bf16.gmra.mxu0 %v1287
    %v7181 = vpop.f32.mrf.mxu0
    %v7182 = vadd.f32 %v7169, %v7181
    %v7183 = vpop.f32.mrf.mxu0
    %7184 = vdwg.mxu0
    %7185 = vmatpush.bf16.msra.mxu0 %v5082
    %7186 = vmatpush.bf16.msra.mxu0 %v5074
    %7187 = vmatpush.bf16.msra.mxu0 %v5066
    %7188 = vmatpush.bf16.msra.mxu0 %v5058
    %7189 = vmatpush.bf16.msra.mxu0 %v5050
    %7190 = vmatpush.bf16.msra.mxu0 %v5042
    %7191 = vmatpush.bf16.msra.mxu0 %v5034
    %7192 = vmatpush.bf16.msra.mxu0 %v5026
    %7193 = vmatmul.bf16.gmra.mxu0 %v1288
    %v7194 = vpop.f32.mrf.mxu0
    %v7195 = vadd.f32 %v7182, %v7194
    %v7196 = vpop.f32.mrf.mxu0
    %7197 = vdwg.mxu0
    %7198 = vmatpush.bf16.msra.mxu0 %v5146
    %7199 = vmatpush.bf16.msra.mxu0 %v5138
    %7200 = vmatpush.bf16.msra.mxu0 %v5130
    %7201 = vmatpush.bf16.msra.mxu0 %v5122
    %7202 = vmatpush.bf16.msra.mxu0 %v5114
    %7203 = vmatpush.bf16.msra.mxu0 %v5106
    %7204 = vmatpush.bf16.msra.mxu0 %v5098
    %7205 = vmatpush.bf16.msra.mxu0 %v5090
    %7206 = vmatmul.bf16.gmra.mxu0 %v1289
    %v7207 = vpop.f32.mrf.mxu0
    %v7208 = vadd.f32 %v7195, %v7207
    %v7209 = vpop.f32.mrf.mxu0
    %7210 = vdwg.mxu0
    %7211 = vmatpush.bf16.msra.mxu0 %v5210
    %7212 = vmatpush.bf16.msra.mxu0 %v5202
    %7213 = vmatpush.bf16.msra.mxu0 %v5194
    %7214 = vmatpush.bf16.msra.mxu0 %v5186
    %7215 = vmatpush.bf16.msra.mxu0 %v5178
    %7216 = vmatpush.bf16.msra.mxu0 %v5170
    %7217 = vmatpush.bf16.msra.mxu0 %v5162
    %7218 = vmatpush.bf16.msra.mxu0 %v5154
    %7219 = vmatmul.bf16.gmra.mxu0 %v1290
    %v7220 = vpop.f32.mrf.mxu0
    %v7221 = vadd.f32 %v7208, %v7220
    %v7222 = vpop.f32.mrf.mxu0
    %7223 = vdwg.mxu0
    %7224 = vmatpush.bf16.msra.mxu0 %v5274
    %7225 = vmatpush.bf16.msra.mxu0 %v5266
    %7226 = vmatpush.bf16.msra.mxu0 %v5258
    %7227 = vmatpush.bf16.msra.mxu0 %v5250
    %7228 = vmatpush.bf16.msra.mxu0 %v5242
    %7229 = vmatpush.bf16.msra.mxu0 %v5234
    %7230 = vmatpush.bf16.msra.mxu0 %v5226
    %7231 = vmatpush.bf16.msra.mxu0 %v5218
    %7232 = vmatmul.bf16.gmra.mxu0 %v1291
    %v7233 = vpop.f32.mrf.mxu0
    %v7234 = vadd.f32 %v7221, %v7233
    %v7235 = vpop.f32.mrf.mxu0
    %7236 = vdwg.mxu0
    %7237 = vmatpush.bf16.msra.mxu0 %v5338
    %7238 = vmatpush.bf16.msra.mxu0 %v5330
    %7239 = vmatpush.bf16.msra.mxu0 %v5322
    %7240 = vmatpush.bf16.msra.mxu0 %v5314
    %7241 = vmatpush.bf16.msra.mxu0 %v5306
    %7242 = vmatpush.bf16.msra.mxu0 %v5298
    %7243 = vmatpush.bf16.msra.mxu0 %v5290
    %7244 = vmatpush.bf16.msra.mxu0 %v5282
    %7245 = vmatmul.bf16.gmra.mxu0 %v1292
    %v7246 = vpop.f32.mrf.mxu0
    %v7247 = vadd.f32 %v7234, %v7246
    %v7248 = vpop.f32.mrf.mxu0
    %7249 = vdwg.mxu0
    %7250 = vmatpush.bf16.msra.mxu0 %v5402
    %7251 = vmatpush.bf16.msra.mxu0 %v5394
    %7252 = vmatpush.bf16.msra.mxu0 %v5386
    %7253 = vmatpush.bf16.msra.mxu0 %v5378
    %7254 = vmatpush.bf16.msra.mxu0 %v5370
    %7255 = vmatpush.bf16.msra.mxu0 %v5362
    %7256 = vmatpush.bf16.msra.mxu0 %v5354
    %7257 = vmatpush.bf16.msra.mxu0 %v5346
    %7258 = vmatmul.bf16.gmra.mxu0 %v1293
    %v7259 = vpop.f32.mrf.mxu0
    %v7260 = vadd.f32 %v7247, %v7259
    %v7261 = vpop.f32.mrf.mxu0
    %7262 = vdwg.mxu0
    %7263 = vmatpush.bf16.msra.mxu0 %v4443
    %7264 = vmatpush.bf16.msra.mxu0 %v4435
    %7265 = vmatpush.bf16.msra.mxu0 %v4427
    %7266 = vmatpush.bf16.msra.mxu0 %v4419
    %7267 = vmatpush.bf16.msra.mxu0 %v4411
    %7268 = vmatpush.bf16.msra.mxu0 %v4403
    %7269 = vmatpush.bf16.msra.mxu0 %v4395
    %7270 = vmatpush.bf16.msra.mxu0 %v4387
    %7271 = vmatmul.bf16.gmra.mxu0 %v1278
    %v7272 = vpop.f32.mrf.mxu0
    %v7273 = vadd.f32 %v1299, %v7272
    %v7274 = vpop.f32.mrf.mxu0
    %7275 = vdwg.mxu0
    %7276 = vmatpush.bf16.msra.mxu0 %v4507
    %7277 = vmatpush.bf16.msra.mxu0 %v4499
    %7278 = vmatpush.bf16.msra.mxu0 %v4491
    %7279 = vmatpush.bf16.msra.mxu0 %v4483
    %7280 = vmatpush.bf16.msra.mxu0 %v4475
    %7281 = vmatpush.bf16.msra.mxu0 %v4467
    %7282 = vmatpush.bf16.msra.mxu0 %v4459
    %7283 = vmatpush.bf16.msra.mxu0 %v4451
    %7284 = vmatmul.bf16.gmra.mxu0 %v1279
    %v7285 = vpop.f32.mrf.mxu0
    %v7286 = vadd.f32 %v7273, %v7285
    %v7287 = vpop.f32.mrf.mxu0
    %7288 = vdwg.mxu0
    %7289 = vmatpush.bf16.msra.mxu0 %v4571
    %7290 = vmatpush.bf16.msra.mxu0 %v4563
    %7291 = vmatpush.bf16.msra.mxu0 %v4555
    %7292 = vmatpush.bf16.msra.mxu0 %v4547
    %7293 = vmatpush.bf16.msra.mxu0 %v4539
    %7294 = vmatpush.bf16.msra.mxu0 %v4531
    %7295 = vmatpush.bf16.msra.mxu0 %v4523
    %7296 = vmatpush.bf16.msra.mxu0 %v4515
    %7297 = vmatmul.bf16.gmra.mxu0 %v1280
    %v7298 = vpop.f32.mrf.mxu0
    %v7299 = vadd.f32 %v7286, %v7298
    %v7300 = vpop.f32.mrf.mxu0
    %7301 = vdwg.mxu0
    %7302 = vmatpush.bf16.msra.mxu0 %v4635
    %7303 = vmatpush.bf16.msra.mxu0 %v4627
    %7304 = vmatpush.bf16.msra.mxu0 %v4619
    %7305 = vmatpush.bf16.msra.mxu0 %v4611
    %7306 = vmatpush.bf16.msra.mxu0 %v4603
    %7307 = vmatpush.bf16.msra.mxu0 %v4595
    %7308 = vmatpush.bf16.msra.mxu0 %v4587
    %7309 = vmatpush.bf16.msra.mxu0 %v4579
    %7310 = vmatmul.bf16.gmra.mxu0 %v1281
    %v7311 = vpop.f32.mrf.mxu0
    %v7312 = vadd.f32 %v7299, %v7311
    %v7313 = vpop.f32.mrf.mxu0
    %7314 = vdwg.mxu0
    %7315 = vmatpush.bf16.msra.mxu0 %v4699
    %7316 = vmatpush.bf16.msra.mxu0 %v4691
    %7317 = vmatpush.bf16.msra.mxu0 %v4683
    %7318 = vmatpush.bf16.msra.mxu0 %v4675
    %7319 = vmatpush.bf16.msra.mxu0 %v4667
    %7320 = vmatpush.bf16.msra.mxu0 %v4659
    %7321 = vmatpush.bf16.msra.mxu0 %v4651
    %7322 = vmatpush.bf16.msra.mxu0 %v4643
    %7323 = vmatmul.bf16.gmra.mxu0 %v1282
    %v7324 = vpop.f32.mrf.mxu0
    %v7325 = vadd.f32 %v7312, %v7324
    %v7326 = vpop.f32.mrf.mxu0
    %7327 = vdwg.mxu0
    %7328 = vmatpush.bf16.msra.mxu0 %v4763
    %7329 = vmatpush.bf16.msra.mxu0 %v4755
    %7330 = vmatpush.bf16.msra.mxu0 %v4747
    %7331 = vmatpush.bf16.msra.mxu0 %v4739
    %7332 = vmatpush.bf16.msra.mxu0 %v4731
    %7333 = vmatpush.bf16.msra.mxu0 %v4723
    %7334 = vmatpush.bf16.msra.mxu0 %v4715
    %7335 = vmatpush.bf16.msra.mxu0 %v4707
    %7336 = vmatmul.bf16.gmra.mxu0 %v1283
    %v7337 = vpop.f32.mrf.mxu0
    %v7338 = vadd.f32 %v7325, %v7337
    %v7339 = vpop.f32.mrf.mxu0
    %7340 = vdwg.mxu0
    %7341 = vmatpush.bf16.msra.mxu0 %v4827
    %7342 = vmatpush.bf16.msra.mxu0 %v4819
    %7343 = vmatpush.bf16.msra.mxu0 %v4811
    %7344 = vmatpush.bf16.msra.mxu0 %v4803
    %7345 = vmatpush.bf16.msra.mxu0 %v4795
    %7346 = vmatpush.bf16.msra.mxu0 %v4787
    %7347 = vmatpush.bf16.msra.mxu0 %v4779
    %7348 = vmatpush.bf16.msra.mxu0 %v4771
    %7349 = vmatmul.bf16.gmra.mxu0 %v1284
    %v7350 = vpop.f32.mrf.mxu0
    %v7351 = vadd.f32 %v7338, %v7350
    %v7352 = vpop.f32.mrf.mxu0
    %7353 = vdwg.mxu0
    %7354 = vmatpush.bf16.msra.mxu0 %v4891
    %7355 = vmatpush.bf16.msra.mxu0 %v4883
    %7356 = vmatpush.bf16.msra.mxu0 %v4875
    %7357 = vmatpush.bf16.msra.mxu0 %v4867
    %7358 = vmatpush.bf16.msra.mxu0 %v4859
    %7359 = vmatpush.bf16.msra.mxu0 %v4851
    %7360 = vmatpush.bf16.msra.mxu0 %v4843
    %7361 = vmatpush.bf16.msra.mxu0 %v4835
    %7362 = vmatmul.bf16.gmra.mxu0 %v1285
    %v7363 = vpop.f32.mrf.mxu0
    %v7364 = vadd.f32 %v7351, %v7363
    %v7365 = vpop.f32.mrf.mxu0
    %7366 = vdwg.mxu0
    %7367 = vmatpush.bf16.msra.mxu0 %v4955
    %7368 = vmatpush.bf16.msra.mxu0 %v4947
    %7369 = vmatpush.bf16.msra.mxu0 %v4939
    %7370 = vmatpush.bf16.msra.mxu0 %v4931
    %7371 = vmatpush.bf16.msra.mxu0 %v4923
    %7372 = vmatpush.bf16.msra.mxu0 %v4915
    %7373 = vmatpush.bf16.msra.mxu0 %v4907
    %7374 = vmatpush.bf16.msra.mxu0 %v4899
    %7375 = vmatmul.bf16.gmra.mxu0 %v1286
    %v7376 = vpop.f32.mrf.mxu0
    %v7377 = vadd.f32 %v7364, %v7376
    %v7378 = vpop.f32.mrf.mxu0
    %7379 = vdwg.mxu0
    %7380 = vmatpush.bf16.msra.mxu0 %v5019
    %7381 = vmatpush.bf16.msra.mxu0 %v5011
    %7382 = vmatpush.bf16.msra.mxu0 %v5003
    %7383 = vmatpush.bf16.msra.mxu0 %v4995
    %7384 = vmatpush.bf16.msra.mxu0 %v4987
    %7385 = vmatpush.bf16.msra.mxu0 %v4979
    %7386 = vmatpush.bf16.msra.mxu0 %v4971
    %7387 = vmatpush.bf16.msra.mxu0 %v4963
    %7388 = vmatmul.bf16.gmra.mxu0 %v1287
    %v7389 = vpop.f32.mrf.mxu0
    %v7390 = vadd.f32 %v7377, %v7389
    %v7391 = vpop.f32.mrf.mxu0
    %7392 = vdwg.mxu0
    %7393 = vmatpush.bf16.msra.mxu0 %v5083
    %7394 = vmatpush.bf16.msra.mxu0 %v5075
    %7395 = vmatpush.bf16.msra.mxu0 %v5067
    %7396 = vmatpush.bf16.msra.mxu0 %v5059
    %7397 = vmatpush.bf16.msra.mxu0 %v5051
    %7398 = vmatpush.bf16.msra.mxu0 %v5043
    %7399 = vmatpush.bf16.msra.mxu0 %v5035
    %7400 = vmatpush.bf16.msra.mxu0 %v5027
    %7401 = vmatmul.bf16.gmra.mxu0 %v1288
    %v7402 = vpop.f32.mrf.mxu0
    %v7403 = vadd.f32 %v7390, %v7402
    %v7404 = vpop.f32.mrf.mxu0
    %7405 = vdwg.mxu0
    %7406 = vmatpush.bf16.msra.mxu0 %v5147
    %7407 = vmatpush.bf16.msra.mxu0 %v5139
    %7408 = vmatpush.bf16.msra.mxu0 %v5131
    %7409 = vmatpush.bf16.msra.mxu0 %v5123
    %7410 = vmatpush.bf16.msra.mxu0 %v5115
    %7411 = vmatpush.bf16.msra.mxu0 %v5107
    %7412 = vmatpush.bf16.msra.mxu0 %v5099
    %7413 = vmatpush.bf16.msra.mxu0 %v5091
    %7414 = vmatmul.bf16.gmra.mxu0 %v1289
    %v7415 = vpop.f32.mrf.mxu0
    %v7416 = vadd.f32 %v7403, %v7415
    %v7417 = vpop.f32.mrf.mxu0
    %7418 = vdwg.mxu0
    %7419 = vmatpush.bf16.msra.mxu0 %v5211
    %7420 = vmatpush.bf16.msra.mxu0 %v5203
    %7421 = vmatpush.bf16.msra.mxu0 %v5195
    %7422 = vmatpush.bf16.msra.mxu0 %v5187
    %7423 = vmatpush.bf16.msra.mxu0 %v5179
    %7424 = vmatpush.bf16.msra.mxu0 %v5171
    %7425 = vmatpush.bf16.msra.mxu0 %v5163
    %7426 = vmatpush.bf16.msra.mxu0 %v5155
    %7427 = vmatmul.bf16.gmra.mxu0 %v1290
    %v7428 = vpop.f32.mrf.mxu0
    %v7429 = vadd.f32 %v7416, %v7428
    %v7430 = vpop.f32.mrf.mxu0
    %7431 = vdwg.mxu0
    %7432 = vmatpush.bf16.msra.mxu0 %v5275
    %7433 = vmatpush.bf16.msra.mxu0 %v5267
    %7434 = vmatpush.bf16.msra.mxu0 %v5259
    %7435 = vmatpush.bf16.msra.mxu0 %v5251
    %7436 = vmatpush.bf16.msra.mxu0 %v5243
    %7437 = vmatpush.bf16.msra.mxu0 %v5235
    %7438 = vmatpush.bf16.msra.mxu0 %v5227
    %7439 = vmatpush.bf16.msra.mxu0 %v5219
    %7440 = vmatmul.bf16.gmra.mxu0 %v1291
    %v7441 = vpop.f32.mrf.mxu0
    %v7442 = vadd.f32 %v7429, %v7441
    %v7443 = vpop.f32.mrf.mxu0
    %7444 = vdwg.mxu0
    %7445 = vmatpush.bf16.msra.mxu0 %v5339
    %7446 = vmatpush.bf16.msra.mxu0 %v5331
    %7447 = vmatpush.bf16.msra.mxu0 %v5323
    %7448 = vmatpush.bf16.msra.mxu0 %v5315
    %7449 = vmatpush.bf16.msra.mxu0 %v5307
    %7450 = vmatpush.bf16.msra.mxu0 %v5299
    %7451 = vmatpush.bf16.msra.mxu0 %v5291
    %7452 = vmatpush.bf16.msra.mxu0 %v5283
    %7453 = vmatmul.bf16.gmra.mxu0 %v1292
    %v7454 = vpop.f32.mrf.mxu0
    %v7455 = vadd.f32 %v7442, %v7454
    %v7456 = vpop.f32.mrf.mxu0
    %7457 = vdwg.mxu0
    %7458 = vmatpush.bf16.msra.mxu0 %v5403
    %7459 = vmatpush.bf16.msra.mxu0 %v5395
    %7460 = vmatpush.bf16.msra.mxu0 %v5387
    %7461 = vmatpush.bf16.msra.mxu0 %v5379
    %7462 = vmatpush.bf16.msra.mxu0 %v5371
    %7463 = vmatpush.bf16.msra.mxu0 %v5363
    %7464 = vmatpush.bf16.msra.mxu0 %v5355
    %7465 = vmatpush.bf16.msra.mxu0 %v5347
    %7466 = vmatmul.bf16.gmra.mxu0 %v1293
    %v7467 = vpop.f32.mrf.mxu0
    %v7468 = vadd.f32 %v7455, %v7467
    %v7469 = vpop.f32.mrf.mxu0
    %7470 = vdwg.mxu0
    %7471 = vmatpush.bf16.msra.mxu0 %v4444
    %7472 = vmatpush.bf16.msra.mxu0 %v4436
    %7473 = vmatpush.bf16.msra.mxu0 %v4428
    %7474 = vmatpush.bf16.msra.mxu0 %v4420
    %7475 = vmatpush.bf16.msra.mxu0 %v4412
    %7476 = vmatpush.bf16.msra.mxu0 %v4404
    %7477 = vmatpush.bf16.msra.mxu0 %v4396
    %7478 = vmatpush.bf16.msra.mxu0 %v4388
    %7479 = vmatmul.bf16.gmra.mxu0 %v1278
    %v7480 = vpop.f32.mrf.mxu0
    %v7481 = vadd.f32 %v1300, %v7480
    %v7482 = vpop.f32.mrf.mxu0
    %7483 = vdwg.mxu0
    %7484 = vmatpush.bf16.msra.mxu0 %v4508
    %7485 = vmatpush.bf16.msra.mxu0 %v4500
    %7486 = vmatpush.bf16.msra.mxu0 %v4492
    %7487 = vmatpush.bf16.msra.mxu0 %v4484
    %7488 = vmatpush.bf16.msra.mxu0 %v4476
    %7489 = vmatpush.bf16.msra.mxu0 %v4468
    %7490 = vmatpush.bf16.msra.mxu0 %v4460
    %7491 = vmatpush.bf16.msra.mxu0 %v4452
    %7492 = vmatmul.bf16.gmra.mxu0 %v1279
    %v7493 = vpop.f32.mrf.mxu0
    %v7494 = vadd.f32 %v7481, %v7493
    %v7495 = vpop.f32.mrf.mxu0
    %7496 = vdwg.mxu0
    %7497 = vmatpush.bf16.msra.mxu0 %v4572
    %7498 = vmatpush.bf16.msra.mxu0 %v4564
    %7499 = vmatpush.bf16.msra.mxu0 %v4556
    %7500 = vmatpush.bf16.msra.mxu0 %v4548
    %7501 = vmatpush.bf16.msra.mxu0 %v4540
    %7502 = vmatpush.bf16.msra.mxu0 %v4532
    %7503 = vmatpush.bf16.msra.mxu0 %v4524
    %7504 = vmatpush.bf16.msra.mxu0 %v4516
    %7505 = vmatmul.bf16.gmra.mxu0 %v1280
    %v7506 = vpop.f32.mrf.mxu0
    %v7507 = vadd.f32 %v7494, %v7506
    %v7508 = vpop.f32.mrf.mxu0
    %7509 = vdwg.mxu0
    %7510 = vmatpush.bf16.msra.mxu0 %v4636
    %7511 = vmatpush.bf16.msra.mxu0 %v4628
    %7512 = vmatpush.bf16.msra.mxu0 %v4620
    %7513 = vmatpush.bf16.msra.mxu0 %v4612
    %7514 = vmatpush.bf16.msra.mxu0 %v4604
    %7515 = vmatpush.bf16.msra.mxu0 %v4596
    %7516 = vmatpush.bf16.msra.mxu0 %v4588
    %7517 = vmatpush.bf16.msra.mxu0 %v4580
    %7518 = vmatmul.bf16.gmra.mxu0 %v1281
    %v7519 = vpop.f32.mrf.mxu0
    %v7520 = vadd.f32 %v7507, %v7519
    %v7521 = vpop.f32.mrf.mxu0
    %7522 = vdwg.mxu0
    %7523 = vmatpush.bf16.msra.mxu0 %v4700
    %7524 = vmatpush.bf16.msra.mxu0 %v4692
    %7525 = vmatpush.bf16.msra.mxu0 %v4684
    %7526 = vmatpush.bf16.msra.mxu0 %v4676
    %7527 = vmatpush.bf16.msra.mxu0 %v4668
    %7528 = vmatpush.bf16.msra.mxu0 %v4660
    %7529 = vmatpush.bf16.msra.mxu0 %v4652
    %7530 = vmatpush.bf16.msra.mxu0 %v4644
    %7531 = vmatmul.bf16.gmra.mxu0 %v1282
    %v7532 = vpop.f32.mrf.mxu0
    %v7533 = vadd.f32 %v7520, %v7532
    %v7534 = vpop.f32.mrf.mxu0
    %7535 = vdwg.mxu0
    %7536 = vmatpush.bf16.msra.mxu0 %v4764
    %7537 = vmatpush.bf16.msra.mxu0 %v4756
    %7538 = vmatpush.bf16.msra.mxu0 %v4748
    %7539 = vmatpush.bf16.msra.mxu0 %v4740
    %7540 = vmatpush.bf16.msra.mxu0 %v4732
    %7541 = vmatpush.bf16.msra.mxu0 %v4724
    %7542 = vmatpush.bf16.msra.mxu0 %v4716
    %7543 = vmatpush.bf16.msra.mxu0 %v4708
    %7544 = vmatmul.bf16.gmra.mxu0 %v1283
    %v7545 = vpop.f32.mrf.mxu0
    %v7546 = vadd.f32 %v7533, %v7545
    %v7547 = vpop.f32.mrf.mxu0
    %7548 = vdwg.mxu0
    %7549 = vmatpush.bf16.msra.mxu0 %v4828
    %7550 = vmatpush.bf16.msra.mxu0 %v4820
    %7551 = vmatpush.bf16.msra.mxu0 %v4812
    %7552 = vmatpush.bf16.msra.mxu0 %v4804
    %7553 = vmatpush.bf16.msra.mxu0 %v4796
    %7554 = vmatpush.bf16.msra.mxu0 %v4788
    %7555 = vmatpush.bf16.msra.mxu0 %v4780
    %7556 = vmatpush.bf16.msra.mxu0 %v4772
    %7557 = vmatmul.bf16.gmra.mxu0 %v1284
    %v7558 = vpop.f32.mrf.mxu0
    %v7559 = vadd.f32 %v7546, %v7558
    %v7560 = vpop.f32.mrf.mxu0
    %7561 = vdwg.mxu0
    %7562 = vmatpush.bf16.msra.mxu0 %v4892
    %7563 = vmatpush.bf16.msra.mxu0 %v4884
    %7564 = vmatpush.bf16.msra.mxu0 %v4876
    %7565 = vmatpush.bf16.msra.mxu0 %v4868
    %7566 = vmatpush.bf16.msra.mxu0 %v4860
    %7567 = vmatpush.bf16.msra.mxu0 %v4852
    %7568 = vmatpush.bf16.msra.mxu0 %v4844
    %7569 = vmatpush.bf16.msra.mxu0 %v4836
    %7570 = vmatmul.bf16.gmra.mxu0 %v1285
    %v7571 = vpop.f32.mrf.mxu0
    %v7572 = vadd.f32 %v7559, %v7571
    %v7573 = vpop.f32.mrf.mxu0
    %7574 = vdwg.mxu0
    %7575 = vmatpush.bf16.msra.mxu0 %v4956
    %7576 = vmatpush.bf16.msra.mxu0 %v4948
    %7577 = vmatpush.bf16.msra.mxu0 %v4940
    %7578 = vmatpush.bf16.msra.mxu0 %v4932
    %7579 = vmatpush.bf16.msra.mxu0 %v4924
    %7580 = vmatpush.bf16.msra.mxu0 %v4916
    %7581 = vmatpush.bf16.msra.mxu0 %v4908
    %7582 = vmatpush.bf16.msra.mxu0 %v4900
    %7583 = vmatmul.bf16.gmra.mxu0 %v1286
    %v7584 = vpop.f32.mrf.mxu0
    %v7585 = vadd.f32 %v7572, %v7584
    %v7586 = vpop.f32.mrf.mxu0
    %7587 = vdwg.mxu0
    %7588 = vmatpush.bf16.msra.mxu0 %v5020
    %7589 = vmatpush.bf16.msra.mxu0 %v5012
    %7590 = vmatpush.bf16.msra.mxu0 %v5004
    %7591 = vmatpush.bf16.msra.mxu0 %v4996
    %7592 = vmatpush.bf16.msra.mxu0 %v4988
    %7593 = vmatpush.bf16.msra.mxu0 %v4980
    %7594 = vmatpush.bf16.msra.mxu0 %v4972
    %7595 = vmatpush.bf16.msra.mxu0 %v4964
    %7596 = vmatmul.bf16.gmra.mxu0 %v1287
    %v7597 = vpop.f32.mrf.mxu0
    %v7598 = vadd.f32 %v7585, %v7597
    %v7599 = vpop.f32.mrf.mxu0
    %7600 = vdwg.mxu0
    %7601 = vmatpush.bf16.msra.mxu0 %v5084
    %7602 = vmatpush.bf16.msra.mxu0 %v5076
    %7603 = vmatpush.bf16.msra.mxu0 %v5068
    %7604 = vmatpush.bf16.msra.mxu0 %v5060
    %7605 = vmatpush.bf16.msra.mxu0 %v5052
    %7606 = vmatpush.bf16.msra.mxu0 %v5044
    %7607 = vmatpush.bf16.msra.mxu0 %v5036
    %7608 = vmatpush.bf16.msra.mxu0 %v5028
    %7609 = vmatmul.bf16.gmra.mxu0 %v1288
    %v7610 = vpop.f32.mrf.mxu0
    %v7611 = vadd.f32 %v7598, %v7610
    %v7612 = vpop.f32.mrf.mxu0
    %7613 = vdwg.mxu0
    %7614 = vmatpush.bf16.msra.mxu0 %v5148
    %7615 = vmatpush.bf16.msra.mxu0 %v5140
    %7616 = vmatpush.bf16.msra.mxu0 %v5132
    %7617 = vmatpush.bf16.msra.mxu0 %v5124
    %7618 = vmatpush.bf16.msra.mxu0 %v5116
    %7619 = vmatpush.bf16.msra.mxu0 %v5108
    %7620 = vmatpush.bf16.msra.mxu0 %v5100
    %7621 = vmatpush.bf16.msra.mxu0 %v5092
    %7622 = vmatmul.bf16.gmra.mxu0 %v1289
    %v7623 = vpop.f32.mrf.mxu0
    %v7624 = vadd.f32 %v7611, %v7623
    %v7625 = vpop.f32.mrf.mxu0
    %7626 = vdwg.mxu0
    %7627 = vmatpush.bf16.msra.mxu0 %v5212
    %7628 = vmatpush.bf16.msra.mxu0 %v5204
    %7629 = vmatpush.bf16.msra.mxu0 %v5196
    %7630 = vmatpush.bf16.msra.mxu0 %v5188
    %7631 = vmatpush.bf16.msra.mxu0 %v5180
    %7632 = vmatpush.bf16.msra.mxu0 %v5172
    %7633 = vmatpush.bf16.msra.mxu0 %v5164
    %7634 = vmatpush.bf16.msra.mxu0 %v5156
    %7635 = vmatmul.bf16.gmra.mxu0 %v1290
    %v7636 = vpop.f32.mrf.mxu0
    %v7637 = vadd.f32 %v7624, %v7636
    %v7638 = vpop.f32.mrf.mxu0
    %7639 = vdwg.mxu0
    %7640 = vmatpush.bf16.msra.mxu0 %v5276
    %7641 = vmatpush.bf16.msra.mxu0 %v5268
    %7642 = vmatpush.bf16.msra.mxu0 %v5260
    %7643 = vmatpush.bf16.msra.mxu0 %v5252
    %7644 = vmatpush.bf16.msra.mxu0 %v5244
    %7645 = vmatpush.bf16.msra.mxu0 %v5236
    %7646 = vmatpush.bf16.msra.mxu0 %v5228
    %7647 = vmatpush.bf16.msra.mxu0 %v5220
    %7648 = vmatmul.bf16.gmra.mxu0 %v1291
    %v7649 = vpop.f32.mrf.mxu0
    %v7650 = vadd.f32 %v7637, %v7649
    %v7651 = vpop.f32.mrf.mxu0
    %7652 = vdwg.mxu0
    %7653 = vmatpush.bf16.msra.mxu0 %v5340
    %7654 = vmatpush.bf16.msra.mxu0 %v5332
    %7655 = vmatpush.bf16.msra.mxu0 %v5324
    %7656 = vmatpush.bf16.msra.mxu0 %v5316
    %7657 = vmatpush.bf16.msra.mxu0 %v5308
    %7658 = vmatpush.bf16.msra.mxu0 %v5300
    %7659 = vmatpush.bf16.msra.mxu0 %v5292
    %7660 = vmatpush.bf16.msra.mxu0 %v5284
    %7661 = vmatmul.bf16.gmra.mxu0 %v1292
    %v7662 = vpop.f32.mrf.mxu0
    %v7663 = vadd.f32 %v7650, %v7662
    %v7664 = vpop.f32.mrf.mxu0
    %7665 = vdwg.mxu0
    %7666 = vmatpush.bf16.msra.mxu0 %v5404
    %7667 = vmatpush.bf16.msra.mxu0 %v5396
    %7668 = vmatpush.bf16.msra.mxu0 %v5388
    %7669 = vmatpush.bf16.msra.mxu0 %v5380
    %7670 = vmatpush.bf16.msra.mxu0 %v5372
    %7671 = vmatpush.bf16.msra.mxu0 %v5364
    %7672 = vmatpush.bf16.msra.mxu0 %v5356
    %7673 = vmatpush.bf16.msra.mxu0 %v5348
    %7674 = vmatmul.bf16.gmra.mxu0 %v1293
    %v7675 = vpop.f32.mrf.mxu0
    %v7676 = vadd.f32 %v7663, %v7675
    %v7677 = vpop.f32.mrf.mxu0
    %7678 = vdwg.mxu0
    %7679 = vmatpush.bf16.msra.mxu0 %v4445
    %7680 = vmatpush.bf16.msra.mxu0 %v4437
    %7681 = vmatpush.bf16.msra.mxu0 %v4429
    %7682 = vmatpush.bf16.msra.mxu0 %v4421
    %7683 = vmatpush.bf16.msra.mxu0 %v4413
    %7684 = vmatpush.bf16.msra.mxu0 %v4405
    %7685 = vmatpush.bf16.msra.mxu0 %v4397
    %7686 = vmatpush.bf16.msra.mxu0 %v4389
    %7687 = vmatmul.bf16.gmra.mxu0 %v1278
    %v7688 = vpop.f32.mrf.mxu0
    %v7689 = vadd.f32 %v1301, %v7688
    %v7690 = vpop.f32.mrf.mxu0
    %7691 = vdwg.mxu0
    %7692 = vmatpush.bf16.msra.mxu0 %v4509
    %7693 = vmatpush.bf16.msra.mxu0 %v4501
    %7694 = vmatpush.bf16.msra.mxu0 %v4493
    %7695 = vmatpush.bf16.msra.mxu0 %v4485
    %7696 = vmatpush.bf16.msra.mxu0 %v4477
    %7697 = vmatpush.bf16.msra.mxu0 %v4469
    %7698 = vmatpush.bf16.msra.mxu0 %v4461
    %7699 = vmatpush.bf16.msra.mxu0 %v4453
    %7700 = vmatmul.bf16.gmra.mxu0 %v1279
    %v7701 = vpop.f32.mrf.mxu0
    %v7702 = vadd.f32 %v7689, %v7701
    %v7703 = vpop.f32.mrf.mxu0
    %7704 = vdwg.mxu0
    %7705 = vmatpush.bf16.msra.mxu0 %v4573
    %7706 = vmatpush.bf16.msra.mxu0 %v4565
    %7707 = vmatpush.bf16.msra.mxu0 %v4557
    %7708 = vmatpush.bf16.msra.mxu0 %v4549
    %7709 = vmatpush.bf16.msra.mxu0 %v4541
    %7710 = vmatpush.bf16.msra.mxu0 %v4533
    %7711 = vmatpush.bf16.msra.mxu0 %v4525
    %7712 = vmatpush.bf16.msra.mxu0 %v4517
    %7713 = vmatmul.bf16.gmra.mxu0 %v1280
    %v7714 = vpop.f32.mrf.mxu0
    %v7715 = vadd.f32 %v7702, %v7714
    %v7716 = vpop.f32.mrf.mxu0
    %7717 = vdwg.mxu0
    %7718 = vmatpush.bf16.msra.mxu0 %v4637
    %7719 = vmatpush.bf16.msra.mxu0 %v4629
    %7720 = vmatpush.bf16.msra.mxu0 %v4621
    %7721 = vmatpush.bf16.msra.mxu0 %v4613
    %7722 = vmatpush.bf16.msra.mxu0 %v4605
    %7723 = vmatpush.bf16.msra.mxu0 %v4597
    %7724 = vmatpush.bf16.msra.mxu0 %v4589
    %7725 = vmatpush.bf16.msra.mxu0 %v4581
    %7726 = vmatmul.bf16.gmra.mxu0 %v1281
    %v7727 = vpop.f32.mrf.mxu0
    %v7728 = vadd.f32 %v7715, %v7727
    %v7729 = vpop.f32.mrf.mxu0
    %7730 = vdwg.mxu0
    %7731 = vmatpush.bf16.msra.mxu0 %v4701
    %7732 = vmatpush.bf16.msra.mxu0 %v4693
    %7733 = vmatpush.bf16.msra.mxu0 %v4685
    %7734 = vmatpush.bf16.msra.mxu0 %v4677
    %7735 = vmatpush.bf16.msra.mxu0 %v4669
    %7736 = vmatpush.bf16.msra.mxu0 %v4661
    %7737 = vmatpush.bf16.msra.mxu0 %v4653
    %7738 = vmatpush.bf16.msra.mxu0 %v4645
    %7739 = vmatmul.bf16.gmra.mxu0 %v1282
    %v7740 = vpop.f32.mrf.mxu0
    %v7741 = vadd.f32 %v7728, %v7740
    %v7742 = vpop.f32.mrf.mxu0
    %7743 = vdwg.mxu0
    %7744 = vmatpush.bf16.msra.mxu0 %v4765
    %7745 = vmatpush.bf16.msra.mxu0 %v4757
    %7746 = vmatpush.bf16.msra.mxu0 %v4749
    %7747 = vmatpush.bf16.msra.mxu0 %v4741
    %7748 = vmatpush.bf16.msra.mxu0 %v4733
    %7749 = vmatpush.bf16.msra.mxu0 %v4725
    %7750 = vmatpush.bf16.msra.mxu0 %v4717
    %7751 = vmatpush.bf16.msra.mxu0 %v4709
    %7752 = vmatmul.bf16.gmra.mxu0 %v1283
    %v7753 = vpop.f32.mrf.mxu0
    %v7754 = vadd.f32 %v7741, %v7753
    %v7755 = vpop.f32.mrf.mxu0
    %7756 = vdwg.mxu0
    %7757 = vmatpush.bf16.msra.mxu0 %v4829
    %7758 = vmatpush.bf16.msra.mxu0 %v4821
    %7759 = vmatpush.bf16.msra.mxu0 %v4813
    %7760 = vmatpush.bf16.msra.mxu0 %v4805
    %7761 = vmatpush.bf16.msra.mxu0 %v4797
    %7762 = vmatpush.bf16.msra.mxu0 %v4789
    %7763 = vmatpush.bf16.msra.mxu0 %v4781
    %7764 = vmatpush.bf16.msra.mxu0 %v4773
    %7765 = vmatmul.bf16.gmra.mxu0 %v1284
    %v7766 = vpop.f32.mrf.mxu0
    %v7767 = vadd.f32 %v7754, %v7766
    %v7768 = vpop.f32.mrf.mxu0
    %7769 = vdwg.mxu0
    %7770 = vmatpush.bf16.msra.mxu0 %v4893
    %7771 = vmatpush.bf16.msra.mxu0 %v4885
    %7772 = vmatpush.bf16.msra.mxu0 %v4877
    %7773 = vmatpush.bf16.msra.mxu0 %v4869
    %7774 = vmatpush.bf16.msra.mxu0 %v4861
    %7775 = vmatpush.bf16.msra.mxu0 %v4853
    %7776 = vmatpush.bf16.msra.mxu0 %v4845
    %7777 = vmatpush.bf16.msra.mxu0 %v4837
    %7778 = vmatmul.bf16.gmra.mxu0 %v1285
    %v7779 = vpop.f32.mrf.mxu0
    %v7780 = vadd.f32 %v7767, %v7779
    %v7781 = vpop.f32.mrf.mxu0
    %7782 = vdwg.mxu0
    %7783 = vmatpush.bf16.msra.mxu0 %v4957
    %7784 = vmatpush.bf16.msra.mxu0 %v4949
    %7785 = vmatpush.bf16.msra.mxu0 %v4941
    %7786 = vmatpush.bf16.msra.mxu0 %v4933
    %7787 = vmatpush.bf16.msra.mxu0 %v4925
    %7788 = vmatpush.bf16.msra.mxu0 %v4917
    %7789 = vmatpush.bf16.msra.mxu0 %v4909
    %7790 = vmatpush.bf16.msra.mxu0 %v4901
    %7791 = vmatmul.bf16.gmra.mxu0 %v1286
    %v7792 = vpop.f32.mrf.mxu0
    %v7793 = vadd.f32 %v7780, %v7792
    %v7794 = vpop.f32.mrf.mxu0
    %7795 = vdwg.mxu0
    %7796 = vmatpush.bf16.msra.mxu0 %v5021
    %7797 = vmatpush.bf16.msra.mxu0 %v5013
    %7798 = vmatpush.bf16.msra.mxu0 %v5005
    %7799 = vmatpush.bf16.msra.mxu0 %v4997
    %7800 = vmatpush.bf16.msra.mxu0 %v4989
    %7801 = vmatpush.bf16.msra.mxu0 %v4981
    %7802 = vmatpush.bf16.msra.mxu0 %v4973
    %7803 = vmatpush.bf16.msra.mxu0 %v4965
    %7804 = vmatmul.bf16.gmra.mxu0 %v1287
    %v7805 = vpop.f32.mrf.mxu0
    %v7806 = vadd.f32 %v7793, %v7805
    %v7807 = vpop.f32.mrf.mxu0
    %7808 = vdwg.mxu0
    %7809 = vmatpush.bf16.msra.mxu0 %v5085
    %7810 = vmatpush.bf16.msra.mxu0 %v5077
    %7811 = vmatpush.bf16.msra.mxu0 %v5069
    %7812 = vmatpush.bf16.msra.mxu0 %v5061
    %7813 = vmatpush.bf16.msra.mxu0 %v5053
    %7814 = vmatpush.bf16.msra.mxu0 %v5045
    %7815 = vmatpush.bf16.msra.mxu0 %v5037
    %7816 = vmatpush.bf16.msra.mxu0 %v5029
    %7817 = vmatmul.bf16.gmra.mxu0 %v1288
    %v7818 = vpop.f32.mrf.mxu0
    %v7819 = vadd.f32 %v7806, %v7818
    %v7820 = vpop.f32.mrf.mxu0
    %7821 = vdwg.mxu0
    %7822 = vmatpush.bf16.msra.mxu0 %v5149
    %7823 = vmatpush.bf16.msra.mxu0 %v5141
    %7824 = vmatpush.bf16.msra.mxu0 %v5133
    %7825 = vmatpush.bf16.msra.mxu0 %v5125
    %7826 = vmatpush.bf16.msra.mxu0 %v5117
    %7827 = vmatpush.bf16.msra.mxu0 %v5109
    %7828 = vmatpush.bf16.msra.mxu0 %v5101
    %7829 = vmatpush.bf16.msra.mxu0 %v5093
    %7830 = vmatmul.bf16.gmra.mxu0 %v1289
    %v7831 = vpop.f32.mrf.mxu0
    %v7832 = vadd.f32 %v7819, %v7831
    %v7833 = vpop.f32.mrf.mxu0
    %7834 = vdwg.mxu0
    %7835 = vmatpush.bf16.msra.mxu0 %v5213
    %7836 = vmatpush.bf16.msra.mxu0 %v5205
    %7837 = vmatpush.bf16.msra.mxu0 %v5197
    %7838 = vmatpush.bf16.msra.mxu0 %v5189
    %7839 = vmatpush.bf16.msra.mxu0 %v5181
    %7840 = vmatpush.bf16.msra.mxu0 %v5173
    %7841 = vmatpush.bf16.msra.mxu0 %v5165
    %7842 = vmatpush.bf16.msra.mxu0 %v5157
    %7843 = vmatmul.bf16.gmra.mxu0 %v1290
    %v7844 = vpop.f32.mrf.mxu0
    %v7845 = vadd.f32 %v7832, %v7844
    %v7846 = vpop.f32.mrf.mxu0
    %7847 = vdwg.mxu0
    %7848 = vmatpush.bf16.msra.mxu0 %v5277
    %7849 = vmatpush.bf16.msra.mxu0 %v5269
    %7850 = vmatpush.bf16.msra.mxu0 %v5261
    %7851 = vmatpush.bf16.msra.mxu0 %v5253
    %7852 = vmatpush.bf16.msra.mxu0 %v5245
    %7853 = vmatpush.bf16.msra.mxu0 %v5237
    %7854 = vmatpush.bf16.msra.mxu0 %v5229
    %7855 = vmatpush.bf16.msra.mxu0 %v5221
    %7856 = vmatmul.bf16.gmra.mxu0 %v1291
    %v7857 = vpop.f32.mrf.mxu0
    %v7858 = vadd.f32 %v7845, %v7857
    %v7859 = vpop.f32.mrf.mxu0
    %7860 = vdwg.mxu0
    %7861 = vmatpush.bf16.msra.mxu0 %v5341
    %7862 = vmatpush.bf16.msra.mxu0 %v5333
    %7863 = vmatpush.bf16.msra.mxu0 %v5325
    %7864 = vmatpush.bf16.msra.mxu0 %v5317
    %7865 = vmatpush.bf16.msra.mxu0 %v5309
    %7866 = vmatpush.bf16.msra.mxu0 %v5301
    %7867 = vmatpush.bf16.msra.mxu0 %v5293
    %7868 = vmatpush.bf16.msra.mxu0 %v5285
    %7869 = vmatmul.bf16.gmra.mxu0 %v1292
    %v7870 = vpop.f32.mrf.mxu0
    %v7871 = vadd.f32 %v7858, %v7870
    %v7872 = vpop.f32.mrf.mxu0
    %7873 = vdwg.mxu0
    %7874 = vmatpush.bf16.msra.mxu0 %v5405
    %7875 = vmatpush.bf16.msra.mxu0 %v5397
    %7876 = vmatpush.bf16.msra.mxu0 %v5389
    %7877 = vmatpush.bf16.msra.mxu0 %v5381
    %7878 = vmatpush.bf16.msra.mxu0 %v5373
    %7879 = vmatpush.bf16.msra.mxu0 %v5365
    %7880 = vmatpush.bf16.msra.mxu0 %v5357
    %7881 = vmatpush.bf16.msra.mxu0 %v5349
    %7882 = vmatmul.bf16.gmra.mxu0 %v1293
    %v7883 = vpop.f32.mrf.mxu0
    %v7884 = vadd.f32 %v7871, %v7883
    %v7885 = vpop.f32.mrf.mxu0
    %7886 = vdwg.mxu0
    %7887 = vmatpush.bf16.msra.mxu0 %v4446
    %7888 = vmatpush.bf16.msra.mxu0 %v4438
    %7889 = vmatpush.bf16.msra.mxu0 %v4430
    %7890 = vmatpush.bf16.msra.mxu0 %v4422
    %7891 = vmatpush.bf16.msra.mxu0 %v4414
    %7892 = vmatpush.bf16.msra.mxu0 %v4406
    %7893 = vmatpush.bf16.msra.mxu0 %v4398
    %7894 = vmatpush.bf16.msra.mxu0 %v4390
    %7895 = vmatmul.bf16.gmra.mxu0 %v1278
    %v7896 = vpop.f32.mrf.mxu0
    %v7897 = vadd.f32 %v1302, %v7896
    %v7898 = vpop.f32.mrf.mxu0
    %7899 = vdwg.mxu0
    %7900 = vmatpush.bf16.msra.mxu0 %v4510
    %7901 = vmatpush.bf16.msra.mxu0 %v4502
    %7902 = vmatpush.bf16.msra.mxu0 %v4494
    %7903 = vmatpush.bf16.msra.mxu0 %v4486
    %7904 = vmatpush.bf16.msra.mxu0 %v4478
    %7905 = vmatpush.bf16.msra.mxu0 %v4470
    %7906 = vmatpush.bf16.msra.mxu0 %v4462
    %7907 = vmatpush.bf16.msra.mxu0 %v4454
    %7908 = vmatmul.bf16.gmra.mxu0 %v1279
    %v7909 = vpop.f32.mrf.mxu0
    %v7910 = vadd.f32 %v7897, %v7909
    %v7911 = vpop.f32.mrf.mxu0
    %7912 = vdwg.mxu0
    %7913 = vmatpush.bf16.msra.mxu0 %v4574
    %7914 = vmatpush.bf16.msra.mxu0 %v4566
    %7915 = vmatpush.bf16.msra.mxu0 %v4558
    %7916 = vmatpush.bf16.msra.mxu0 %v4550
    %7917 = vmatpush.bf16.msra.mxu0 %v4542
    %7918 = vmatpush.bf16.msra.mxu0 %v4534
    %7919 = vmatpush.bf16.msra.mxu0 %v4526
    %7920 = vmatpush.bf16.msra.mxu0 %v4518
    %7921 = vmatmul.bf16.gmra.mxu0 %v1280
    %v7922 = vpop.f32.mrf.mxu0
    %v7923 = vadd.f32 %v7910, %v7922
    %v7924 = vpop.f32.mrf.mxu0
    %7925 = vdwg.mxu0
    %7926 = vmatpush.bf16.msra.mxu0 %v4638
    %7927 = vmatpush.bf16.msra.mxu0 %v4630
    %7928 = vmatpush.bf16.msra.mxu0 %v4622
    %7929 = vmatpush.bf16.msra.mxu0 %v4614
    %7930 = vmatpush.bf16.msra.mxu0 %v4606
    %7931 = vmatpush.bf16.msra.mxu0 %v4598
    %7932 = vmatpush.bf16.msra.mxu0 %v4590
    %7933 = vmatpush.bf16.msra.mxu0 %v4582
    %7934 = vmatmul.bf16.gmra.mxu0 %v1281
    %v7935 = vpop.f32.mrf.mxu0
    %v7936 = vadd.f32 %v7923, %v7935
    %v7937 = vpop.f32.mrf.mxu0
    %7938 = vdwg.mxu0
    %7939 = vmatpush.bf16.msra.mxu0 %v4702
    %7940 = vmatpush.bf16.msra.mxu0 %v4694
    %7941 = vmatpush.bf16.msra.mxu0 %v4686
    %7942 = vmatpush.bf16.msra.mxu0 %v4678
    %7943 = vmatpush.bf16.msra.mxu0 %v4670
    %7944 = vmatpush.bf16.msra.mxu0 %v4662
    %7945 = vmatpush.bf16.msra.mxu0 %v4654
    %7946 = vmatpush.bf16.msra.mxu0 %v4646
    %7947 = vmatmul.bf16.gmra.mxu0 %v1282
    %v7948 = vpop.f32.mrf.mxu0
    %v7949 = vadd.f32 %v7936, %v7948
    %v7950 = vpop.f32.mrf.mxu0
    %7951 = vdwg.mxu0
    %7952 = vmatpush.bf16.msra.mxu0 %v4766
    %7953 = vmatpush.bf16.msra.mxu0 %v4758
    %7954 = vmatpush.bf16.msra.mxu0 %v4750
    %7955 = vmatpush.bf16.msra.mxu0 %v4742
    %7956 = vmatpush.bf16.msra.mxu0 %v4734
    %7957 = vmatpush.bf16.msra.mxu0 %v4726
    %7958 = vmatpush.bf16.msra.mxu0 %v4718
    %7959 = vmatpush.bf16.msra.mxu0 %v4710
    %7960 = vmatmul.bf16.gmra.mxu0 %v1283
    %v7961 = vpop.f32.mrf.mxu0
    %v7962 = vadd.f32 %v7949, %v7961
    %v7963 = vpop.f32.mrf.mxu0
    %7964 = vdwg.mxu0
    %7965 = vmatpush.bf16.msra.mxu0 %v4830
    %7966 = vmatpush.bf16.msra.mxu0 %v4822
    %7967 = vmatpush.bf16.msra.mxu0 %v4814
    %7968 = vmatpush.bf16.msra.mxu0 %v4806
    %7969 = vmatpush.bf16.msra.mxu0 %v4798
    %7970 = vmatpush.bf16.msra.mxu0 %v4790
    %7971 = vmatpush.bf16.msra.mxu0 %v4782
    %7972 = vmatpush.bf16.msra.mxu0 %v4774
    %7973 = vmatmul.bf16.gmra.mxu0 %v1284
    %v7974 = vpop.f32.mrf.mxu0
    %v7975 = vadd.f32 %v7962, %v7974
    %v7976 = vpop.f32.mrf.mxu0
    %7977 = vdwg.mxu0
    %7978 = vmatpush.bf16.msra.mxu0 %v4894
    %7979 = vmatpush.bf16.msra.mxu0 %v4886
    %7980 = vmatpush.bf16.msra.mxu0 %v4878
    %7981 = vmatpush.bf16.msra.mxu0 %v4870
    %7982 = vmatpush.bf16.msra.mxu0 %v4862
    %7983 = vmatpush.bf16.msra.mxu0 %v4854
    %7984 = vmatpush.bf16.msra.mxu0 %v4846
    %7985 = vmatpush.bf16.msra.mxu0 %v4838
    %7986 = vmatmul.bf16.gmra.mxu0 %v1285
    %v7987 = vpop.f32.mrf.mxu0
    %v7988 = vadd.f32 %v7975, %v7987
    %v7989 = vpop.f32.mrf.mxu0
    %7990 = vdwg.mxu0
    %7991 = vmatpush.bf16.msra.mxu0 %v4958
    %7992 = vmatpush.bf16.msra.mxu0 %v4950
    %7993 = vmatpush.bf16.msra.mxu0 %v4942
    %7994 = vmatpush.bf16.msra.mxu0 %v4934
    %7995 = vmatpush.bf16.msra.mxu0 %v4926
    %7996 = vmatpush.bf16.msra.mxu0 %v4918
    %7997 = vmatpush.bf16.msra.mxu0 %v4910
    %7998 = vmatpush.bf16.msra.mxu0 %v4902
    %7999 = vmatmul.bf16.gmra.mxu0 %v1286
    %v8000 = vpop.f32.mrf.mxu0
    %v8001 = vadd.f32 %v7988, %v8000
    %v8002 = vpop.f32.mrf.mxu0
    %8003 = vdwg.mxu0
    %8004 = vmatpush.bf16.msra.mxu0 %v5022
    %8005 = vmatpush.bf16.msra.mxu0 %v5014
    %8006 = vmatpush.bf16.msra.mxu0 %v5006
    %8007 = vmatpush.bf16.msra.mxu0 %v4998
    %8008 = vmatpush.bf16.msra.mxu0 %v4990
    %8009 = vmatpush.bf16.msra.mxu0 %v4982
    %8010 = vmatpush.bf16.msra.mxu0 %v4974
    %8011 = vmatpush.bf16.msra.mxu0 %v4966
    %8012 = vmatmul.bf16.gmra.mxu0 %v1287
    %v8013 = vpop.f32.mrf.mxu0
    %v8014 = vadd.f32 %v8001, %v8013
    %v8015 = vpop.f32.mrf.mxu0
    %8016 = vdwg.mxu0
    %8017 = vmatpush.bf16.msra.mxu0 %v5086
    %8018 = vmatpush.bf16.msra.mxu0 %v5078
    %8019 = vmatpush.bf16.msra.mxu0 %v5070
    %8020 = vmatpush.bf16.msra.mxu0 %v5062
    %8021 = vmatpush.bf16.msra.mxu0 %v5054
    %8022 = vmatpush.bf16.msra.mxu0 %v5046
    %8023 = vmatpush.bf16.msra.mxu0 %v5038
    %8024 = vmatpush.bf16.msra.mxu0 %v5030
    %8025 = vmatmul.bf16.gmra.mxu0 %v1288
    %v8026 = vpop.f32.mrf.mxu0
    %v8027 = vadd.f32 %v8014, %v8026
    %v8028 = vpop.f32.mrf.mxu0
    %8029 = vdwg.mxu0
    %8030 = vmatpush.bf16.msra.mxu0 %v5150
    %8031 = vmatpush.bf16.msra.mxu0 %v5142
    %8032 = vmatpush.bf16.msra.mxu0 %v5134
    %8033 = vmatpush.bf16.msra.mxu0 %v5126
    %8034 = vmatpush.bf16.msra.mxu0 %v5118
    %8035 = vmatpush.bf16.msra.mxu0 %v5110
    %8036 = vmatpush.bf16.msra.mxu0 %v5102
    %8037 = vmatpush.bf16.msra.mxu0 %v5094
    %8038 = vmatmul.bf16.gmra.mxu0 %v1289
    %v8039 = vpop.f32.mrf.mxu0
    %v8040 = vadd.f32 %v8027, %v8039
    %v8041 = vpop.f32.mrf.mxu0
    %8042 = vdwg.mxu0
    %8043 = vmatpush.bf16.msra.mxu0 %v5214
    %8044 = vmatpush.bf16.msra.mxu0 %v5206
    %8045 = vmatpush.bf16.msra.mxu0 %v5198
    %8046 = vmatpush.bf16.msra.mxu0 %v5190
    %8047 = vmatpush.bf16.msra.mxu0 %v5182
    %8048 = vmatpush.bf16.msra.mxu0 %v5174
    %8049 = vmatpush.bf16.msra.mxu0 %v5166
    %8050 = vmatpush.bf16.msra.mxu0 %v5158
    %8051 = vmatmul.bf16.gmra.mxu0 %v1290
    %v8052 = vpop.f32.mrf.mxu0
    %v8053 = vadd.f32 %v8040, %v8052
    %v8054 = vpop.f32.mrf.mxu0
    %8055 = vdwg.mxu0
    %8056 = vmatpush.bf16.msra.mxu0 %v5278
    %8057 = vmatpush.bf16.msra.mxu0 %v5270
    %8058 = vmatpush.bf16.msra.mxu0 %v5262
    %8059 = vmatpush.bf16.msra.mxu0 %v5254
    %8060 = vmatpush.bf16.msra.mxu0 %v5246
    %8061 = vmatpush.bf16.msra.mxu0 %v5238
    %8062 = vmatpush.bf16.msra.mxu0 %v5230
    %8063 = vmatpush.bf16.msra.mxu0 %v5222
    %8064 = vmatmul.bf16.gmra.mxu0 %v1291
    %v8065 = vpop.f32.mrf.mxu0
    %v8066 = vadd.f32 %v8053, %v8065
    %v8067 = vpop.f32.mrf.mxu0
    %8068 = vdwg.mxu0
    %8069 = vmatpush.bf16.msra.mxu0 %v5342
    %8070 = vmatpush.bf16.msra.mxu0 %v5334
    %8071 = vmatpush.bf16.msra.mxu0 %v5326
    %8072 = vmatpush.bf16.msra.mxu0 %v5318
    %8073 = vmatpush.bf16.msra.mxu0 %v5310
    %8074 = vmatpush.bf16.msra.mxu0 %v5302
    %8075 = vmatpush.bf16.msra.mxu0 %v5294
    %8076 = vmatpush.bf16.msra.mxu0 %v5286
    %8077 = vmatmul.bf16.gmra.mxu0 %v1292
    %v8078 = vpop.f32.mrf.mxu0
    %v8079 = vadd.f32 %v8066, %v8078
    %v8080 = vpop.f32.mrf.mxu0
    %8081 = vdwg.mxu0
    %8082 = vmatpush.bf16.msra.mxu0 %v5406
    %8083 = vmatpush.bf16.msra.mxu0 %v5398
    %8084 = vmatpush.bf16.msra.mxu0 %v5390
    %8085 = vmatpush.bf16.msra.mxu0 %v5382
    %8086 = vmatpush.bf16.msra.mxu0 %v5374
    %8087 = vmatpush.bf16.msra.mxu0 %v5366
    %8088 = vmatpush.bf16.msra.mxu0 %v5358
    %8089 = vmatpush.bf16.msra.mxu0 %v5350
    %8090 = vmatmul.bf16.gmra.mxu0 %v1293
    %v8091 = vpop.f32.mrf.mxu0
    %v8092 = vadd.f32 %v8079, %v8091
    %v8093 = vpop.f32.mrf.mxu0
    %8094 = vdwg.mxu0
    %v8095 = vmul.f32 %v6636, 0.5
    %v8096 = vmul.f32 %v6844, 0.5
    %v8097 = vmul.f32 %v7052, 0.5
    %v8098 = vmul.f32 %v7260, 0.5
    %v8099 = vmul.f32 %v7468, 0.5
    %v8100 = vmul.f32 %v7676, 0.5
    %v8101 = vmul.f32 %v7884, 0.5
    %v8102 = vmul.f32 %v8092, 0.5
    %v8103 = vmul.f32 %v6636, 0.70710677
    %v8104 = vmul.f32 %v6844, 0.70710677
    %v8105 = vmul.f32 %v7052, 0.70710677
    %v8106 = vmul.f32 %v7260, 0.70710677
    %v8107 = vmul.f32 %v7468, 0.70710677
    %v8108 = vmul.f32 %v7676, 0.70710677
    %v8109 = vmul.f32 %v7884, 0.70710677
    %v8110 = vmul.f32 %v8092, 0.70710677
    %v8111 = vmul.f32 %v8103, %v8103
    %v8112 = vmin.f32 16.0, %v8111
    %v8113 = vmul.f32 %v8112, 2.1237322e-06
    %v8114 = vadd.f32 %v8113, 0.00028619796
    %v8115 = vmul.f32 %v8112, %v8114
    %v8116 = vadd.f32 %v8115, 0.0036580483
    %v8117 = vmul.f32 %v8112, %v8116
    %v8118 = vadd.f32 %v8117, 0.05243302
    %v8119 = vmul.f32 %v8112, %v8118
    %v8120 = vadd.f32 %v8119, 0.18741608
    %v8121 = vmul.f32 %v8112, %v8120
    %v8122 = vadd.f32 %v8121, 1.1283791
    %v8123 = vmul.f32 %v8103, %v8122
    %v8124 = vmul.f32 %v8112, 3.8918573e-05
    %v8125 = vadd.f32 %v8124, 0.001143296
    %v8126 = vmul.f32 %v8112, %v8125
    %v8127 = vadd.f32 %v8126, 0.014752088
    %v8128 = vmul.f32 %v8112, %v8127
    %v8129 = vadd.f32 %v8128, 0.112945676
    %v8130 = vmul.f32 %v8112, %v8129
    %v8131 = vadd.f32 %v8130, 0.4994258
    %v8132 = vmul.f32 %v8112, %v8131
    %v8133 = vadd.f32 %v8132, 1.0
    %v8134 = vrcp.pop %v8133
    %v8135 = vmul.f32 %v8133, %v8134
    %v8136 = vsub.f32 1.0, %v8135
    %v8137 = vmul.f32 %v8134, %v8136
    %v8138 = vadd.f32 %v8134, %v8137
    %vm8139 = vweird.f32 %v8133
    %vm8140 = vweird.f32 %v8134
    %vm8141 = vmor %vm8139, %vm8140
    %v8142 = vsel %vm8141, %v8134, %v8138
    %v8143 = vand.u32 2147483647, %v8133
    %vm8144 = vcmp.eq.f32.partialorder %v8143, 8.507059e+37
    %v8145 = vand.u32 %v8133, 2147483648
    %v8146 = vor.u32 1.1754944e-38, %v8145
    %v8147 = vsel %vm8144, %v8146, %v8142
    %v8148 = vmul.f32 %v8123, %v8147
    %v8149 = vmin.f32 %v8148, 1.0
    %v8150 = vmax.f32 %v8149, -1.0
    %v8151 = vmul.f32 %v8104, %v8104
    %v8152 = vmin.f32 16.0, %v8151
    %v8153 = vmul.f32 %v8152, 2.1237322e-06
    %v8154 = vadd.f32 %v8153, 0.00028619796
    %v8155 = vmul.f32 %v8152, %v8154
    %v8156 = vadd.f32 %v8155, 0.0036580483
    %v8157 = vmul.f32 %v8152, %v8156
    %v8158 = vadd.f32 %v8157, 0.05243302
    %v8159 = vmul.f32 %v8152, %v8158
    %v8160 = vadd.f32 %v8159, 0.18741608
    %v8161 = vmul.f32 %v8152, %v8160
    %v8162 = vadd.f32 %v8161, 1.1283791
    %v8163 = vmul.f32 %v8104, %v8162
    %v8164 = vmul.f32 %v8152, 3.8918573e-05
    %v8165 = vadd.f32 %v8164, 0.001143296
    %v8166 = vmul.f32 %v8152, %v8165
    %v8167 = vadd.f32 %v8166, 0.014752088
    %v8168 = vmul.f32 %v8152, %v8167
    %v8169 = vadd.f32 %v8168, 0.112945676
    %v8170 = vmul.f32 %v8152, %v8169
    %v8171 = vadd.f32 %v8170, 0.4994258
    %v8172 = vmul.f32 %v8152, %v8171
    %v8173 = vadd.f32 %v8172, 1.0
    %v8174 = vrcp.pop %v8173
    %v8175 = vmul.f32 %v8173, %v8174
    %v8176 = vsub.f32 1.0, %v8175
    %v8177 = vmul.f32 %v8174, %v8176
    %v8178 = vadd.f32 %v8174, %v8177
    %vm8179 = vweird.f32 %v8173
    %vm8180 = vweird.f32 %v8174
    %vm8181 = vmor %vm8179, %vm8180
    %v8182 = vsel %vm8181, %v8174, %v8178
    %v8183 = vand.u32 2147483647, %v8173
    %vm8184 = vcmp.eq.f32.partialorder %v8183, 8.507059e+37
    %v8185 = vand.u32 %v8173, 2147483648
    %v8186 = vor.u32 1.1754944e-38, %v8185
    %v8187 = vsel %vm8184, %v8186, %v8182
    %v8188 = vmul.f32 %v8163, %v8187
    %v8189 = vmin.f32 %v8188, 1.0
    %v8190 = vmax.f32 %v8189, -1.0
    %v8191 = vmul.f32 %v8105, %v8105
    %v8192 = vmin.f32 16.0, %v8191
    %v8193 = vmul.f32 %v8192, 2.1237322e-06
    %v8194 = vadd.f32 %v8193, 0.00028619796
    %v8195 = vmul.f32 %v8192, %v8194
    %v8196 = vadd.f32 %v8195, 0.0036580483
    %v8197 = vmul.f32 %v8192, %v8196
    %v8198 = vadd.f32 %v8197, 0.05243302
    %v8199 = vmul.f32 %v8192, %v8198
    %v8200 = vadd.f32 %v8199, 0.18741608
    %v8201 = vmul.f32 %v8192, %v8200
    %v8202 = vadd.f32 %v8201, 1.1283791
    %v8203 = vmul.f32 %v8105, %v8202
    %v8204 = vmul.f32 %v8192, 3.8918573e-05
    %v8205 = vadd.f32 %v8204, 0.001143296
    %v8206 = vmul.f32 %v8192, %v8205
    %v8207 = vadd.f32 %v8206, 0.014752088
    %v8208 = vmul.f32 %v8192, %v8207
    %v8209 = vadd.f32 %v8208, 0.112945676
    %v8210 = vmul.f32 %v8192, %v8209
    %v8211 = vadd.f32 %v8210, 0.4994258
    %v8212 = vmul.f32 %v8192, %v8211
    %v8213 = vadd.f32 %v8212, 1.0
    %v8214 = vrcp.pop %v8213
    %v8215 = vmul.f32 %v8213, %v8214
    %v8216 = vsub.f32 1.0, %v8215
    %v8217 = vmul.f32 %v8214, %v8216
    %v8218 = vadd.f32 %v8214, %v8217
    %vm8219 = vweird.f32 %v8213
    %vm8220 = vweird.f32 %v8214
    %vm8221 = vmor %vm8219, %vm8220
    %v8222 = vsel %vm8221, %v8214, %v8218
    %v8223 = vand.u32 2147483647, %v8213
    %vm8224 = vcmp.eq.f32.partialorder %v8223, 8.507059e+37
    %v8225 = vand.u32 %v8213, 2147483648
    %v8226 = vor.u32 1.1754944e-38, %v8225
    %v8227 = vsel %vm8224, %v8226, %v8222
    %v8228 = vmul.f32 %v8203, %v8227
    %v8229 = vmin.f32 %v8228, 1.0
    %v8230 = vmax.f32 %v8229, -1.0
    %v8231 = vmul.f32 %v8106, %v8106
    %v8232 = vmin.f32 16.0, %v8231
    %v8233 = vmul.f32 %v8232, 2.1237322e-06
    %v8234 = vadd.f32 %v8233, 0.00028619796
    %v8235 = vmul.f32 %v8232, %v8234
    %v8236 = vadd.f32 %v8235, 0.0036580483
    %v8237 = vmul.f32 %v8232, %v8236
    %v8238 = vadd.f32 %v8237, 0.05243302
    %v8239 = vmul.f32 %v8232, %v8238
    %v8240 = vadd.f32 %v8239, 0.18741608
    %v8241 = vmul.f32 %v8232, %v8240
    %v8242 = vadd.f32 %v8241, 1.1283791
    %v8243 = vmul.f32 %v8106, %v8242
    %v8244 = vmul.f32 %v8232, 3.8918573e-05
    %v8245 = vadd.f32 %v8244, 0.001143296
    %v8246 = vmul.f32 %v8232, %v8245
    %v8247 = vadd.f32 %v8246, 0.014752088
    %v8248 = vmul.f32 %v8232, %v8247
    %v8249 = vadd.f32 %v8248, 0.112945676
    %v8250 = vmul.f32 %v8232, %v8249
    %v8251 = vadd.f32 %v8250, 0.4994258
    %v8252 = vmul.f32 %v8232, %v8251
    %v8253 = vadd.f32 %v8252, 1.0
    %v8254 = vrcp.pop %v8253
    %v8255 = vmul.f32 %v8253, %v8254
    %v8256 = vsub.f32 1.0, %v8255
    %v8257 = vmul.f32 %v8254, %v8256
    %v8258 = vadd.f32 %v8254, %v8257
    %vm8259 = vweird.f32 %v8253
    %vm8260 = vweird.f32 %v8254
    %vm8261 = vmor %vm8259, %vm8260
    %v8262 = vsel %vm8261, %v8254, %v8258
    %v8263 = vand.u32 2147483647, %v8253
    %vm8264 = vcmp.eq.f32.partialorder %v8263, 8.507059e+37
    %v8265 = vand.u32 %v8253, 2147483648
    %v8266 = vor.u32 1.1754944e-38, %v8265
    %v8267 = vsel %vm8264, %v8266, %v8262
    %v8268 = vmul.f32 %v8243, %v8267
    %v8269 = vmin.f32 %v8268, 1.0
    %v8270 = vmax.f32 %v8269, -1.0
    %v8271 = vmul.f32 %v8107, %v8107
    %v8272 = vmin.f32 16.0, %v8271
    %v8273 = vmul.f32 %v8272, 2.1237322e-06
    %v8274 = vadd.f32 %v8273, 0.00028619796
    %v8275 = vmul.f32 %v8272, %v8274
    %v8276 = vadd.f32 %v8275, 0.0036580483
    %v8277 = vmul.f32 %v8272, %v8276
    %v8278 = vadd.f32 %v8277, 0.05243302
    %v8279 = vmul.f32 %v8272, %v8278
    %v8280 = vadd.f32 %v8279, 0.18741608
    %v8281 = vmul.f32 %v8272, %v8280
    %v8282 = vadd.f32 %v8281, 1.1283791
    %v8283 = vmul.f32 %v8107, %v8282
    %v8284 = vmul.f32 %v8272, 3.8918573e-05
    %v8285 = vadd.f32 %v8284, 0.001143296
    %v8286 = vmul.f32 %v8272, %v8285
    %v8287 = vadd.f32 %v8286, 0.014752088
    %v8288 = vmul.f32 %v8272, %v8287
    %v8289 = vadd.f32 %v8288, 0.112945676
    %v8290 = vmul.f32 %v8272, %v8289
    %v8291 = vadd.f32 %v8290, 0.4994258
    %v8292 = vmul.f32 %v8272, %v8291
    %v8293 = vadd.f32 %v8292, 1.0
    %v8294 = vrcp.pop %v8293
    %v8295 = vmul.f32 %v8293, %v8294
    %v8296 = vsub.f32 1.0, %v8295
    %v8297 = vmul.f32 %v8294, %v8296
    %v8298 = vadd.f32 %v8294, %v8297
    %vm8299 = vweird.f32 %v8293
    %vm8300 = vweird.f32 %v8294
    %vm8301 = vmor %vm8299, %vm8300
    %v8302 = vsel %vm8301, %v8294, %v8298
    %v8303 = vand.u32 2147483647, %v8293
    %vm8304 = vcmp.eq.f32.partialorder %v8303, 8.507059e+37
    %v8305 = vand.u32 %v8293, 2147483648
    %v8306 = vor.u32 1.1754944e-38, %v8305
    %v8307 = vsel %vm8304, %v8306, %v8302
    %v8308 = vmul.f32 %v8283, %v8307
    %v8309 = vmin.f32 %v8308, 1.0
    %v8310 = vmax.f32 %v8309, -1.0
    %v8311 = vmul.f32 %v8108, %v8108
    %v8312 = vmin.f32 16.0, %v8311
    %v8313 = vmul.f32 %v8312, 2.1237322e-06
    %v8314 = vadd.f32 %v8313, 0.00028619796
    %v8315 = vmul.f32 %v8312, %v8314
    %v8316 = vadd.f32 %v8315, 0.0036580483
    %v8317 = vmul.f32 %v8312, %v8316
    %v8318 = vadd.f32 %v8317, 0.05243302
    %v8319 = vmul.f32 %v8312, %v8318
    %v8320 = vadd.f32 %v8319, 0.18741608
    %v8321 = vmul.f32 %v8312, %v8320
    %v8322 = vadd.f32 %v8321, 1.1283791
    %v8323 = vmul.f32 %v8108, %v8322
    %v8324 = vmul.f32 %v8312, 3.8918573e-05
    %v8325 = vadd.f32 %v8324, 0.001143296
    %v8326 = vmul.f32 %v8312, %v8325
    %v8327 = vadd.f32 %v8326, 0.014752088
    %v8328 = vmul.f32 %v8312, %v8327
    %v8329 = vadd.f32 %v8328, 0.112945676
    %v8330 = vmul.f32 %v8312, %v8329
    %v8331 = vadd.f32 %v8330, 0.4994258
    %v8332 = vmul.f32 %v8312, %v8331
    %v8333 = vadd.f32 %v8332, 1.0
    %v8334 = vrcp.pop %v8333
    %v8335 = vmul.f32 %v8333, %v8334
    %v8336 = vsub.f32 1.0, %v8335
    %v8337 = vmul.f32 %v8334, %v8336
    %v8338 = vadd.f32 %v8334, %v8337
    %vm8339 = vweird.f32 %v8333
    %vm8340 = vweird.f32 %v8334
    %vm8341 = vmor %vm8339, %vm8340
    %v8342 = vsel %vm8341, %v8334, %v8338
    %v8343 = vand.u32 2147483647, %v8333
    %vm8344 = vcmp.eq.f32.partialorder %v8343, 8.507059e+37
    %v8345 = vand.u32 %v8333, 2147483648
    %v8346 = vor.u32 1.1754944e-38, %v8345
    %v8347 = vsel %vm8344, %v8346, %v8342
    %v8348 = vmul.f32 %v8323, %v8347
    %v8349 = vmin.f32 %v8348, 1.0
    %v8350 = vmax.f32 %v8349, -1.0
    %v8351 = vmul.f32 %v8109, %v8109
    %v8352 = vmin.f32 16.0, %v8351
    %v8353 = vmul.f32 %v8352, 2.1237322e-06
    %v8354 = vadd.f32 %v8353, 0.00028619796
    %v8355 = vmul.f32 %v8352, %v8354
    %v8356 = vadd.f32 %v8355, 0.0036580483
    %v8357 = vmul.f32 %v8352, %v8356
    %v8358 = vadd.f32 %v8357, 0.05243302
    %v8359 = vmul.f32 %v8352, %v8358
    %v8360 = vadd.f32 %v8359, 0.18741608
    %v8361 = vmul.f32 %v8352, %v8360
    %v8362 = vadd.f32 %v8361, 1.1283791
    %v8363 = vmul.f32 %v8109, %v8362
    %v8364 = vmul.f32 %v8352, 3.8918573e-05
    %v8365 = vadd.f32 %v8364, 0.001143296
    %v8366 = vmul.f32 %v8352, %v8365
    %v8367 = vadd.f32 %v8366, 0.014752088
    %v8368 = vmul.f32 %v8352, %v8367
    %v8369 = vadd.f32 %v8368, 0.112945676
    %v8370 = vmul.f32 %v8352, %v8369
    %v8371 = vadd.f32 %v8370, 0.4994258
    %v8372 = vmul.f32 %v8352, %v8371
    %v8373 = vadd.f32 %v8372, 1.0
    %v8374 = vrcp.pop %v8373
    %v8375 = vmul.f32 %v8373, %v8374
    %v8376 = vsub.f32 1.0, %v8375
    %v8377 = vmul.f32 %v8374, %v8376
    %v8378 = vadd.f32 %v8374, %v8377
    %vm8379 = vweird.f32 %v8373
    %vm8380 = vweird.f32 %v8374
    %vm8381 = vmor %vm8379, %vm8380
    %v8382 = vsel %vm8381, %v8374, %v8378
    %v8383 = vand.u32 2147483647, %v8373
    %vm8384 = vcmp.eq.f32.partialorder %v8383, 8.507059e+37
    %v8385 = vand.u32 %v8373, 2147483648
    %v8386 = vor.u32 1.1754944e-38, %v8385
    %v8387 = vsel %vm8384, %v8386, %v8382
    %v8388 = vmul.f32 %v8363, %v8387
    %v8389 = vmin.f32 %v8388, 1.0
    %v8390 = vmax.f32 %v8389, -1.0
    %v8391 = vmul.f32 %v8110, %v8110
    %v8392 = vmin.f32 16.0, %v8391
    %v8393 = vmul.f32 %v8392, 2.1237322e-06
    %v8394 = vadd.f32 %v8393, 0.00028619796
    %v8395 = vmul.f32 %v8392, %v8394
    %v8396 = vadd.f32 %v8395, 0.0036580483
    %v8397 = vmul.f32 %v8392, %v8396
    %v8398 = vadd.f32 %v8397, 0.05243302
    %v8399 = vmul.f32 %v8392, %v8398
    %v8400 = vadd.f32 %v8399, 0.18741608
    %v8401 = vmul.f32 %v8392, %v8400
    %v8402 = vadd.f32 %v8401, 1.1283791
    %v8403 = vmul.f32 %v8110, %v8402
    %v8404 = vmul.f32 %v8392, 3.8918573e-05
    %v8405 = vadd.f32 %v8404, 0.001143296
    %v8406 = vmul.f32 %v8392, %v8405
    %v8407 = vadd.f32 %v8406, 0.014752088
    %v8408 = vmul.f32 %v8392, %v8407
    %v8409 = vadd.f32 %v8408, 0.112945676
    %v8410 = vmul.f32 %v8392, %v8409
    %v8411 = vadd.f32 %v8410, 0.4994258
    %v8412 = vmul.f32 %v8392, %v8411
    %v8413 = vadd.f32 %v8412, 1.0
    %v8414 = vrcp.pop %v8413
    %v8415 = vmul.f32 %v8413, %v8414
    %v8416 = vsub.f32 1.0, %v8415
    %v8417 = vmul.f32 %v8414, %v8416
    %v8418 = vadd.f32 %v8414, %v8417
    %vm8419 = vweird.f32 %v8413
    %vm8420 = vweird.f32 %v8414
    %vm8421 = vmor %vm8419, %vm8420
    %v8422 = vsel %vm8421, %v8414, %v8418
    %v8423 = vand.u32 2147483647, %v8413
    %vm8424 = vcmp.eq.f32.partialorder %v8423, 8.507059e+37
    %v8425 = vand.u32 %v8413, 2147483648
    %v8426 = vor.u32 1.1754944e-38, %v8425
    %v8427 = vsel %vm8424, %v8426, %v8422
    %v8428 = vmul.f32 %v8403, %v8427
    %v8429 = vmin.f32 %v8428, 1.0
    %v8430 = vmax.f32 %v8429, -1.0
    %v8431 = vadd.f32 %v8150, 1.0
    %v8432 = vadd.f32 %v8190, 1.0
    %v8433 = vadd.f32 %v8230, 1.0
    %v8434 = vadd.f32 %v8270, 1.0
    %v8435 = vadd.f32 %v8310, 1.0
    %v8436 = vadd.f32 %v8350, 1.0
    %v8437 = vadd.f32 %v8390, 1.0
    %v8438 = vadd.f32 %v8430, 1.0
    %v8439 = vmul.f32 %v8095, %v8431
    %v8440 = vmul.f32 %v8096, %v8432
    %v8441 = vmul.f32 %v8097, %v8433
    %v8442 = vmul.f32 %v8098, %v8434
    %v8443 = vmul.f32 %v8099, %v8435
    %v8444 = vmul.f32 %v8100, %v8436
    %v8445 = vmul.f32 %v8101, %v8437
    %v8446 = vmul.f32 %v8102, %v8438
    %v8447 = vld [vmem:[#allocation7] sm:$0xff]
    %v8448 = vld [vmem:[#allocation7 + $0x8] sm:$0xff]
    %v8449 = vld [vmem:[#allocation7 + $0x10] sm:$0xff]
    %v8450 = vld [vmem:[#allocation7 + $0x18] sm:$0xff]
    %v8451 = vld [vmem:[#allocation7 + $0x20] sm:$0xff]
    %v8452 = vld [vmem:[#allocation7 + $0x28] sm:$0xff]
    %v8453 = vld [vmem:[#allocation7 + $0x30] sm:$0xff]
    %v8454 = vld [vmem:[#allocation7 + $0x38] sm:$0xff]
    %v8455 = vld [vmem:[#allocation7 + $0x40] sm:$0xff]
    %v8456 = vld [vmem:[#allocation7 + $0x48] sm:$0xff]
    %v8457 = vld [vmem:[#allocation7 + $0x50] sm:$0xff]
    %v8458 = vld [vmem:[#allocation7 + $0x58] sm:$0xff]
    %v8459 = vld [vmem:[#allocation7 + $0x60] sm:$0xff]
    %v8460 = vld [vmem:[#allocation7 + $0x68] sm:$0xff]
    %v8461 = vld [vmem:[#allocation7 + $0x70] sm:$0xff]
    %v8462 = vld [vmem:[#allocation7 + $0x78] sm:$0xff]
    %v8463 = vld [vmem:[#allocation7 + $0x80] sm:$0xff]
    %v8464 = vld [vmem:[#allocation7 + $0x88] sm:$0xff]
    %v8465 = vld [vmem:[#allocation7 + $0x90] sm:$0xff]
    %v8466 = vld [vmem:[#allocation7 + $0x98] sm:$0xff]
    %v8467 = vld [vmem:[#allocation7 + $0xa0] sm:$0xff]
    %v8468 = vld [vmem:[#allocation7 + $0xa8] sm:$0xff]
    %v8469 = vld [vmem:[#allocation7 + $0xb0] sm:$0xff]
    %v8470 = vld [vmem:[#allocation7 + $0xb8] sm:$0xff]
    %v8471 = vld [vmem:[#allocation7 + $0xc0] sm:$0xff]
    %v8472 = vld [vmem:[#allocation7 + $0xc8] sm:$0xff]
    %v8473 = vld [vmem:[#allocation7 + $0xd0] sm:$0xff]
    %v8474 = vld [vmem:[#allocation7 + $0xd8] sm:$0xff]
    %v8475 = vld [vmem:[#allocation7 + $0xe0] sm:$0xff]
    %v8476 = vld [vmem:[#allocation7 + $0xe8] sm:$0xff]
    %v8477 = vld [vmem:[#allocation7 + $0xf0] sm:$0xff]
    %v8478 = vld [vmem:[#allocation7 + $0xf8] sm:$0xff]
    %v8479 = vld [vmem:[#allocation7 + $0x100] sm:$0xff]
    %v8480 = vld [vmem:[#allocation7 + $0x108] sm:$0xff]
    %v8481 = vld [vmem:[#allocation7 + $0x110] sm:$0xff]
    %v8482 = vld [vmem:[#allocation7 + $0x118] sm:$0xff]
    %v8483 = vld [vmem:[#allocation7 + $0x120] sm:$0xff]
    %v8484 = vld [vmem:[#allocation7 + $0x128] sm:$0xff]
    %v8485 = vld [vmem:[#allocation7 + $0x130] sm:$0xff]
    %v8486 = vld [vmem:[#allocation7 + $0x138] sm:$0xff]
    %v8487 = vld [vmem:[#allocation7 + $0x140] sm:$0xff]
    %v8488 = vld [vmem:[#allocation7 + $0x148] sm:$0xff]
    %v8489 = vld [vmem:[#allocation7 + $0x150] sm:$0xff]
    %v8490 = vld [vmem:[#allocation7 + $0x158] sm:$0xff]
    %v8491 = vld [vmem:[#allocation7 + $0x160] sm:$0xff]
    %v8492 = vld [vmem:[#allocation7 + $0x168] sm:$0xff]
    %v8493 = vld [vmem:[#allocation7 + $0x170] sm:$0xff]
    %v8494 = vld [vmem:[#allocation7 + $0x178] sm:$0xff]
    %v8495 = vld [vmem:[#allocation7 + $0x180] sm:$0xff]
    %v8496 = vld [vmem:[#allocation7 + $0x188] sm:$0xff]
    %v8497 = vld [vmem:[#allocation7 + $0x190] sm:$0xff]
    %v8498 = vld [vmem:[#allocation7 + $0x198] sm:$0xff]
    %v8499 = vld [vmem:[#allocation7 + $0x1a0] sm:$0xff]
    %v8500 = vld [vmem:[#allocation7 + $0x1a8] sm:$0xff]
    %v8501 = vld [vmem:[#allocation7 + $0x1b0] sm:$0xff]
    %v8502 = vld [vmem:[#allocation7 + $0x1b8] sm:$0xff]
    %v8503 = vld [vmem:[#allocation7 + $0x1c0] sm:$0xff]
    %v8504 = vld [vmem:[#allocation7 + $0x1c8] sm:$0xff]
    %v8505 = vld [vmem:[#allocation7 + $0x1d0] sm:$0xff]
    %v8506 = vld [vmem:[#allocation7 + $0x1d8] sm:$0xff]
    %v8507 = vld [vmem:[#allocation7 + $0x1e0] sm:$0xff]
    %v8508 = vld [vmem:[#allocation7 + $0x1e8] sm:$0xff]
    %v8509 = vld [vmem:[#allocation7 + $0x1f0] sm:$0xff]
    %v8510 = vld [vmem:[#allocation7 + $0x1f8] sm:$0xff]
    %v8511 = vld [vmem:[#allocation7 + $0x200] sm:$0xff]
    %v8512 = vld [vmem:[#allocation7 + $0x208] sm:$0xff]
    %v8513 = vld [vmem:[#allocation7 + $0x210] sm:$0xff]
    %v8514 = vld [vmem:[#allocation7 + $0x218] sm:$0xff]
    %v8515 = vld [vmem:[#allocation7 + $0x220] sm:$0xff]
    %v8516 = vld [vmem:[#allocation7 + $0x228] sm:$0xff]
    %v8517 = vld [vmem:[#allocation7 + $0x230] sm:$0xff]
    %v8518 = vld [vmem:[#allocation7 + $0x238] sm:$0xff]
    %v8519 = vld [vmem:[#allocation7 + $0x240] sm:$0xff]
    %v8520 = vld [vmem:[#allocation7 + $0x248] sm:$0xff]
    %v8521 = vld [vmem:[#allocation7 + $0x250] sm:$0xff]
    %v8522 = vld [vmem:[#allocation7 + $0x258] sm:$0xff]
    %v8523 = vld [vmem:[#allocation7 + $0x260] sm:$0xff]
    %v8524 = vld [vmem:[#allocation7 + $0x268] sm:$0xff]
    %v8525 = vld [vmem:[#allocation7 + $0x270] sm:$0xff]
    %v8526 = vld [vmem:[#allocation7 + $0x278] sm:$0xff]
    %v8527 = vld [vmem:[#allocation7 + $0x280] sm:$0xff]
    %v8528 = vld [vmem:[#allocation7 + $0x288] sm:$0xff]
    %v8529 = vld [vmem:[#allocation7 + $0x290] sm:$0xff]
    %v8530 = vld [vmem:[#allocation7 + $0x298] sm:$0xff]
    %v8531 = vld [vmem:[#allocation7 + $0x2a0] sm:$0xff]
    %v8532 = vld [vmem:[#allocation7 + $0x2a8] sm:$0xff]
    %v8533 = vld [vmem:[#allocation7 + $0x2b0] sm:$0xff]
    %v8534 = vld [vmem:[#allocation7 + $0x2b8] sm:$0xff]
    %v8535 = vld [vmem:[#allocation7 + $0x2c0] sm:$0xff]
    %v8536 = vld [vmem:[#allocation7 + $0x2c8] sm:$0xff]
    %v8537 = vld [vmem:[#allocation7 + $0x2d0] sm:$0xff]
    %v8538 = vld [vmem:[#allocation7 + $0x2d8] sm:$0xff]
    %v8539 = vld [vmem:[#allocation7 + $0x2e0] sm:$0xff]
    %v8540 = vld [vmem:[#allocation7 + $0x2e8] sm:$0xff]
    %v8541 = vld [vmem:[#allocation7 + $0x2f0] sm:$0xff]
    %v8542 = vld [vmem:[#allocation7 + $0x2f8] sm:$0xff]
    %v8543 = vld [vmem:[#allocation7 + $0x300] sm:$0xff]
    %v8544 = vld [vmem:[#allocation7 + $0x308] sm:$0xff]
    %v8545 = vld [vmem:[#allocation7 + $0x310] sm:$0xff]
    %v8546 = vld [vmem:[#allocation7 + $0x318] sm:$0xff]
    %v8547 = vld [vmem:[#allocation7 + $0x320] sm:$0xff]
    %v8548 = vld [vmem:[#allocation7 + $0x328] sm:$0xff]
    %v8549 = vld [vmem:[#allocation7 + $0x330] sm:$0xff]
    %v8550 = vld [vmem:[#allocation7 + $0x338] sm:$0xff]
    %v8551 = vld [vmem:[#allocation7 + $0x340] sm:$0xff]
    %v8552 = vld [vmem:[#allocation7 + $0x348] sm:$0xff]
    %v8553 = vld [vmem:[#allocation7 + $0x350] sm:$0xff]
    %v8554 = vld [vmem:[#allocation7 + $0x358] sm:$0xff]
    %v8555 = vld [vmem:[#allocation7 + $0x360] sm:$0xff]
    %v8556 = vld [vmem:[#allocation7 + $0x368] sm:$0xff]
    %v8557 = vld [vmem:[#allocation7 + $0x370] sm:$0xff]
    %v8558 = vld [vmem:[#allocation7 + $0x378] sm:$0xff]
    %v8559 = vld [vmem:[#allocation7 + $0x380] sm:$0xff]
    %v8560 = vld [vmem:[#allocation7 + $0x388] sm:$0xff]
    %v8561 = vld [vmem:[#allocation7 + $0x390] sm:$0xff]
    %v8562 = vld [vmem:[#allocation7 + $0x398] sm:$0xff]
    %v8563 = vld [vmem:[#allocation7 + $0x3a0] sm:$0xff]
    %v8564 = vld [vmem:[#allocation7 + $0x3a8] sm:$0xff]
    %v8565 = vld [vmem:[#allocation7 + $0x3b0] sm:$0xff]
    %v8566 = vld [vmem:[#allocation7 + $0x3b8] sm:$0xff]
    %v8567 = vld [vmem:[#allocation7 + $0x3c0] sm:$0xff]
    %v8568 = vld [vmem:[#allocation7 + $0x3c8] sm:$0xff]
    %v8569 = vld [vmem:[#allocation7 + $0x3d0] sm:$0xff]
    %v8570 = vld [vmem:[#allocation7 + $0x3d8] sm:$0xff]
    %v8571 = vld [vmem:[#allocation7 + $0x3e0] sm:$0xff]
    %v8572 = vld [vmem:[#allocation7 + $0x3e8] sm:$0xff]
    %v8573 = vld [vmem:[#allocation7 + $0x3f0] sm:$0xff]
    %v8574 = vld [vmem:[#allocation7 + $0x3f8] sm:$0xff]
    %v8575 = vld [vmem:[#allocation7 + $0x400] sm:$0xff]
    %v8576 = vld [vmem:[#allocation7 + $0x408] sm:$0xff]
    %v8577 = vld [vmem:[#allocation7 + $0x410] sm:$0xff]
    %v8578 = vld [vmem:[#allocation7 + $0x418] sm:$0xff]
    %v8579 = vld [vmem:[#allocation7 + $0x420] sm:$0xff]
    %v8580 = vld [vmem:[#allocation7 + $0x428] sm:$0xff]
    %v8581 = vld [vmem:[#allocation7 + $0x430] sm:$0xff]
    %v8582 = vld [vmem:[#allocation7 + $0x438] sm:$0xff]
    %v8583 = vld [vmem:[#allocation7 + $0x440] sm:$0xff]
    %v8584 = vld [vmem:[#allocation7 + $0x448] sm:$0xff]
    %v8585 = vld [vmem:[#allocation7 + $0x450] sm:$0xff]
    %v8586 = vld [vmem:[#allocation7 + $0x458] sm:$0xff]
    %v8587 = vld [vmem:[#allocation7 + $0x460] sm:$0xff]
    %v8588 = vld [vmem:[#allocation7 + $0x468] sm:$0xff]
    %v8589 = vld [vmem:[#allocation7 + $0x470] sm:$0xff]
    %v8590 = vld [vmem:[#allocation7 + $0x478] sm:$0xff]
    %v8591 = vld [vmem:[#allocation7 + $0x480] sm:$0xff]
    %v8592 = vld [vmem:[#allocation7 + $0x488] sm:$0xff]
    %v8593 = vld [vmem:[#allocation7 + $0x490] sm:$0xff]
    %v8594 = vld [vmem:[#allocation7 + $0x498] sm:$0xff]
    %v8595 = vld [vmem:[#allocation7 + $0x4a0] sm:$0xff]
    %v8596 = vld [vmem:[#allocation7 + $0x4a8] sm:$0xff]
    %v8597 = vld [vmem:[#allocation7 + $0x4b0] sm:$0xff]
    %v8598 = vld [vmem:[#allocation7 + $0x4b8] sm:$0xff]
    %v8599 = vld [vmem:[#allocation7 + $0x4c0] sm:$0xff]
    %v8600 = vld [vmem:[#allocation7 + $0x4c8] sm:$0xff]
    %v8601 = vld [vmem:[#allocation7 + $0x4d0] sm:$0xff]
    %v8602 = vld [vmem:[#allocation7 + $0x4d8] sm:$0xff]
    %v8603 = vld [vmem:[#allocation7 + $0x4e0] sm:$0xff]
    %v8604 = vld [vmem:[#allocation7 + $0x4e8] sm:$0xff]
    %v8605 = vld [vmem:[#allocation7 + $0x4f0] sm:$0xff]
    %v8606 = vld [vmem:[#allocation7 + $0x4f8] sm:$0xff]
    %v8607 = vld [vmem:[#allocation7 + $0x500] sm:$0xff]
    %v8608 = vld [vmem:[#allocation7 + $0x508] sm:$0xff]
    %v8609 = vld [vmem:[#allocation7 + $0x510] sm:$0xff]
    %v8610 = vld [vmem:[#allocation7 + $0x518] sm:$0xff]
    %v8611 = vld [vmem:[#allocation7 + $0x520] sm:$0xff]
    %v8612 = vld [vmem:[#allocation7 + $0x528] sm:$0xff]
    %v8613 = vld [vmem:[#allocation7 + $0x530] sm:$0xff]
    %v8614 = vld [vmem:[#allocation7 + $0x538] sm:$0xff]
    %v8615 = vld [vmem:[#allocation7 + $0x540] sm:$0xff]
    %v8616 = vld [vmem:[#allocation7 + $0x548] sm:$0xff]
    %v8617 = vld [vmem:[#allocation7 + $0x550] sm:$0xff]
    %v8618 = vld [vmem:[#allocation7 + $0x558] sm:$0xff]
    %v8619 = vld [vmem:[#allocation7 + $0x560] sm:$0xff]
    %v8620 = vld [vmem:[#allocation7 + $0x568] sm:$0xff]
    %v8621 = vld [vmem:[#allocation7 + $0x570] sm:$0xff]
    %v8622 = vld [vmem:[#allocation7 + $0x578] sm:$0xff]
    %v8623 = vld [vmem:[#allocation7 + $0x580] sm:$0xff]
    %v8624 = vld [vmem:[#allocation7 + $0x588] sm:$0xff]
    %v8625 = vld [vmem:[#allocation7 + $0x590] sm:$0xff]
    %v8626 = vld [vmem:[#allocation7 + $0x598] sm:$0xff]
    %v8627 = vld [vmem:[#allocation7 + $0x5a0] sm:$0xff]
    %v8628 = vld [vmem:[#allocation7 + $0x5a8] sm:$0xff]
    %v8629 = vld [vmem:[#allocation7 + $0x5b0] sm:$0xff]
    %v8630 = vld [vmem:[#allocation7 + $0x5b8] sm:$0xff]
    %v8631 = vld [vmem:[#allocation7 + $0x5c0] sm:$0xff]
    %v8632 = vld [vmem:[#allocation7 + $0x5c8] sm:$0xff]
    %v8633 = vld [vmem:[#allocation7 + $0x5d0] sm:$0xff]
    %v8634 = vld [vmem:[#allocation7 + $0x5d8] sm:$0xff]
    %v8635 = vld [vmem:[#allocation7 + $0x5e0] sm:$0xff]
    %v8636 = vld [vmem:[#allocation7 + $0x5e8] sm:$0xff]
    %v8637 = vld [vmem:[#allocation7 + $0x5f0] sm:$0xff]
    %v8638 = vld [vmem:[#allocation7 + $0x5f8] sm:$0xff]
    %v8639 = vld [vmem:[#allocation7 + $0x600] sm:$0xff]
    %v8640 = vld [vmem:[#allocation7 + $0x608] sm:$0xff]
    %v8641 = vld [vmem:[#allocation7 + $0x610] sm:$0xff]
    %v8642 = vld [vmem:[#allocation7 + $0x618] sm:$0xff]
    %v8643 = vld [vmem:[#allocation7 + $0x620] sm:$0xff]
    %v8644 = vld [vmem:[#allocation7 + $0x628] sm:$0xff]
    %v8645 = vld [vmem:[#allocation7 + $0x630] sm:$0xff]
    %v8646 = vld [vmem:[#allocation7 + $0x638] sm:$0xff]
    %v8647 = vld [vmem:[#allocation7 + $0x640] sm:$0xff]
    %v8648 = vld [vmem:[#allocation7 + $0x648] sm:$0xff]
    %v8649 = vld [vmem:[#allocation7 + $0x650] sm:$0xff]
    %v8650 = vld [vmem:[#allocation7 + $0x658] sm:$0xff]
    %v8651 = vld [vmem:[#allocation7 + $0x660] sm:$0xff]
    %v8652 = vld [vmem:[#allocation7 + $0x668] sm:$0xff]
    %v8653 = vld [vmem:[#allocation7 + $0x670] sm:$0xff]
    %v8654 = vld [vmem:[#allocation7 + $0x678] sm:$0xff]
    %v8655 = vld [vmem:[#allocation7 + $0x680] sm:$0xff]
    %v8656 = vld [vmem:[#allocation7 + $0x688] sm:$0xff]
    %v8657 = vld [vmem:[#allocation7 + $0x690] sm:$0xff]
    %v8658 = vld [vmem:[#allocation7 + $0x698] sm:$0xff]
    %v8659 = vld [vmem:[#allocation7 + $0x6a0] sm:$0xff]
    %v8660 = vld [vmem:[#allocation7 + $0x6a8] sm:$0xff]
    %v8661 = vld [vmem:[#allocation7 + $0x6b0] sm:$0xff]
    %v8662 = vld [vmem:[#allocation7 + $0x6b8] sm:$0xff]
    %v8663 = vld [vmem:[#allocation7 + $0x6c0] sm:$0xff]
    %v8664 = vld [vmem:[#allocation7 + $0x6c8] sm:$0xff]
    %v8665 = vld [vmem:[#allocation7 + $0x6d0] sm:$0xff]
    %v8666 = vld [vmem:[#allocation7 + $0x6d8] sm:$0xff]
    %v8667 = vld [vmem:[#allocation7 + $0x6e0] sm:$0xff]
    %v8668 = vld [vmem:[#allocation7 + $0x6e8] sm:$0xff]
    %v8669 = vld [vmem:[#allocation7 + $0x6f0] sm:$0xff]
    %v8670 = vld [vmem:[#allocation7 + $0x6f8] sm:$0xff]
    %v8671 = vld [vmem:[#allocation7 + $0x700] sm:$0xff]
    %v8672 = vld [vmem:[#allocation7 + $0x708] sm:$0xff]
    %v8673 = vld [vmem:[#allocation7 + $0x710] sm:$0xff]
    %v8674 = vld [vmem:[#allocation7 + $0x718] sm:$0xff]
    %v8675 = vld [vmem:[#allocation7 + $0x720] sm:$0xff]
    %v8676 = vld [vmem:[#allocation7 + $0x728] sm:$0xff]
    %v8677 = vld [vmem:[#allocation7 + $0x730] sm:$0xff]
    %v8678 = vld [vmem:[#allocation7 + $0x738] sm:$0xff]
    %v8679 = vld [vmem:[#allocation7 + $0x740] sm:$0xff]
    %v8680 = vld [vmem:[#allocation7 + $0x748] sm:$0xff]
    %v8681 = vld [vmem:[#allocation7 + $0x750] sm:$0xff]
    %v8682 = vld [vmem:[#allocation7 + $0x758] sm:$0xff]
    %v8683 = vld [vmem:[#allocation7 + $0x760] sm:$0xff]
    %v8684 = vld [vmem:[#allocation7 + $0x768] sm:$0xff]
    %v8685 = vld [vmem:[#allocation7 + $0x770] sm:$0xff]
    %v8686 = vld [vmem:[#allocation7 + $0x778] sm:$0xff]
    %v8687 = vld [vmem:[#allocation7 + $0x780] sm:$0xff]
    %v8688 = vld [vmem:[#allocation7 + $0x788] sm:$0xff]
    %v8689 = vld [vmem:[#allocation7 + $0x790] sm:$0xff]
    %v8690 = vld [vmem:[#allocation7 + $0x798] sm:$0xff]
    %v8691 = vld [vmem:[#allocation7 + $0x7a0] sm:$0xff]
    %v8692 = vld [vmem:[#allocation7 + $0x7a8] sm:$0xff]
    %v8693 = vld [vmem:[#allocation7 + $0x7b0] sm:$0xff]
    %v8694 = vld [vmem:[#allocation7 + $0x7b8] sm:$0xff]
    %v8695 = vld [vmem:[#allocation7 + $0x7c0] sm:$0xff]
    %v8696 = vld [vmem:[#allocation7 + $0x7c8] sm:$0xff]
    %v8697 = vld [vmem:[#allocation7 + $0x7d0] sm:$0xff]
    %v8698 = vld [vmem:[#allocation7 + $0x7d8] sm:$0xff]
    %v8699 = vld [vmem:[#allocation7 + $0x7e0] sm:$0xff]
    %v8700 = vld [vmem:[#allocation7 + $0x7e8] sm:$0xff]
    %v8701 = vld [vmem:[#allocation7 + $0x7f0] sm:$0xff]
    %v8702 = vld [vmem:[#allocation7 + $0x7f8] sm:$0xff]
    %v8703 = vld [vmem:[#allocation9] sm:$0xf]
    %v8704 = vpack.c.bf16 %v8439, %v8439
    %v8705 = vpack.c.bf16 %v8440, %v8440
    %v8706 = vpack.c.bf16 %v8441, %v8441
    %v8707 = vpack.c.bf16 %v8442, %v8442
    %v8708 = vpack.c.bf16 %v8443, %v8443
    %v8709 = vpack.c.bf16 %v8444, %v8444
    %v8710 = vpack.c.bf16 %v8445, %v8445
    %v8711 = vpack.c.bf16 %v8446, %v8446
    %v8713 = vperm.slane %v8703, 0
    %v8714 = vperm.slane %v8703, 1
    %v8715 = vperm.slane %v8703, 2
    %v8716 = vperm.slane %v8703, 3
    %v8977 = vunpack.c.l.b16 %v8447
    %v8978 = vunpack.c.h.b16 %v8447
    %v8979 = vunpack.c.l.b16 %v8448
    %v8980 = vunpack.c.h.b16 %v8448
    %v8981 = vunpack.c.l.b16 %v8449
    %v8982 = vunpack.c.h.b16 %v8449
    %v8983 = vunpack.c.l.b16 %v8450
    %v8984 = vunpack.c.h.b16 %v8450
    %v8985 = vunpack.c.l.b16 %v8451
    %v8986 = vunpack.c.h.b16 %v8451
    %v8987 = vunpack.c.l.b16 %v8452
    %v8988 = vunpack.c.h.b16 %v8452
    %v8989 = vunpack.c.l.b16 %v8453
    %v8990 = vunpack.c.h.b16 %v8453
    %v8991 = vunpack.c.l.b16 %v8454
    %v8992 = vunpack.c.h.b16 %v8454
    %v8993 = vunpack.c.l.b16 %v8455
    %v8994 = vunpack.c.h.b16 %v8455
    %v8995 = vunpack.c.l.b16 %v8456
    %v8996 = vunpack.c.h.b16 %v8456
    %v8997 = vunpack.c.l.b16 %v8457
    %v8998 = vunpack.c.h.b16 %v8457
    %v8999 = vunpack.c.l.b16 %v8458
    %v9000 = vunpack.c.h.b16 %v8458
    %v9001 = vunpack.c.l.b16 %v8459
    %v9002 = vunpack.c.h.b16 %v8459
    %v9003 = vunpack.c.l.b16 %v8460
    %v9004 = vunpack.c.h.b16 %v8460
    %v9005 = vunpack.c.l.b16 %v8461
    %v9006 = vunpack.c.h.b16 %v8461
    %v9007 = vunpack.c.l.b16 %v8462
    %v9008 = vunpack.c.h.b16 %v8462
    %v9009 = vunpack.c.l.b16 %v8463
    %v9010 = vunpack.c.h.b16 %v8463
    %v9011 = vunpack.c.l.b16 %v8464
    %v9012 = vunpack.c.h.b16 %v8464
    %v9013 = vunpack.c.l.b16 %v8465
    %v9014 = vunpack.c.h.b16 %v8465
    %v9015 = vunpack.c.l.b16 %v8466
    %v9016 = vunpack.c.h.b16 %v8466
    %v9017 = vunpack.c.l.b16 %v8467
    %v9018 = vunpack.c.h.b16 %v8467
    %v9019 = vunpack.c.l.b16 %v8468
    %v9020 = vunpack.c.h.b16 %v8468
    %v9021 = vunpack.c.l.b16 %v8469
    %v9022 = vunpack.c.h.b16 %v8469
    %v9023 = vunpack.c.l.b16 %v8470
    %v9024 = vunpack.c.h.b16 %v8470
    %v9025 = vunpack.c.l.b16 %v8471
    %v9026 = vunpack.c.h.b16 %v8471
    %v9027 = vunpack.c.l.b16 %v8472
    %v9028 = vunpack.c.h.b16 %v8472
    %v9029 = vunpack.c.l.b16 %v8473
    %v9030 = vunpack.c.h.b16 %v8473
    %v9031 = vunpack.c.l.b16 %v8474
    %v9032 = vunpack.c.h.b16 %v8474
    %v9033 = vunpack.c.l.b16 %v8475
    %v9034 = vunpack.c.h.b16 %v8475
    %v9035 = vunpack.c.l.b16 %v8476
    %v9036 = vunpack.c.h.b16 %v8476
    %v9037 = vunpack.c.l.b16 %v8477
    %v9038 = vunpack.c.h.b16 %v8477
    %v9039 = vunpack.c.l.b16 %v8478
    %v9040 = vunpack.c.h.b16 %v8478
    %v9041 = vunpack.c.l.b16 %v8479
    %v9042 = vunpack.c.h.b16 %v8479
    %v9043 = vunpack.c.l.b16 %v8480
    %v9044 = vunpack.c.h.b16 %v8480
    %v9045 = vunpack.c.l.b16 %v8481
    %v9046 = vunpack.c.h.b16 %v8481
    %v9047 = vunpack.c.l.b16 %v8482
    %v9048 = vunpack.c.h.b16 %v8482
    %v9049 = vunpack.c.l.b16 %v8483
    %v9050 = vunpack.c.h.b16 %v8483
    %v9051 = vunpack.c.l.b16 %v8484
    %v9052 = vunpack.c.h.b16 %v8484
    %v9053 = vunpack.c.l.b16 %v8485
    %v9054 = vunpack.c.h.b16 %v8485
    %v9055 = vunpack.c.l.b16 %v8486
    %v9056 = vunpack.c.h.b16 %v8486
    %v9057 = vunpack.c.l.b16 %v8487
    %v9058 = vunpack.c.h.b16 %v8487
    %v9059 = vunpack.c.l.b16 %v8488
    %v9060 = vunpack.c.h.b16 %v8488
    %v9061 = vunpack.c.l.b16 %v8489
    %v9062 = vunpack.c.h.b16 %v8489
    %v9063 = vunpack.c.l.b16 %v8490
    %v9064 = vunpack.c.h.b16 %v8490
    %v9065 = vunpack.c.l.b16 %v8491
    %v9066 = vunpack.c.h.b16 %v8491
    %v9067 = vunpack.c.l.b16 %v8492
    %v9068 = vunpack.c.h.b16 %v8492
    %v9069 = vunpack.c.l.b16 %v8493
    %v9070 = vunpack.c.h.b16 %v8493
    %v9071 = vunpack.c.l.b16 %v8494
    %v9072 = vunpack.c.h.b16 %v8494
    %v9073 = vunpack.c.l.b16 %v8495
    %v9074 = vunpack.c.h.b16 %v8495
    %v9075 = vunpack.c.l.b16 %v8496
    %v9076 = vunpack.c.h.b16 %v8496
    %v9077 = vunpack.c.l.b16 %v8497
    %v9078 = vunpack.c.h.b16 %v8497
    %v9079 = vunpack.c.l.b16 %v8498
    %v9080 = vunpack.c.h.b16 %v8498
    %v9081 = vunpack.c.l.b16 %v8499
    %v9082 = vunpack.c.h.b16 %v8499
    %v9083 = vunpack.c.l.b16 %v8500
    %v9084 = vunpack.c.h.b16 %v8500
    %v9085 = vunpack.c.l.b16 %v8501
    %v9086 = vunpack.c.h.b16 %v8501
    %v9087 = vunpack.c.l.b16 %v8502
    %v9088 = vunpack.c.h.b16 %v8502
    %v9089 = vunpack.c.l.b16 %v8503
    %v9090 = vunpack.c.h.b16 %v8503
    %v9091 = vunpack.c.l.b16 %v8504
    %v9092 = vunpack.c.h.b16 %v8504
    %v9093 = vunpack.c.l.b16 %v8505
    %v9094 = vunpack.c.h.b16 %v8505
    %v9095 = vunpack.c.l.b16 %v8506
    %v9096 = vunpack.c.h.b16 %v8506
    %v9097 = vunpack.c.l.b16 %v8507
    %v9098 = vunpack.c.h.b16 %v8507
    %v9099 = vunpack.c.l.b16 %v8508
    %v9100 = vunpack.c.h.b16 %v8508
    %v9101 = vunpack.c.l.b16 %v8509
    %v9102 = vunpack.c.h.b16 %v8509
    %v9103 = vunpack.c.l.b16 %v8510
    %v9104 = vunpack.c.h.b16 %v8510
    %v9105 = vunpack.c.l.b16 %v8511
    %v9106 = vunpack.c.h.b16 %v8511
    %v9107 = vunpack.c.l.b16 %v8512
    %v9108 = vunpack.c.h.b16 %v8512
    %v9109 = vunpack.c.l.b16 %v8513
    %v9110 = vunpack.c.h.b16 %v8513
    %v9111 = vunpack.c.l.b16 %v8514
    %v9112 = vunpack.c.h.b16 %v8514
    %v9113 = vunpack.c.l.b16 %v8515
    %v9114 = vunpack.c.h.b16 %v8515
    %v9115 = vunpack.c.l.b16 %v8516
    %v9116 = vunpack.c.h.b16 %v8516
    %v9117 = vunpack.c.l.b16 %v8517
    %v9118 = vunpack.c.h.b16 %v8517
    %v9119 = vunpack.c.l.b16 %v8518
    %v9120 = vunpack.c.h.b16 %v8518
    %v9121 = vunpack.c.l.b16 %v8519
    %v9122 = vunpack.c.h.b16 %v8519
    %v9123 = vunpack.c.l.b16 %v8520
    %v9124 = vunpack.c.h.b16 %v8520
    %v9125 = vunpack.c.l.b16 %v8521
    %v9126 = vunpack.c.h.b16 %v8521
    %v9127 = vunpack.c.l.b16 %v8522
    %v9128 = vunpack.c.h.b16 %v8522
    %v9129 = vunpack.c.l.b16 %v8523
    %v9130 = vunpack.c.h.b16 %v8523
    %v9131 = vunpack.c.l.b16 %v8524
    %v9132 = vunpack.c.h.b16 %v8524
    %v9133 = vunpack.c.l.b16 %v8525
    %v9134 = vunpack.c.h.b16 %v8525
    %v9135 = vunpack.c.l.b16 %v8526
    %v9136 = vunpack.c.h.b16 %v8526
    %v9137 = vunpack.c.l.b16 %v8527
    %v9138 = vunpack.c.h.b16 %v8527
    %v9139 = vunpack.c.l.b16 %v8528
    %v9140 = vunpack.c.h.b16 %v8528
    %v9141 = vunpack.c.l.b16 %v8529
    %v9142 = vunpack.c.h.b16 %v8529
    %v9143 = vunpack.c.l.b16 %v8530
    %v9144 = vunpack.c.h.b16 %v8530
    %v9145 = vunpack.c.l.b16 %v8531
    %v9146 = vunpack.c.h.b16 %v8531
    %v9147 = vunpack.c.l.b16 %v8532
    %v9148 = vunpack.c.h.b16 %v8532
    %v9149 = vunpack.c.l.b16 %v8533
    %v9150 = vunpack.c.h.b16 %v8533
    %v9151 = vunpack.c.l.b16 %v8534
    %v9152 = vunpack.c.h.b16 %v8534
    %v9153 = vunpack.c.l.b16 %v8535
    %v9154 = vunpack.c.h.b16 %v8535
    %v9155 = vunpack.c.l.b16 %v8536
    %v9156 = vunpack.c.h.b16 %v8536
    %v9157 = vunpack.c.l.b16 %v8537
    %v9158 = vunpack.c.h.b16 %v8537
    %v9159 = vunpack.c.l.b16 %v8538
    %v9160 = vunpack.c.h.b16 %v8538
    %v9161 = vunpack.c.l.b16 %v8539
    %v9162 = vunpack.c.h.b16 %v8539
    %v9163 = vunpack.c.l.b16 %v8540
    %v9164 = vunpack.c.h.b16 %v8540
    %v9165 = vunpack.c.l.b16 %v8541
    %v9166 = vunpack.c.h.b16 %v8541
    %v9167 = vunpack.c.l.b16 %v8542
    %v9168 = vunpack.c.h.b16 %v8542
    %v9169 = vunpack.c.l.b16 %v8543
    %v9170 = vunpack.c.h.b16 %v8543
    %v9171 = vunpack.c.l.b16 %v8544
    %v9172 = vunpack.c.h.b16 %v8544
    %v9173 = vunpack.c.l.b16 %v8545
    %v9174 = vunpack.c.h.b16 %v8545
    %v9175 = vunpack.c.l.b16 %v8546
    %v9176 = vunpack.c.h.b16 %v8546
    %v9177 = vunpack.c.l.b16 %v8547
    %v9178 = vunpack.c.h.b16 %v8547
    %v9179 = vunpack.c.l.b16 %v8548
    %v9180 = vunpack.c.h.b16 %v8548
    %v9181 = vunpack.c.l.b16 %v8549
    %v9182 = vunpack.c.h.b16 %v8549
    %v9183 = vunpack.c.l.b16 %v8550
    %v9184 = vunpack.c.h.b16 %v8550
    %v9185 = vunpack.c.l.b16 %v8551
    %v9186 = vunpack.c.h.b16 %v8551
    %v9187 = vunpack.c.l.b16 %v8552
    %v9188 = vunpack.c.h.b16 %v8552
    %v9189 = vunpack.c.l.b16 %v8553
    %v9190 = vunpack.c.h.b16 %v8553
    %v9191 = vunpack.c.l.b16 %v8554
    %v9192 = vunpack.c.h.b16 %v8554
    %v9193 = vunpack.c.l.b16 %v8555
    %v9194 = vunpack.c.h.b16 %v8555
    %v9195 = vunpack.c.l.b16 %v8556
    %v9196 = vunpack.c.h.b16 %v8556
    %v9197 = vunpack.c.l.b16 %v8557
    %v9198 = vunpack.c.h.b16 %v8557
    %v9199 = vunpack.c.l.b16 %v8558
    %v9200 = vunpack.c.h.b16 %v8558
    %v9201 = vunpack.c.l.b16 %v8559
    %v9202 = vunpack.c.h.b16 %v8559
    %v9203 = vunpack.c.l.b16 %v8560
    %v9204 = vunpack.c.h.b16 %v8560
    %v9205 = vunpack.c.l.b16 %v8561
    %v9206 = vunpack.c.h.b16 %v8561
    %v9207 = vunpack.c.l.b16 %v8562
    %v9208 = vunpack.c.h.b16 %v8562
    %v9209 = vunpack.c.l.b16 %v8563
    %v9210 = vunpack.c.h.b16 %v8563
    %v9211 = vunpack.c.l.b16 %v8564
    %v9212 = vunpack.c.h.b16 %v8564
    %v9213 = vunpack.c.l.b16 %v8565
    %v9214 = vunpack.c.h.b16 %v8565
    %v9215 = vunpack.c.l.b16 %v8566
    %v9216 = vunpack.c.h.b16 %v8566
    %v9217 = vunpack.c.l.b16 %v8567
    %v9218 = vunpack.c.h.b16 %v8567
    %v9219 = vunpack.c.l.b16 %v8568
    %v9220 = vunpack.c.h.b16 %v8568
    %v9221 = vunpack.c.l.b16 %v8569
    %v9222 = vunpack.c.h.b16 %v8569
    %v9223 = vunpack.c.l.b16 %v8570
    %v9224 = vunpack.c.h.b16 %v8570
    %v9225 = vunpack.c.l.b16 %v8571
    %v9226 = vunpack.c.h.b16 %v8571
    %v9227 = vunpack.c.l.b16 %v8572
    %v9228 = vunpack.c.h.b16 %v8572
    %v9229 = vunpack.c.l.b16 %v8573
    %v9230 = vunpack.c.h.b16 %v8573
    %v9231 = vunpack.c.l.b16 %v8574
    %v9232 = vunpack.c.h.b16 %v8574
    %v9233 = vunpack.c.l.b16 %v8575
    %v9234 = vunpack.c.h.b16 %v8575
    %v9235 = vunpack.c.l.b16 %v8576
    %v9236 = vunpack.c.h.b16 %v8576
    %v9237 = vunpack.c.l.b16 %v8577
    %v9238 = vunpack.c.h.b16 %v8577
    %v9239 = vunpack.c.l.b16 %v8578
    %v9240 = vunpack.c.h.b16 %v8578
    %v9241 = vunpack.c.l.b16 %v8579
    %v9242 = vunpack.c.h.b16 %v8579
    %v9243 = vunpack.c.l.b16 %v8580
    %v9244 = vunpack.c.h.b16 %v8580
    %v9245 = vunpack.c.l.b16 %v8581
    %v9246 = vunpack.c.h.b16 %v8581
    %v9247 = vunpack.c.l.b16 %v8582
    %v9248 = vunpack.c.h.b16 %v8582
    %v9249 = vunpack.c.l.b16 %v8583
    %v9250 = vunpack.c.h.b16 %v8583
    %v9251 = vunpack.c.l.b16 %v8584
    %v9252 = vunpack.c.h.b16 %v8584
    %v9253 = vunpack.c.l.b16 %v8585
    %v9254 = vunpack.c.h.b16 %v8585
    %v9255 = vunpack.c.l.b16 %v8586
    %v9256 = vunpack.c.h.b16 %v8586
    %v9257 = vunpack.c.l.b16 %v8587
    %v9258 = vunpack.c.h.b16 %v8587
    %v9259 = vunpack.c.l.b16 %v8588
    %v9260 = vunpack.c.h.b16 %v8588
    %v9261 = vunpack.c.l.b16 %v8589
    %v9262 = vunpack.c.h.b16 %v8589
    %v9263 = vunpack.c.l.b16 %v8590
    %v9264 = vunpack.c.h.b16 %v8590
    %v9265 = vunpack.c.l.b16 %v8591
    %v9266 = vunpack.c.h.b16 %v8591
    %v9267 = vunpack.c.l.b16 %v8592
    %v9268 = vunpack.c.h.b16 %v8592
    %v9269 = vunpack.c.l.b16 %v8593
    %v9270 = vunpack.c.h.b16 %v8593
    %v9271 = vunpack.c.l.b16 %v8594
    %v9272 = vunpack.c.h.b16 %v8594
    %v9273 = vunpack.c.l.b16 %v8595
    %v9274 = vunpack.c.h.b16 %v8595
    %v9275 = vunpack.c.l.b16 %v8596
    %v9276 = vunpack.c.h.b16 %v8596
    %v9277 = vunpack.c.l.b16 %v8597
    %v9278 = vunpack.c.h.b16 %v8597
    %v9279 = vunpack.c.l.b16 %v8598
    %v9280 = vunpack.c.h.b16 %v8598
    %v9281 = vunpack.c.l.b16 %v8599
    %v9282 = vunpack.c.h.b16 %v8599
    %v9283 = vunpack.c.l.b16 %v8600
    %v9284 = vunpack.c.h.b16 %v8600
    %v9285 = vunpack.c.l.b16 %v8601
    %v9286 = vunpack.c.h.b16 %v8601
    %v9287 = vunpack.c.l.b16 %v8602
    %v9288 = vunpack.c.h.b16 %v8602
    %v9289 = vunpack.c.l.b16 %v8603
    %v9290 = vunpack.c.h.b16 %v8603
    %v9291 = vunpack.c.l.b16 %v8604
    %v9292 = vunpack.c.h.b16 %v8604
    %v9293 = vunpack.c.l.b16 %v8605
    %v9294 = vunpack.c.h.b16 %v8605
    %v9295 = vunpack.c.l.b16 %v8606
    %v9296 = vunpack.c.h.b16 %v8606
    %v9297 = vunpack.c.l.b16 %v8607
    %v9298 = vunpack.c.h.b16 %v8607
    %v9299 = vunpack.c.l.b16 %v8608
    %v9300 = vunpack.c.h.b16 %v8608
    %v9301 = vunpack.c.l.b16 %v8609
    %v9302 = vunpack.c.h.b16 %v8609
    %v9303 = vunpack.c.l.b16 %v8610
    %v9304 = vunpack.c.h.b16 %v8610
    %v9305 = vunpack.c.l.b16 %v8611
    %v9306 = vunpack.c.h.b16 %v8611
    %v9307 = vunpack.c.l.b16 %v8612
    %v9308 = vunpack.c.h.b16 %v8612
    %v9309 = vunpack.c.l.b16 %v8613
    %v9310 = vunpack.c.h.b16 %v8613
    %v9311 = vunpack.c.l.b16 %v8614
    %v9312 = vunpack.c.h.b16 %v8614
    %v9313 = vunpack.c.l.b16 %v8615
    %v9314 = vunpack.c.h.b16 %v8615
    %v9315 = vunpack.c.l.b16 %v8616
    %v9316 = vunpack.c.h.b16 %v8616
    %v9317 = vunpack.c.l.b16 %v8617
    %v9318 = vunpack.c.h.b16 %v8617
    %v9319 = vunpack.c.l.b16 %v8618
    %v9320 = vunpack.c.h.b16 %v8618
    %v9321 = vunpack.c.l.b16 %v8619
    %v9322 = vunpack.c.h.b16 %v8619
    %v9323 = vunpack.c.l.b16 %v8620
    %v9324 = vunpack.c.h.b16 %v8620
    %v9325 = vunpack.c.l.b16 %v8621
    %v9326 = vunpack.c.h.b16 %v8621
    %v9327 = vunpack.c.l.b16 %v8622
    %v9328 = vunpack.c.h.b16 %v8622
    %v9329 = vunpack.c.l.b16 %v8623
    %v9330 = vunpack.c.h.b16 %v8623
    %v9331 = vunpack.c.l.b16 %v8624
    %v9332 = vunpack.c.h.b16 %v8624
    %v9333 = vunpack.c.l.b16 %v8625
    %v9334 = vunpack.c.h.b16 %v8625
    %v9335 = vunpack.c.l.b16 %v8626
    %v9336 = vunpack.c.h.b16 %v8626
    %v9337 = vunpack.c.l.b16 %v8627
    %v9338 = vunpack.c.h.b16 %v8627
    %v9339 = vunpack.c.l.b16 %v8628
    %v9340 = vunpack.c.h.b16 %v8628
    %v9341 = vunpack.c.l.b16 %v8629
    %v9342 = vunpack.c.h.b16 %v8629
    %v9343 = vunpack.c.l.b16 %v8630
    %v9344 = vunpack.c.h.b16 %v8630
    %v9345 = vunpack.c.l.b16 %v8631
    %v9346 = vunpack.c.h.b16 %v8631
    %v9347 = vunpack.c.l.b16 %v8632
    %v9348 = vunpack.c.h.b16 %v8632
    %v9349 = vunpack.c.l.b16 %v8633
    %v9350 = vunpack.c.h.b16 %v8633
    %v9351 = vunpack.c.l.b16 %v8634
    %v9352 = vunpack.c.h.b16 %v8634
    %v9353 = vunpack.c.l.b16 %v8635
    %v9354 = vunpack.c.h.b16 %v8635
    %v9355 = vunpack.c.l.b16 %v8636
    %v9356 = vunpack.c.h.b16 %v8636
    %v9357 = vunpack.c.l.b16 %v8637
    %v9358 = vunpack.c.h.b16 %v8637
    %v9359 = vunpack.c.l.b16 %v8638
    %v9360 = vunpack.c.h.b16 %v8638
    %v9361 = vunpack.c.l.b16 %v8639
    %v9362 = vunpack.c.h.b16 %v8639
    %v9363 = vunpack.c.l.b16 %v8640
    %v9364 = vunpack.c.h.b16 %v8640
    %v9365 = vunpack.c.l.b16 %v8641
    %v9366 = vunpack.c.h.b16 %v8641
    %v9367 = vunpack.c.l.b16 %v8642
    %v9368 = vunpack.c.h.b16 %v8642
    %v9369 = vunpack.c.l.b16 %v8643
    %v9370 = vunpack.c.h.b16 %v8643
    %v9371 = vunpack.c.l.b16 %v8644
    %v9372 = vunpack.c.h.b16 %v8644
    %v9373 = vunpack.c.l.b16 %v8645
    %v9374 = vunpack.c.h.b16 %v8645
    %v9375 = vunpack.c.l.b16 %v8646
    %v9376 = vunpack.c.h.b16 %v8646
    %v9377 = vunpack.c.l.b16 %v8647
    %v9378 = vunpack.c.h.b16 %v8647
    %v9379 = vunpack.c.l.b16 %v8648
    %v9380 = vunpack.c.h.b16 %v8648
    %v9381 = vunpack.c.l.b16 %v8649
    %v9382 = vunpack.c.h.b16 %v8649
    %v9383 = vunpack.c.l.b16 %v8650
    %v9384 = vunpack.c.h.b16 %v8650
    %v9385 = vunpack.c.l.b16 %v8651
    %v9386 = vunpack.c.h.b16 %v8651
    %v9387 = vunpack.c.l.b16 %v8652
    %v9388 = vunpack.c.h.b16 %v8652
    %v9389 = vunpack.c.l.b16 %v8653
    %v9390 = vunpack.c.h.b16 %v8653
    %v9391 = vunpack.c.l.b16 %v8654
    %v9392 = vunpack.c.h.b16 %v8654
    %v9393 = vunpack.c.l.b16 %v8655
    %v9394 = vunpack.c.h.b16 %v8655
    %v9395 = vunpack.c.l.b16 %v8656
    %v9396 = vunpack.c.h.b16 %v8656
    %v9397 = vunpack.c.l.b16 %v8657
    %v9398 = vunpack.c.h.b16 %v8657
    %v9399 = vunpack.c.l.b16 %v8658
    %v9400 = vunpack.c.h.b16 %v8658
    %v9401 = vunpack.c.l.b16 %v8659
    %v9402 = vunpack.c.h.b16 %v8659
    %v9403 = vunpack.c.l.b16 %v8660
    %v9404 = vunpack.c.h.b16 %v8660
    %v9405 = vunpack.c.l.b16 %v8661
    %v9406 = vunpack.c.h.b16 %v8661
    %v9407 = vunpack.c.l.b16 %v8662
    %v9408 = vunpack.c.h.b16 %v8662
    %v9409 = vunpack.c.l.b16 %v8663
    %v9410 = vunpack.c.h.b16 %v8663
    %v9411 = vunpack.c.l.b16 %v8664
    %v9412 = vunpack.c.h.b16 %v8664
    %v9413 = vunpack.c.l.b16 %v8665
    %v9414 = vunpack.c.h.b16 %v8665
    %v9415 = vunpack.c.l.b16 %v8666
    %v9416 = vunpack.c.h.b16 %v8666
    %v9417 = vunpack.c.l.b16 %v8667
    %v9418 = vunpack.c.h.b16 %v8667
    %v9419 = vunpack.c.l.b16 %v8668
    %v9420 = vunpack.c.h.b16 %v8668
    %v9421 = vunpack.c.l.b16 %v8669
    %v9422 = vunpack.c.h.b16 %v8669
    %v9423 = vunpack.c.l.b16 %v8670
    %v9424 = vunpack.c.h.b16 %v8670
    %v9425 = vunpack.c.l.b16 %v8671
    %v9426 = vunpack.c.h.b16 %v8671
    %v9427 = vunpack.c.l.b16 %v8672
    %v9428 = vunpack.c.h.b16 %v8672
    %v9429 = vunpack.c.l.b16 %v8673
    %v9430 = vunpack.c.h.b16 %v8673
    %v9431 = vunpack.c.l.b16 %v8674
    %v9432 = vunpack.c.h.b16 %v8674
    %v9433 = vunpack.c.l.b16 %v8675
    %v9434 = vunpack.c.h.b16 %v8675
    %v9435 = vunpack.c.l.b16 %v8676
    %v9436 = vunpack.c.h.b16 %v8676
    %v9437 = vunpack.c.l.b16 %v8677
    %v9438 = vunpack.c.h.b16 %v8677
    %v9439 = vunpack.c.l.b16 %v8678
    %v9440 = vunpack.c.h.b16 %v8678
    %v9441 = vunpack.c.l.b16 %v8679
    %v9442 = vunpack.c.h.b16 %v8679
    %v9443 = vunpack.c.l.b16 %v8680
    %v9444 = vunpack.c.h.b16 %v8680
    %v9445 = vunpack.c.l.b16 %v8681
    %v9446 = vunpack.c.h.b16 %v8681
    %v9447 = vunpack.c.l.b16 %v8682
    %v9448 = vunpack.c.h.b16 %v8682
    %v9449 = vunpack.c.l.b16 %v8683
    %v9450 = vunpack.c.h.b16 %v8683
    %v9451 = vunpack.c.l.b16 %v8684
    %v9452 = vunpack.c.h.b16 %v8684
    %v9453 = vunpack.c.l.b16 %v8685
    %v9454 = vunpack.c.h.b16 %v8685
    %v9455 = vunpack.c.l.b16 %v8686
    %v9456 = vunpack.c.h.b16 %v8686
    %v9457 = vunpack.c.l.b16 %v8687
    %v9458 = vunpack.c.h.b16 %v8687
    %v9459 = vunpack.c.l.b16 %v8688
    %v9460 = vunpack.c.h.b16 %v8688
    %v9461 = vunpack.c.l.b16 %v8689
    %v9462 = vunpack.c.h.b16 %v8689
    %v9463 = vunpack.c.l.b16 %v8690
    %v9464 = vunpack.c.h.b16 %v8690
    %v9465 = vunpack.c.l.b16 %v8691
    %v9466 = vunpack.c.h.b16 %v8691
    %v9467 = vunpack.c.l.b16 %v8692
    %v9468 = vunpack.c.h.b16 %v8692
    %v9469 = vunpack.c.l.b16 %v8693
    %v9470 = vunpack.c.h.b16 %v8693
    %v9471 = vunpack.c.l.b16 %v8694
    %v9472 = vunpack.c.h.b16 %v8694
    %v9473 = vunpack.c.l.b16 %v8695
    %v9474 = vunpack.c.h.b16 %v8695
    %v9475 = vunpack.c.l.b16 %v8696
    %v9476 = vunpack.c.h.b16 %v8696
    %v9477 = vunpack.c.l.b16 %v8697
    %v9478 = vunpack.c.h.b16 %v8697
    %v9479 = vunpack.c.l.b16 %v8698
    %v9480 = vunpack.c.h.b16 %v8698
    %v9481 = vunpack.c.l.b16 %v8699
    %v9482 = vunpack.c.h.b16 %v8699
    %v9483 = vunpack.c.l.b16 %v8700
    %v9484 = vunpack.c.h.b16 %v8700
    %v9485 = vunpack.c.l.b16 %v8701
    %v9486 = vunpack.c.h.b16 %v8701
    %v9487 = vunpack.c.l.b16 %v8702
    %v9488 = vunpack.c.h.b16 %v8702
    %v9489 = vpack.c.b16 %v8981, %v8977
    %v9490 = vpack.c.b16 %v8982, %v8978
    %v9491 = vpack.c.b16 %v8983, %v8979
    %v9492 = vpack.c.b16 %v8984, %v8980
    %v9493 = vpack.c.b16 %v8989, %v8985
    %v9494 = vpack.c.b16 %v8990, %v8986
    %v9495 = vpack.c.b16 %v8991, %v8987
    %v9496 = vpack.c.b16 %v8992, %v8988
    %v9497 = vpack.c.b16 %v8997, %v8993
    %v9498 = vpack.c.b16 %v8998, %v8994
    %v9499 = vpack.c.b16 %v8999, %v8995
    %v9500 = vpack.c.b16 %v9000, %v8996
    %v9501 = vpack.c.b16 %v9005, %v9001
    %v9502 = vpack.c.b16 %v9006, %v9002
    %v9503 = vpack.c.b16 %v9007, %v9003
    %v9504 = vpack.c.b16 %v9008, %v9004
    %v9505 = vpack.c.b16 %v9013, %v9009
    %v9506 = vpack.c.b16 %v9014, %v9010
    %v9507 = vpack.c.b16 %v9015, %v9011
    %v9508 = vpack.c.b16 %v9016, %v9012
    %v9509 = vpack.c.b16 %v9021, %v9017
    %v9510 = vpack.c.b16 %v9022, %v9018
    %v9511 = vpack.c.b16 %v9023, %v9019
    %v9512 = vpack.c.b16 %v9024, %v9020
    %v9513 = vpack.c.b16 %v9029, %v9025
    %v9514 = vpack.c.b16 %v9030, %v9026
    %v9515 = vpack.c.b16 %v9031, %v9027
    %v9516 = vpack.c.b16 %v9032, %v9028
    %v9517 = vpack.c.b16 %v9037, %v9033
    %v9518 = vpack.c.b16 %v9038, %v9034
    %v9519 = vpack.c.b16 %v9039, %v9035
    %v9520 = vpack.c.b16 %v9040, %v9036
    %v9521 = vpack.c.b16 %v9045, %v9041
    %v9522 = vpack.c.b16 %v9046, %v9042
    %v9523 = vpack.c.b16 %v9047, %v9043
    %v9524 = vpack.c.b16 %v9048, %v9044
    %v9525 = vpack.c.b16 %v9053, %v9049
    %v9526 = vpack.c.b16 %v9054, %v9050
    %v9527 = vpack.c.b16 %v9055, %v9051
    %v9528 = vpack.c.b16 %v9056, %v9052
    %v9529 = vpack.c.b16 %v9061, %v9057
    %v9530 = vpack.c.b16 %v9062, %v9058
    %v9531 = vpack.c.b16 %v9063, %v9059
    %v9532 = vpack.c.b16 %v9064, %v9060
    %v9533 = vpack.c.b16 %v9069, %v9065
    %v9534 = vpack.c.b16 %v9070, %v9066
    %v9535 = vpack.c.b16 %v9071, %v9067
    %v9536 = vpack.c.b16 %v9072, %v9068
    %v9537 = vpack.c.b16 %v9077, %v9073
    %v9538 = vpack.c.b16 %v9078, %v9074
    %v9539 = vpack.c.b16 %v9079, %v9075
    %v9540 = vpack.c.b16 %v9080, %v9076
    %v9541 = vpack.c.b16 %v9085, %v9081
    %v9542 = vpack.c.b16 %v9086, %v9082
    %v9543 = vpack.c.b16 %v9087, %v9083
    %v9544 = vpack.c.b16 %v9088, %v9084
    %v9545 = vpack.c.b16 %v9093, %v9089
    %v9546 = vpack.c.b16 %v9094, %v9090
    %v9547 = vpack.c.b16 %v9095, %v9091
    %v9548 = vpack.c.b16 %v9096, %v9092
    %v9549 = vpack.c.b16 %v9101, %v9097
    %v9550 = vpack.c.b16 %v9102, %v9098
    %v9551 = vpack.c.b16 %v9103, %v9099
    %v9552 = vpack.c.b16 %v9104, %v9100
    %v9553 = vpack.c.b16 %v9109, %v9105
    %v9554 = vpack.c.b16 %v9110, %v9106
    %v9555 = vpack.c.b16 %v9111, %v9107
    %v9556 = vpack.c.b16 %v9112, %v9108
    %v9557 = vpack.c.b16 %v9117, %v9113
    %v9558 = vpack.c.b16 %v9118, %v9114
    %v9559 = vpack.c.b16 %v9119, %v9115
    %v9560 = vpack.c.b16 %v9120, %v9116
    %v9561 = vpack.c.b16 %v9125, %v9121
    %v9562 = vpack.c.b16 %v9126, %v9122
    %v9563 = vpack.c.b16 %v9127, %v9123
    %v9564 = vpack.c.b16 %v9128, %v9124
    %v9565 = vpack.c.b16 %v9133, %v9129
    %v9566 = vpack.c.b16 %v9134, %v9130
    %v9567 = vpack.c.b16 %v9135, %v9131
    %v9568 = vpack.c.b16 %v9136, %v9132
    %v9569 = vpack.c.b16 %v9141, %v9137
    %v9570 = vpack.c.b16 %v9142, %v9138
    %v9571 = vpack.c.b16 %v9143, %v9139
    %v9572 = vpack.c.b16 %v9144, %v9140
    %v9573 = vpack.c.b16 %v9149, %v9145
    %v9574 = vpack.c.b16 %v9150, %v9146
    %v9575 = vpack.c.b16 %v9151, %v9147
    %v9576 = vpack.c.b16 %v9152, %v9148
    %v9577 = vpack.c.b16 %v9157, %v9153
    %v9578 = vpack.c.b16 %v9158, %v9154
    %v9579 = vpack.c.b16 %v9159, %v9155
    %v9580 = vpack.c.b16 %v9160, %v9156
    %v9581 = vpack.c.b16 %v9165, %v9161
    %v9582 = vpack.c.b16 %v9166, %v9162
    %v9583 = vpack.c.b16 %v9167, %v9163
    %v9584 = vpack.c.b16 %v9168, %v9164
    %v9585 = vpack.c.b16 %v9173, %v9169
    %v9586 = vpack.c.b16 %v9174, %v9170
    %v9587 = vpack.c.b16 %v9175, %v9171
    %v9588 = vpack.c.b16 %v9176, %v9172
    %v9589 = vpack.c.b16 %v9181, %v9177
    %v9590 = vpack.c.b16 %v9182, %v9178
    %v9591 = vpack.c.b16 %v9183, %v9179
    %v9592 = vpack.c.b16 %v9184, %v9180
    %v9593 = vpack.c.b16 %v9189, %v9185
    %v9594 = vpack.c.b16 %v9190, %v9186
    %v9595 = vpack.c.b16 %v9191, %v9187
    %v9596 = vpack.c.b16 %v9192, %v9188
    %v9597 = vpack.c.b16 %v9197, %v9193
    %v9598 = vpack.c.b16 %v9198, %v9194
    %v9599 = vpack.c.b16 %v9199, %v9195
    %v9600 = vpack.c.b16 %v9200, %v9196
    %v9601 = vpack.c.b16 %v9205, %v9201
    %v9602 = vpack.c.b16 %v9206, %v9202
    %v9603 = vpack.c.b16 %v9207, %v9203
    %v9604 = vpack.c.b16 %v9208, %v9204
    %v9605 = vpack.c.b16 %v9213, %v9209
    %v9606 = vpack.c.b16 %v9214, %v9210
    %v9607 = vpack.c.b16 %v9215, %v9211
    %v9608 = vpack.c.b16 %v9216, %v9212
    %v9609 = vpack.c.b16 %v9221, %v9217
    %v9610 = vpack.c.b16 %v9222, %v9218
    %v9611 = vpack.c.b16 %v9223, %v9219
    %v9612 = vpack.c.b16 %v9224, %v9220
    %v9613 = vpack.c.b16 %v9229, %v9225
    %v9614 = vpack.c.b16 %v9230, %v9226
    %v9615 = vpack.c.b16 %v9231, %v9227
    %v9616 = vpack.c.b16 %v9232, %v9228
    %v9617 = vpack.c.b16 %v9237, %v9233
    %v9618 = vpack.c.b16 %v9238, %v9234
    %v9619 = vpack.c.b16 %v9239, %v9235
    %v9620 = vpack.c.b16 %v9240, %v9236
    %v9621 = vpack.c.b16 %v9245, %v9241
    %v9622 = vpack.c.b16 %v9246, %v9242
    %v9623 = vpack.c.b16 %v9247, %v9243
    %v9624 = vpack.c.b16 %v9248, %v9244
    %v9625 = vpack.c.b16 %v9253, %v9249
    %v9626 = vpack.c.b16 %v9254, %v9250
    %v9627 = vpack.c.b16 %v9255, %v9251
    %v9628 = vpack.c.b16 %v9256, %v9252
    %v9629 = vpack.c.b16 %v9261, %v9257
    %v9630 = vpack.c.b16 %v9262, %v9258
    %v9631 = vpack.c.b16 %v9263, %v9259
    %v9632 = vpack.c.b16 %v9264, %v9260
    %v9633 = vpack.c.b16 %v9269, %v9265
    %v9634 = vpack.c.b16 %v9270, %v9266
    %v9635 = vpack.c.b16 %v9271, %v9267
    %v9636 = vpack.c.b16 %v9272, %v9268
    %v9637 = vpack.c.b16 %v9277, %v9273
    %v9638 = vpack.c.b16 %v9278, %v9274
    %v9639 = vpack.c.b16 %v9279, %v9275
    %v9640 = vpack.c.b16 %v9280, %v9276
    %v9641 = vpack.c.b16 %v9285, %v9281
    %v9642 = vpack.c.b16 %v9286, %v9282
    %v9643 = vpack.c.b16 %v9287, %v9283
    %v9644 = vpack.c.b16 %v9288, %v9284
    %v9645 = vpack.c.b16 %v9293, %v9289
    %v9646 = vpack.c.b16 %v9294, %v9290
    %v9647 = vpack.c.b16 %v9295, %v9291
    %v9648 = vpack.c.b16 %v9296, %v9292
    %v9649 = vpack.c.b16 %v9301, %v9297
    %v9650 = vpack.c.b16 %v9302, %v9298
    %v9651 = vpack.c.b16 %v9303, %v9299
    %v9652 = vpack.c.b16 %v9304, %v9300
    %v9653 = vpack.c.b16 %v9309, %v9305
    %v9654 = vpack.c.b16 %v9310, %v9306
    %v9655 = vpack.c.b16 %v9311, %v9307
    %v9656 = vpack.c.b16 %v9312, %v9308
    %v9657 = vpack.c.b16 %v9317, %v9313
    %v9658 = vpack.c.b16 %v9318, %v9314
    %v9659 = vpack.c.b16 %v9319, %v9315
    %v9660 = vpack.c.b16 %v9320, %v9316
    %v9661 = vpack.c.b16 %v9325, %v9321
    %v9662 = vpack.c.b16 %v9326, %v9322
    %v9663 = vpack.c.b16 %v9327, %v9323
    %v9664 = vpack.c.b16 %v9328, %v9324
    %v9665 = vpack.c.b16 %v9333, %v9329
    %v9666 = vpack.c.b16 %v9334, %v9330
    %v9667 = vpack.c.b16 %v9335, %v9331
    %v9668 = vpack.c.b16 %v9336, %v9332
    %v9669 = vpack.c.b16 %v9341, %v9337
    %v9670 = vpack.c.b16 %v9342, %v9338
    %v9671 = vpack.c.b16 %v9343, %v9339
    %v9672 = vpack.c.b16 %v9344, %v9340
    %v9673 = vpack.c.b16 %v9349, %v9345
    %v9674 = vpack.c.b16 %v9350, %v9346
    %v9675 = vpack.c.b16 %v9351, %v9347
    %v9676 = vpack.c.b16 %v9352, %v9348
    %v9677 = vpack.c.b16 %v9357, %v9353
    %v9678 = vpack.c.b16 %v9358, %v9354
    %v9679 = vpack.c.b16 %v9359, %v9355
    %v9680 = vpack.c.b16 %v9360, %v9356
    %v9681 = vpack.c.b16 %v9365, %v9361
    %v9682 = vpack.c.b16 %v9366, %v9362
    %v9683 = vpack.c.b16 %v9367, %v9363
    %v9684 = vpack.c.b16 %v9368, %v9364
    %v9685 = vpack.c.b16 %v9373, %v9369
    %v9686 = vpack.c.b16 %v9374, %v9370
    %v9687 = vpack.c.b16 %v9375, %v9371
    %v9688 = vpack.c.b16 %v9376, %v9372
    %v9689 = vpack.c.b16 %v9381, %v9377
    %v9690 = vpack.c.b16 %v9382, %v9378
    %v9691 = vpack.c.b16 %v9383, %v9379
    %v9692 = vpack.c.b16 %v9384, %v9380
    %v9693 = vpack.c.b16 %v9389, %v9385
    %v9694 = vpack.c.b16 %v9390, %v9386
    %v9695 = vpack.c.b16 %v9391, %v9387
    %v9696 = vpack.c.b16 %v9392, %v9388
    %v9697 = vpack.c.b16 %v9397, %v9393
    %v9698 = vpack.c.b16 %v9398, %v9394
    %v9699 = vpack.c.b16 %v9399, %v9395
    %v9700 = vpack.c.b16 %v9400, %v9396
    %v9701 = vpack.c.b16 %v9405, %v9401
    %v9702 = vpack.c.b16 %v9406, %v9402
    %v9703 = vpack.c.b16 %v9407, %v9403
    %v9704 = vpack.c.b16 %v9408, %v9404
    %v9705 = vpack.c.b16 %v9413, %v9409
    %v9706 = vpack.c.b16 %v9414, %v9410
    %v9707 = vpack.c.b16 %v9415, %v9411
    %v9708 = vpack.c.b16 %v9416, %v9412
    %v9709 = vpack.c.b16 %v9421, %v9417
    %v9710 = vpack.c.b16 %v9422, %v9418
    %v9711 = vpack.c.b16 %v9423, %v9419
    %v9712 = vpack.c.b16 %v9424, %v9420
    %v9713 = vpack.c.b16 %v9429, %v9425
    %v9714 = vpack.c.b16 %v9430, %v9426
    %v9715 = vpack.c.b16 %v9431, %v9427
    %v9716 = vpack.c.b16 %v9432, %v9428
    %v9717 = vpack.c.b16 %v9437, %v9433
    %v9718 = vpack.c.b16 %v9438, %v9434
    %v9719 = vpack.c.b16 %v9439, %v9435
    %v9720 = vpack.c.b16 %v9440, %v9436
    %v9721 = vpack.c.b16 %v9445, %v9441
    %v9722 = vpack.c.b16 %v9446, %v9442
    %v9723 = vpack.c.b16 %v9447, %v9443
    %v9724 = vpack.c.b16 %v9448, %v9444
    %v9725 = vpack.c.b16 %v9453, %v9449
    %v9726 = vpack.c.b16 %v9454, %v9450
    %v9727 = vpack.c.b16 %v9455, %v9451
    %v9728 = vpack.c.b16 %v9456, %v9452
    %v9729 = vpack.c.b16 %v9461, %v9457
    %v9730 = vpack.c.b16 %v9462, %v9458
    %v9731 = vpack.c.b16 %v9463, %v9459
    %v9732 = vpack.c.b16 %v9464, %v9460
    %v9733 = vpack.c.b16 %v9469, %v9465
    %v9734 = vpack.c.b16 %v9470, %v9466
    %v9735 = vpack.c.b16 %v9471, %v9467
    %v9736 = vpack.c.b16 %v9472, %v9468
    %v9737 = vpack.c.b16 %v9477, %v9473
    %v9738 = vpack.c.b16 %v9478, %v9474
    %v9739 = vpack.c.b16 %v9479, %v9475
    %v9740 = vpack.c.b16 %v9480, %v9476
    %v9741 = vpack.c.b16 %v9485, %v9481
    %v9742 = vpack.c.b16 %v9486, %v9482
    %v9743 = vpack.c.b16 %v9487, %v9483
    %v9744 = vpack.c.b16 %v9488, %v9484
    %10001 = vmatpush.bf16.msra.mxu0 %v9517
    %10002 = vmatpush.bf16.msra.mxu0 %v9513
    %10003 = vmatpush.bf16.msra.mxu0 %v9509
    %10004 = vmatpush.bf16.msra.mxu0 %v9505
    %10005 = vmatpush.bf16.msra.mxu0 %v9501
    %10006 = vmatpush.bf16.msra.mxu0 %v9497
    %10007 = vmatpush.bf16.msra.mxu0 %v9493
    %10008 = vmatpush.bf16.msra.mxu0 %v9489
    %10009 = vmatmul.bf16.gmra.mxu0 %v8704
    %v10010 = vpop.f32.mrf.mxu0
    %v10011 = vadd.f32 %v8713, %v10010
    %v10012 = vpop.f32.mrf.mxu0
    %10013 = vdwg.mxu0
    %10014 = vmatpush.bf16.msra.mxu0 %v9549
    %10015 = vmatpush.bf16.msra.mxu0 %v9545
    %10016 = vmatpush.bf16.msra.mxu0 %v9541
    %10017 = vmatpush.bf16.msra.mxu0 %v9537
    %10018 = vmatpush.bf16.msra.mxu0 %v9533
    %10019 = vmatpush.bf16.msra.mxu0 %v9529
    %10020 = vmatpush.bf16.msra.mxu0 %v9525
    %10021 = vmatpush.bf16.msra.mxu0 %v9521
    %10022 = vmatmul.bf16.gmra.mxu0 %v8705
    %v10023 = vpop.f32.mrf.mxu0
    %v10024 = vadd.f32 %v10011, %v10023
    %v10025 = vpop.f32.mrf.mxu0
    %10026 = vdwg.mxu0
    %10027 = vmatpush.bf16.msra.mxu0 %v9581
    %10028 = vmatpush.bf16.msra.mxu0 %v9577
    %10029 = vmatpush.bf16.msra.mxu0 %v9573
    %10030 = vmatpush.bf16.msra.mxu0 %v9569
    %10031 = vmatpush.bf16.msra.mxu0 %v9565
    %10032 = vmatpush.bf16.msra.mxu0 %v9561
    %10033 = vmatpush.bf16.msra.mxu0 %v9557
    %10034 = vmatpush.bf16.msra.mxu0 %v9553
    %10035 = vmatmul.bf16.gmra.mxu0 %v8706
    %v10036 = vpop.f32.mrf.mxu0
    %v10037 = vadd.f32 %v10024, %v10036
    %v10038 = vpop.f32.mrf.mxu0
    %10039 = vdwg.mxu0
    %10040 = vmatpush.bf16.msra.mxu0 %v9613
    %10041 = vmatpush.bf16.msra.mxu0 %v9609
    %10042 = vmatpush.bf16.msra.mxu0 %v9605
    %10043 = vmatpush.bf16.msra.mxu0 %v9601
    %10044 = vmatpush.bf16.msra.mxu0 %v9597
    %10045 = vmatpush.bf16.msra.mxu0 %v9593
    %10046 = vmatpush.bf16.msra.mxu0 %v9589
    %10047 = vmatpush.bf16.msra.mxu0 %v9585
    %10048 = vmatmul.bf16.gmra.mxu0 %v8707
    %v10049 = vpop.f32.mrf.mxu0
    %v10050 = vadd.f32 %v10037, %v10049
    %v10051 = vpop.f32.mrf.mxu0
    %10052 = vdwg.mxu0
    %10053 = vmatpush.bf16.msra.mxu0 %v9645
    %10054 = vmatpush.bf16.msra.mxu0 %v9641
    %10055 = vmatpush.bf16.msra.mxu0 %v9637
    %10056 = vmatpush.bf16.msra.mxu0 %v9633
    %10057 = vmatpush.bf16.msra.mxu0 %v9629
    %10058 = vmatpush.bf16.msra.mxu0 %v9625
    %10059 = vmatpush.bf16.msra.mxu0 %v9621
    %10060 = vmatpush.bf16.msra.mxu0 %v9617
    %10061 = vmatmul.bf16.gmra.mxu0 %v8708
    %v10062 = vpop.f32.mrf.mxu0
    %v10063 = vadd.f32 %v10050, %v10062
    %v10064 = vpop.f32.mrf.mxu0
    %10065 = vdwg.mxu0
    %10066 = vmatpush.bf16.msra.mxu0 %v9677
    %10067 = vmatpush.bf16.msra.mxu0 %v9673
    %10068 = vmatpush.bf16.msra.mxu0 %v9669
    %10069 = vmatpush.bf16.msra.mxu0 %v9665
    %10070 = vmatpush.bf16.msra.mxu0 %v9661
    %10071 = vmatpush.bf16.msra.mxu0 %v9657
    %10072 = vmatpush.bf16.msra.mxu0 %v9653
    %10073 = vmatpush.bf16.msra.mxu0 %v9649
    %10074 = vmatmul.bf16.gmra.mxu0 %v8709
    %v10075 = vpop.f32.mrf.mxu0
    %v10076 = vadd.f32 %v10063, %v10075
    %v10077 = vpop.f32.mrf.mxu0
    %10078 = vdwg.mxu0
    %10079 = vmatpush.bf16.msra.mxu0 %v9709
    %10080 = vmatpush.bf16.msra.mxu0 %v9705
    %10081 = vmatpush.bf16.msra.mxu0 %v9701
    %10082 = vmatpush.bf16.msra.mxu0 %v9697
    %10083 = vmatpush.bf16.msra.mxu0 %v9693
    %10084 = vmatpush.bf16.msra.mxu0 %v9689
    %10085 = vmatpush.bf16.msra.mxu0 %v9685
    %10086 = vmatpush.bf16.msra.mxu0 %v9681
    %10087 = vmatmul.bf16.gmra.mxu0 %v8710
    %v10088 = vpop.f32.mrf.mxu0
    %v10089 = vadd.f32 %v10076, %v10088
    %v10090 = vpop.f32.mrf.mxu0
    %10091 = vdwg.mxu0
    %10092 = vmatpush.bf16.msra.mxu0 %v9741
    %10093 = vmatpush.bf16.msra.mxu0 %v9737
    %10094 = vmatpush.bf16.msra.mxu0 %v9733
    %10095 = vmatpush.bf16.msra.mxu0 %v9729
    %10096 = vmatpush.bf16.msra.mxu0 %v9725
    %10097 = vmatpush.bf16.msra.mxu0 %v9721
    %10098 = vmatpush.bf16.msra.mxu0 %v9717
    %10099 = vmatpush.bf16.msra.mxu0 %v9713
    %10100 = vmatmul.bf16.gmra.mxu0 %v8711
    %v10101 = vpop.f32.mrf.mxu0
    %v10102 = vadd.f32 %v10089, %v10101
    %v10103 = vpop.f32.mrf.mxu0
    %10104 = vdwg.mxu0
    %10105 = vmatpush.bf16.msra.mxu0 %v9518
    %10106 = vmatpush.bf16.msra.mxu0 %v9514
    %10107 = vmatpush.bf16.msra.mxu0 %v9510
    %10108 = vmatpush.bf16.msra.mxu0 %v9506
    %10109 = vmatpush.bf16.msra.mxu0 %v9502
    %10110 = vmatpush.bf16.msra.mxu0 %v9498
    %10111 = vmatpush.bf16.msra.mxu0 %v9494
    %10112 = vmatpush.bf16.msra.mxu0 %v9490
    %10113 = vmatmul.bf16.gmra.mxu0 %v8704
    %v10114 = vpop.f32.mrf.mxu0
    %v10115 = vadd.f32 %v8714, %v10114
    %v10116 = vpop.f32.mrf.mxu0
    %10117 = vdwg.mxu0
    %10118 = vmatpush.bf16.msra.mxu0 %v9550
    %10119 = vmatpush.bf16.msra.mxu0 %v9546
    %10120 = vmatpush.bf16.msra.mxu0 %v9542
    %10121 = vmatpush.bf16.msra.mxu0 %v9538
    %10122 = vmatpush.bf16.msra.mxu0 %v9534
    %10123 = vmatpush.bf16.msra.mxu0 %v9530
    %10124 = vmatpush.bf16.msra.mxu0 %v9526
    %10125 = vmatpush.bf16.msra.mxu0 %v9522
    %10126 = vmatmul.bf16.gmra.mxu0 %v8705
    %v10127 = vpop.f32.mrf.mxu0
    %v10128 = vadd.f32 %v10115, %v10127
    %v10129 = vpop.f32.mrf.mxu0
    %10130 = vdwg.mxu0
    %10131 = vmatpush.bf16.msra.mxu0 %v9582
    %10132 = vmatpush.bf16.msra.mxu0 %v9578
    %10133 = vmatpush.bf16.msra.mxu0 %v9574
    %10134 = vmatpush.bf16.msra.mxu0 %v9570
    %10135 = vmatpush.bf16.msra.mxu0 %v9566
    %10136 = vmatpush.bf16.msra.mxu0 %v9562
    %10137 = vmatpush.bf16.msra.mxu0 %v9558
    %10138 = vmatpush.bf16.msra.mxu0 %v9554
    %10139 = vmatmul.bf16.gmra.mxu0 %v8706
    %v10140 = vpop.f32.mrf.mxu0
    %v10141 = vadd.f32 %v10128, %v10140
    %v10142 = vpop.f32.mrf.mxu0
    %10143 = vdwg.mxu0
    %10144 = vmatpush.bf16.msra.mxu0 %v9614
    %10145 = vmatpush.bf16.msra.mxu0 %v9610
    %10146 = vmatpush.bf16.msra.mxu0 %v9606
    %10147 = vmatpush.bf16.msra.mxu0 %v9602
    %10148 = vmatpush.bf16.msra.mxu0 %v9598
    %10149 = vmatpush.bf16.msra.mxu0 %v9594
    %10150 = vmatpush.bf16.msra.mxu0 %v9590
    %10151 = vmatpush.bf16.msra.mxu0 %v9586
    %10152 = vmatmul.bf16.gmra.mxu0 %v8707
    %v10153 = vpop.f32.mrf.mxu0
    %v10154 = vadd.f32 %v10141, %v10153
    %v10155 = vpop.f32.mrf.mxu0
    %10156 = vdwg.mxu0
    %10157 = vmatpush.bf16.msra.mxu0 %v9646
    %10158 = vmatpush.bf16.msra.mxu0 %v9642
    %10159 = vmatpush.bf16.msra.mxu0 %v9638
    %10160 = vmatpush.bf16.msra.mxu0 %v9634
    %10161 = vmatpush.bf16.msra.mxu0 %v9630
    %10162 = vmatpush.bf16.msra.mxu0 %v9626
    %10163 = vmatpush.bf16.msra.mxu0 %v9622
    %10164 = vmatpush.bf16.msra.mxu0 %v9618
    %10165 = vmatmul.bf16.gmra.mxu0 %v8708
    %v10166 = vpop.f32.mrf.mxu0
    %v10167 = vadd.f32 %v10154, %v10166
    %v10168 = vpop.f32.mrf.mxu0
    %10169 = vdwg.mxu0
    %10170 = vmatpush.bf16.msra.mxu0 %v9678
    %10171 = vmatpush.bf16.msra.mxu0 %v9674
    %10172 = vmatpush.bf16.msra.mxu0 %v9670
    %10173 = vmatpush.bf16.msra.mxu0 %v9666
    %10174 = vmatpush.bf16.msra.mxu0 %v9662
    %10175 = vmatpush.bf16.msra.mxu0 %v9658
    %10176 = vmatpush.bf16.msra.mxu0 %v9654
    %10177 = vmatpush.bf16.msra.mxu0 %v9650
    %10178 = vmatmul.bf16.gmra.mxu0 %v8709
    %v10179 = vpop.f32.mrf.mxu0
    %v10180 = vadd.f32 %v10167, %v10179
    %v10181 = vpop.f32.mrf.mxu0
    %10182 = vdwg.mxu0
    %10183 = vmatpush.bf16.msra.mxu0 %v9710
    %10184 = vmatpush.bf16.msra.mxu0 %v9706
    %10185 = vmatpush.bf16.msra.mxu0 %v9702
    %10186 = vmatpush.bf16.msra.mxu0 %v9698
    %10187 = vmatpush.bf16.msra.mxu0 %v9694
    %10188 = vmatpush.bf16.msra.mxu0 %v9690
    %10189 = vmatpush.bf16.msra.mxu0 %v9686
    %10190 = vmatpush.bf16.msra.mxu0 %v9682
    %10191 = vmatmul.bf16.gmra.mxu0 %v8710
    %v10192 = vpop.f32.mrf.mxu0
    %v10193 = vadd.f32 %v10180, %v10192
    %v10194 = vpop.f32.mrf.mxu0
    %10195 = vdwg.mxu0
    %10196 = vmatpush.bf16.msra.mxu0 %v9742
    %10197 = vmatpush.bf16.msra.mxu0 %v9738
    %10198 = vmatpush.bf16.msra.mxu0 %v9734
    %10199 = vmatpush.bf16.msra.mxu0 %v9730
    %10200 = vmatpush.bf16.msra.mxu0 %v9726
    %10201 = vmatpush.bf16.msra.mxu0 %v9722
    %10202 = vmatpush.bf16.msra.mxu0 %v9718
    %10203 = vmatpush.bf16.msra.mxu0 %v9714
    %10204 = vmatmul.bf16.gmra.mxu0 %v8711
    %v10205 = vpop.f32.mrf.mxu0
    %v10206 = vadd.f32 %v10193, %v10205
    %v10207 = vpop.f32.mrf.mxu0
    %10208 = vdwg.mxu0
    %10209 = vmatpush.bf16.msra.mxu0 %v9519
    %10210 = vmatpush.bf16.msra.mxu0 %v9515
    %10211 = vmatpush.bf16.msra.mxu0 %v9511
    %10212 = vmatpush.bf16.msra.mxu0 %v9507
    %10213 = vmatpush.bf16.msra.mxu0 %v9503
    %10214 = vmatpush.bf16.msra.mxu0 %v9499
    %10215 = vmatpush.bf16.msra.mxu0 %v9495
    %10216 = vmatpush.bf16.msra.mxu0 %v9491
    %10217 = vmatmul.bf16.gmra.mxu0 %v8704
    %v10218 = vpop.f32.mrf.mxu0
    %v10219 = vadd.f32 %v8715, %v10218
    %v10220 = vpop.f32.mrf.mxu0
    %10221 = vdwg.mxu0
    %10222 = vmatpush.bf16.msra.mxu0 %v9551
    %10223 = vmatpush.bf16.msra.mxu0 %v9547
    %10224 = vmatpush.bf16.msra.mxu0 %v9543
    %10225 = vmatpush.bf16.msra.mxu0 %v9539
    %10226 = vmatpush.bf16.msra.mxu0 %v9535
    %10227 = vmatpush.bf16.msra.mxu0 %v9531
    %10228 = vmatpush.bf16.msra.mxu0 %v9527
    %10229 = vmatpush.bf16.msra.mxu0 %v9523
    %10230 = vmatmul.bf16.gmra.mxu0 %v8705
    %v10231 = vpop.f32.mrf.mxu0
    %v10232 = vadd.f32 %v10219, %v10231
    %v10233 = vpop.f32.mrf.mxu0
    %10234 = vdwg.mxu0
    %10235 = vmatpush.bf16.msra.mxu0 %v9583
    %10236 = vmatpush.bf16.msra.mxu0 %v9579
    %10237 = vmatpush.bf16.msra.mxu0 %v9575
    %10238 = vmatpush.bf16.msra.mxu0 %v9571
    %10239 = vmatpush.bf16.msra.mxu0 %v9567
    %10240 = vmatpush.bf16.msra.mxu0 %v9563
    %10241 = vmatpush.bf16.msra.mxu0 %v9559
    %10242 = vmatpush.bf16.msra.mxu0 %v9555
    %10243 = vmatmul.bf16.gmra.mxu0 %v8706
    %v10244 = vpop.f32.mrf.mxu0
    %v10245 = vadd.f32 %v10232, %v10244
    %v10246 = vpop.f32.mrf.mxu0
    %10247 = vdwg.mxu0
    %10248 = vmatpush.bf16.msra.mxu0 %v9615
    %10249 = vmatpush.bf16.msra.mxu0 %v9611
    %10250 = vmatpush.bf16.msra.mxu0 %v9607
    %10251 = vmatpush.bf16.msra.mxu0 %v9603
    %10252 = vmatpush.bf16.msra.mxu0 %v9599
    %10253 = vmatpush.bf16.msra.mxu0 %v9595
    %10254 = vmatpush.bf16.msra.mxu0 %v9591
    %10255 = vmatpush.bf16.msra.mxu0 %v9587
    %10256 = vmatmul.bf16.gmra.mxu0 %v8707
    %v10257 = vpop.f32.mrf.mxu0
    %v10258 = vadd.f32 %v10245, %v10257
    %v10259 = vpop.f32.mrf.mxu0
    %10260 = vdwg.mxu0
    %10261 = vmatpush.bf16.msra.mxu0 %v9647
    %10262 = vmatpush.bf16.msra.mxu0 %v9643
    %10263 = vmatpush.bf16.msra.mxu0 %v9639
    %10264 = vmatpush.bf16.msra.mxu0 %v9635
    %10265 = vmatpush.bf16.msra.mxu0 %v9631
    %10266 = vmatpush.bf16.msra.mxu0 %v9627
    %10267 = vmatpush.bf16.msra.mxu0 %v9623
    %10268 = vmatpush.bf16.msra.mxu0 %v9619
    %10269 = vmatmul.bf16.gmra.mxu0 %v8708
    %v10270 = vpop.f32.mrf.mxu0
    %v10271 = vadd.f32 %v10258, %v10270
    %v10272 = vpop.f32.mrf.mxu0
    %10273 = vdwg.mxu0
    %10274 = vmatpush.bf16.msra.mxu0 %v9679
    %10275 = vmatpush.bf16.msra.mxu0 %v9675
    %10276 = vmatpush.bf16.msra.mxu0 %v9671
    %10277 = vmatpush.bf16.msra.mxu0 %v9667
    %10278 = vmatpush.bf16.msra.mxu0 %v9663
    %10279 = vmatpush.bf16.msra.mxu0 %v9659
    %10280 = vmatpush.bf16.msra.mxu0 %v9655
    %10281 = vmatpush.bf16.msra.mxu0 %v9651
    %10282 = vmatmul.bf16.gmra.mxu0 %v8709
    %v10283 = vpop.f32.mrf.mxu0
    %v10284 = vadd.f32 %v10271, %v10283
    %v10285 = vpop.f32.mrf.mxu0
    %10286 = vdwg.mxu0
    %10287 = vmatpush.bf16.msra.mxu0 %v9711
    %10288 = vmatpush.bf16.msra.mxu0 %v9707
    %10289 = vmatpush.bf16.msra.mxu0 %v9703
    %10290 = vmatpush.bf16.msra.mxu0 %v9699
    %10291 = vmatpush.bf16.msra.mxu0 %v9695
    %10292 = vmatpush.bf16.msra.mxu0 %v9691
    %10293 = vmatpush.bf16.msra.mxu0 %v9687
    %10294 = vmatpush.bf16.msra.mxu0 %v9683
    %10295 = vmatmul.bf16.gmra.mxu0 %v8710
    %v10296 = vpop.f32.mrf.mxu0
    %v10297 = vadd.f32 %v10284, %v10296
    %v10298 = vpop.f32.mrf.mxu0
    %10299 = vdwg.mxu0
    %10300 = vmatpush.bf16.msra.mxu0 %v9743
    %10301 = vmatpush.bf16.msra.mxu0 %v9739
    %10302 = vmatpush.bf16.msra.mxu0 %v9735
    %10303 = vmatpush.bf16.msra.mxu0 %v9731
    %10304 = vmatpush.bf16.msra.mxu0 %v9727
    %10305 = vmatpush.bf16.msra.mxu0 %v9723
    %10306 = vmatpush.bf16.msra.mxu0 %v9719
    %10307 = vmatpush.bf16.msra.mxu0 %v9715
    %10308 = vmatmul.bf16.gmra.mxu0 %v8711
    %v10309 = vpop.f32.mrf.mxu0
    %v10310 = vadd.f32 %v10297, %v10309
    %v10311 = vpop.f32.mrf.mxu0
    %10312 = vdwg.mxu0
    %10313 = vmatpush.bf16.msra.mxu0 %v9520
    %10314 = vmatpush.bf16.msra.mxu0 %v9516
    %10315 = vmatpush.bf16.msra.mxu0 %v9512
    %10316 = vmatpush.bf16.msra.mxu0 %v9508
    %10317 = vmatpush.bf16.msra.mxu0 %v9504
    %10318 = vmatpush.bf16.msra.mxu0 %v9500
    %10319 = vmatpush.bf16.msra.mxu0 %v9496
    %10320 = vmatpush.bf16.msra.mxu0 %v9492
    %10321 = vmatmul.bf16.gmra.mxu0 %v8704
    %v10322 = vpop.f32.mrf.mxu0
    %v10323 = vadd.f32 %v8716, %v10322
    %v10324 = vpop.f32.mrf.mxu0
    %10325 = vdwg.mxu0
    %10326 = vmatpush.bf16.msra.mxu0 %v9552
    %10327 = vmatpush.bf16.msra.mxu0 %v9548
    %10328 = vmatpush.bf16.msra.mxu0 %v9544
    %10329 = vmatpush.bf16.msra.mxu0 %v9540
    %10330 = vmatpush.bf16.msra.mxu0 %v9536
    %10331 = vmatpush.bf16.msra.mxu0 %v9532
    %10332 = vmatpush.bf16.msra.mxu0 %v9528
    %10333 = vmatpush.bf16.msra.mxu0 %v9524
    %10334 = vmatmul.bf16.gmra.mxu0 %v8705
    %v10335 = vpop.f32.mrf.mxu0
    %v10336 = vadd.f32 %v10323, %v10335
    %v10337 = vpop.f32.mrf.mxu0
    %10338 = vdwg.mxu0
    %10339 = vmatpush.bf16.msra.mxu0 %v9584
    %10340 = vmatpush.bf16.msra.mxu0 %v9580
    %10341 = vmatpush.bf16.msra.mxu0 %v9576
    %10342 = vmatpush.bf16.msra.mxu0 %v9572
    %10343 = vmatpush.bf16.msra.mxu0 %v9568
    %10344 = vmatpush.bf16.msra.mxu0 %v9564
    %10345 = vmatpush.bf16.msra.mxu0 %v9560
    %10346 = vmatpush.bf16.msra.mxu0 %v9556
    %10347 = vmatmul.bf16.gmra.mxu0 %v8706
    %v10348 = vpop.f32.mrf.mxu0
    %v10349 = vadd.f32 %v10336, %v10348
    %v10350 = vpop.f32.mrf.mxu0
    %10351 = vdwg.mxu0
    %10352 = vmatpush.bf16.msra.mxu0 %v9616
    %10353 = vmatpush.bf16.msra.mxu0 %v9612
    %10354 = vmatpush.bf16.msra.mxu0 %v9608
    %10355 = vmatpush.bf16.msra.mxu0 %v9604
    %10356 = vmatpush.bf16.msra.mxu0 %v9600
    %10357 = vmatpush.bf16.msra.mxu0 %v9596
    %10358 = vmatpush.bf16.msra.mxu0 %v9592
    %10359 = vmatpush.bf16.msra.mxu0 %v9588
    %10360 = vmatmul.bf16.gmra.mxu0 %v8707
    %v10361 = vpop.f32.mrf.mxu0
    %v10362 = vadd.f32 %v10349, %v10361
    %v10363 = vpop.f32.mrf.mxu0
    %10364 = vdwg.mxu0
    %10365 = vmatpush.bf16.msra.mxu0 %v9648
    %10366 = vmatpush.bf16.msra.mxu0 %v9644
    %10367 = vmatpush.bf16.msra.mxu0 %v9640
    %10368 = vmatpush.bf16.msra.mxu0 %v9636
    %10369 = vmatpush.bf16.msra.mxu0 %v9632
    %10370 = vmatpush.bf16.msra.mxu0 %v9628
    %10371 = vmatpush.bf16.msra.mxu0 %v9624
    %10372 = vmatpush.bf16.msra.mxu0 %v9620
    %10373 = vmatmul.bf16.gmra.mxu0 %v8708
    %v10374 = vpop.f32.mrf.mxu0
    %v10375 = vadd.f32 %v10362, %v10374
    %v10376 = vpop.f32.mrf.mxu0
    %10377 = vdwg.mxu0
    %10378 = vmatpush.bf16.msra.mxu0 %v9680
    %10379 = vmatpush.bf16.msra.mxu0 %v9676
    %10380 = vmatpush.bf16.msra.mxu0 %v9672
    %10381 = vmatpush.bf16.msra.mxu0 %v9668
    %10382 = vmatpush.bf16.msra.mxu0 %v9664
    %10383 = vmatpush.bf16.msra.mxu0 %v9660
    %10384 = vmatpush.bf16.msra.mxu0 %v9656
    %10385 = vmatpush.bf16.msra.mxu0 %v9652
    %10386 = vmatmul.bf16.gmra.mxu0 %v8709
    %v10387 = vpop.f32.mrf.mxu0
    %v10388 = vadd.f32 %v10375, %v10387
    %v10389 = vpop.f32.mrf.mxu0
    %10390 = vdwg.mxu0
    %10391 = vmatpush.bf16.msra.mxu0 %v9712
    %10392 = vmatpush.bf16.msra.mxu0 %v9708
    %10393 = vmatpush.bf16.msra.mxu0 %v9704
    %10394 = vmatpush.bf16.msra.mxu0 %v9700
    %10395 = vmatpush.bf16.msra.mxu0 %v9696
    %10396 = vmatpush.bf16.msra.mxu0 %v9692
    %10397 = vmatpush.bf16.msra.mxu0 %v9688
    %10398 = vmatpush.bf16.msra.mxu0 %v9684
    %10399 = vmatmul.bf16.gmra.mxu0 %v8710
    %v10400 = vpop.f32.mrf.mxu0
    %v10401 = vadd.f32 %v10388, %v10400
    %v10402 = vpop.f32.mrf.mxu0
    %10403 = vdwg.mxu0
    %10404 = vmatpush.bf16.msra.mxu0 %v9744
    %10405 = vmatpush.bf16.msra.mxu0 %v9740
    %10406 = vmatpush.bf16.msra.mxu0 %v9736
    %10407 = vmatpush.bf16.msra.mxu0 %v9732
    %10408 = vmatpush.bf16.msra.mxu0 %v9728
    %10409 = vmatpush.bf16.msra.mxu0 %v9724
    %10410 = vmatpush.bf16.msra.mxu0 %v9720
    %10411 = vmatpush.bf16.msra.mxu0 %v9716
    %10412 = vmatmul.bf16.gmra.mxu0 %v8711
    %v10413 = vpop.f32.mrf.mxu0
    %v10414 = vadd.f32 %v10401, %v10413
    %v10415 = vpop.f32.mrf.mxu0
    %10416 = vdwg.mxu0
    %v10417 = vmul.f32 %v10102, 0.5
    %v10418 = vmul.f32 %v10206, 0.5
    %v10419 = vmul.f32 %v10310, 0.5
    %v10420 = vmul.f32 %v10414, 0.5
    %v10421 = vmul.f32 %v10102, 0.70710677
    %v10422 = vmul.f32 %v10206, 0.70710677
    %v10423 = vmul.f32 %v10310, 0.70710677
    %v10424 = vmul.f32 %v10414, 0.70710677
    %v10425 = vmul.f32 %v10421, %v10421
    %v10426 = vmin.f32 16.0, %v10425
    %v10427 = vmul.f32 %v10426, 2.1237322e-06
    %v10428 = vadd.f32 %v10427, 0.00028619796
    %v10429 = vmul.f32 %v10426, %v10428
    %v10430 = vadd.f32 %v10429, 0.0036580483
    %v10431 = vmul.f32 %v10426, %v10430
    %v10432 = vadd.f32 %v10431, 0.05243302
    %v10433 = vmul.f32 %v10426, %v10432
    %v10434 = vadd.f32 %v10433, 0.18741608
    %v10435 = vmul.f32 %v10426, %v10434
    %v10436 = vadd.f32 %v10435, 1.1283791
    %v10437 = vmul.f32 %v10421, %v10436
    %v10438 = vmul.f32 %v10426, 3.8918573e-05
    %v10439 = vadd.f32 %v10438, 0.001143296
    %v10440 = vmul.f32 %v10426, %v10439
    %v10441 = vadd.f32 %v10440, 0.014752088
    %v10442 = vmul.f32 %v10426, %v10441
    %v10443 = vadd.f32 %v10442, 0.112945676
    %v10444 = vmul.f32 %v10426, %v10443
    %v10445 = vadd.f32 %v10444, 0.4994258
    %v10446 = vmul.f32 %v10426, %v10445
    %v10447 = vadd.f32 %v10446, 1.0
    %v10448 = vrcp.pop %v10447
    %v10449 = vmul.f32 %v10447, %v10448
    %v10450 = vsub.f32 1.0, %v10449
    %v10451 = vmul.f32 %v10448, %v10450
    %v10452 = vadd.f32 %v10448, %v10451
    %vm10453 = vweird.f32 %v10447
    %vm10454 = vweird.f32 %v10448
    %vm10455 = vmor %vm10453, %vm10454
    %v10456 = vsel %vm10455, %v10448, %v10452
    %v10457 = vand.u32 2147483647, %v10447
    %vm10458 = vcmp.eq.f32.partialorder %v10457, 8.507059e+37
    %v10459 = vand.u32 %v10447, 2147483648
    %v10460 = vor.u32 1.1754944e-38, %v10459
    %v10461 = vsel %vm10458, %v10460, %v10456
    %v10462 = vmul.f32 %v10437, %v10461
    %v10463 = vmin.f32 %v10462, 1.0
    %v10464 = vmax.f32 %v10463, -1.0
    %v10465 = vmul.f32 %v10422, %v10422
    %v10466 = vmin.f32 16.0, %v10465
    %v10467 = vmul.f32 %v10466, 2.1237322e-06
    %v10468 = vadd.f32 %v10467, 0.00028619796
    %v10469 = vmul.f32 %v10466, %v10468
    %v10470 = vadd.f32 %v10469, 0.0036580483
    %v10471 = vmul.f32 %v10466, %v10470
    %v10472 = vadd.f32 %v10471, 0.05243302
    %v10473 = vmul.f32 %v10466, %v10472
    %v10474 = vadd.f32 %v10473, 0.18741608
    %v10475 = vmul.f32 %v10466, %v10474
    %v10476 = vadd.f32 %v10475, 1.1283791
    %v10477 = vmul.f32 %v10422, %v10476
    %v10478 = vmul.f32 %v10466, 3.8918573e-05
    %v10479 = vadd.f32 %v10478, 0.001143296
    %v10480 = vmul.f32 %v10466, %v10479
    %v10481 = vadd.f32 %v10480, 0.014752088
    %v10482 = vmul.f32 %v10466, %v10481
    %v10483 = vadd.f32 %v10482, 0.112945676
    %v10484 = vmul.f32 %v10466, %v10483
    %v10485 = vadd.f32 %v10484, 0.4994258
    %v10486 = vmul.f32 %v10466, %v10485
    %v10487 = vadd.f32 %v10486, 1.0
    %v10488 = vrcp.pop %v10487
    %v10489 = vmul.f32 %v10487, %v10488
    %v10490 = vsub.f32 1.0, %v10489
    %v10491 = vmul.f32 %v10488, %v10490
    %v10492 = vadd.f32 %v10488, %v10491
    %vm10493 = vweird.f32 %v10487
    %vm10494 = vweird.f32 %v10488
    %vm10495 = vmor %vm10493, %vm10494
    %v10496 = vsel %vm10495, %v10488, %v10492
    %v10497 = vand.u32 2147483647, %v10487
    %vm10498 = vcmp.eq.f32.partialorder %v10497, 8.507059e+37
    %v10499 = vand.u32 %v10487, 2147483648
    %v10500 = vor.u32 1.1754944e-38, %v10499
    %v10501 = vsel %vm10498, %v10500, %v10496
    %v10502 = vmul.f32 %v10477, %v10501
    %v10503 = vmin.f32 %v10502, 1.0
    %v10504 = vmax.f32 %v10503, -1.0
    %v10505 = vmul.f32 %v10423, %v10423
    %v10506 = vmin.f32 16.0, %v10505
    %v10507 = vmul.f32 %v10506, 2.1237322e-06
    %v10508 = vadd.f32 %v10507, 0.00028619796
    %v10509 = vmul.f32 %v10506, %v10508
    %v10510 = vadd.f32 %v10509, 0.0036580483
    %v10511 = vmul.f32 %v10506, %v10510
    %v10512 = vadd.f32 %v10511, 0.05243302
    %v10513 = vmul.f32 %v10506, %v10512
    %v10514 = vadd.f32 %v10513, 0.18741608
    %v10515 = vmul.f32 %v10506, %v10514
    %v10516 = vadd.f32 %v10515, 1.1283791
    %v10517 = vmul.f32 %v10423, %v10516
    %v10518 = vmul.f32 %v10506, 3.8918573e-05
    %v10519 = vadd.f32 %v10518, 0.001143296
    %v10520 = vmul.f32 %v10506, %v10519
    %v10521 = vadd.f32 %v10520, 0.014752088
    %v10522 = vmul.f32 %v10506, %v10521
    %v10523 = vadd.f32 %v10522, 0.112945676
    %v10524 = vmul.f32 %v10506, %v10523
    %v10525 = vadd.f32 %v10524, 0.4994258
    %v10526 = vmul.f32 %v10506, %v10525
    %v10527 = vadd.f32 %v10526, 1.0
    %v10528 = vrcp.pop %v10527
    %v10529 = vmul.f32 %v10527, %v10528
    %v10530 = vsub.f32 1.0, %v10529
    %v10531 = vmul.f32 %v10528, %v10530
    %v10532 = vadd.f32 %v10528, %v10531
    %vm10533 = vweird.f32 %v10527
    %vm10534 = vweird.f32 %v10528
    %vm10535 = vmor %vm10533, %vm10534
    %v10536 = vsel %vm10535, %v10528, %v10532
    %v10537 = vand.u32 2147483647, %v10527
    %vm10538 = vcmp.eq.f32.partialorder %v10537, 8.507059e+37
    %v10539 = vand.u32 %v10527, 2147483648
    %v10540 = vor.u32 1.1754944e-38, %v10539
    %v10541 = vsel %vm10538, %v10540, %v10536
    %v10542 = vmul.f32 %v10517, %v10541
    %v10543 = vmin.f32 %v10542, 1.0
    %v10544 = vmax.f32 %v10543, -1.0
    %v10545 = vmul.f32 %v10424, %v10424
    %v10546 = vmin.f32 16.0, %v10545
    %v10547 = vmul.f32 %v10546, 2.1237322e-06
    %v10548 = vadd.f32 %v10547, 0.00028619796
    %v10549 = vmul.f32 %v10546, %v10548
    %v10550 = vadd.f32 %v10549, 0.0036580483
    %v10551 = vmul.f32 %v10546, %v10550
    %v10552 = vadd.f32 %v10551, 0.05243302
    %v10553 = vmul.f32 %v10546, %v10552
    %v10554 = vadd.f32 %v10553, 0.18741608
    %v10555 = vmul.f32 %v10546, %v10554
    %v10556 = vadd.f32 %v10555, 1.1283791
    %v10557 = vmul.f32 %v10424, %v10556
    %v10558 = vmul.f32 %v10546, 3.8918573e-05
    %v10559 = vadd.f32 %v10558, 0.001143296
    %v10560 = vmul.f32 %v10546, %v10559
    %v10561 = vadd.f32 %v10560, 0.014752088
    %v10562 = vmul.f32 %v10546, %v10561
    %v10563 = vadd.f32 %v10562, 0.112945676
    %v10564 = vmul.f32 %v10546, %v10563
    %v10565 = vadd.f32 %v10564, 0.4994258
    %v10566 = vmul.f32 %v10546, %v10565
    %v10567 = vadd.f32 %v10566, 1.0
    %v10568 = vrcp.pop %v10567
    %v10569 = vmul.f32 %v10567, %v10568
    %v10570 = vsub.f32 1.0, %v10569
    %v10571 = vmul.f32 %v10568, %v10570
    %v10572 = vadd.f32 %v10568, %v10571
    %vm10573 = vweird.f32 %v10567
    %vm10574 = vweird.f32 %v10568
    %vm10575 = vmor %vm10573, %vm10574
    %v10576 = vsel %vm10575, %v10568, %v10572
    %v10577 = vand.u32 2147483647, %v10567
    %vm10578 = vcmp.eq.f32.partialorder %v10577, 8.507059e+37
    %v10579 = vand.u32 %v10567, 2147483648
    %v10580 = vor.u32 1.1754944e-38, %v10579
    %v10581 = vsel %vm10578, %v10580, %v10576
    %v10582 = vmul.f32 %v10557, %v10581
    %v10583 = vmin.f32 %v10582, 1.0
    %v10584 = vmax.f32 %v10583, -1.0
    %v10585 = vadd.f32 %v10464, 1.0
    %v10586 = vadd.f32 %v10504, 1.0
    %v10587 = vadd.f32 %v10544, 1.0
    %v10588 = vadd.f32 %v10584, 1.0
    %v10589 = vmul.f32 %v10417, %v10585
    %v10590 = vmul.f32 %v10418, %v10586
    %v10591 = vmul.f32 %v10419, %v10587
    %v10592 = vmul.f32 %v10420, %v10588
    %v10593 = vld [vmem:[#allocation10] sm:$0xff]
    %v10594 = vld [vmem:[#allocation10 + $0x8] sm:$0xff]
    %v10595 = vld [vmem:[#allocation10 + $0x10] sm:$0xff]
    %v10596 = vld [vmem:[#allocation10 + $0x18] sm:$0xff]
    %v10597 = vld [vmem:[#allocation10 + $0x20] sm:$0xff]
    %v10598 = vld [vmem:[#allocation10 + $0x28] sm:$0xff]
    %v10599 = vld [vmem:[#allocation10 + $0x30] sm:$0xff]
    %v10600 = vld [vmem:[#allocation10 + $0x38] sm:$0xff]
    %v10601 = vld [vmem:[#allocation10 + $0x40] sm:$0xff]
    %v10602 = vld [vmem:[#allocation10 + $0x48] sm:$0xff]
    %v10603 = vld [vmem:[#allocation10 + $0x50] sm:$0xff]
    %v10604 = vld [vmem:[#allocation10 + $0x58] sm:$0xff]
    %v10605 = vld [vmem:[#allocation10 + $0x60] sm:$0xff]
    %v10606 = vld [vmem:[#allocation10 + $0x68] sm:$0xff]
    %v10607 = vld [vmem:[#allocation10 + $0x70] sm:$0xff]
    %v10608 = vld [vmem:[#allocation10 + $0x78] sm:$0xff]
    %v10609 = vld [vmem:[#allocation10 + $0x80] sm:$0xff]
    %v10610 = vld [vmem:[#allocation10 + $0x88] sm:$0xff]
    %v10611 = vld [vmem:[#allocation10 + $0x90] sm:$0xff]
    %v10612 = vld [vmem:[#allocation10 + $0x98] sm:$0xff]
    %v10613 = vld [vmem:[#allocation10 + $0xa0] sm:$0xff]
    %v10614 = vld [vmem:[#allocation10 + $0xa8] sm:$0xff]
    %v10615 = vld [vmem:[#allocation10 + $0xb0] sm:$0xff]
    %v10616 = vld [vmem:[#allocation10 + $0xb8] sm:$0xff]
    %v10617 = vld [vmem:[#allocation10 + $0xc0] sm:$0xff]
    %v10618 = vld [vmem:[#allocation10 + $0xc8] sm:$0xff]
    %v10619 = vld [vmem:[#allocation10 + $0xd0] sm:$0xff]
    %v10620 = vld [vmem:[#allocation10 + $0xd8] sm:$0xff]
    %v10621 = vld [vmem:[#allocation10 + $0xe0] sm:$0xff]
    %v10622 = vld [vmem:[#allocation10 + $0xe8] sm:$0xff]
    %v10623 = vld [vmem:[#allocation10 + $0xf0] sm:$0xff]
    %v10624 = vld [vmem:[#allocation10 + $0xf8] sm:$0xff]
    %v10625 = vld [vmem:[#allocation10 + $0x100] sm:$0xff]
    %v10626 = vld [vmem:[#allocation10 + $0x108] sm:$0xff]
    %v10627 = vld [vmem:[#allocation10 + $0x110] sm:$0xff]
    %v10628 = vld [vmem:[#allocation10 + $0x118] sm:$0xff]
    %v10629 = vld [vmem:[#allocation10 + $0x120] sm:$0xff]
    %v10630 = vld [vmem:[#allocation10 + $0x128] sm:$0xff]
    %v10631 = vld [vmem:[#allocation10 + $0x130] sm:$0xff]
    %v10632 = vld [vmem:[#allocation10 + $0x138] sm:$0xff]
    %v10633 = vld [vmem:[#allocation10 + $0x140] sm:$0xff]
    %v10634 = vld [vmem:[#allocation10 + $0x148] sm:$0xff]
    %v10635 = vld [vmem:[#allocation10 + $0x150] sm:$0xff]
    %v10636 = vld [vmem:[#allocation10 + $0x158] sm:$0xff]
    %v10637 = vld [vmem:[#allocation10 + $0x160] sm:$0xff]
    %v10638 = vld [vmem:[#allocation10 + $0x168] sm:$0xff]
    %v10639 = vld [vmem:[#allocation10 + $0x170] sm:$0xff]
    %v10640 = vld [vmem:[#allocation10 + $0x178] sm:$0xff]
    %v10641 = vld [vmem:[#allocation10 + $0x180] sm:$0xff]
    %v10642 = vld [vmem:[#allocation10 + $0x188] sm:$0xff]
    %v10643 = vld [vmem:[#allocation10 + $0x190] sm:$0xff]
    %v10644 = vld [vmem:[#allocation10 + $0x198] sm:$0xff]
    %v10645 = vld [vmem:[#allocation10 + $0x1a0] sm:$0xff]
    %v10646 = vld [vmem:[#allocation10 + $0x1a8] sm:$0xff]
    %v10647 = vld [vmem:[#allocation10 + $0x1b0] sm:$0xff]
    %v10648 = vld [vmem:[#allocation10 + $0x1b8] sm:$0xff]
    %v10649 = vld [vmem:[#allocation10 + $0x1c0] sm:$0xff]
    %v10650 = vld [vmem:[#allocation10 + $0x1c8] sm:$0xff]
    %v10651 = vld [vmem:[#allocation10 + $0x1d0] sm:$0xff]
    %v10652 = vld [vmem:[#allocation10 + $0x1d8] sm:$0xff]
    %v10653 = vld [vmem:[#allocation10 + $0x1e0] sm:$0xff]
    %v10654 = vld [vmem:[#allocation10 + $0x1e8] sm:$0xff]
    %v10655 = vld [vmem:[#allocation10 + $0x1f0] sm:$0xff]
    %v10656 = vld [vmem:[#allocation10 + $0x1f8] sm:$0xff]
    %v10657 = vld [vmem:[#allocation12] sm:$0x3]
    %v10658 = vpack.c.bf16 %v10589, %v10589
    %v10659 = vpack.c.bf16 %v10590, %v10590
    %v10660 = vpack.c.bf16 %v10591, %v10591
    %v10661 = vpack.c.bf16 %v10592, %v10592
    %v10663 = vperm.slane %v10657, 0
    %v10664 = vperm.slane %v10657, 1
    %v10731 = vunpack.c.l.b16 %v10593
    %v10732 = vunpack.c.h.b16 %v10593
    %v10733 = vunpack.c.l.b16 %v10594
    %v10734 = vunpack.c.h.b16 %v10594
    %v10735 = vunpack.c.l.b16 %v10595
    %v10736 = vunpack.c.h.b16 %v10595
    %v10737 = vunpack.c.l.b16 %v10596
    %v10738 = vunpack.c.h.b16 %v10596
    %v10739 = vunpack.c.l.b16 %v10597
    %v10740 = vunpack.c.h.b16 %v10597
    %v10741 = vunpack.c.l.b16 %v10598
    %v10742 = vunpack.c.h.b16 %v10598
    %v10743 = vunpack.c.l.b16 %v10599
    %v10744 = vunpack.c.h.b16 %v10599
    %v10745 = vunpack.c.l.b16 %v10600
    %v10746 = vunpack.c.h.b16 %v10600
    %v10747 = vunpack.c.l.b16 %v10601
    %v10748 = vunpack.c.h.b16 %v10601
    %v10749 = vunpack.c.l.b16 %v10602
    %v10750 = vunpack.c.h.b16 %v10602
    %v10751 = vunpack.c.l.b16 %v10603
    %v10752 = vunpack.c.h.b16 %v10603
    %v10753 = vunpack.c.l.b16 %v10604
    %v10754 = vunpack.c.h.b16 %v10604
    %v10755 = vunpack.c.l.b16 %v10605
    %v10756 = vunpack.c.h.b16 %v10605
    %v10757 = vunpack.c.l.b16 %v10606
    %v10758 = vunpack.c.h.b16 %v10606
    %v10759 = vunpack.c.l.b16 %v10607
    %v10760 = vunpack.c.h.b16 %v10607
    %v10761 = vunpack.c.l.b16 %v10608
    %v10762 = vunpack.c.h.b16 %v10608
    %v10763 = vunpack.c.l.b16 %v10609
    %v10764 = vunpack.c.h.b16 %v10609
    %v10765 = vunpack.c.l.b16 %v10610
    %v10766 = vunpack.c.h.b16 %v10610
    %v10767 = vunpack.c.l.b16 %v10611
    %v10768 = vunpack.c.h.b16 %v10611
    %v10769 = vunpack.c.l.b16 %v10612
    %v10770 = vunpack.c.h.b16 %v10612
    %v10771 = vunpack.c.l.b16 %v10613
    %v10772 = vunpack.c.h.b16 %v10613
    %v10773 = vunpack.c.l.b16 %v10614
    %v10774 = vunpack.c.h.b16 %v10614
    %v10775 = vunpack.c.l.b16 %v10615
    %v10776 = vunpack.c.h.b16 %v10615
    %v10777 = vunpack.c.l.b16 %v10616
    %v10778 = vunpack.c.h.b16 %v10616
    %v10779 = vunpack.c.l.b16 %v10617
    %v10780 = vunpack.c.h.b16 %v10617
    %v10781 = vunpack.c.l.b16 %v10618
    %v10782 = vunpack.c.h.b16 %v10618
    %v10783 = vunpack.c.l.b16 %v10619
    %v10784 = vunpack.c.h.b16 %v10619
    %v10785 = vunpack.c.l.b16 %v10620
    %v10786 = vunpack.c.h.b16 %v10620
    %v10787 = vunpack.c.l.b16 %v10621
    %v10788 = vunpack.c.h.b16 %v10621
    %v10789 = vunpack.c.l.b16 %v10622
    %v10790 = vunpack.c.h.b16 %v10622
    %v10791 = vunpack.c.l.b16 %v10623
    %v10792 = vunpack.c.h.b16 %v10623
    %v10793 = vunpack.c.l.b16 %v10624
    %v10794 = vunpack.c.h.b16 %v10624
    %v10795 = vunpack.c.l.b16 %v10625
    %v10796 = vunpack.c.h.b16 %v10625
    %v10797 = vunpack.c.l.b16 %v10626
    %v10798 = vunpack.c.h.b16 %v10626
    %v10799 = vunpack.c.l.b16 %v10627
    %v10800 = vunpack.c.h.b16 %v10627
    %v10801 = vunpack.c.l.b16 %v10628
    %v10802 = vunpack.c.h.b16 %v10628
    %v10803 = vunpack.c.l.b16 %v10629
    %v10804 = vunpack.c.h.b16 %v10629
    %v10805 = vunpack.c.l.b16 %v10630
    %v10806 = vunpack.c.h.b16 %v10630
    %v10807 = vunpack.c.l.b16 %v10631
    %v10808 = vunpack.c.h.b16 %v10631
    %v10809 = vunpack.c.l.b16 %v10632
    %v10810 = vunpack.c.h.b16 %v10632
    %v10811 = vunpack.c.l.b16 %v10633
    %v10812 = vunpack.c.h.b16 %v10633
    %v10813 = vunpack.c.l.b16 %v10634
    %v10814 = vunpack.c.h.b16 %v10634
    %v10815 = vunpack.c.l.b16 %v10635
    %v10816 = vunpack.c.h.b16 %v10635
    %v10817 = vunpack.c.l.b16 %v10636
    %v10818 = vunpack.c.h.b16 %v10636
    %v10819 = vunpack.c.l.b16 %v10637
    %v10820 = vunpack.c.h.b16 %v10637
    %v10821 = vunpack.c.l.b16 %v10638
    %v10822 = vunpack.c.h.b16 %v10638
    %v10823 = vunpack.c.l.b16 %v10639
    %v10824 = vunpack.c.h.b16 %v10639
    %v10825 = vunpack.c.l.b16 %v10640
    %v10826 = vunpack.c.h.b16 %v10640
    %v10827 = vunpack.c.l.b16 %v10641
    %v10828 = vunpack.c.h.b16 %v10641
    %v10829 = vunpack.c.l.b16 %v10642
    %v10830 = vunpack.c.h.b16 %v10642
    %v10831 = vunpack.c.l.b16 %v10643
    %v10832 = vunpack.c.h.b16 %v10643
    %v10833 = vunpack.c.l.b16 %v10644
    %v10834 = vunpack.c.h.b16 %v10644
    %v10835 = vunpack.c.l.b16 %v10645
    %v10836 = vunpack.c.h.b16 %v10645
    %v10837 = vunpack.c.l.b16 %v10646
    %v10838 = vunpack.c.h.b16 %v10646
    %v10839 = vunpack.c.l.b16 %v10647
    %v10840 = vunpack.c.h.b16 %v10647
    %v10841 = vunpack.c.l.b16 %v10648
    %v10842 = vunpack.c.h.b16 %v10648
    %v10843 = vunpack.c.l.b16 %v10649
    %v10844 = vunpack.c.h.b16 %v10649
    %v10845 = vunpack.c.l.b16 %v10650
    %v10846 = vunpack.c.h.b16 %v10650
    %v10847 = vunpack.c.l.b16 %v10651
    %v10848 = vunpack.c.h.b16 %v10651
    %v10849 = vunpack.c.l.b16 %v10652
    %v10850 = vunpack.c.h.b16 %v10652
    %v10851 = vunpack.c.l.b16 %v10653
    %v10852 = vunpack.c.h.b16 %v10653
    %v10853 = vunpack.c.l.b16 %v10654
    %v10854 = vunpack.c.h.b16 %v10654
    %v10855 = vunpack.c.l.b16 %v10655
    %v10856 = vunpack.c.h.b16 %v10655
    %v10857 = vunpack.c.l.b16 %v10656
    %v10858 = vunpack.c.h.b16 %v10656
    %v10859 = vpack.c.b16 %v10733, %v10731
    %v10860 = vpack.c.b16 %v10734, %v10732
    %v10861 = vpack.c.b16 %v10737, %v10735
    %v10862 = vpack.c.b16 %v10738, %v10736
    %v10863 = vpack.c.b16 %v10741, %v10739
    %v10864 = vpack.c.b16 %v10742, %v10740
    %v10865 = vpack.c.b16 %v10745, %v10743
    %v10866 = vpack.c.b16 %v10746, %v10744
    %v10867 = vpack.c.b16 %v10749, %v10747
    %v10868 = vpack.c.b16 %v10750, %v10748
    %v10869 = vpack.c.b16 %v10753, %v10751
    %v10870 = vpack.c.b16 %v10754, %v10752
    %v10871 = vpack.c.b16 %v10757, %v10755
    %v10872 = vpack.c.b16 %v10758, %v10756
    %v10873 = vpack.c.b16 %v10761, %v10759
    %v10874 = vpack.c.b16 %v10762, %v10760
    %v10875 = vpack.c.b16 %v10765, %v10763
    %v10876 = vpack.c.b16 %v10766, %v10764
    %v10877 = vpack.c.b16 %v10769, %v10767
    %v10878 = vpack.c.b16 %v10770, %v10768
    %v10879 = vpack.c.b16 %v10773, %v10771
    %v10880 = vpack.c.b16 %v10774, %v10772
    %v10881 = vpack.c.b16 %v10777, %v10775
    %v10882 = vpack.c.b16 %v10778, %v10776
    %v10883 = vpack.c.b16 %v10781, %v10779
    %v10884 = vpack.c.b16 %v10782, %v10780
    %v10885 = vpack.c.b16 %v10785, %v10783
    %v10886 = vpack.c.b16 %v10786, %v10784
    %v10887 = vpack.c.b16 %v10789, %v10787
    %v10888 = vpack.c.b16 %v10790, %v10788
    %v10889 = vpack.c.b16 %v10793, %v10791
    %v10890 = vpack.c.b16 %v10794, %v10792
    %v10891 = vpack.c.b16 %v10797, %v10795
    %v10892 = vpack.c.b16 %v10798, %v10796
    %v10893 = vpack.c.b16 %v10801, %v10799
    %v10894 = vpack.c.b16 %v10802, %v10800
    %v10895 = vpack.c.b16 %v10805, %v10803
    %v10896 = vpack.c.b16 %v10806, %v10804
    %v10897 = vpack.c.b16 %v10809, %v10807
    %v10898 = vpack.c.b16 %v10810, %v10808
    %v10899 = vpack.c.b16 %v10813, %v10811
    %v10900 = vpack.c.b16 %v10814, %v10812
    %v10901 = vpack.c.b16 %v10817, %v10815
    %v10902 = vpack.c.b16 %v10818, %v10816
    %v10903 = vpack.c.b16 %v10821, %v10819
    %v10904 = vpack.c.b16 %v10822, %v10820
    %v10905 = vpack.c.b16 %v10825, %v10823
    %v10906 = vpack.c.b16 %v10826, %v10824
    %v10907 = vpack.c.b16 %v10829, %v10827
    %v10908 = vpack.c.b16 %v10830, %v10828
    %v10909 = vpack.c.b16 %v10833, %v10831
    %v10910 = vpack.c.b16 %v10834, %v10832
    %v10911 = vpack.c.b16 %v10837, %v10835
    %v10912 = vpack.c.b16 %v10838, %v10836
    %v10913 = vpack.c.b16 %v10841, %v10839
    %v10914 = vpack.c.b16 %v10842, %v10840
    %v10915 = vpack.c.b16 %v10845, %v10843
    %v10916 = vpack.c.b16 %v10846, %v10844
    %v10917 = vpack.c.b16 %v10849, %v10847
    %v10918 = vpack.c.b16 %v10850, %v10848
    %v10919 = vpack.c.b16 %v10853, %v10851
    %v10920 = vpack.c.b16 %v10854, %v10852
    %v10921 = vpack.c.b16 %v10857, %v10855
    %v10922 = vpack.c.b16 %v10858, %v10856
    %10987 = vmatpush.bf16.msra.mxu0 %v10873
    %10988 = vmatpush.bf16.msra.mxu0 %v10871
    %10989 = vmatpush.bf16.msra.mxu0 %v10869
    %10990 = vmatpush.bf16.msra.mxu0 %v10867
    %10991 = vmatpush.bf16.msra.mxu0 %v10865
    %10992 = vmatpush.bf16.msra.mxu0 %v10863
    %10993 = vmatpush.bf16.msra.mxu0 %v10861
    %10994 = vmatpush.bf16.msra.mxu0 %v10859
    %10995 = vmatmul.bf16.gmra.mxu0 %v10658
    %v10996 = vpop.f32.mrf.mxu0
    %v10997 = vadd.f32 %v10663, %v10996
    %v10998 = vpop.f32.mrf.mxu0
    %10999 = vdwg.mxu0
    %11000 = vmatpush.bf16.msra.mxu0 %v10889
    %11001 = vmatpush.bf16.msra.mxu0 %v10887
    %11002 = vmatpush.bf16.msra.mxu0 %v10885
    %11003 = vmatpush.bf16.msra.mxu0 %v10883
    %11004 = vmatpush.bf16.msra.mxu0 %v10881
    %11005 = vmatpush.bf16.msra.mxu0 %v10879
    %11006 = vmatpush.bf16.msra.mxu0 %v10877
    %11007 = vmatpush.bf16.msra.mxu0 %v10875
    %11008 = vmatmul.bf16.gmra.mxu0 %v10659
    %v11009 = vpop.f32.mrf.mxu0
    %v11010 = vadd.f32 %v10997, %v11009
    %v11011 = vpop.f32.mrf.mxu0
    %11012 = vdwg.mxu0
    %11013 = vmatpush.bf16.msra.mxu0 %v10905
    %11014 = vmatpush.bf16.msra.mxu0 %v10903
    %11015 = vmatpush.bf16.msra.mxu0 %v10901
    %11016 = vmatpush.bf16.msra.mxu0 %v10899
    %11017 = vmatpush.bf16.msra.mxu0 %v10897
    %11018 = vmatpush.bf16.msra.mxu0 %v10895
    %11019 = vmatpush.bf16.msra.mxu0 %v10893
    %11020 = vmatpush.bf16.msra.mxu0 %v10891
    %11021 = vmatmul.bf16.gmra.mxu0 %v10660
    %v11022 = vpop.f32.mrf.mxu0
    %v11023 = vadd.f32 %v11010, %v11022
    %v11024 = vpop.f32.mrf.mxu0
    %11025 = vdwg.mxu0
    %11026 = vmatpush.bf16.msra.mxu0 %v10921
    %11027 = vmatpush.bf16.msra.mxu0 %v10919
    %11028 = vmatpush.bf16.msra.mxu0 %v10917
    %11029 = vmatpush.bf16.msra.mxu0 %v10915
    %11030 = vmatpush.bf16.msra.mxu0 %v10913
    %11031 = vmatpush.bf16.msra.mxu0 %v10911
    %11032 = vmatpush.bf16.msra.mxu0 %v10909
    %11033 = vmatpush.bf16.msra.mxu0 %v10907
    %11034 = vmatmul.bf16.gmra.mxu0 %v10661
    %v11035 = vpop.f32.mrf.mxu0
    %v11036 = vadd.f32 %v11023, %v11035
    %v11037 = vpop.f32.mrf.mxu0
    %11038 = vdwg.mxu0
    %11039 = vmatpush.bf16.msra.mxu0 %v10874
    %11040 = vmatpush.bf16.msra.mxu0 %v10872
    %11041 = vmatpush.bf16.msra.mxu0 %v10870
    %11042 = vmatpush.bf16.msra.mxu0 %v10868
    %11043 = vmatpush.bf16.msra.mxu0 %v10866
    %11044 = vmatpush.bf16.msra.mxu0 %v10864
    %11045 = vmatpush.bf16.msra.mxu0 %v10862
    %11046 = vmatpush.bf16.msra.mxu0 %v10860
    %11047 = vmatmul.bf16.gmra.mxu0 %v10658
    %v11048 = vpop.f32.mrf.mxu0
    %v11049 = vadd.f32 %v10664, %v11048
    %v11050 = vpop.f32.mrf.mxu0
    %11051 = vdwg.mxu0
    %11052 = vmatpush.bf16.msra.mxu0 %v10890
    %11053 = vmatpush.bf16.msra.mxu0 %v10888
    %11054 = vmatpush.bf16.msra.mxu0 %v10886
    %11055 = vmatpush.bf16.msra.mxu0 %v10884
    %11056 = vmatpush.bf16.msra.mxu0 %v10882
    %11057 = vmatpush.bf16.msra.mxu0 %v10880
    %11058 = vmatpush.bf16.msra.mxu0 %v10878
    %11059 = vmatpush.bf16.msra.mxu0 %v10876
    %11060 = vmatmul.bf16.gmra.mxu0 %v10659
    %v11061 = vpop.f32.mrf.mxu0
    %v11062 = vadd.f32 %v11049, %v11061
    %v11063 = vpop.f32.mrf.mxu0
    %11064 = vdwg.mxu0
    %11065 = vmatpush.bf16.msra.mxu0 %v10906
    %11066 = vmatpush.bf16.msra.mxu0 %v10904
    %11067 = vmatpush.bf16.msra.mxu0 %v10902
    %11068 = vmatpush.bf16.msra.mxu0 %v10900
    %11069 = vmatpush.bf16.msra.mxu0 %v10898
    %11070 = vmatpush.bf16.msra.mxu0 %v10896
    %11071 = vmatpush.bf16.msra.mxu0 %v10894
    %11072 = vmatpush.bf16.msra.mxu0 %v10892
    %11073 = vmatmul.bf16.gmra.mxu0 %v10660
    %v11074 = vpop.f32.mrf.mxu0
    %v11075 = vadd.f32 %v11062, %v11074
    %v11076 = vpop.f32.mrf.mxu0
    %11077 = vdwg.mxu0
    %11078 = vmatpush.bf16.msra.mxu0 %v10922
    %11079 = vmatpush.bf16.msra.mxu0 %v10920
    %11080 = vmatpush.bf16.msra.mxu0 %v10918
    %11081 = vmatpush.bf16.msra.mxu0 %v10916
    %11082 = vmatpush.bf16.msra.mxu0 %v10914
    %11083 = vmatpush.bf16.msra.mxu0 %v10912
    %11084 = vmatpush.bf16.msra.mxu0 %v10910
    %11085 = vmatpush.bf16.msra.mxu0 %v10908
    %11086 = vmatmul.bf16.gmra.mxu0 %v10661
    %v11087 = vpop.f32.mrf.mxu0
    %v11088 = vadd.f32 %v11075, %v11087
    %v11089 = vpop.f32.mrf.mxu0
    %11090 = vdwg.mxu0
    %v11091 = vmul.f32 %v11036, 0.5
    %v11092 = vmul.f32 %v11088, 0.5
    %v11093 = vmul.f32 %v11036, 0.70710677
    %v11094 = vmul.f32 %v11088, 0.70710677
    %v11095 = vmul.f32 %v11093, %v11093
    %v11096 = vmin.f32 16.0, %v11095
    %v11097 = vmul.f32 %v11096, 2.1237322e-06
    %v11098 = vadd.f32 %v11097, 0.00028619796
    %v11099 = vmul.f32 %v11096, %v11098
    %v11100 = vadd.f32 %v11099, 0.0036580483
    %v11101 = vmul.f32 %v11096, %v11100
    %v11102 = vadd.f32 %v11101, 0.05243302
    %v11103 = vmul.f32 %v11096, %v11102
    %v11104 = vadd.f32 %v11103, 0.18741608
    %v11105 = vmul.f32 %v11096, %v11104
    %v11106 = vadd.f32 %v11105, 1.1283791
    %v11107 = vmul.f32 %v11093, %v11106
    %v11108 = vmul.f32 %v11096, 3.8918573e-05
    %v11109 = vadd.f32 %v11108, 0.001143296
    %v11110 = vmul.f32 %v11096, %v11109
    %v11111 = vadd.f32 %v11110, 0.014752088
    %v11112 = vmul.f32 %v11096, %v11111
    %v11113 = vadd.f32 %v11112, 0.112945676
    %v11114 = vmul.f32 %v11096, %v11113
    %v11115 = vadd.f32 %v11114, 0.4994258
    %v11116 = vmul.f32 %v11096, %v11115
    %v11117 = vadd.f32 %v11116, 1.0
    %v11118 = vrcp.pop %v11117
    %v11119 = vmul.f32 %v11117, %v11118
    %v11120 = vsub.f32 1.0, %v11119
    %v11121 = vmul.f32 %v11118, %v11120
    %v11122 = vadd.f32 %v11118, %v11121
    %vm11123 = vweird.f32 %v11117
    %vm11124 = vweird.f32 %v11118
    %vm11125 = vmor %vm11123, %vm11124
    %v11126 = vsel %vm11125, %v11118, %v11122
    %v11127 = vand.u32 2147483647, %v11117
    %vm11128 = vcmp.eq.f32.partialorder %v11127, 8.507059e+37
    %v11129 = vand.u32 %v11117, 2147483648
    %v11130 = vor.u32 1.1754944e-38, %v11129
    %v11131 = vsel %vm11128, %v11130, %v11126
    %v11132 = vmul.f32 %v11107, %v11131
    %v11133 = vmin.f32 %v11132, 1.0
    %v11134 = vmax.f32 %v11133, -1.0
    %v11135 = vmul.f32 %v11094, %v11094
    %v11136 = vmin.f32 16.0, %v11135
    %v11137 = vmul.f32 %v11136, 2.1237322e-06
    %v11138 = vadd.f32 %v11137, 0.00028619796
    %v11139 = vmul.f32 %v11136, %v11138
    %v11140 = vadd.f32 %v11139, 0.0036580483
    %v11141 = vmul.f32 %v11136, %v11140
    %v11142 = vadd.f32 %v11141, 0.05243302
    %v11143 = vmul.f32 %v11136, %v11142
    %v11144 = vadd.f32 %v11143, 0.18741608
    %v11145 = vmul.f32 %v11136, %v11144
    %v11146 = vadd.f32 %v11145, 1.1283791
    %v11147 = vmul.f32 %v11094, %v11146
    %v11148 = vmul.f32 %v11136, 3.8918573e-05
    %v11149 = vadd.f32 %v11148, 0.001143296
    %v11150 = vmul.f32 %v11136, %v11149
    %v11151 = vadd.f32 %v11150, 0.014752088
    %v11152 = vmul.f32 %v11136, %v11151
    %v11153 = vadd.f32 %v11152, 0.112945676
    %v11154 = vmul.f32 %v11136, %v11153
    %v11155 = vadd.f32 %v11154, 0.4994258
    %v11156 = vmul.f32 %v11136, %v11155
    %v11157 = vadd.f32 %v11156, 1.0
    %v11158 = vrcp.pop %v11157
    %v11159 = vmul.f32 %v11157, %v11158
    %v11160 = vsub.f32 1.0, %v11159
    %v11161 = vmul.f32 %v11158, %v11160
    %v11162 = vadd.f32 %v11158, %v11161
    %vm11163 = vweird.f32 %v11157
    %vm11164 = vweird.f32 %v11158
    %vm11165 = vmor %vm11163, %vm11164
    %v11166 = vsel %vm11165, %v11158, %v11162
    %v11167 = vand.u32 2147483647, %v11157
    %vm11168 = vcmp.eq.f32.partialorder %v11167, 8.507059e+37
    %v11169 = vand.u32 %v11157, 2147483648
    %v11170 = vor.u32 1.1754944e-38, %v11169
    %v11171 = vsel %vm11168, %v11170, %v11166
    %v11172 = vmul.f32 %v11147, %v11171
    %v11173 = vmin.f32 %v11172, 1.0
    %v11174 = vmax.f32 %v11173, -1.0
    %v11175 = vadd.f32 %v11134, 1.0
    %v11176 = vadd.f32 %v11174, 1.0
    %v11177 = vmul.f32 %v11091, %v11175
    %v11178 = vmul.f32 %v11092, %v11176
    %v11179 = vld [vmem:[#allocation13] sm:$0xf]
    %v11180 = vld [vmem:[#allocation13 + $0x4] sm:$0xf]
    %v11181 = vld [vmem:[#allocation13 + $0x8] sm:$0xf]
    %v11182 = vld [vmem:[#allocation13 + $0xc] sm:$0xf]
    %v11183 = vld [vmem:[#allocation13 + $0x10] sm:$0xf]
    %v11184 = vld [vmem:[#allocation13 + $0x14] sm:$0xf]
    %v11185 = vld [vmem:[#allocation13 + $0x18] sm:$0xf]
    %v11186 = vld [vmem:[#allocation13 + $0x1c] sm:$0xf]
    %v11187 = vld [vmem:[#allocation13 + $0x20] sm:$0xf]
    %v11188 = vld [vmem:[#allocation13 + $0x24] sm:$0xf]
    %v11189 = vld [vmem:[#allocation13 + $0x28] sm:$0xf]
    %v11190 = vld [vmem:[#allocation13 + $0x2c] sm:$0xf]
    %v11191 = vld [vmem:[#allocation13 + $0x30] sm:$0xf]
    %v11192 = vld [vmem:[#allocation13 + $0x34] sm:$0xf]
    %v11193 = vld [vmem:[#allocation13 + $0x38] sm:$0xf]
    %v11194 = vld [vmem:[#allocation13 + $0x3c] sm:$0xf]
    %v11195 = vld [vmem:[#allocation13 + $0x40] sm:$0xf]
    %v11196 = vld [vmem:[#allocation13 + $0x44] sm:$0xf]
    %v11197 = vld [vmem:[#allocation13 + $0x48] sm:$0xf]
    %v11198 = vld [vmem:[#allocation13 + $0x4c] sm:$0xf]
    %v11199 = vld [vmem:[#allocation13 + $0x50] sm:$0xf]
    %v11200 = vld [vmem:[#allocation13 + $0x54] sm:$0xf]
    %v11201 = vld [vmem:[#allocation13 + $0x58] sm:$0xf]
    %v11202 = vld [vmem:[#allocation13 + $0x5c] sm:$0xf]
    %v11203 = vld [vmem:[#allocation13 + $0x60] sm:$0xf]
    %v11204 = vld [vmem:[#allocation13 + $0x64] sm:$0xf]
    %v11205 = vld [vmem:[#allocation13 + $0x68] sm:$0xf]
    %v11206 = vld [vmem:[#allocation13 + $0x6c] sm:$0xf]
    %v11207 = vld [vmem:[#allocation13 + $0x70] sm:$0xf]
    %v11208 = vld [vmem:[#allocation13 + $0x74] sm:$0xf]
    %v11209 = vld [vmem:[#allocation13 + $0x78] sm:$0xf]
    %v11210 = vld [vmem:[#allocation13 + $0x7c] sm:$0xf]
    %v11211 = vld [vmem:[#allocation15] sm:$0x1]
    %v11212 = vpack.c.bf16 %v11177, %v11177
    %v11213 = vpack.c.bf16 %v11178, %v11178
    %v11215 = vperm.slane %v11211, 0
    %v11249 = vunpack.c.l.b16 %v11179
    %v11250 = vunpack.c.l.b16 %v11180
    %v11251 = vunpack.c.l.b16 %v11181
    %v11252 = vunpack.c.l.b16 %v11182
    %v11253 = vunpack.c.l.b16 %v11183
    %v11254 = vunpack.c.l.b16 %v11184
    %v11255 = vunpack.c.l.b16 %v11185
    %v11256 = vunpack.c.l.b16 %v11186
    %v11257 = vunpack.c.l.b16 %v11187
    %v11258 = vunpack.c.l.b16 %v11188
    %v11259 = vunpack.c.l.b16 %v11189
    %v11260 = vunpack.c.l.b16 %v11190
    %v11261 = vunpack.c.l.b16 %v11191
    %v11262 = vunpack.c.l.b16 %v11192
    %v11263 = vunpack.c.l.b16 %v11193
    %v11264 = vunpack.c.l.b16 %v11194
    %v11265 = vunpack.c.l.b16 %v11195
    %v11266 = vunpack.c.l.b16 %v11196
    %v11267 = vunpack.c.l.b16 %v11197
    %v11268 = vunpack.c.l.b16 %v11198
    %v11269 = vunpack.c.l.b16 %v11199
    %v11270 = vunpack.c.l.b16 %v11200
    %v11271 = vunpack.c.l.b16 %v11201
    %v11272 = vunpack.c.l.b16 %v11202
    %v11273 = vunpack.c.l.b16 %v11203
    %v11274 = vunpack.c.l.b16 %v11204
    %v11275 = vunpack.c.l.b16 %v11205
    %v11276 = vunpack.c.l.b16 %v11206
    %v11277 = vunpack.c.l.b16 %v11207
    %v11278 = vunpack.c.l.b16 %v11208
    %v11279 = vunpack.c.l.b16 %v11209
    %v11280 = vunpack.c.l.b16 %v11210
    %v11281 = vpack.c.b16 %v11250, %v11249
    %v11282 = vpack.c.b16 %v11252, %v11251
    %v11283 = vpack.c.b16 %v11254, %v11253
    %v11284 = vpack.c.b16 %v11256, %v11255
    %v11285 = vpack.c.b16 %v11258, %v11257
    %v11286 = vpack.c.b16 %v11260, %v11259
    %v11287 = vpack.c.b16 %v11262, %v11261
    %v11288 = vpack.c.b16 %v11264, %v11263
    %v11289 = vpack.c.b16 %v11266, %v11265
    %v11290 = vpack.c.b16 %v11268, %v11267
    %v11291 = vpack.c.b16 %v11270, %v11269
    %v11292 = vpack.c.b16 %v11272, %v11271
    %v11293 = vpack.c.b16 %v11274, %v11273
    %v11294 = vpack.c.b16 %v11276, %v11275
    %v11295 = vpack.c.b16 %v11278, %v11277
    %v11296 = vpack.c.b16 %v11280, %v11279
    %11313 = vmatpush.bf16.msra.mxu0 %v11288
    %11314 = vmatpush.bf16.msra.mxu0 %v11287
    %11315 = vmatpush.bf16.msra.mxu0 %v11286
    %11316 = vmatpush.bf16.msra.mxu0 %v11285
    %11317 = vmatpush.bf16.msra.mxu0 %v11284
    %11318 = vmatpush.bf16.msra.mxu0 %v11283
    %11319 = vmatpush.bf16.msra.mxu0 %v11282
    %11320 = vmatpush.bf16.msra.mxu0 %v11281
    %11321 = vmatmul.bf16.gmra.mxu0 %v11212
    %v11322 = vpop.f32.mrf.mxu0
    %v11323 = vadd.f32 %v11215, %v11322
    %v11324 = vpop.f32.mrf.mxu0
    %11325 = vdwg.mxu0
    %11326 = vmatpush.bf16.msra.mxu0 %v11296
    %11327 = vmatpush.bf16.msra.mxu0 %v11295
    %11328 = vmatpush.bf16.msra.mxu0 %v11294
    %11329 = vmatpush.bf16.msra.mxu0 %v11293
    %11330 = vmatpush.bf16.msra.mxu0 %v11292
    %11331 = vmatpush.bf16.msra.mxu0 %v11291
    %11332 = vmatpush.bf16.msra.mxu0 %v11290
    %11333 = vmatpush.bf16.msra.mxu0 %v11289
    %11334 = vmatmul.bf16.gmra.mxu0 %v11213
    %v11335 = vpop.f32.mrf.mxu0
    %v11336 = vadd.f32 %v11323, %v11335
    %v11337 = vpop.f32.mrf.mxu0
    %11338 = vdwg.mxu0
    %v11339 = vmul.f32 %v11336, 0.5
    %v11340 = vmul.f32 %v11336, 0.70710677
    %v11341 = vmul.f32 %v11340, %v11340
    %v11342 = vmin.f32 16.0, %v11341
    %v11343 = vmul.f32 %v11342, 2.1237322e-06
    %v11344 = vadd.f32 %v11343, 0.00028619796
    %v11345 = vmul.f32 %v11342, %v11344
    %v11346 = vadd.f32 %v11345, 0.0036580483
    %v11347 = vmul.f32 %v11342, %v11346
    %v11348 = vadd.f32 %v11347, 0.05243302
    %v11349 = vmul.f32 %v11342, %v11348
    %v11350 = vadd.f32 %v11349, 0.18741608
    %v11351 = vmul.f32 %v11342, %v11350
    %v11352 = vadd.f32 %v11351, 1.1283791
    %v11353 = vmul.f32 %v11340, %v11352
    %v11354 = vmul.f32 %v11342, 3.8918573e-05
    %v11355 = vadd.f32 %v11354, 0.001143296
    %v11356 = vmul.f32 %v11342, %v11355
    %v11357 = vadd.f32 %v11356, 0.014752088
    %v11358 = vmul.f32 %v11342, %v11357
    %v11359 = vadd.f32 %v11358, 0.112945676
    %v11360 = vmul.f32 %v11342, %v11359
    %v11361 = vadd.f32 %v11360, 0.4994258
    %v11362 = vmul.f32 %v11342, %v11361
    %v11363 = vadd.f32 %v11362, 1.0
    %v11364 = vrcp.pop %v11363
    %v11365 = vmul.f32 %v11363, %v11364
    %v11366 = vsub.f32 1.0, %v11365
    %v11367 = vmul.f32 %v11364, %v11366
    %v11368 = vadd.f32 %v11364, %v11367
    %vm11369 = vweird.f32 %v11363
    %vm11370 = vweird.f32 %v11364
    %vm11371 = vmor %vm11369, %vm11370
    %v11372 = vsel %vm11371, %v11364, %v11368
    %v11373 = vand.u32 2147483647, %v11363
    %vm11374 = vcmp.eq.f32.partialorder %v11373, 8.507059e+37
    %v11375 = vand.u32 %v11363, 2147483648
    %v11376 = vor.u32 1.1754944e-38, %v11375
    %v11377 = vsel %vm11374, %v11376, %v11372
    %v11378 = vmul.f32 %v11353, %v11377
    %v11379 = vmin.f32 %v11378, 1.0
    %v11380 = vmax.f32 %v11379, -1.0
    %v11381 = vadd.f32 %v11380, 1.0
    %v11382 = vmul.f32 %v11339, %v11381
    %v11383 = vld [vmem:[%s9] sm:$0xf]
    %v11384 = vld [vmem:[%s9 + $0x4] sm:$0xf]
    %v11385 = vld [vmem:[%s9 + $0x8] sm:$0xf]
    %v11386 = vld [vmem:[%s9 + $0xc] sm:$0xf]
    %v11387 = vld [vmem:[%s9 + $0x10] sm:$0xf]
    %v11388 = vld [vmem:[%s9 + $0x14] sm:$0xf]
    %v11389 = vld [vmem:[%s9 + $0x18] sm:$0xf]
    %v11390 = vld [vmem:[%s9 + $0x1c] sm:$0xf]
    %v11391 = vld [vmem:[%s9 + $0x20] sm:$0xf]
    %v11392 = vld [vmem:[%s9 + $0x24] sm:$0xf]
    %v11393 = vld [vmem:[%s9 + $0x28] sm:$0xf]
    %v11394 = vld [vmem:[%s9 + $0x2c] sm:$0xf]
    %v11395 = vld [vmem:[%s9 + $0x30] sm:$0xf]
    %v11396 = vld [vmem:[%s9 + $0x34] sm:$0xf]
    %v11397 = vld [vmem:[%s9 + $0x38] sm:$0xf]
    %v11398 = vld [vmem:[%s9 + $0x3c] sm:$0xf]
    %v11399 = vld [vmem:[#allocation16] sm:$0x1]
    %v11400 = vpack.c.bf16 %v11382, %v11382
    %v11402 = vperm.slane %v11399, 0
    %v11420 = vunpack.c.l.b16 %v11383
    %v11421 = vunpack.c.l.b16 %v11384
    %v11422 = vunpack.c.l.b16 %v11385
    %v11423 = vunpack.c.l.b16 %v11386
    %v11424 = vunpack.c.l.b16 %v11387
    %v11425 = vunpack.c.l.b16 %v11388
    %v11426 = vunpack.c.l.b16 %v11389
    %v11427 = vunpack.c.l.b16 %v11390
    %v11428 = vunpack.c.l.b16 %v11391
    %v11429 = vunpack.c.l.b16 %v11392
    %v11430 = vunpack.c.l.b16 %v11393
    %v11431 = vunpack.c.l.b16 %v11394
    %v11432 = vunpack.c.l.b16 %v11395
    %v11433 = vunpack.c.l.b16 %v11396
    %v11434 = vunpack.c.l.b16 %v11397
    %v11435 = vunpack.c.l.b16 %v11398
    %v11436 = vpack.c.b16 %v11421, %v11420
    %v11437 = vpack.c.b16 %v11423, %v11422
    %v11438 = vpack.c.b16 %v11425, %v11424
    %v11439 = vpack.c.b16 %v11427, %v11426
    %v11440 = vpack.c.b16 %v11429, %v11428
    %v11441 = vpack.c.b16 %v11431, %v11430
    %v11442 = vpack.c.b16 %v11433, %v11432
    %v11443 = vpack.c.b16 %v11435, %v11434
    %11452 = vmatpush.bf16.msra.mxu0 %v11443
    %11453 = vmatpush.bf16.msra.mxu0 %v11442
    %11454 = vmatpush.bf16.msra.mxu0 %v11441
    %11455 = vmatpush.bf16.msra.mxu0 %v11440
    %11456 = vmatpush.bf16.msra.mxu0 %v11439
    %11457 = vmatpush.bf16.msra.mxu0 %v11438
    %11458 = vmatpush.bf16.msra.mxu0 %v11437
    %11459 = vmatpush.bf16.msra.mxu0 %v11436
    %11460 = vmatmul.bf16.gmra.mxu0 %v11400
    %v11461 = vpop.f32.mrf.mxu0
    %v11462 = vadd.f32 %v11402, %v11461
    %v11463 = vpop.f32.mrf.mxu0
    %11464 = vdwg.mxu0
    %v11465 = vmul.f32 %v11462, 0.5
    %v11466 = vmul.f32 %v11462, 0.70710677
    %v11467 = vmul.f32 %v11466, %v11466
    %v11468 = vmin.f32 16.0, %v11467
    %v11469 = vmul.f32 %v11468, 2.1237322e-06
    %v11470 = vadd.f32 %v11469, 0.00028619796
    %v11471 = vmul.f32 %v11468, %v11470
    %v11472 = vadd.f32 %v11471, 0.0036580483
    %v11473 = vmul.f32 %v11468, %v11472
    %v11474 = vadd.f32 %v11473, 0.05243302
    %v11475 = vmul.f32 %v11468, %v11474
    %v11476 = vadd.f32 %v11475, 0.18741608
    %v11477 = vmul.f32 %v11468, %v11476
    %v11478 = vadd.f32 %v11477, 1.1283791
    %v11479 = vmul.f32 %v11466, %v11478
    %v11480 = vmul.f32 %v11468, 3.8918573e-05
    %v11481 = vadd.f32 %v11480, 0.001143296
    %v11482 = vmul.f32 %v11468, %v11481
    %v11483 = vadd.f32 %v11482, 0.014752088
    %v11484 = vmul.f32 %v11468, %v11483
    %v11485 = vadd.f32 %v11484, 0.112945676
    %v11486 = vmul.f32 %v11468, %v11485
    %v11487 = vadd.f32 %v11486, 0.4994258
    %v11488 = vmul.f32 %v11468, %v11487
    %v11489 = vadd.f32 %v11488, 1.0
    %v11490 = vrcp.pop %v11489
    %v11491 = vmul.f32 %v11489, %v11490
    %v11492 = vsub.f32 1.0, %v11491
    %v11493 = vmul.f32 %v11490, %v11492
    %v11494 = vadd.f32 %v11490, %v11493
    %vm11495 = vweird.f32 %v11489
    %vm11496 = vweird.f32 %v11490
    %vm11497 = vmor %vm11495, %vm11496
    %v11498 = vsel %vm11497, %v11490, %v11494
    %v11499 = vand.u32 2147483647, %v11489
    %vm11500 = vcmp.eq.f32.partialorder %v11499, 8.507059e+37
    %v11501 = vand.u32 %v11489, 2147483648
    %v11502 = vor.u32 1.1754944e-38, %v11501
    %v11503 = vsel %vm11500, %v11502, %v11498
    %v11504 = vmul.f32 %v11479, %v11503
    %v11505 = vmin.f32 %v11504, 1.0
    %v11506 = vmax.f32 %v11505, -1.0
    %v11507 = vadd.f32 %v11506, 1.0
    %v11508 = vmul.f32 %v11465, %v11507
    %v11509 = vld [vmem:[%s11] sm:$0xf]
    %v11510 = vld [vmem:[%s11 + $0x4] sm:$0xf]
    %v11511 = vld [vmem:[%s11 + $0x8] sm:$0xf]
    %v11512 = vld [vmem:[%s11 + $0xc] sm:$0xf]
    %v11513 = vld [vmem:[#allocation18] sm:$0x1]
    %v11514 = vpack.c.bf16 %v11508, %v11508
    %v11516 = vperm.slane %v11513, 0
    %v11522 = vunpack.c.l.b16 %v11509
    %v11523 = vunpack.c.l.b16 %v11510
    %v11524 = vunpack.c.l.b16 %v11511
    %v11525 = vunpack.c.l.b16 %v11512
    %v11526 = vpack.c.b16 %v11523, %v11522
    %v11527 = vpack.c.b16 %v11525, %v11524
    %vm11530 = vcmask 261120
    %v11532 = vsel %vm11530, %v11514, 0
    %11534 = vmatpush.bf16.msra.mxu0 0
    %11535 = vmatpush.bf16.msra.mxu0 0
    %11536 = vmatpush.bf16.msra.mxu0 0
    %11537 = vmatpush.bf16.msra.mxu0 0
    %11538 = vmatpush.bf16.msra.mxu0 0
    %11539 = vmatpush.bf16.msra.mxu0 0
    %11540 = vmatpush.bf16.msra.mxu0 %v11527
    %11541 = vmatpush.bf16.msra.mxu0 %v11526
    %11542 = vmatmul.bf16.gmra.mxu0 %v11532
    %v11543 = vpop.f32.mrf.mxu0
    %v11544 = vadd.f32 %v11516, %v11543
    %v11545 = vpop.f32.mrf.mxu0
    %11546 = vdwg.mxu0
    %v11547 = vmul.f32 %v11544, 0.5
    %v11548 = vmul.f32 %v11544, 0.70710677
    %v11549 = vmul.f32 %v11548, %v11548
    %v11550 = vmin.f32 16.0, %v11549
    %v11551 = vmul.f32 %v11550, 2.1237322e-06
    %v11552 = vadd.f32 %v11551, 0.00028619796
    %v11553 = vmul.f32 %v11550, %v11552
    %v11554 = vadd.f32 %v11553, 0.0036580483
    %v11555 = vmul.f32 %v11550, %v11554
    %v11556 = vadd.f32 %v11555, 0.05243302
    %v11557 = vmul.f32 %v11550, %v11556
    %v11558 = vadd.f32 %v11557, 0.18741608
    %v11559 = vmul.f32 %v11550, %v11558
    %v11560 = vadd.f32 %v11559, 1.1283791
    %v11561 = vmul.f32 %v11548, %v11560
    %v11562 = vmul.f32 %v11550, 3.8918573e-05
    %v11563 = vadd.f32 %v11562, 0.001143296
    %v11564 = vmul.f32 %v11550, %v11563
    %v11565 = vadd.f32 %v11564, 0.014752088
    %v11566 = vmul.f32 %v11550, %v11565
    %v11567 = vadd.f32 %v11566, 0.112945676
    %v11568 = vmul.f32 %v11550, %v11567
    %v11569 = vadd.f32 %v11568, 0.4994258
    %v11570 = vmul.f32 %v11550, %v11569
    %v11571 = vadd.f32 %v11570, 1.0
    %v11572 = vrcp.pop %v11571
    %v11573 = vmul.f32 %v11571, %v11572
    %v11574 = vsub.f32 1.0, %v11573
    %v11575 = vmul.f32 %v11572, %v11574
    %v11576 = vadd.f32 %v11572, %v11575
    %vm11577 = vweird.f32 %v11571
    %vm11578 = vweird.f32 %v11572
    %vm11579 = vmor %vm11577, %vm11578
    %v11580 = vsel %vm11579, %v11572, %v11576
    %v11581 = vand.u32 2147483647, %v11571
    %vm11582 = vcmp.eq.f32.partialorder %v11581, 8.507059e+37
    %v11583 = vand.u32 %v11571, 2147483648
    %v11584 = vor.u32 1.1754944e-38, %v11583
    %v11585 = vsel %vm11582, %v11584, %v11580
    %v11586 = vmul.f32 %v11561, %v11585
    %v11587 = vmin.f32 %v11586, 1.0
    %v11588 = vmax.f32 %v11587, -1.0
    %v11589 = vadd.f32 %v11588, 1.0
    %v11590 = vmul.f32 %v11547, %v11589
    %v11591 = vld [vmem:[#allocation19] sm:$0xff]
    %v11592 = vld [vmem:[#allocation19 + $0x8] sm:$0xff]
    %v11593 = vld [vmem:[#allocation21] sm:$0x1]
    %v11595 = vperm.slane %v11593, 0
    %vm11597 = vcmask 130048
    %v11599 = vsel %vm11597, %v11590, 0
    %11601 = vmatpush.msra.mxu0 0.0
    %11602 = vmatpush.msra.mxu0 0.0
    %11603 = vmatpush.msra.mxu0 0.0
    %11604 = vmatpush.msra.mxu0 0.0
    %11605 = vmatpush.msra.mxu0 0.0
    %11606 = vmatpush.msra.mxu0 0.0
    %11607 = vmatpush.msra.mxu0 0.0
    %11608 = vmatpush.msra.mxu0 0.0
    %11609 = vmatpush.msra.mxu0 0.0
    %11610 = vmatpush.msra.mxu0 0.0
    %11611 = vmatpush.msra.mxu0 0.0
    %11612 = vmatpush.msra.mxu0 0.0
    %11613 = vmatpush.msra.mxu0 0.0
    %11614 = vmatpush.msra.mxu0 0.0
    %11615 = vmatpush.msra.mxu0 %v11592
    %11616 = vmatpush.msra.mxu0 %v11591
    %11617 = vmatmul.f32.gmra.mxu0 %v11599
    %v11618 = vpop.f32.mrf.mxu0
    %v11619 = vadd.f32 %v11595, %v11618
    %11620 = vdwg.mxu0
    %11621 = vst [vmem:[%s15] sm:$0xff] %v11619
    // Predicated region
    $region114: #{geo_predictor.1} parent=1 // pred_check
      _
    $region115: #{geo_predictor.1} parent=1 // pred_check_branch
      %11623 = sbr.rel (0) target = $region117
    $region116: #{geo_predictor.1} parent=1 // pred_region
      _
    $region117: #{geo_predictor.1} parent=1 // pred_fallthru
      _
    // Predicated region
    $region118: #{geo_predictor.1} parent=1 // pred_check
      _
    $region119: #{geo_predictor.1} parent=1 // pred_check_branch
      %11625 = sbr.rel (0) target = $region121
    $region120: #{geo_predictor.1} parent=1 // pred_region
      _
    $region121: #{geo_predictor.1} parent=1 // pred_fallthru
      _
    %11626 = vsyncpa [#allocation3], 1
    %11627 = vsyncpa [#allocation5], 1
    %11628 = vsyncpa [#allocation8], 1
    %11629 = vsyncpa [#allocation11], 1
    %11630 = vsyncpa [#allocation14], 1
    %11631 = vsyncpa [#allocation17], 1
    %11632 = vsyncpa [#allocation20], 1

</llo_original>
